<compile_context>
chip_gen: v7x
topology: tpu7x:2x2x1
jax: 0.10.0
libtpu: 0.0.40
codegen_flags: <defaults>
</compile_context>

<pallas_src>
import functools

import jax
import jax.numpy as jnp
from jax.experimental import pallas as pl
from jax.experimental.pallas import tpu as pltpu


def _rup(x, m):
    return ((x + m - 1) // m) * m


# -----------------------------------------------------------------------------
# Tiled matmul: o = (A * scale + shift) @ B + bias   (scale/shift/bias optional)
# B is pre-padded (columns % 128 == 0) and pre-cast to bf16 at init; A is cast
# to bf16 in-kernel; f32 accumulation.  Every layer here has K <= 512, so the
# whole K fits in a single block: no K-loop and no accumulator scratch.
# -----------------------------------------------------------------------------
def _mm_kernel(*refs, has_prologue, has_bias):
    i = 0
    a_ref = refs[i]; i += 1
    b_ref = refs[i]; i += 1
    if has_prologue:
        scale_ref, shift_ref = refs[i], refs[i + 1]; i += 2
    if has_bias:
        bias_ref = refs[i]; i += 1
    o_ref = refs[i]

    if has_prologue:
        a = a_ref[...].astype(jnp.float32) * scale_ref[...] + shift_ref[...]
        a = a.astype(jnp.bfloat16)
    else:
        a = a_ref[...].astype(jnp.bfloat16)
    acc = jnp.dot(a, b_ref[...], preferred_element_type=jnp.float32)
    if has_bias:
        acc = acc + bias_ref[...]
    o_ref[...] = acc.astype(o_ref.dtype)


def matmul(a, b, bias=None, a_scale=None, a_shift=None, out_dtype=jnp.float32):
    M, K = a.shape
    Kb, N = b.shape
    assert K == Kb and N % 128 == 0
    tm = min(256, _rup(M, 8))
    Mp = _rup(M, tm)
    tn = 128
    for cand in (1024, 512, 256):
        if N % cand == 0:
            tn = cand
            break
    a_p = a if Mp == M else jnp.pad(a, ((0, Mp - M), (0, 0)))

    has_prologue = a_scale is not None
    has_bias = bias is not None
    in_specs = [pl.BlockSpec((tm, K), lambda i, j: (i, 0)),
                pl.BlockSpec((K, tn), lambda i, j: (0, j))]
    operands = [a_p, b]
    if has_prologue:
        in_specs += [pl.BlockSpec((1, K), lambda i, j: (0, 0)),
                     pl.BlockSpec((1, K), lambda i, j: (0, 0))]
        operands += [a_scale, a_shift]
    if has_bias:
        in_specs.append(pl.BlockSpec((1, tn), lambda i, j: (0, j)))
        operands.append(bias)

    out = pl.pallas_call(
        functools.partial(_mm_kernel, has_prologue=has_prologue,
                          has_bias=has_bias),
        out_shape=jax.ShapeDtypeStruct((Mp, N), out_dtype),
        grid=(Mp // tm, N // tn),
        in_specs=in_specs,
        out_specs=pl.BlockSpec((tm, tn), lambda i, j: (i, j)),
        compiler_params=pltpu.CompilerParams(
            dimension_semantics=("parallel", "parallel")),
    )(*operands)
    return out if Mp == M else out[:M]


# -----------------------------------------------------------------------------
# BatchNorm (training-mode batch stats): one tiled reduction kernel that emits
# per-channel scale = gamma*rsqrt(var+eps) and shift = beta - mean*scale.
# Channel-chunk axis is "parallel" (uses both v7x TensorCores), row axis last.
# -----------------------------------------------------------------------------
def _bn_stats_kernel(x_ref, g_ref, b_ref, scale_ref, shift_ref,
                     sum_ref, sq_ref, *, inv_count, eps):
    @pl.when(pl.program_id(1) == 0)
    def _():
        sum_ref[...] = jnp.zeros_like(sum_ref)
        sq_ref[...] = jnp.zeros_like(sq_ref)

    x = x_ref[...].astype(jnp.float32)
    sum_ref[...] += jnp.sum(x, axis=0, keepdims=True)
    sq_ref[...] += jnp.sum(x * x, axis=0, keepdims=True)

    @pl.when(pl.program_id(1) == pl.num_programs(1) - 1)
    def _():
        mean = sum_ref[...] * inv_count
        var = sq_ref[...] * inv_count - mean * mean       # biased (train mode)
        scale = g_ref[...] * jax.lax.rsqrt(var + eps)
        scale_ref[...] = scale
        shift_ref[...] = b_ref[...] - mean * scale


def bn_scale_shift(x2d, gamma, beta, eps=1e-5):
    """x2d: (rows, C) with rows over (n, h, w).  Returns (1, C) scale, shift."""
    M, C = x2d.shape
    cc = 256 if C % 256 == 0 else C
    tm = min(512, _rup(M, 8))
    Mp = _rup(M, tm)
    x_p = x2d if Mp == M else jnp.pad(x2d, ((0, Mp - M), (0, 0)))
    return pl.pallas_call(
        functools.partial(_bn_stats_kernel, inv_count=1.0 / M, eps=eps),
        out_shape=(jax.ShapeDtypeStruct((1, C), jnp.float32),
                   jax.ShapeDtypeStruct((1, C), jnp.float32)),
        grid=(C // cc, Mp // tm),
        in_specs=[pl.BlockSpec((tm, cc), lambda c, r: (r, c)),
                  pl.BlockSpec((1, cc), lambda c, r: (0, c)),
                  pl.BlockSpec((1, cc), lambda c, r: (0, c))],
        out_specs=(pl.BlockSpec((1, cc), lambda c, r: (0, c)),
                   pl.BlockSpec((1, cc), lambda c, r: (0, c))),
        scratch_shapes=[pltpu.VMEM((1, cc), jnp.float32),
                        pltpu.VMEM((1, cc), jnp.float32)],
        compiler_params=pltpu.CompilerParams(
            dimension_semantics=("parallel", "arbitrary")),
    )(x_p, gamma, beta)


# -----------------------------------------------------------------------------
# col2im for ConvTranspose2d(k=4, s=2, p=1) in sub-pixel form.
# The matmul produces z[(n,ih,iw), 16*Cout] with columns ordered (kh, kw, c).
# out[n, 2q+p, 2s+t, c] = sum_{khd,kwd} z[n, q+p-khd, s+t-kwd, 2khd+1-p, 2kwd+1-t, c]
# The kernel writes the (n, q, p, s, t*C+c) layout, which reshapes for free
# (row-major) to NHWC (n, 2H, 2W, C).
# -----------------------------------------------------------------------------
def _shift_plane(src, dh, dw, H, W):
    """src: (H*W, C).  out[q*W+s] = src[(q+dh)*W+(s+dw)] if inside [0,H)x[0,W) else 0."""
    HW, C = src.shape
    off = dh * W + dw
    if off > 0:
        shifted = jnp.concatenate(
            [src[off:], jnp.zeros((off, C), src.dtype)], axis=0)
    elif off < 0:
        shifted = jnp.concatenate(
            [jnp.zeros((-off, C), src.dtype), src[:HW + off]], axis=0)
    else:
        shifted = src
    conds = []
    if dh != 0 or dw != 0:
        m = jax.lax.broadcasted_iota(jnp.int32, (HW, 1), 0)
        if dh > 0:
            conds.append(m < (H - dh) * W)
        elif dh < 0:
            conds.append(m >= (-dh) * W)
        if dw > 0:
            conds.append((m % W) < (W - dw))
        elif dw < 0:
            conds.append((m % W) >= (-dw))
    if not conds:
        return shifted
    valid = conds[0]
    for c in conds[1:]:
        valid = jnp.logical_and(valid, c)
    return jnp.where(valid, shifted, jnp.zeros_like(shifted))


def _col2im_emit(get_plane, o_ref, H, W, C, activation):
    for p in range(2):
        for t in range(2):
            acc = None
            for khd in range(2):
                for kwd in range(2):
                    kh = 2 * khd + 1 - p
                    kw = 2 * kwd + 1 - t
                    contrib = _shift_plane(get_plane(4 * kh + kw),
                                           p - khd, t - kwd, H, W)
                    acc = contrib if acc is None else acc + contrib
            if activation is not None:
                acc = activation(acc)
            o_ref[0, :, p, :, t * C:(t + 1) * C] = (
                acc.reshape(H, W, C).astype(o_ref.dtype))


def _col2im_kernel(z_ref, o_ref, *, H, W, C, activation):
    _col2im_emit(lambda k: z_ref[0, :, k * C:(k + 1) * C].astype(jnp.float32),
                 o_ref, H, W, C, activation)


def col2im_k4s2p1(z, *, H, W, C, activation=None, out_dtype=jnp.float32):
    """z: (N, H*W, 16*C) -> (N, H, 2, W, 2*C) (free reshape to (N, 2H, 2W, C))."""
    N = z.shape[0]
    return pl.pallas_call(
        functools.partial(_col2im_kernel, H=H, W=W, C=C, activation=activation),
        out_shape=jax.ShapeDtypeStruct((N, H, 2, W, 2 * C), out_dtype),
        grid=(N,),
        in_specs=[pl.BlockSpec((1, H * W, 16 * C), lambda n: (n, 0, 0))],
        out_specs=pl.BlockSpec((1, H, 2, W, 2 * C),
                               lambda n: (n, 0, 0, 0, 0)),
        compiler_params=pltpu.CompilerParams(
            dimension_semantics=("parallel",)),
    )(z)


# -----------------------------------------------------------------------------
# Fully fused final stage: BN apply + LeakyReLU + ConvT(4,2,1) matmul + col2im
# + tanh, gridded over batch.  Used for the small 512 -> out_channels layer so
# its 16*coutp = 128-column dot never round-trips HBM and no padded-N slice
# pass is needed.
# -----------------------------------------------------------------------------
def _convt_fused_kernel(a_ref, scale_ref, shift_ref, b_ref, o_ref, *,
                        H, W, C, slope, activation):
    a = a_ref[0].astype(jnp.float32) * scale_ref[...] + shift_ref[...]
    if slope is not None:
        a = jnp.where(a >= 0, a, slope * a)
    z = jnp.dot(a.astype(jnp.bfloat16), b_ref[...],
                preferred_element_type=jnp.float32)          # (H*W, 16*C)
    _col2im_emit(lambda k: z[:, k * C:(k + 1) * C], o_ref, H, W, C, activation)


def convt_fused_k4s2p1(a, scale, shift, w, *, H, W, C, slope=None,
                       activation=None, out_dtype=jnp.float32):
    """a: (N, H*W, Cin); w: (Cin, 16*C) bf16 -> (N, H, 2, W, 2*C)."""
    N, HW, Cin = a.shape
    return pl.pallas_call(
        functools.partial(_convt_fused_kernel, H=H, W=W, C=C, slope=slope,
                          activation=activation),
        out_shape=jax.ShapeDtypeStruct((N, H, 2, W, 2 * C), out_dtype),
        grid=(N,),
        in_specs=[pl.BlockSpec((1, HW, Cin), lambda n: (n, 0, 0)),
                  pl.BlockSpec((1, Cin), lambda n: (0, 0)),
                  pl.BlockSpec((1, Cin), lambda n: (0, 0)),
                  pl.BlockSpec((Cin, 16 * C), lambda n: (0, 0))],
        out_specs=pl.BlockSpec((1, H, 2, W, 2 * C),
                               lambda n: (n, 0, 0, 0, 0)),
        compiler_params=pltpu.CompilerParams(
            dimension_semantics=("parallel",)),
    )(a, scale, shift, w)


# --------------------------- full Generator forward ---------------------------
def generator_forward(x, params, g_mid_img_s, out_channels):
    s = g_mid_img_s
    N = x.shape[0]
    C1, C2 = 128, 512
    coutp = params["wm2"].shape[1] // 16

    # Linear (columns pre-permuted at init so the output is channel-last).
    h = matmul(x, params["w1_cl"], bias=params["b1_cl"])          # (N, s*s*128)
    h = h.reshape(N * s * s, C1)

    # BatchNorm2d(128): batch stats -> per-channel scale/shift.
    sc1, sh1 = bn_scale_shift(h, params["bn1_g"], params["bn1_b"])

    # ConvTranspose2d(128 -> 512): BN1 apply fused as the matmul prologue,
    # bf16 hand-off, then one per-batch col2im kernel.
    z1 = matmul(h, params["wm1"], a_scale=sc1, a_shift=sh1,
                out_dtype=jnp.bfloat16)                           # (N*s*s, 16*512)
    c1 = col2im_k4s2p1(z1.reshape(N, s * s, 16 * C2), H=s, W=s, C=C2,
                       out_dtype=jnp.bfloat16)                    # (N, s, 2, s, 1024)
    OH, OW = 2 * s, 2 * s

    # BatchNorm2d(512): batch stats -> scale/shift.
    sc2, sh2 = bn_scale_shift(c1.reshape(N * OH * OW, C2),
                              params["bn2_g"], params["bn2_b"])

    # BN2 + LeakyReLU(0.2) + ConvTranspose2d(512 -> out) + col2im + Tanh.
    y = convt_fused_k4s2p1(c1.reshape(N, OH * OW, C2), sc2, sh2, params["wm2"],
                           H=OH, W=OW, C=coutp, slope=0.2,
                           activation=jnp.tanh)                   # (N, OH, 2, OW, 2*coutp)

    # Free reshape to NHWC; tiny channel un-pad + NCHW transpose at the module
    # boundary (negligible: N*4s*4s*out_channels elements).
    y = y.reshape(N, 2 * OH, 2 * OW, coutp)[..., :out_channels]
    return y.transpose(0, 3, 1, 2)


# ---------------- params: torch layout + one-time re-layout -------------------
def init_torch_params(key, noise_size, g_mid_img_s, out_channels):
    s = g_mid_img_s
    k1, k2, k3 = jax.random.split(key, 3)
    return {
        "w1": 0.02 * jax.random.normal(k1, (128 * s * s, noise_size), jnp.float32),
        "b1": jnp.zeros((128 * s * s,), jnp.float32),
        "bn1_g": jnp.ones((128,), jnp.float32),
        "bn1_b": jnp.zeros((128,), jnp.float32),
        "bn2_g": jnp.ones((512,), jnp.float32),
        "bn2_b": jnp.zeros((512,), jnp.float32),
        # ConvTranspose2d weights: (Cin, Cout, kH, kW)
        "wt1": 0.02 * jax.random.normal(k2, (128, 512, 4, 4), jnp.float32),
        "wt2": 0.02 * jax.random.normal(k3, (512, out_channels, 4, 4), jnp.float32),
    }


def prepare_params(p, g_mid_img_s, out_channels):
    """One-time weight re-layout + pad + bf16 cast (never per forward call)."""
    s = g_mid_img_s
    # Linear: (out,in) -> (in,out); permute columns so a row-major reshape of
    # the Linear output is channel-last (n, h, w, c).
    j = jnp.arange(128 * s * s)
    perm = (j % 128) * (s * s) + (j // 128)
    w1_cl = p["w1"].T[:, perm].astype(jnp.bfloat16)
    b1_cl = p["b1"][perm].reshape(1, -1).astype(jnp.float32)
    # ConvTranspose weights (Cin, Cout, kh, kw) -> (Cin, 16*Cout), columns
    # ordered (kh, kw, cout).  The final layer's cout is padded to a multiple
    # of 8 so 16*coutp = 128 lane-aligned columns (no per-forward pad/slice).
    wm1 = jnp.transpose(p["wt1"], (0, 2, 3, 1)).reshape(128, -1).astype(jnp.bfloat16)
    coutp = _rup(out_channels, 8)
    wt2p = jnp.pad(p["wt2"], ((0, 0), (0, coutp - out_channels), (0, 0), (0, 0)))
    wm2 = jnp.transpose(wt2p, (0, 2, 3, 1)).reshape(512, 16 * coutp).astype(jnp.bfloat16)
    return {
        "w1_cl": w1_cl, "b1_cl": b1_cl,
        "bn1_g": p["bn1_g"].reshape(1, 128), "bn1_b": p["bn1_b"].reshape(1, 128),
        "bn2_g": p["bn2_g"].reshape(1, 512), "bn2_b": p["bn2_b"].reshape(1, 512),
        "wm1": wm1, "wm2": wm2,
    }


if __name__ == "__main__":
    noise_size = 32
    g_mid_img_s = 4          # mid image 4x4 -> output 16x16
    greyscale = False
    out_channels = 1 if greyscale else 3
    batch = 2

    key = jax.random.PRNGKey(0)
    kp, kx = jax.random.split(key)
    params = prepare_params(
        init_torch_params(kp, noise_size, g_mid_img_s, out_channels),
        g_mid_img_s, out_channels)
    x = jax.random.normal(kx, (batch, noise_size), jnp.float32)

    fwd = jax.jit(functools.partial(generator_forward,
                                    g_mid_img_s=g_mid_img_s,
                                    out_channels=out_channels))
    y = fwd(x, params)
    jax.block_until_ready(y)

    assert y.shape == (batch, out_channels, 4 * g_mid_img_s, 4 * g_mid_img_s), y.shape
    assert bool(jnp.all(jnp.isfinite(y)))
    assert bool(jnp.all(jnp.abs(y) <= 1.0 + 1e-6))   # tanh output range
    print("KERNEL_OK")
</pallas_src>

<mosaic_0001>
module attributes {stable_mosaic.version = 11 : i64} {
  func.func @_mm_kernel(%arg0: i32, %arg1: i32, %arg2: memref<8x32xf32, #tpu.memory_space<vmem>>, %arg3: memref<32x1024xbf16, #tpu.memory_space<vmem>>, %arg4: memref<1x1024xf32, #tpu.memory_space<vmem>>, %arg5: memref<8x1024xf32, #tpu.memory_space<vmem>>) attributes {dimension_semantics = [#tpu.dimension_semantics<parallel>, #tpu.dimension_semantics<parallel>], iteration_bounds = array<i64: 1, 2>, scalar_prefetch = 0 : i64, scratch_operands = 0 : i64, tpu.core_type = #tpu.core_type<tc>, window_params = [{transform_indices = @transform_0, window_bounds = array<i64: 8, 32>}, {transform_indices = @transform_1, window_bounds = array<i64: 32, 1024>}, {transform_indices = @transform_2, window_bounds = array<i64: 1, 1024>}, {transform_indices = @transform_3, window_bounds = array<i64: 8, 1024>}]} {
    %c0 = arith.constant 0 : index
    %c0_0 = arith.constant 0 : index
    %0 = vector.load %arg2[%c0, %c0_0] : memref<8x32xf32, #tpu.memory_space<vmem>>, vector<8x32xf32>
    %1 = arith.truncf %0 : vector<8x32xf32> to vector<8x32xbf16>
    %c0_1 = arith.constant 0 : index
    %c0_2 = arith.constant 0 : index
    %2 = vector.load %arg3[%c0_1, %c0_2] : memref<32x1024xbf16, #tpu.memory_space<vmem>>, vector<32x1024xbf16>
    %cst = arith.constant dense<0.000000e+00> : vector<8x1024xf32>
    %3 = tpu.matmul %1, %2, %cst {dimension_numbers = #tpu.dot_dimension_numbers<[1], [0], [0], [1], [0, 0, 1, 1], [], []>} : vector<8x32xbf16>, vector<32x1024xbf16>, vector<8x1024xf32> -> vector<8x1024xf32>
    %c0_3 = arith.constant 0 : index
    %c0_4 = arith.constant 0 : index
    %4 = vector.load %arg4[%c0_3, %c0_4] : memref<1x1024xf32, #tpu.memory_space<vmem>>, vector<1x1024xf32>
    %5 = vector.broadcast %4 : vector<1x1024xf32> to vector<8x1024xf32>
    %6 = arith.addf %3, %5 : vector<8x1024xf32>
    %c0_5 = arith.constant 0 : index
    %c0_6 = arith.constant 0 : index
    %7 = vector.load %arg5[%c0_5, %c0_6] : memref<8x1024xf32, #tpu.memory_space<vmem>>, vector<8x1024xf32>
    tpu.vector_store %arg5[%c0_5, %c0_6], %6 {strides = array<i32>} : memref<8x1024xf32, #tpu.memory_space<vmem>>, vector<8x1024xf32>,
    return
  }
  func.func @transform_0(%arg0: i32, %arg1: i32) -> (i32, i32) {
    %c0_i32 = arith.constant 0 : i32
    %c0_i32_0 = arith.constant 0 : i32
    return %arg0, %c0_i32 : i32, i32
  }
  func.func @transform_1(%arg0: i32, %arg1: i32) -> (i32, i32) {
    %c0_i32 = arith.constant 0 : i32
    %c0_i32_0 = arith.constant 0 : i32
    return %c0_i32, %arg1 : i32, i32
  }
  func.func @transform_2(%arg0: i32, %arg1: i32) -> (i32, i32) {
    %c0_i32 = arith.constant 0 : i32
    %c0_i32_0 = arith.constant 0 : i32
    return %c0_i32, %arg1 : i32, i32
  }
  func.func @transform_3(%arg0: i32, %arg1: i32) -> (i32, i32) {
    %c0_i32 = arith.constant 0 : i32
    return %arg0, %arg1 : i32, i32
  }
}

module attributes {stable_mosaic.version = 11 : i64} {
  func.func @_mm_kernel(%arg0: i32, %arg1: i32, %arg2: memref<32x128xf32, #tpu.memory_space<vmem>>, %arg3: memref<128x1024xbf16, #tpu.memory_space<vmem>>, %arg4: memref<1x128xf32, #tpu.memory_space<vmem>>, %arg5: memref<1x128xf32, #tpu.memory_space<vmem>>, %arg6: memref<32x1024xbf16, #tpu.memory_space<vmem>>) attributes {dimension_semantics = [#tpu.dimension_semantics<parallel>, #tpu.dimension_semantics<parallel>], iteration_bounds = array<i64: 1, 8>, scalar_prefetch = 0 : i64, scratch_operands = 0 : i64, tpu.core_type = #tpu.core_type<tc>, window_params = [{transform_indices = @transform_0, window_bounds = array<i64: 32, 128>}, {transform_indices = @transform_1, window_bounds = array<i64: 128, 1024>}, {pipeline_mode = #tpu.pipeline_mode<synchronous>, transform_indices = @transform_2, window_bounds = array<i64: 1, 128>}, {pipeline_mode = #tpu.pipeline_mode<synchronous>, transform_indices = @transform_3, window_bounds = array<i64: 1, 128>}, {transform_indices = @transform_4, window_bounds = array<i64: 32, 1024>}]} {
    %c0 = arith.constant 0 : index
    %c0_0 = arith.constant 0 : index
    %0 = vector.load %arg2[%c0, %c0_0] : memref<32x128xf32, #tpu.memory_space<vmem>>, vector<32x128xf32>
    %c0_1 = arith.constant 0 : index
    %c0_2 = arith.constant 0 : index
    %1 = vector.load %arg4[%c0_1, %c0_2] : memref<1x128xf32, #tpu.memory_space<vmem>>, vector<1x128xf32>
    %2 = vector.broadcast %1 : vector<1x128xf32> to vector<32x128xf32>
    %3 = arith.mulf %0, %2 : vector<32x128xf32>
    %c0_3 = arith.constant 0 : index
    %c0_4 = arith.constant 0 : index
    %4 = vector.load %arg5[%c0_3, %c0_4] : memref<1x128xf32, #tpu.memory_space<vmem>>, vector<1x128xf32>
    %5 = vector.broadcast %4 : vector<1x128xf32> to vector<32x128xf32>
    %6 = arith.addf %3, %5 : vector<32x128xf32>
    %7 = arith.truncf %6 : vector<32x128xf32> to vector<32x128xbf16>
    %c0_5 = arith.constant 0 : index
    %c0_6 = arith.constant 0 : index
    %8 = vector.load %arg3[%c0_5, %c0_6] : memref<128x1024xbf16, #tpu.memory_space<vmem>>, vector<128x1024xbf16>
    %cst = arith.constant dense<0.000000e+00> : vector<32x1024xf32>
    %9 = tpu.matmul %7, %8, %cst {dimension_numbers = #tpu.dot_dimension_numbers<[1], [0], [0], [1], [0, 0, 1, 1], [], []>} : vector<32x128xbf16>, vector<128x1024xbf16>, vector<32x1024xf32> -> vector<32x1024xf32>
    %10 = arith.truncf %9 : vector<32x1024xf32> to vector<32x1024xbf16>
    %c0_7 = arith.constant 0 : index
    %c0_8 = arith.constant 0 : index
    %11 = vector.load %arg6[%c0_7, %c0_8] : memref<32x1024xbf16, #tpu.memory_space<vmem>>, vector<32x1024xbf16>
    tpu.vector_store %arg6[%c0_7, %c0_8], %10 {strides = array<i32>} : memref<32x1024xbf16, #tpu.memory_space<vmem>>, vector<32x1024xbf16>,
    return
  }
  func.func @transform_0(%arg0: i32, %arg1: i32) -> (i32, i32) {
    %c0_i32 = arith.constant 0 : i32
    %c0_i32_0 = arith.constant 0 : i32
    return %arg0, %c0_i32 : i32, i32
  }
  func.func @transform_1(%arg0: i32, %arg1: i32) -> (i32, i32) {
    %c0_i32 = arith.constant 0 : i32
    %c0_i32_0 = arith.constant 0 : i32
    return %c0_i32, %arg1 : i32, i32
  }
  func.func @transform_2(%arg0: i32, %arg1: i32) -> (i32, i32) {
    %c0_i32 = arith.constant 0 : i32
    %c0_i32_0 = arith.constant 0 : i32
    %c0_i32_1 = arith.constant 0 : i32
    return %c0_i32, %c0_i32_0 : i32, i32
  }
  func.func @transform_3(%arg0: i32, %arg1: i32) -> (i32, i32) {
    %c0_i32 = arith.constant 0 : i32
    %c0_i32_0 = arith.constant 0 : i32
    %c0_i32_1 = arith.constant 0 : i32
    return %c0_i32, %c0_i32_0 : i32, i32
  }
  func.func @transform_4(%arg0: i32, %arg1: i32) -> (i32, i32) {
    %c0_i32 = arith.constant 0 : i32
    return %arg0, %arg1 : i32, i32
  }
}

module attributes {stable_mosaic.version = 11 : i64} {
  func.func @_bn_stats_kernel(%arg0: i32, %arg1: i32, %arg2: memref<32x128xf32, #tpu.memory_space<vmem>>, %arg3: memref<1x128xf32, #tpu.memory_space<vmem>>, %arg4: memref<1x128xf32, #tpu.memory_space<vmem>>, %arg5: memref<1x128xf32, #tpu.memory_space<vmem>>, %arg6: memref<1x128xf32, #tpu.memory_space<vmem>>, %arg7: memref<1x128xf32, #tpu.memory_space<vmem>>, %arg8: memref<1x128xf32, #tpu.memory_space<vmem>>) attributes {dimension_semantics = [#tpu.dimension_semantics<parallel>, #tpu.dimension_semantics<arbitrary>], iteration_bounds = array<i64: 1, 1>, scalar_prefetch = 0 : i64, scratch_operands = 2 : i64, tpu.core_type = #tpu.core_type<tc>, window_params = [{transform_indices = @transform_0, window_bounds = array<i64: 32, 128>}, {transform_indices = @transform_1, window_bounds = array<i64: 1, 128>}, {transform_indices = @transform_2, window_bounds = array<i64: 1, 128>}, {transform_indices = @transform_3, window_bounds = array<i64: 1, 128>}, {transform_indices = @transform_4, window_bounds = array<i64: 1, 128>}]} {
    %c0_i32 = arith.constant 0 : i32
    %0 = arith.cmpi eq, %arg1, %c0_i32 : i32
    %1 = arith.extui %0 : i1 to i32
    %c0_i32_0 = arith.constant 0 : i32
    %2 = arith.cmpi ne, %1, %c0_i32_0 : i32
    scf.if %2 {
      %cst_13 = arith.constant 0.000000e+00 : f32
      %18 = vector.broadcast %cst_13 : f32 to vector<1x128xf32>
      %c0_14 = arith.constant 0 : index
      %c0_15 = arith.constant 0 : index
      %19 = vector.load %arg7[%c0_14, %c0_15] : memref<1x128xf32, #tpu.memory_space<vmem>>, vector<1x128xf32>
      tpu.vector_store %arg7[%c0_14, %c0_15], %18 {strides = array<i32>} : memref<1x128xf32, #tpu.memory_space<vmem>>, vector<1x128xf32>,
      %cst_16 = arith.constant 0.000000e+00 : f32
      %20 = vector.broadcast %cst_16 : f32 to vector<1x128xf32>
      %c0_17 = arith.constant 0 : index
      %c0_18 = arith.constant 0 : index
      %21 = vector.load %arg8[%c0_17, %c0_18] : memref<1x128xf32, #tpu.memory_space<vmem>>, vector<1x128xf32>
      tpu.vector_store %arg8[%c0_17, %c0_18], %20 {strides = array<i32>} : memref<1x128xf32, #tpu.memory_space<vmem>>, vector<1x128xf32>,
    } else {
    }
    %c0 = arith.constant 0 : index
    %c0_1 = arith.constant 0 : index
    %3 = vector.load %arg2[%c0, %c0_1] : memref<32x128xf32, #tpu.memory_space<vmem>>, vector<32x128xf32>
    %c0_2 = arith.constant 0 : index
    %c0_3 = arith.constant 0 : index
    %4 = vector.load %arg7[%c0_2, %c0_3] : memref<1x128xf32, #tpu.memory_space<vmem>>, vector<1x128xf32>
    %cst = arith.constant dense<0.000000e+00> : vector<128xf32>
    %5 = vector.multi_reduction <add>, %3, %cst [0] : vector<32x128xf32> to vector<128xf32>
    %6 = vector.shape_cast %5 : vector<128xf32> to vector<1x128xf32>
    %7 = arith.addf %4, %6 : vector<1x128xf32>
    %c0_4 = arith.constant 0 : index
    %c0_5 = arith.constant 0 : index
    %8 = vector.load %arg7[%c0_4, %c0_5] : memref<1x128xf32, #tpu.memory_space<vmem>>, vector<1x128xf32>
    tpu.vector_store %arg7[%c0_4, %c0_5], %7 {strides = array<i32>} : memref<1x128xf32, #tpu.memory_space<vmem>>, vector<1x128xf32>,
    %c0_6 = arith.constant 0 : index
    %c0_7 = arith.constant 0 : index
    %9 = vector.load %arg8[%c0_6, %c0_7] : memref<1x128xf32, #tpu.memory_space<vmem>>, vector<1x128xf32>
    %10 = arith.mulf %3, %3 : vector<32x128xf32>
    %cst_8 = arith.constant dense<0.000000e+00> : vector<128xf32>
    %11 = vector.multi_reduction <add>, %10, %cst_8 [0] : vector<32x128xf32> to vector<128xf32>
    %12 = vector.shape_cast %11 : vector<128xf32> to vector<1x128xf32>
    %13 = arith.addf %9, %12 : vector<1x128xf32>
    %c0_9 = arith.constant 0 : index
    %c0_10 = arith.constant 0 : index
    %14 = vector.load %arg8[%c0_9, %c0_10] : memref<1x128xf32, #tpu.memory_space<vmem>>, vector<1x128xf32>
    tpu.vector_store %arg8[%c0_9, %c0_10], %13 {strides = array<i32>} : memref<1x128xf32, #tpu.memory_space<vmem>>, vector<1x128xf32>,
    %c0_i32_11 = arith.constant 0 : i32
    %15 = arith.cmpi eq, %arg1, %c0_i32_11 : i32
    %16 = arith.extui %15 : i1 to i32
    %c0_i32_12 = arith.constant 0 : i32
    %17 = arith.cmpi ne, %16, %c0_i32_12 : i32
    scf.if %17 {
      %c0_13 = arith.constant 0 : index
      %c0_14 = arith.constant 0 : index
      %18 = vector.load %arg7[%c0_13, %c0_14] : memref<1x128xf32, #tpu.memory_space<vmem>>, vector<1x128xf32>
      %cst_15 = arith.constant 3.125000e-02 : f32
      %19 = vector.broadcast %cst_15 : f32 to vector<1x128xf32>
      %20 = arith.mulf %18, %19 : vector<1x128xf32>
      %c0_16 = arith.constant 0 : index
      %c0_17 = arith.constant 0 : index
      %21 = vector.load %arg8[%c0_16, %c0_17] : memref<1x128xf32, #tpu.memory_space<vmem>>, vector<1x128xf32>
      %cst_18 = arith.constant 3.125000e-02 : f32
      %22 = vector.broadcast %cst_18 : f32 to vector<1x128xf32>
      %23 = arith.mulf %21, %22 : vector<1x128xf32>
      %24 = arith.mulf %20, %20 : vector<1x128xf32>
      %25 = arith.subf %23, %24 : vector<1x128xf32>
      %c0_19 = arith.constant 0 : index
      %c0_20 = arith.constant 0 : index
      %26 = vector.load %arg3[%c0_19, %c0_20] : memref<1x128xf32, #tpu.memory_space<vmem>>, vector<1x128xf32>
      %cst_21 = arith.constant 9.99999974E-6 : f32
      %27 = vector.broadcast %cst_21 : f32 to vector<1x128xf32>
      %28 = arith.addf %25, %27 : vector<1x128xf32>
      %29 = math.rsqrt %28 : vector<1x128xf32>
      %30 = arith.mulf %26, %29 : vector<1x128xf32>
      %c0_22 = arith.constant 0 : index
      %c0_23 = arith.constant 0 : index
      %31 = vector.load %arg5[%c0_22, %c0_23] : memref<1x128xf32, #tpu.memory_space<vmem>>, vector<1x128xf32>
      tpu.vector_store %arg5[%c0_22, %c0_23], %30 {strides = array<i32>} : memref<1x128xf32, #tpu.memory_space<vmem>>, vector<1x128xf32>,
      %c0_24 = arith.constant 0 : index
      %c0_25 = arith.constant 0 : index
      %32 = vector.load %arg4[%c0_24, %c0_25] : memref<1x128xf32, #tpu.memory_space<vmem>>, vector<1x128xf32>
      %33 = arith.mulf %20, %30 : vector<1x128xf32>
      %34 = arith.subf %32, %33 : vector<1x128xf32>
      %c0_26 = arith.constant 0 : index
      %c0_27 = arith.constant 0 : index
      %35 = vector.load %arg6[%c0_26, %c0_27] : memref<1x128xf32, #tpu.memory_space<vmem>>, vector<1x128xf32>
      tpu.vector_store %arg6[%c0_26, %c0_27], %34 {strides = array<i32>} : memref<1x128xf32, #tpu.memory_space<vmem>>, vector<1x128xf32>,
    } else {
    }
    return
  }
  func.func @transform_0(%arg0: i32, %arg1: i32) -> (i32, i32) {
    %c0_i32 = arith.constant 0 : i32
    return %arg1, %arg0 : i32, i32
  }
  func.func @transform_1(%arg0: i32, %arg1: i32) -> (i32, i32) {
    %c0_i32 = arith.constant 0 : i32
    %c0_i32_0 = arith.constant 0 : i32
    return %c0_i32, %arg0 : i32, i32
  }
  func.func @transform_2(%arg0: i32, %arg1: i32) -> (i32, i32) {
    %c0_i32 = arith.constant 0 : i32
    %c0_i32_0 = arith.constant 0 : i32
    return %c0_i32, %arg0 : i32, i32
  }
  func.func @transform_3(%arg0: i32, %arg1: i32) -> (i32, i32) {
    %c0_i32 = arith.constant 0 : i32
    %c0_i32_0 = arith.constant 0 : i32
    return %c0_i32, %arg0 : i32, i32
  }
  func.func @transform_4(%arg0: i32, %arg1: i32) -> (i32, i32) {
    %c0_i32 = arith.constant 0 : i32
    %c0_i32_0 = arith.constant 0 : i32
    return %c0_i32, %arg0 : i32, i32
  }
}

module attributes {stable_mosaic.version = 11 : i64} {
  func.func @_col2im_kernel(%arg0: i32, %arg1: memref<1x16x8192xbf16, #tpu.memory_space<vmem>>, %arg2: memref<1x4x2x4x1024xbf16, #tpu.memory_space<vmem>>) attributes {dimension_semantics = [#tpu.dimension_semantics<parallel>], iteration_bounds = array<i64: 2>, scalar_prefetch = 0 : i64, scratch_operands = 0 : i64, tpu.core_type = #tpu.core_type<tc>, window_params = [{transform_indices = @transform_0, window_bounds = array<i64: 1, 16, 8192>}, {transform_indices = @transform_1, window_bounds = array<i64: 1, 4, 2, 4, 1024>}]} {
    %c0 = arith.constant 0 : index
    %c0_0 = arith.constant 0 : index
    %c2560 = arith.constant 2560 : index
    %0 = vector.load %arg1[%c0, %c0_0, %c2560] : memref<1x16x8192xbf16, #tpu.memory_space<vmem>>, vector<1x16x512xbf16>
    %1 = vector.shape_cast %0 : vector<1x16x512xbf16> to vector<16x512xbf16>
    %2 = arith.extf %1 : vector<16x512xbf16> to vector<16x512xf32>
    %c0_1 = arith.constant 0 : index
    %c0_2 = arith.constant 0 : index
    %c3584 = arith.constant 3584 : index
    %3 = vector.load %arg1[%c0_1, %c0_2, %c3584] : memref<1x16x8192xbf16, #tpu.memory_space<vmem>>, vector<1x16x512xbf16>
    %4 = vector.shape_cast %3 : vector<1x16x512xbf16> to vector<16x512xbf16>
    %5 = arith.extf %4 : vector<16x512xbf16> to vector<16x512xf32>
    %cst = arith.constant 0.000000e+00 : f32
    %6 = vector.broadcast %cst : f32 to vector<1x512xf32>
    %7 = vector.extract_strided_slice %5 {offsets = [0, 0], sizes = [15, 512], strides = [1, 1]} : vector<16x512xf32> to vector<15x512xf32>
    %8 = tpu.concatenate %6, %7 in 0 : vector<1x512xf32>, vector<15x512xf32> -> vector<16x512xf32>
    %9 = tpu.iota {dimensions = array<i32: 0>} : vector<16x1xi32>
    %c4_i32 = arith.constant 4 : i32
    %c0_i32 = arith.constant 0 : i32
    %10 = arith.cmpi eq, %c4_i32, %c0_i32 : i32
    %c1_i32 = arith.constant 1 : i32
    %11 = arith.select %10, %c1_i32, %c4_i32 : i32
    %12 = vector.broadcast %11 : i32 to vector<16x1xi32>
    %13 = arith.remsi %9, %12 : vector<16x1xi32>
    %c0_i32_3 = arith.constant 0 : i32
    %14 = vector.broadcast %c0_i32_3 : i32 to vector<16x1xi32>
    %15 = arith.cmpi ne, %13, %14 : vector<16x1xi32>
    %c0_i32_4 = arith.constant 0 : i32
    %16 = vector.broadcast %c0_i32_4 : i32 to vector<16x1xi32>
    %17 = arith.cmpi slt, %13, %16 : vector<16x1xi32>
    %c0_i32_5 = arith.constant 0 : i32
    %18 = arith.cmpi slt, %11, %c0_i32_5 : i32
    %19 = vector.broadcast %18 : i1 to vector<16x1xi1>
    %20 = vector.broadcast %19 : vector<16x1xi1> to vector<16x1xi1>
    %21 = arith.xori %17, %20 : vector<16x1xi1>
    %22 = arith.andi %21, %15 : vector<16x1xi1>
    %23 = vector.broadcast %11 : i32 to vector<16x1xi32>
    %24 = arith.addi %13, %23 : vector<16x1xi32>
    %25 = arith.select %22, %24, %13 : vector<16x1xi1>, vector<16x1xi32>
    %c1_i32_6 = arith.constant 1 : i32
    %26 = vector.broadcast %c1_i32_6 : i32 to vector<16x1xi32>
    %27 = arith.cmpi sge, %25, %26 : vector<16x1xi32>
    %cst_7 = arith.constant 0.000000e+00 : f32
    %28 = vector.broadcast %cst_7 : f32 to vector<16x512xf32>
    %29 = vector.shape_cast %27 : vector<16x1xi1> to vector<16x1xi1>
    %30 = vector.broadcast %29 : vector<16x1xi1> to vector<16x512xi1>
    %31 = arith.select %30, %8, %28 : vector<16x512xi1>, vector<16x512xf32>
    %32 = arith.addf %2, %31 : vector<16x512xf32>
    %c0_8 = arith.constant 0 : index
    %c0_9 = arith.constant 0 : index
    %c6656 = arith.constant 6656 : index
    %33 = vector.load %arg1[%c0_8, %c0_9, %c6656] : memref<1x16x8192xbf16, #tpu.memory_space<vmem>>, vector<1x16x512xbf16>
    %34 = vector.shape_cast %33 : vector<1x16x512xbf16> to vector<16x512xbf16>
    %35 = arith.extf %34 : vector<16x512xbf16> to vector<16x512xf32>
    %cst_10 = arith.constant 0.000000e+00 : f32
    %36 = vector.broadcast %cst_10 : f32 to vector<4x512xf32>
    %37 = vector.extract_strided_slice %35 {offsets = [0, 0], sizes = [12, 512], strides = [1, 1]} : vector<16x512xf32> to vector<12x512xf32>
    %38 = tpu.concatenate %36, %37 in 0 : vector<4x512xf32>, vector<12x512xf32> -> vector<16x512xf32>
    %39 = tpu.iota {dimensions = array<i32: 0>} : vector<16x1xi32>
    %c4_i32_11 = arith.constant 4 : i32
    %40 = vector.broadcast %c4_i32_11 : i32 to vector<16x1xi32>
    %41 = arith.cmpi sge, %39, %40 : vector<16x1xi32>
    %cst_12 = arith.constant 0.000000e+00 : f32
    %42 = vector.broadcast %cst_12 : f32 to vector<16x512xf32>
    %43 = vector.shape_cast %41 : vector<16x1xi1> to vector<16x1xi1>
    %44 = vector.broadcast %43 : vector<16x1xi1> to vector<16x512xi1>
    %45 = arith.select %44, %38, %42 : vector<16x512xi1>, vector<16x512xf32>
    %46 = arith.addf %32, %45 : vector<16x512xf32>
    %c0_13 = arith.constant 0 : index
    %c0_14 = arith.constant 0 : index
    %c7680 = arith.constant 7680 : index
    %47 = vector.load %arg1[%c0_13, %c0_14, %c7680] : memref<1x16x8192xbf16, #tpu.memory_space<vmem>>, vector<1x16x512xbf16>
    %48 = vector.shape_cast %47 : vector<1x16x512xbf16> to vector<16x512xbf16>
    %49 = arith.extf %48 : vector<16x512xbf16> to vector<16x512xf32>
    %cst_15 = arith.constant 0.000000e+00 : f32
    %50 = vector.broadcast %cst_15 : f32 to vector<5x512xf32>
    %51 = vector.extract_strided_slice %49 {offsets = [0, 0], sizes = [11, 512], strides = [1, 1]} : vector<16x512xf32> to vector<11x512xf32>
    %52 = tpu.concatenate %50, %51 in 0 : vector<5x512xf32>, vector<11x512xf32> -> vector<16x512xf32>
    %53 = tpu.iota {dimensions = array<i32: 0>} : vector<16x1xi32>
    %c4_i32_16 = arith.constant 4 : i32
    %54 = vector.broadcast %c4_i32_16 : i32 to vector<16x1xi32>
    %55 = arith.cmpi sge, %53, %54 : vector<16x1xi32>
    %c4_i32_17 = arith.constant 4 : i32
    %c0_i32_18 = arith.constant 0 : i32
    %56 = arith.cmpi eq, %c4_i32_17, %c0_i32_18 : i32
    %c1_i32_19 = arith.constant 1 : i32
    %57 = arith.select %56, %c1_i32_19, %c4_i32_17 : i32
    %58 = vector.broadcast %57 : i32 to vector<16x1xi32>
    %59 = arith.remsi %53, %58 : vector<16x1xi32>
    %c0_i32_20 = arith.constant 0 : i32
    %60 = vector.broadcast %c0_i32_20 : i32 to vector<16x1xi32>
    %61 = arith.cmpi ne, %59, %60 : vector<16x1xi32>
    %c0_i32_21 = arith.constant 0 : i32
    %62 = vector.broadcast %c0_i32_21 : i32 to vector<16x1xi32>
    %63 = arith.cmpi slt, %59, %62 : vector<16x1xi32>
    %c0_i32_22 = arith.constant 0 : i32
    %64 = arith.cmpi slt, %57, %c0_i32_22 : i32
    %65 = vector.broadcast %64 : i1 to vector<16x1xi1>
    %66 = vector.broadcast %65 : vector<16x1xi1> to vector<16x1xi1>
    %67 = arith.xori %63, %66 : vector<16x1xi1>
    %68 = arith.andi %67, %61 : vector<16x1xi1>
    %69 = vector.broadcast %57 : i32 to vector<16x1xi32>
    %70 = arith.addi %59, %69 : vector<16x1xi32>
    %71 = arith.select %68, %70, %59 : vector<16x1xi1>, vector<16x1xi32>
    %c1_i32_23 = arith.constant 1 : i32
    %72 = vector.broadcast %c1_i32_23 : i32 to vector<16x1xi32>
    %73 = arith.cmpi sge, %71, %72 : vector<16x1xi32>
    %74 = arith.andi %55, %73 : vector<16x1xi1>
    %cst_24 = arith.constant 0.000000e+00 : f32
    %75 = vector.broadcast %cst_24 : f32 to vector<16x512xf32>
    %76 = vector.shape_cast %74 : vector<16x1xi1> to vector<16x1xi1>
    %77 = vector.broadcast %76 : vector<16x1xi1> to vector<16x512xi1>
    %78 = arith.select %77, %52, %75 : vector<16x512xi1>, vector<16x512xf32>
    %79 = arith.addf %46, %78 : vector<16x512xf32>
    %80 = vector.shape_cast %79 : vector<16x512xf32> to vector<4x4x512xf32>
    %81 = arith.truncf %80 : vector<4x4x512xf32> to vector<4x4x512xbf16>
    %c0_25 = arith.constant 0 : index
    %c0_26 = arith.constant 0 : index
    %c0_27 = arith.constant 0 : index
    %c0_28 = arith.constant 0 : index
    %c0_29 = arith.constant 0 : index
    %82 = vector.load %arg2[%c0_25, %c0_26, %c0_27, %c0_28, %c0_29] : memref<1x4x2x4x1024xbf16, #tpu.memory_space<vmem>>, vector<1x4x1x4x512xbf16>
    %83 = vector.shape_cast %82 : vector<1x4x1x4x512xbf16> to vector<4x4x512xbf16>
    %84 = vector.shape_cast %81 : vector<4x4x512xbf16> to vector<1x4x1x4x512xbf16>
    tpu.vector_store %arg2[%c0_25, %c0_26, %c0_27, %c0_28, %c0_29], %84 {strides = array<i32>} : memref<1x4x2x4x1024xbf16, #tpu.memory_space<vmem>>, vector<1x4x1x4x512xbf16>,
    %c0_30 = arith.constant 0 : index
    %c0_31 = arith.constant 0 : index
    %c2048 = arith.constant 2048 : index
    %85 = vector.load %arg1[%c0_30, %c0_31, %c2048] : memref<1x16x8192xbf16, #tpu.memory_space<vmem>>, vector<1x16x512xbf16>
    %86 = vector.shape_cast %85 : vector<1x16x512xbf16> to vector<16x512xbf16>
    %87 = arith.extf %86 : vector<16x512xbf16> to vector<16x512xf32>
    %88 = vector.extract_strided_slice %87 {offsets = [1, 0], sizes = [15, 512], strides = [1, 1]} : vector<16x512xf32> to vector<15x512xf32>
    %cst_32 = arith.constant 0.000000e+00 : f32
    %89 = vector.broadcast %cst_32 : f32 to vector<1x512xf32>
    %90 = tpu.concatenate %88, %89 in 0 : vector<15x512xf32>, vector<1x512xf32> -> vector<16x512xf32>
    %91 = tpu.iota {dimensions = array<i32: 0>} : vector<16x1xi32>
    %c4_i32_33 = arith.constant 4 : i32
    %c0_i32_34 = arith.constant 0 : i32
    %92 = arith.cmpi eq, %c4_i32_33, %c0_i32_34 : i32
    %c1_i32_35 = arith.constant 1 : i32
    %93 = arith.select %92, %c1_i32_35, %c4_i32_33 : i32
    %94 = vector.broadcast %93 : i32 to vector<16x1xi32>
    %95 = arith.remsi %91, %94 : vector<16x1xi32>
    %c0_i32_36 = arith.constant 0 : i32
    %96 = vector.broadcast %c0_i32_36 : i32 to vector<16x1xi32>
    %97 = arith.cmpi ne, %95, %96 : vector<16x1xi32>
    %c0_i32_37 = arith.constant 0 : i32
    %98 = vector.broadcast %c0_i32_37 : i32 to vector<16x1xi32>
    %99 = arith.cmpi slt, %95, %98 : vector<16x1xi32>
    %c0_i32_38 = arith.constant 0 : i32
    %100 = arith.cmpi slt, %93, %c0_i32_38 : i32
    %101 = vector.broadcast %100 : i1 to vector<16x1xi1>
    %102 = vector.broadcast %101 : vector<16x1xi1> to vector<16x1xi1>
    %103 = arith.xori %99, %102 : vector<16x1xi1>
    %104 = arith.andi %103, %97 : vector<16x1xi1>
    %105 = vector.broadcast %93 : i32 to vector<16x1xi32>
    %106 = arith.addi %95, %105 : vector<16x1xi32>
    %107 = arith.select %104, %106, %95 : vector<16x1xi1>, vector<16x1xi32>
    %c3_i32 = arith.constant 3 : i32
    %108 = vector.broadcast %c3_i32 : i32 to vector<16x1xi32>
    %109 = arith.cmpi slt, %107, %108 : vector<16x1xi32>
    %cst_39 = arith.constant 0.000000e+00 : f32
    %110 = vector.broadcast %cst_39 : f32 to vector<16x512xf32>
    %111 = vector.shape_cast %109 : vector<16x1xi1> to vector<16x1xi1>
    %112 = vector.broadcast %111 : vector<16x1xi1> to vector<16x512xi1>
    %113 = arith.select %112, %90, %110 : vector<16x512xi1>, vector<16x512xf32>
    %c0_40 = arith.constant 0 : index
    %c0_41 = arith.constant 0 : index
    %c3072 = arith.constant 3072 : index
    %114 = vector.load %arg1[%c0_40, %c0_41, %c3072] : memref<1x16x8192xbf16, #tpu.memory_space<vmem>>, vector<1x16x512xbf16>
    %115 = vector.shape_cast %114 : vector<1x16x512xbf16> to vector<16x512xbf16>
    %116 = arith.extf %115 : vector<16x512xbf16> to vector<16x512xf32>
    %117 = arith.addf %113, %116 : vector<16x512xf32>
    %c0_42 = arith.constant 0 : index
    %c0_43 = arith.constant 0 : index
    %c6144 = arith.constant 6144 : index
    %118 = vector.load %arg1[%c0_42, %c0_43, %c6144] : memref<1x16x8192xbf16, #tpu.memory_space<vmem>>, vector<1x16x512xbf16>
    %119 = vector.shape_cast %118 : vector<1x16x512xbf16> to vector<16x512xbf16>
    %120 = arith.extf %119 : vector<16x512xbf16> to vector<16x512xf32>
    %cst_44 = arith.constant 0.000000e+00 : f32
    %121 = vector.broadcast %cst_44 : f32 to vector<3x512xf32>
    %122 = vector.extract_strided_slice %120 {offsets = [0, 0], sizes = [13, 512], strides = [1, 1]} : vector<16x512xf32> to vector<13x512xf32>
    %123 = tpu.concatenate %121, %122 in 0 : vector<3x512xf32>, vector<13x512xf32> -> vector<16x512xf32>
    %124 = tpu.iota {dimensions = array<i32: 0>} : vector<16x1xi32>
    %c4_i32_45 = arith.constant 4 : i32
    %125 = vector.broadcast %c4_i32_45 : i32 to vector<16x1xi32>
    %126 = arith.cmpi sge, %124, %125 : vector<16x1xi32>
    %c4_i32_46 = arith.constant 4 : i32
    %c0_i32_47 = arith.constant 0 : i32
    %127 = arith.cmpi eq, %c4_i32_46, %c0_i32_47 : i32
    %c1_i32_48 = arith.constant 1 : i32
    %128 = arith.select %127, %c1_i32_48, %c4_i32_46 : i32
    %129 = vector.broadcast %128 : i32 to vector<16x1xi32>
    %130 = arith.remsi %124, %129 : vector<16x1xi32>
    %c0_i32_49 = arith.constant 0 : i32
    %131 = vector.broadcast %c0_i32_49 : i32 to vector<16x1xi32>
    %132 = arith.cmpi ne, %130, %131 : vector<16x1xi32>
    %c0_i32_50 = arith.constant 0 : i32
    %133 = vector.broadcast %c0_i32_50 : i32 to vector<16x1xi32>
    %134 = arith.cmpi slt, %130, %133 : vector<16x1xi32>
    %c0_i32_51 = arith.constant 0 : i32
    %135 = arith.cmpi slt, %128, %c0_i32_51 : i32
    %136 = vector.broadcast %135 : i1 to vector<16x1xi1>
    %137 = vector.broadcast %136 : vector<16x1xi1> to vector<16x1xi1>
    %138 = arith.xori %134, %137 : vector<16x1xi1>
    %139 = arith.andi %138, %132 : vector<16x1xi1>
    %140 = vector.broadcast %128 : i32 to vector<16x1xi32>
    %141 = arith.addi %130, %140 : vector<16x1xi32>
    %142 = arith.select %139, %141, %130 : vector<16x1xi1>, vector<16x1xi32>
    %c3_i32_52 = arith.constant 3 : i32
    %143 = vector.broadcast %c3_i32_52 : i32 to vector<16x1xi32>
    %144 = arith.cmpi slt, %142, %143 : vector<16x1xi32>
    %145 = arith.andi %126, %144 : vector<16x1xi1>
    %cst_53 = arith.constant 0.000000e+00 : f32
    %146 = vector.broadcast %cst_53 : f32 to vector<16x512xf32>
    %147 = vector.shape_cast %145 : vector<16x1xi1> to vector<16x1xi1>
    %148 = vector.broadcast %147 : vector<16x1xi1> to vector<16x512xi1>
    %149 = arith.select %148, %123, %146 : vector<16x512xi1>, vector<16x512xf32>
    %150 = arith.addf %117, %149 : vector<16x512xf32>
    %c0_54 = arith.constant 0 : index
    %c0_55 = arith.constant 0 : index
    %c7168 = arith.constant 7168 : index
    %151 = vector.load %arg1[%c0_54, %c0_55, %c7168] : memref<1x16x8192xbf16, #tpu.memory_space<vmem>>, vector<1x16x512xbf16>
    %152 = vector.shape_cast %151 : vector<1x16x512xbf16> to vector<16x512xbf16>
    %153 = arith.extf %152 : vector<16x512xbf16> to vector<16x512xf32>
    %cst_56 = arith.constant 0.000000e+00 : f32
    %154 = vector.broadcast %cst_56 : f32 to vector<4x512xf32>
    %155 = vector.extract_strided_slice %153 {offsets = [0, 0], sizes = [12, 512], strides = [1, 1]} : vector<16x512xf32> to vector<12x512xf32>
    %156 = tpu.concatenate %154, %155 in 0 : vector<4x512xf32>, vector<12x512xf32> -> vector<16x512xf32>
    %157 = tpu.iota {dimensions = array<i32: 0>} : vector<16x1xi32>
    %c4_i32_57 = arith.constant 4 : i32
    %158 = vector.broadcast %c4_i32_57 : i32 to vector<16x1xi32>
    %159 = arith.cmpi sge, %157, %158 : vector<16x1xi32>
    %cst_58 = arith.constant 0.000000e+00 : f32
    %160 = vector.broadcast %cst_58 : f32 to vector<16x512xf32>
    %161 = vector.shape_cast %159 : vector<16x1xi1> to vector<16x1xi1>
    %162 = vector.broadcast %161 : vector<16x1xi1> to vector<16x512xi1>
    %163 = arith.select %162, %156, %160 : vector<16x512xi1>, vector<16x512xf32>
    %164 = arith.addf %150, %163 : vector<16x512xf32>
    %165 = vector.shape_cast %164 : vector<16x512xf32> to vector<4x4x512xf32>
    %166 = arith.truncf %165 : vector<4x4x512xf32> to vector<4x4x512xbf16>
    %c0_59 = arith.constant 0 : index
    %c0_60 = arith.constant 0 : index
    %c0_61 = arith.constant 0 : index
    %c0_62 = arith.constant 0 : index
    %c512 = arith.constant 512 : index
    %167 = vector.load %arg2[%c0_59, %c0_60, %c0_61, %c0_62, %c512] : memref<1x4x2x4x1024xbf16, #tpu.memory_space<vmem>>, vector<1x4x1x4x512xbf16>
    %168 = vector.shape_cast %167 : vector<1x4x1x4x512xbf16> to vector<4x4x512xbf16>
    %169 = vector.shape_cast %166 : vector<4x4x512xbf16> to vector<1x4x1x4x512xbf16>
    tpu.vector_store %arg2[%c0_59, %c0_60, %c0_61, %c0_62, %c512], %169 {strides = array<i32>} : memref<1x4x2x4x1024xbf16, #tpu.memory_space<vmem>>, vector<1x4x1x4x512xbf16>,
    %c0_63 = arith.constant 0 : index
    %c0_64 = arith.constant 0 : index
    %c512_65 = arith.constant 512 : index
    %170 = vector.load %arg1[%c0_63, %c0_64, %c512_65] : memref<1x16x8192xbf16, #tpu.memory_space<vmem>>, vector<1x16x512xbf16>
    %171 = vector.shape_cast %170 : vector<1x16x512xbf16> to vector<16x512xbf16>
    %172 = arith.extf %171 : vector<16x512xbf16> to vector<16x512xf32>
    %173 = vector.extract_strided_slice %172 {offsets = [4, 0], sizes = [12, 512], strides = [1, 1]} : vector<16x512xf32> to vector<12x512xf32>
    %cst_66 = arith.constant 0.000000e+00 : f32
    %174 = vector.broadcast %cst_66 : f32 to vector<4x512xf32>
    %175 = tpu.concatenate %173, %174 in 0 : vector<12x512xf32>, vector<4x512xf32> -> vector<16x512xf32>
    %176 = tpu.iota {dimensions = array<i32: 0>} : vector<16x1xi32>
    %c12_i32 = arith.constant 12 : i32
    %177 = vector.broadcast %c12_i32 : i32 to vector<16x1xi32>
    %178 = arith.cmpi slt, %176, %177 : vector<16x1xi32>
    %cst_67 = arith.constant 0.000000e+00 : f32
    %179 = vector.broadcast %cst_67 : f32 to vector<16x512xf32>
    %180 = vector.shape_cast %178 : vector<16x1xi1> to vector<16x1xi1>
    %181 = vector.broadcast %180 : vector<16x1xi1> to vector<16x512xi1>
    %182 = arith.select %181, %175, %179 : vector<16x512xi1>, vector<16x512xf32>
    %c0_68 = arith.constant 0 : index
    %c0_69 = arith.constant 0 : index
    %c1536 = arith.constant 1536 : index
    %183 = vector.load %arg1[%c0_68, %c0_69, %c1536] : memref<1x16x8192xbf16, #tpu.memory_space<vmem>>, vector<1x16x512xbf16>
    %184 = vector.shape_cast %183 : vector<1x16x512xbf16> to vector<16x512xbf16>
    %185 = arith.extf %184 : vector<16x512xbf16> to vector<16x512xf32>
    %186 = vector.extract_strided_slice %185 {offsets = [3, 0], sizes = [13, 512], strides = [1, 1]} : vector<16x512xf32> to vector<13x512xf32>
    %cst_70 = arith.constant 0.000000e+00 : f32
    %187 = vector.broadcast %cst_70 : f32 to vector<3x512xf32>
    %188 = tpu.concatenate %186, %187 in 0 : vector<13x512xf32>, vector<3x512xf32> -> vector<16x512xf32>
    %189 = tpu.iota {dimensions = array<i32: 0>} : vector<16x1xi32>
    %c12_i32_71 = arith.constant 12 : i32
    %190 = vector.broadcast %c12_i32_71 : i32 to vector<16x1xi32>
    %191 = arith.cmpi slt, %189, %190 : vector<16x1xi32>
    %c4_i32_72 = arith.constant 4 : i32
    %c0_i32_73 = arith.constant 0 : i32
    %192 = arith.cmpi eq, %c4_i32_72, %c0_i32_73 : i32
    %c1_i32_74 = arith.constant 1 : i32
    %193 = arith.select %192, %c1_i32_74, %c4_i32_72 : i32
    %194 = vector.broadcast %193 : i32 to vector<16x1xi32>
    %195 = arith.remsi %189, %194 : vector<16x1xi32>
    %c0_i32_75 = arith.constant 0 : i32
    %196 = vector.broadcast %c0_i32_75 : i32 to vector<16x1xi32>
    %197 = arith.cmpi ne, %195, %196 : vector<16x1xi32>
    %c0_i32_76 = arith.constant 0 : i32
    %198 = vector.broadcast %c0_i32_76 : i32 to vector<16x1xi32>
    %199 = arith.cmpi slt, %195, %198 : vector<16x1xi32>
    %c0_i32_77 = arith.constant 0 : i32
    %200 = arith.cmpi slt, %193, %c0_i32_77 : i32
    %201 = vector.broadcast %200 : i1 to vector<16x1xi1>
    %202 = vector.broadcast %201 : vector<16x1xi1> to vector<16x1xi1>
    %203 = arith.xori %199, %202 : vector<16x1xi1>
    %204 = arith.andi %203, %197 : vector<16x1xi1>
    %205 = vector.broadcast %193 : i32 to vector<16x1xi32>
    %206 = arith.addi %195, %205 : vector<16x1xi32>
    %207 = arith.select %204, %206, %195 : vector<16x1xi1>, vector<16x1xi32>
    %c1_i32_78 = arith.constant 1 : i32
    %208 = vector.broadcast %c1_i32_78 : i32 to vector<16x1xi32>
    %209 = arith.cmpi sge, %207, %208 : vector<16x1xi32>
    %210 = arith.andi %191, %209 : vector<16x1xi1>
    %cst_79 = arith.constant 0.000000e+00 : f32
    %211 = vector.broadcast %cst_79 : f32 to vector<16x512xf32>
    %212 = vector.shape_cast %210 : vector<16x1xi1> to vector<16x1xi1>
    %213 = vector.broadcast %212 : vector<16x1xi1> to vector<16x512xi1>
    %214 = arith.select %213, %188, %211 : vector<16x512xi1>, vector<16x512xf32>
    %215 = arith.addf %182, %214 : vector<16x512xf32>
    %c0_80 = arith.constant 0 : index
    %c0_81 = arith.constant 0 : index
    %c4608 = arith.constant 4608 : index
    %216 = vector.load %arg1[%c0_80, %c0_81, %c4608] : memref<1x16x8192xbf16, #tpu.memory_space<vmem>>, vector<1x16x512xbf16>
    %217 = vector.shape_cast %216 : vector<1x16x512xbf16> to vector<16x512xbf16>
    %218 = arith.extf %217 : vector<16x512xbf16> to vector<16x512xf32>
    %219 = arith.addf %215, %218 : vector<16x512xf32>
    %c0_82 = arith.constant 0 : index
    %c0_83 = arith.constant 0 : index
    %c5632 = arith.constant 5632 : index
    %220 = vector.load %arg1[%c0_82, %c0_83, %c5632] : memref<1x16x8192xbf16, #tpu.memory_space<vmem>>, vector<1x16x512xbf16>
    %221 = vector.shape_cast %220 : vector<1x16x512xbf16> to vector<16x512xbf16>
    %222 = arith.extf %221 : vector<16x512xbf16> to vector<16x512xf32>
    %cst_84 = arith.constant 0.000000e+00 : f32
    %223 = vector.broadcast %cst_84 : f32 to vector<1x512xf32>
    %224 = vector.extract_strided_slice %222 {offsets = [0, 0], sizes = [15, 512], strides = [1, 1]} : vector<16x512xf32> to vector<15x512xf32>
    %225 = tpu.concatenate %223, %224 in 0 : vector<1x512xf32>, vector<15x512xf32> -> vector<16x512xf32>
    %226 = tpu.iota {dimensions = array<i32: 0>} : vector<16x1xi32>
    %c4_i32_85 = arith.constant 4 : i32
    %c0_i32_86 = arith.constant 0 : i32
    %227 = arith.cmpi eq, %c4_i32_85, %c0_i32_86 : i32
    %c1_i32_87 = arith.constant 1 : i32
    %228 = arith.select %227, %c1_i32_87, %c4_i32_85 : i32
    %229 = vector.broadcast %228 : i32 to vector<16x1xi32>
    %230 = arith.remsi %226, %229 : vector<16x1xi32>
    %c0_i32_88 = arith.constant 0 : i32
    %231 = vector.broadcast %c0_i32_88 : i32 to vector<16x1xi32>
    %232 = arith.cmpi ne, %230, %231 : vector<16x1xi32>
    %c0_i32_89 = arith.constant 0 : i32
    %233 = vector.broadcast %c0_i32_89 : i32 to vector<16x1xi32>
    %234 = arith.cmpi slt, %230, %233 : vector<16x1xi32>
    %c0_i32_90 = arith.constant 0 : i32
    %235 = arith.cmpi slt, %228, %c0_i32_90 : i32
    %236 = vector.broadcast %235 : i1 to vector<16x1xi1>
    %237 = vector.broadcast %236 : vector<16x1xi1> to vector<16x1xi1>
    %238 = arith.xori %234, %237 : vector<16x1xi1>
    %239 = arith.andi %238, %232 : vector<16x1xi1>
    %240 = vector.broadcast %228 : i32 to vector<16x1xi32>
    %241 = arith.addi %230, %240 : vector<16x1xi32>
    %242 = arith.select %239, %241, %230 : vector<16x1xi1>, vector<16x1xi32>
    %c1_i32_91 = arith.constant 1 : i32
    %243 = vector.broadcast %c1_i32_91 : i32 to vector<16x1xi32>
    %244 = arith.cmpi sge, %242, %243 : vector<16x1xi32>
    %cst_92 = arith.constant 0.000000e+00 : f32
    %245 = vector.broadcast %cst_92 : f32 to vector<16x512xf32>
    %246 = vector.shape_cast %244 : vector<16x1xi1> to vector<16x1xi1>
    %247 = vector.broadcast %246 : vector<16x1xi1> to vector<16x512xi1>
    %248 = arith.select %247, %225, %245 : vector<16x512xi1>, vector<16x512xf32>
    %249 = arith.addf %219, %248 : vector<16x512xf32>
    %250 = vector.shape_cast %249 : vector<16x512xf32> to vector<4x4x512xf32>
    %251 = arith.truncf %250 : vector<4x4x512xf32> to vector<4x4x512xbf16>
    %c0_93 = arith.constant 0 : index
    %c0_94 = arith.constant 0 : index
    %c1 = arith.constant 1 : index
    %c0_95 = arith.constant 0 : index
    %c0_96 = arith.constant 0 : index
    %252 = vector.load %arg2[%c0_93, %c0_94, %c1, %c0_95, %c0_96] : memref<1x4x2x4x1024xbf16, #tpu.memory_space<vmem>>, vector<1x4x1x4x512xbf16>
    %253 = vector.shape_cast %252 : vector<1x4x1x4x512xbf16> to vector<4x4x512xbf16>
    %254 = vector.shape_cast %251 : vector<4x4x512xbf16> to vector<1x4x1x4x512xbf16>
    tpu.vector_store %arg2[%c0_93, %c0_94, %c1, %c0_95, %c0_96], %254 {strides = array<i32>} : memref<1x4x2x4x1024xbf16, #tpu.memory_space<vmem>>, vector<1x4x1x4x512xbf16>,
    %c0_97 = arith.constant 0 : index
    %c0_98 = arith.constant 0 : index
    %c0_99 = arith.constant 0 : index
    %255 = vector.load %arg1[%c0_97, %c0_98, %c0_99] : memref<1x16x8192xbf16, #tpu.memory_space<vmem>>, vector<1x16x512xbf16>
    %256 = vector.shape_cast %255 : vector<1x16x512xbf16> to vector<16x512xbf16>
    %257 = arith.extf %256 : vector<16x512xbf16> to vector<16x512xf32>
    %258 = vector.extract_strided_slice %257 {offsets = [5, 0], sizes = [11, 512], strides = [1, 1]} : vector<16x512xf32> to vector<11x512xf32>
    %cst_100 = arith.constant 0.000000e+00 : f32
    %259 = vector.broadcast %cst_100 : f32 to vector<5x512xf32>
    %260 = tpu.concatenate %258, %259 in 0 : vector<11x512xf32>, vector<5x512xf32> -> vector<16x512xf32>
    %261 = tpu.iota {dimensions = array<i32: 0>} : vector<16x1xi32>
    %c12_i32_101 = arith.constant 12 : i32
    %262 = vector.broadcast %c12_i32_101 : i32 to vector<16x1xi32>
    %263 = arith.cmpi slt, %261, %262 : vector<16x1xi32>
    %c4_i32_102 = arith.constant 4 : i32
    %c0_i32_103 = arith.constant 0 : i32
    %264 = arith.cmpi eq, %c4_i32_102, %c0_i32_103 : i32
    %c1_i32_104 = arith.constant 1 : i32
    %265 = arith.select %264, %c1_i32_104, %c4_i32_102 : i32
    %266 = vector.broadcast %265 : i32 to vector<16x1xi32>
    %267 = arith.remsi %261, %266 : vector<16x1xi32>
    %c0_i32_105 = arith.constant 0 : i32
    %268 = vector.broadcast %c0_i32_105 : i32 to vector<16x1xi32>
    %269 = arith.cmpi ne, %267, %268 : vector<16x1xi32>
    %c0_i32_106 = arith.constant 0 : i32
    %270 = vector.broadcast %c0_i32_106 : i32 to vector<16x1xi32>
    %271 = arith.cmpi slt, %267, %270 : vector<16x1xi32>
    %c0_i32_107 = arith.constant 0 : i32
    %272 = arith.cmpi slt, %265, %c0_i32_107 : i32
    %273 = vector.broadcast %272 : i1 to vector<16x1xi1>
    %274 = vector.broadcast %273 : vector<16x1xi1> to vector<16x1xi1>
    %275 = arith.xori %271, %274 : vector<16x1xi1>
    %276 = arith.andi %275, %269 : vector<16x1xi1>
    %277 = vector.broadcast %265 : i32 to vector<16x1xi32>
    %278 = arith.addi %267, %277 : vector<16x1xi32>
    %279 = arith.select %276, %278, %267 : vector<16x1xi1>, vector<16x1xi32>
    %c3_i32_108 = arith.constant 3 : i32
    %280 = vector.broadcast %c3_i32_108 : i32 to vector<16x1xi32>
    %281 = arith.cmpi slt, %279, %280 : vector<16x1xi32>
    %282 = arith.andi %263, %281 : vector<16x1xi1>
    %cst_109 = arith.constant 0.000000e+00 : f32
    %283 = vector.broadcast %cst_109 : f32 to vector<16x512xf32>
    %284 = vector.shape_cast %282 : vector<16x1xi1> to vector<16x1xi1>
    %285 = vector.broadcast %284 : vector<16x1xi1> to vector<16x512xi1>
    %286 = arith.select %285, %260, %283 : vector<16x512xi1>, vector<16x512xf32>
    %c0_110 = arith.constant 0 : index
    %c0_111 = arith.constant 0 : index
    %c1024 = arith.constant 1024 : index
    %287 = vector.load %arg1[%c0_110, %c0_111, %c1024] : memref<1x16x8192xbf16, #tpu.memory_space<vmem>>, vector<1x16x512xbf16>
    %288 = vector.shape_cast %287 : vector<1x16x512xbf16> to vector<16x512xbf16>
    %289 = arith.extf %288 : vector<16x512xbf16> to vector<16x512xf32>
    %290 = vector.extract_strided_slice %289 {offsets = [4, 0], sizes = [12, 512], strides = [1, 1]} : vector<16x512xf32> to vector<12x512xf32>
    %cst_112 = arith.constant 0.000000e+00 : f32
    %291 = vector.broadcast %cst_112 : f32 to vector<4x512xf32>
    %292 = tpu.concatenate %290, %291 in 0 : vector<12x512xf32>, vector<4x512xf32> -> vector<16x512xf32>
    %293 = tpu.iota {dimensions = array<i32: 0>} : vector<16x1xi32>
    %c12_i32_113 = arith.constant 12 : i32
    %294 = vector.broadcast %c12_i32_113 : i32 to vector<16x1xi32>
    %295 = arith.cmpi slt, %293, %294 : vector<16x1xi32>
    %cst_114 = arith.constant 0.000000e+00 : f32
    %296 = vector.broadcast %cst_114 : f32 to vector<16x512xf32>
    %297 = vector.shape_cast %295 : vector<16x1xi1> to vector<16x1xi1>
    %298 = vector.broadcast %297 : vector<16x1xi1> to vector<16x512xi1>
    %299 = arith.select %298, %292, %296 : vector<16x512xi1>, vector<16x512xf32>
    %300 = arith.addf %286, %299 : vector<16x512xf32>
    %c0_115 = arith.constant 0 : index
    %c0_116 = arith.constant 0 : index
    %c4096 = arith.constant 4096 : index
    %301 = vector.load %arg1[%c0_115, %c0_116, %c4096] : memref<1x16x8192xbf16, #tpu.memory_space<vmem>>, vector<1x16x512xbf16>
    %302 = vector.shape_cast %301 : vector<1x16x512xbf16> to vector<16x512xbf16>
    %303 = arith.extf %302 : vector<16x512xbf16> to vector<16x512xf32>
    %304 = vector.extract_strided_slice %303 {offsets = [1, 0], sizes = [15, 512], strides = [1, 1]} : vector<16x512xf32> to vector<15x512xf32>
    %cst_117 = arith.constant 0.000000e+00 : f32
    %305 = vector.broadcast %cst_117 : f32 to vector<1x512xf32>
    %306 = tpu.concatenate %304, %305 in 0 : vector<15x512xf32>, vector<1x512xf32> -> vector<16x512xf32>
    %307 = tpu.iota {dimensions = array<i32: 0>} : vector<16x1xi32>
    %c4_i32_118 = arith.constant 4 : i32
    %c0_i32_119 = arith.constant 0 : i32
    %308 = arith.cmpi eq, %c4_i32_118, %c0_i32_119 : i32
    %c1_i32_120 = arith.constant 1 : i32
    %309 = arith.select %308, %c1_i32_120, %c4_i32_118 : i32
    %310 = vector.broadcast %309 : i32 to vector<16x1xi32>
    %311 = arith.remsi %307, %310 : vector<16x1xi32>
    %c0_i32_121 = arith.constant 0 : i32
    %312 = vector.broadcast %c0_i32_121 : i32 to vector<16x1xi32>
    %313 = arith.cmpi ne, %311, %312 : vector<16x1xi32>
    %c0_i32_122 = arith.constant 0 : i32
    %314 = vector.broadcast %c0_i32_122 : i32 to vector<16x1xi32>
    %315 = arith.cmpi slt, %311, %314 : vector<16x1xi32>
    %c0_i32_123 = arith.constant 0 : i32
    %316 = arith.cmpi slt, %309, %c0_i32_123 : i32
    %317 = vector.broadcast %316 : i1 to vector<16x1xi1>
    %318 = vector.broadcast %317 : vector<16x1xi1> to vector<16x1xi1>
    %319 = arith.xori %315, %318 : vector<16x1xi1>
    %320 = arith.andi %319, %313 : vector<16x1xi1>
    %321 = vector.broadcast %309 : i32 to vector<16x1xi32>
    %322 = arith.addi %311, %321 : vector<16x1xi32>
    %323 = arith.select %320, %322, %311 : vector<16x1xi1>, vector<16x1xi32>
    %c3_i32_124 = arith.constant 3 : i32
    %324 = vector.broadcast %c3_i32_124 : i32 to vector<16x1xi32>
    %325 = arith.cmpi slt, %323, %324 : vector<16x1xi32>
    %cst_125 = arith.constant 0.000000e+00 : f32
    %326 = vector.broadcast %cst_125 : f32 to vector<16x512xf32>
    %327 = vector.shape_cast %325 : vector<16x1xi1> to vector<16x1xi1>
    %328 = vector.broadcast %327 : vector<16x1xi1> to vector<16x512xi1>
    %329 = arith.select %328, %306, %326 : vector<16x512xi1>, vector<16x512xf32>
    %330 = arith.addf %300, %329 : vector<16x512xf32>
    %c0_126 = arith.constant 0 : index
    %c0_127 = arith.constant 0 : index
    %c5120 = arith.constant 5120 : index
    %331 = vector.load %arg1[%c0_126, %c0_127, %c5120] : memref<1x16x8192xbf16, #tpu.memory_space<vmem>>, vector<1x16x512xbf16>
    %332 = vector.shape_cast %331 : vector<1x16x512xbf16> to vector<16x512xbf16>
    %333 = arith.extf %332 : vector<16x512xbf16> to vector<16x512xf32>
    %334 = arith.addf %330, %333 : vector<16x512xf32>
    %335 = vector.shape_cast %334 : vector<16x512xf32> to vector<4x4x512xf32>
    %336 = arith.truncf %335 : vector<4x4x512xf32> to vector<4x4x512xbf16>
    %c0_128 = arith.constant 0 : index
    %c0_129 = arith.constant 0 : index
    %c1_130 = arith.constant 1 : index
    %c0_131 = arith.constant 0 : index
    %c512_132 = arith.constant 512 : index
    %337 = vector.load %arg2[%c0_128, %c0_129, %c1_130, %c0_131, %c512_132] : memref<1x4x2x4x1024xbf16, #tpu.memory_space<vmem>>, vector<1x4x1x4x512xbf16>
    %338 = vector.shape_cast %337 : vector<1x4x1x4x512xbf16> to vector<4x4x512xbf16>
    %339 = vector.shape_cast %336 : vector<4x4x512xbf16> to vector<1x4x1x4x512xbf16>
    tpu.vector_store %arg2[%c0_128, %c0_129, %c1_130, %c0_131, %c512_132], %339 {strides = array<i32>} : memref<1x4x2x4x1024xbf16, #tpu.memory_space<vmem>>, vector<1x4x1x4x512xbf16>,
    return
  }
  func.func @transform_0(%arg0: i32) -> (i32, i32, i32) {
    %c0_i32 = arith.constant 0 : i32
    %c0_i32_0 = arith.constant 0 : i32
    %c0_i32_1 = arith.constant 0 : i32
    return %arg0, %c0_i32, %c0_i32_0 : i32, i32, i32
  }
  func.func @transform_1(%arg0: i32) -> (i32, i32, i32, i32, i32) {
    %c0_i32 = arith.constant 0 : i32
    %c0_i32_0 = arith.constant 0 : i32
    %c0_i32_1 = arith.constant 0 : i32
    %c0_i32_2 = arith.constant 0 : i32
    %c0_i32_3 = arith.constant 0 : i32
    return %arg0, %c0_i32, %c0_i32_0, %c0_i32_1, %c0_i32_2 : i32, i32, i32, i32, i32
  }
}

module attributes {stable_mosaic.version = 11 : i64} {
  func.func @_bn_stats_kernel(%arg0: i32, %arg1: i32, %arg2: memref<128x256xbf16, #tpu.memory_space<vmem>>, %arg3: memref<1x256xf32, #tpu.memory_space<vmem>>, %arg4: memref<1x256xf32, #tpu.memory_space<vmem>>, %arg5: memref<1x256xf32, #tpu.memory_space<vmem>>, %arg6: memref<1x256xf32, #tpu.memory_space<vmem>>, %arg7: memref<1x256xf32, #tpu.memory_space<vmem>>, %arg8: memref<1x256xf32, #tpu.memory_space<vmem>>) attributes {dimension_semantics = [#tpu.dimension_semantics<parallel>, #tpu.dimension_semantics<arbitrary>], iteration_bounds = array<i64: 2, 1>, scalar_prefetch = 0 : i64, scratch_operands = 2 : i64, tpu.core_type = #tpu.core_type<tc>, window_params = [{transform_indices = @transform_0, window_bounds = array<i64: 128, 256>}, {transform_indices = @transform_1, window_bounds = array<i64: 1, 256>}, {transform_indices = @transform_2, window_bounds = array<i64: 1, 256>}, {transform_indices = @transform_3, window_bounds = array<i64: 1, 256>}, {transform_indices = @transform_4, window_bounds = array<i64: 1, 256>}]} {
    %c0_i32 = arith.constant 0 : i32
    %0 = arith.cmpi eq, %arg1, %c0_i32 : i32
    %1 = arith.extui %0 : i1 to i32
    %c0_i32_0 = arith.constant 0 : i32
    %2 = arith.cmpi ne, %1, %c0_i32_0 : i32
    scf.if %2 {
      %cst_13 = arith.constant 0.000000e+00 : f32
      %19 = vector.broadcast %cst_13 : f32 to vector<1x256xf32>
      %c0_14 = arith.constant 0 : index
      %c0_15 = arith.constant 0 : index
      %20 = vector.load %arg7[%c0_14, %c0_15] : memref<1x256xf32, #tpu.memory_space<vmem>>, vector<1x256xf32>
      tpu.vector_store %arg7[%c0_14, %c0_15], %19 {strides = array<i32>} : memref<1x256xf32, #tpu.memory_space<vmem>>, vector<1x256xf32>,
      %cst_16 = arith.constant 0.000000e+00 : f32
      %21 = vector.broadcast %cst_16 : f32 to vector<1x256xf32>
      %c0_17 = arith.constant 0 : index
      %c0_18 = arith.constant 0 : index
      %22 = vector.load %arg8[%c0_17, %c0_18] : memref<1x256xf32, #tpu.memory_space<vmem>>, vector<1x256xf32>
      tpu.vector_store %arg8[%c0_17, %c0_18], %21 {strides = array<i32>} : memref<1x256xf32, #tpu.memory_space<vmem>>, vector<1x256xf32>,
    } else {
    }
    %c0 = arith.constant 0 : index
    %c0_1 = arith.constant 0 : index
    %3 = vector.load %arg2[%c0, %c0_1] : memref<128x256xbf16, #tpu.memory_space<vmem>>, vector<128x256xbf16>
    %4 = arith.extf %3 : vector<128x256xbf16> to vector<128x256xf32>
    %c0_2 = arith.constant 0 : index
    %c0_3 = arith.constant 0 : index
    %5 = vector.load %arg7[%c0_2, %c0_3] : memref<1x256xf32, #tpu.memory_space<vmem>>, vector<1x256xf32>
    %cst = arith.constant dense<0.000000e+00> : vector<256xf32>
    %6 = vector.multi_reduction <add>, %4, %cst [0] : vector<128x256xf32> to vector<256xf32>
    %7 = vector.shape_cast %6 : vector<256xf32> to vector<1x256xf32>
    %8 = arith.addf %5, %7 : vector<1x256xf32>
    %c0_4 = arith.constant 0 : index
    %c0_5 = arith.constant 0 : index
    %9 = vector.load %arg7[%c0_4, %c0_5] : memref<1x256xf32, #tpu.memory_space<vmem>>, vector<1x256xf32>
    tpu.vector_store %arg7[%c0_4, %c0_5], %8 {strides = array<i32>} : memref<1x256xf32, #tpu.memory_space<vmem>>, vector<1x256xf32>,
    %c0_6 = arith.constant 0 : index
    %c0_7 = arith.constant 0 : index
    %10 = vector.load %arg8[%c0_6, %c0_7] : memref<1x256xf32, #tpu.memory_space<vmem>>, vector<1x256xf32>
    %11 = arith.mulf %4, %4 : vector<128x256xf32>
    %cst_8 = arith.constant dense<0.000000e+00> : vector<256xf32>
    %12 = vector.multi_reduction <add>, %11, %cst_8 [0] : vector<128x256xf32> to vector<256xf32>
    %13 = vector.shape_cast %12 : vector<256xf32> to vector<1x256xf32>
    %14 = arith.addf %10, %13 : vector<1x256xf32>
    %c0_9 = arith.constant 0 : index
    %c0_10 = arith.constant 0 : index
    %15 = vector.load %arg8[%c0_9, %c0_10] : memref<1x256xf32, #tpu.memory_space<vmem>>, vector<1x256xf32>
    tpu.vector_store %arg8[%c0_9, %c0_10], %14 {strides = array<i32>} : memref<1x256xf32, #tpu.memory_space<vmem>>, vector<1x256xf32>,
    %c0_i32_11 = arith.constant 0 : i32
    %16 = arith.cmpi eq, %arg1, %c0_i32_11 : i32
    %17 = arith.extui %16 : i1 to i32
    %c0_i32_12 = arith.constant 0 : i32
    %18 = arith.cmpi ne, %17, %c0_i32_12 : i32
    scf.if %18 {
      %c0_13 = arith.constant 0 : index
      %c0_14 = arith.constant 0 : index
      %19 = vector.load %arg7[%c0_13, %c0_14] : memref<1x256xf32, #tpu.memory_space<vmem>>, vector<1x256xf32>
      %cst_15 = arith.constant 7.812500e-03 : f32
      %20 = vector.broadcast %cst_15 : f32 to vector<1x256xf32>
      %21 = arith.mulf %19, %20 : vector<1x256xf32>
      %c0_16 = arith.constant 0 : index
      %c0_17 = arith.constant 0 : index
      %22 = vector.load %arg8[%c0_16, %c0_17] : memref<1x256xf32, #tpu.memory_space<vmem>>, vector<1x256xf32>
      %cst_18 = arith.constant 7.812500e-03 : f32
      %23 = vector.broadcast %cst_18 : f32 to vector<1x256xf32>
      %24 = arith.mulf %22, %23 : vector<1x256xf32>
      %25 = arith.mulf %21, %21 : vector<1x256xf32>
      %26 = arith.subf %24, %25 : vector<1x256xf32>
      %c0_19 = arith.constant 0 : index
      %c0_20 = arith.constant 0 : index
      %27 = vector.load %arg3[%c0_19, %c0_20] : memref<1x256xf32, #tpu.memory_space<vmem>>, vector<1x256xf32>
      %cst_21 = arith.constant 9.99999974E-6 : f32
      %28 = vector.broadcast %cst_21 : f32 to vector<1x256xf32>
      %29 = arith.addf %26, %28 : vector<1x256xf32>
      %30 = math.rsqrt %29 : vector<1x256xf32>
      %31 = arith.mulf %27, %30 : vector<1x256xf32>
      %c0_22 = arith.constant 0 : index
      %c0_23 = arith.constant 0 : index
      %32 = vector.load %arg5[%c0_22, %c0_23] : memref<1x256xf32, #tpu.memory_space<vmem>>, vector<1x256xf32>
      tpu.vector_store %arg5[%c0_22, %c0_23], %31 {strides = array<i32>} : memref<1x256xf32, #tpu.memory_space<vmem>>, vector<1x256xf32>,
      %c0_24 = arith.constant 0 : index
      %c0_25 = arith.constant 0 : index
      %33 = vector.load %arg4[%c0_24, %c0_25] : memref<1x256xf32, #tpu.memory_space<vmem>>, vector<1x256xf32>
      %34 = arith.mulf %21, %31 : vector<1x256xf32>
      %35 = arith.subf %33, %34 : vector<1x256xf32>
      %c0_26 = arith.constant 0 : index
      %c0_27 = arith.constant 0 : index
      %36 = vector.load %arg6[%c0_26, %c0_27] : memref<1x256xf32, #tpu.memory_space<vmem>>, vector<1x256xf32>
      tpu.vector_store %arg6[%c0_26, %c0_27], %35 {strides = array<i32>} : memref<1x256xf32, #tpu.memory_space<vmem>>, vector<1x256xf32>,
    } else {
    }
    return
  }
  func.func @transform_0(%arg0: i32, %arg1: i32) -> (i32, i32) {
    %c0_i32 = arith.constant 0 : i32
    return %arg1, %arg0 : i32, i32
  }
  func.func @transform_1(%arg0: i32, %arg1: i32) -> (i32, i32) {
    %c0_i32 = arith.constant 0 : i32
    %c0_i32_0 = arith.constant 0 : i32
    return %c0_i32, %arg0 : i32, i32
  }
  func.func @transform_2(%arg0: i32, %arg1: i32) -> (i32, i32) {
    %c0_i32 = arith.constant 0 : i32
    %c0_i32_0 = arith.constant 0 : i32
    return %c0_i32, %arg0 : i32, i32
  }
  func.func @transform_3(%arg0: i32, %arg1: i32) -> (i32, i32) {
    %c0_i32 = arith.constant 0 : i32
    %c0_i32_0 = arith.constant 0 : i32
    return %c0_i32, %arg0 : i32, i32
  }
  func.func @transform_4(%arg0: i32, %arg1: i32) -> (i32, i32) {
    %c0_i32 = arith.constant 0 : i32
    %c0_i32_0 = arith.constant 0 : i32
    return %c0_i32, %arg0 : i32, i32
  }
}

module attributes {stable_mosaic.version = 11 : i64} {
  func.func @_convt_fused_kernel(%arg0: i32, %arg1: memref<1x64x512xbf16, #tpu.memory_space<vmem>>, %arg2: memref<1x512xf32, #tpu.memory_space<vmem>>, %arg3: memref<1x512xf32, #tpu.memory_space<vmem>>, %arg4: memref<512x128xbf16, #tpu.memory_space<vmem>>, %arg5: memref<1x8x2x8x16xf32, #tpu.memory_space<vmem>>) attributes {dimension_semantics = [#tpu.dimension_semantics<parallel>], iteration_bounds = array<i64: 2>, scalar_prefetch = 0 : i64, scratch_operands = 0 : i64, tpu.core_type = #tpu.core_type<tc>, window_params = [{transform_indices = @transform_0, window_bounds = array<i64: 1, 64, 512>}, {pipeline_mode = #tpu.pipeline_mode<synchronous>, transform_indices = @transform_1, window_bounds = array<i64: 1, 512>}, {pipeline_mode = #tpu.pipeline_mode<synchronous>, transform_indices = @transform_2, window_bounds = array<i64: 1, 512>}, {pipeline_mode = #tpu.pipeline_mode<synchronous>, transform_indices = @transform_3, window_bounds = array<i64: 512, 128>}, {transform_indices = @transform_4, window_bounds = array<i64: 1, 8, 2, 8, 16>}]} {
    %c0 = arith.constant 0 : index
    %c0_0 = arith.constant 0 : index
    %c0_1 = arith.constant 0 : index
    %0 = vector.load %arg1[%c0, %c0_0, %c0_1] : memref<1x64x512xbf16, #tpu.memory_space<vmem>>, vector<1x64x512xbf16>
    %1 = vector.shape_cast %0 : vector<1x64x512xbf16> to vector<64x512xbf16>
    %2 = arith.extf %1 : vector<64x512xbf16> to vector<64x512xf32>
    %c0_2 = arith.constant 0 : index
    %c0_3 = arith.constant 0 : index
    %3 = vector.load %arg2[%c0_2, %c0_3] : memref<1x512xf32, #tpu.memory_space<vmem>>, vector<1x512xf32>
    %4 = vector.broadcast %3 : vector<1x512xf32> to vector<64x512xf32>
    %5 = arith.mulf %2, %4 : vector<64x512xf32>
    %c0_4 = arith.constant 0 : index
    %c0_5 = arith.constant 0 : index
    %6 = vector.load %arg3[%c0_4, %c0_5] : memref<1x512xf32, #tpu.memory_space<vmem>>, vector<1x512xf32>
    %7 = vector.broadcast %6 : vector<1x512xf32> to vector<64x512xf32>
    %8 = arith.addf %5, %7 : vector<64x512xf32>
    %cst = arith.constant 0.000000e+00 : f32
    %9 = vector.broadcast %cst : f32 to vector<64x512xf32>
    %10 = arith.cmpf oge, %8, %9 : vector<64x512xf32>
    %cst_6 = arith.constant 2.000000e-01 : f32
    %11 = vector.broadcast %cst_6 : f32 to vector<64x512xf32>
    %12 = arith.mulf %11, %8 : vector<64x512xf32>
    %13 = arith.select %10, %8, %12 : vector<64x512xi1>, vector<64x512xf32>
    %14 = arith.truncf %13 : vector<64x512xf32> to vector<64x512xbf16>
    %c0_7 = arith.constant 0 : index
    %c0_8 = arith.constant 0 : index
    %15 = vector.load %arg4[%c0_7, %c0_8] : memref<512x128xbf16, #tpu.memory_space<vmem>>, vector<512x128xbf16>
    %cst_9 = arith.constant dense<0.000000e+00> : vector<64x128xf32>
    %16 = tpu.matmul %14, %15, %cst_9 {dimension_numbers = #tpu.dot_dimension_numbers<[1], [0], [0], [1], [0, 0, 1, 1], [], []>} : vector<64x512xbf16>, vector<512x128xbf16>, vector<64x128xf32> -> vector<64x128xf32>
    %17 = vector.extract_strided_slice %16 {offsets = [0, 40], sizes = [64, 8], strides = [1, 1]} : vector<64x128xf32> to vector<64x8xf32>
    %18 = vector.extract_strided_slice %16 {offsets = [0, 56], sizes = [64, 8], strides = [1, 1]} : vector<64x128xf32> to vector<64x8xf32>
    %cst_10 = arith.constant 0.000000e+00 : f32
    %19 = vector.broadcast %cst_10 : f32 to vector<1x8xf32>
    %20 = vector.extract_strided_slice %18 {offsets = [0, 0], sizes = [63, 8], strides = [1, 1]} : vector<64x8xf32> to vector<63x8xf32>
    %21 = tpu.concatenate %19, %20 in 0 : vector<1x8xf32>, vector<63x8xf32> -> vector<64x8xf32>
    %22 = tpu.iota {dimensions = array<i32: 0>} : vector<64x1xi32>
    %c8_i32 = arith.constant 8 : i32
    %c0_i32 = arith.constant 0 : i32
    %23 = arith.cmpi eq, %c8_i32, %c0_i32 : i32
    %c1_i32 = arith.constant 1 : i32
    %24 = arith.select %23, %c1_i32, %c8_i32 : i32
    %25 = vector.broadcast %24 : i32 to vector<64x1xi32>
    %26 = arith.remsi %22, %25 : vector<64x1xi32>
    %c0_i32_11 = arith.constant 0 : i32
    %27 = vector.broadcast %c0_i32_11 : i32 to vector<64x1xi32>
    %28 = arith.cmpi ne, %26, %27 : vector<64x1xi32>
    %c0_i32_12 = arith.constant 0 : i32
    %29 = vector.broadcast %c0_i32_12 : i32 to vector<64x1xi32>
    %30 = arith.cmpi slt, %26, %29 : vector<64x1xi32>
    %c0_i32_13 = arith.constant 0 : i32
    %31 = arith.cmpi slt, %24, %c0_i32_13 : i32
    %32 = vector.broadcast %31 : i1 to vector<64x1xi1>
    %33 = vector.broadcast %32 : vector<64x1xi1> to vector<64x1xi1>
    %34 = arith.xori %30, %33 : vector<64x1xi1>
    %35 = arith.andi %34, %28 : vector<64x1xi1>
    %36 = vector.broadcast %24 : i32 to vector<64x1xi32>
    %37 = arith.addi %26, %36 : vector<64x1xi32>
    %38 = arith.select %35, %37, %26 : vector<64x1xi1>, vector<64x1xi32>
    %c1_i32_14 = arith.constant 1 : i32
    %39 = vector.broadcast %c1_i32_14 : i32 to vector<64x1xi32>
    %40 = arith.cmpi sge, %38, %39 : vector<64x1xi32>
    %cst_15 = arith.constant 0.000000e+00 : f32
    %41 = vector.broadcast %cst_15 : f32 to vector<64x8xf32>
    %42 = vector.shape_cast %40 : vector<64x1xi1> to vector<64x1xi1>
    %43 = vector.broadcast %42 : vector<64x1xi1> to vector<64x8xi1>
    %44 = arith.select %43, %21, %41 : vector<64x8xi1>, vector<64x8xf32>
    %45 = arith.addf %17, %44 : vector<64x8xf32>
    %46 = vector.extract_strided_slice %16 {offsets = [0, 104], sizes = [64, 8], strides = [1, 1]} : vector<64x128xf32> to vector<64x8xf32>
    %cst_16 = arith.constant 0.000000e+00 : f32
    %47 = vector.broadcast %cst_16 : f32 to vector<8x8xf32>
    %48 = vector.extract_strided_slice %46 {offsets = [0, 0], sizes = [56, 8], strides = [1, 1]} : vector<64x8xf32> to vector<56x8xf32>
    %49 = tpu.concatenate %47, %48 in 0 : vector<8x8xf32>, vector<56x8xf32> -> vector<64x8xf32>
    %50 = tpu.iota {dimensions = array<i32: 0>} : vector<64x1xi32>
    %c8_i32_17 = arith.constant 8 : i32
    %51 = vector.broadcast %c8_i32_17 : i32 to vector<64x1xi32>
    %52 = arith.cmpi sge, %50, %51 : vector<64x1xi32>
    %cst_18 = arith.constant 0.000000e+00 : f32
    %53 = vector.broadcast %cst_18 : f32 to vector<64x8xf32>
    %54 = vector.shape_cast %52 : vector<64x1xi1> to vector<64x1xi1>
    %55 = vector.broadcast %54 : vector<64x1xi1> to vector<64x8xi1>
    %56 = arith.select %55, %49, %53 : vector<64x8xi1>, vector<64x8xf32>
    %57 = arith.addf %45, %56 : vector<64x8xf32>
    %58 = vector.extract_strided_slice %16 {offsets = [0, 120], sizes = [64, 8], strides = [1, 1]} : vector<64x128xf32> to vector<64x8xf32>
    %cst_19 = arith.constant 0.000000e+00 : f32
    %59 = vector.broadcast %cst_19 : f32 to vector<9x8xf32>
    %60 = vector.extract_strided_slice %58 {offsets = [0, 0], sizes = [55, 8], strides = [1, 1]} : vector<64x8xf32> to vector<55x8xf32>
    %61 = tpu.concatenate %59, %60 in 0 : vector<9x8xf32>, vector<55x8xf32> -> vector<64x8xf32>
    %62 = tpu.iota {dimensions = array<i32: 0>} : vector<64x1xi32>
    %c8_i32_20 = arith.constant 8 : i32
    %63 = vector.broadcast %c8_i32_20 : i32 to vector<64x1xi32>
    %64 = arith.cmpi sge, %62, %63 : vector<64x1xi32>
    %c8_i32_21 = arith.constant 8 : i32
    %c0_i32_22 = arith.constant 0 : i32
    %65 = arith.cmpi eq, %c8_i32_21, %c0_i32_22 : i32
    %c1_i32_23 = arith.constant 1 : i32
    %66 = arith.select %65, %c1_i32_23, %c8_i32_21 : i32
    %67 = vector.broadcast %66 : i32 to vector<64x1xi32>
    %68 = arith.remsi %62, %67 : vector<64x1xi32>
    %c0_i32_24 = arith.constant 0 : i32
    %69 = vector.broadcast %c0_i32_24 : i32 to vector<64x1xi32>
    %70 = arith.cmpi ne, %68, %69 : vector<64x1xi32>
    %c0_i32_25 = arith.constant 0 : i32
    %71 = vector.broadcast %c0_i32_25 : i32 to vector<64x1xi32>
    %72 = arith.cmpi slt, %68, %71 : vector<64x1xi32>
    %c0_i32_26 = arith.constant 0 : i32
    %73 = arith.cmpi slt, %66, %c0_i32_26 : i32
    %74 = vector.broadcast %73 : i1 to vector<64x1xi1>
    %75 = vector.broadcast %74 : vector<64x1xi1> to vector<64x1xi1>
    %76 = arith.xori %72, %75 : vector<64x1xi1>
    %77 = arith.andi %76, %70 : vector<64x1xi1>
    %78 = vector.broadcast %66 : i32 to vector<64x1xi32>
    %79 = arith.addi %68, %78 : vector<64x1xi32>
    %80 = arith.select %77, %79, %68 : vector<64x1xi1>, vector<64x1xi32>
    %c1_i32_27 = arith.constant 1 : i32
    %81 = vector.broadcast %c1_i32_27 : i32 to vector<64x1xi32>
    %82 = arith.cmpi sge, %80, %81 : vector<64x1xi32>
    %83 = arith.andi %64, %82 : vector<64x1xi1>
    %cst_28 = arith.constant 0.000000e+00 : f32
    %84 = vector.broadcast %cst_28 : f32 to vector<64x8xf32>
    %85 = vector.shape_cast %83 : vector<64x1xi1> to vector<64x1xi1>
    %86 = vector.broadcast %85 : vector<64x1xi1> to vector<64x8xi1>
    %87 = arith.select %86, %61, %84 : vector<64x8xi1>, vector<64x8xf32>
    %88 = arith.addf %57, %87 : vector<64x8xf32>
    %89 = math.tanh %88 : vector<64x8xf32>
    %90 = vector.shape_cast %89 : vector<64x8xf32> to vector<8x8x8xf32>
    %c0_29 = arith.constant 0 : index
    %c0_30 = arith.constant 0 : index
    %c0_31 = arith.constant 0 : index
    %c0_32 = arith.constant 0 : index
    %c0_33 = arith.constant 0 : index
    %91 = vector.load %arg5[%c0_29, %c0_30, %c0_31, %c0_32, %c0_33] : memref<1x8x2x8x16xf32, #tpu.memory_space<vmem>>, vector<1x8x1x8x8xf32>
    %92 = vector.shape_cast %91 : vector<1x8x1x8x8xf32> to vector<8x8x8xf32>
    %93 = vector.shape_cast %90 : vector<8x8x8xf32> to vector<1x8x1x8x8xf32>
    tpu.vector_store %arg5[%c0_29, %c0_30, %c0_31, %c0_32, %c0_33], %93 {strides = array<i32>} : memref<1x8x2x8x16xf32, #tpu.memory_space<vmem>>, vector<1x8x1x8x8xf32>,
    %94 = vector.extract_strided_slice %16 {offsets = [0, 32], sizes = [64, 8], strides = [1, 1]} : vector<64x128xf32> to vector<64x8xf32>
    %95 = vector.extract_strided_slice %94 {offsets = [1, 0], sizes = [63, 8], strides = [1, 1]} : vector<64x8xf32> to vector<63x8xf32>
    %cst_34 = arith.constant 0.000000e+00 : f32
    %96 = vector.broadcast %cst_34 : f32 to vector<1x8xf32>
    %97 = tpu.concatenate %95, %96 in 0 : vector<63x8xf32>, vector<1x8xf32> -> vector<64x8xf32>
    %98 = tpu.iota {dimensions = array<i32: 0>} : vector<64x1xi32>
    %c8_i32_35 = arith.constant 8 : i32
    %c0_i32_36 = arith.constant 0 : i32
    %99 = arith.cmpi eq, %c8_i32_35, %c0_i32_36 : i32
    %c1_i32_37 = arith.constant 1 : i32
    %100 = arith.select %99, %c1_i32_37, %c8_i32_35 : i32
    %101 = vector.broadcast %100 : i32 to vector<64x1xi32>
    %102 = arith.remsi %98, %101 : vector<64x1xi32>
    %c0_i32_38 = arith.constant 0 : i32
    %103 = vector.broadcast %c0_i32_38 : i32 to vector<64x1xi32>
    %104 = arith.cmpi ne, %102, %103 : vector<64x1xi32>
    %c0_i32_39 = arith.constant 0 : i32
    %105 = vector.broadcast %c0_i32_39 : i32 to vector<64x1xi32>
    %106 = arith.cmpi slt, %102, %105 : vector<64x1xi32>
    %c0_i32_40 = arith.constant 0 : i32
    %107 = arith.cmpi slt, %100, %c0_i32_40 : i32
    %108 = vector.broadcast %107 : i1 to vector<64x1xi1>
    %109 = vector.broadcast %108 : vector<64x1xi1> to vector<64x1xi1>
    %110 = arith.xori %106, %109 : vector<64x1xi1>
    %111 = arith.andi %110, %104 : vector<64x1xi1>
    %112 = vector.broadcast %100 : i32 to vector<64x1xi32>
    %113 = arith.addi %102, %112 : vector<64x1xi32>
    %114 = arith.select %111, %113, %102 : vector<64x1xi1>, vector<64x1xi32>
    %c7_i32 = arith.constant 7 : i32
    %115 = vector.broadcast %c7_i32 : i32 to vector<64x1xi32>
    %116 = arith.cmpi slt, %114, %115 : vector<64x1xi32>
    %cst_41 = arith.constant 0.000000e+00 : f32
    %117 = vector.broadcast %cst_41 : f32 to vector<64x8xf32>
    %118 = vector.shape_cast %116 : vector<64x1xi1> to vector<64x1xi1>
    %119 = vector.broadcast %118 : vector<64x1xi1> to vector<64x8xi1>
    %120 = arith.select %119, %97, %117 : vector<64x8xi1>, vector<64x8xf32>
    %121 = vector.extract_strided_slice %16 {offsets = [0, 48], sizes = [64, 8], strides = [1, 1]} : vector<64x128xf32> to vector<64x8xf32>
    %122 = arith.addf %120, %121 : vector<64x8xf32>
    %123 = vector.extract_strided_slice %16 {offsets = [0, 96], sizes = [64, 8], strides = [1, 1]} : vector<64x128xf32> to vector<64x8xf32>
    %cst_42 = arith.constant 0.000000e+00 : f32
    %124 = vector.broadcast %cst_42 : f32 to vector<7x8xf32>
    %125 = vector.extract_strided_slice %123 {offsets = [0, 0], sizes = [57, 8], strides = [1, 1]} : vector<64x8xf32> to vector<57x8xf32>
    %126 = tpu.concatenate %124, %125 in 0 : vector<7x8xf32>, vector<57x8xf32> -> vector<64x8xf32>
    %127 = tpu.iota {dimensions = array<i32: 0>} : vector<64x1xi32>
    %c8_i32_43 = arith.constant 8 : i32
    %128 = vector.broadcast %c8_i32_43 : i32 to vector<64x1xi32>
    %129 = arith.cmpi sge, %127, %128 : vector<64x1xi32>
    %c8_i32_44 = arith.constant 8 : i32
    %c0_i32_45 = arith.constant 0 : i32
    %130 = arith.cmpi eq, %c8_i32_44, %c0_i32_45 : i32
    %c1_i32_46 = arith.constant 1 : i32
    %131 = arith.select %130, %c1_i32_46, %c8_i32_44 : i32
    %132 = vector.broadcast %131 : i32 to vector<64x1xi32>
    %133 = arith.remsi %127, %132 : vector<64x1xi32>
    %c0_i32_47 = arith.constant 0 : i32
    %134 = vector.broadcast %c0_i32_47 : i32 to vector<64x1xi32>
    %135 = arith.cmpi ne, %133, %134 : vector<64x1xi32>
    %c0_i32_48 = arith.constant 0 : i32
    %136 = vector.broadcast %c0_i32_48 : i32 to vector<64x1xi32>
    %137 = arith.cmpi slt, %133, %136 : vector<64x1xi32>
    %c0_i32_49 = arith.constant 0 : i32
    %138 = arith.cmpi slt, %131, %c0_i32_49 : i32
    %139 = vector.broadcast %138 : i1 to vector<64x1xi1>
    %140 = vector.broadcast %139 : vector<64x1xi1> to vector<64x1xi1>
    %141 = arith.xori %137, %140 : vector<64x1xi1>
    %142 = arith.andi %141, %135 : vector<64x1xi1>
    %143 = vector.broadcast %131 : i32 to vector<64x1xi32>
    %144 = arith.addi %133, %143 : vector<64x1xi32>
    %145 = arith.select %142, %144, %133 : vector<64x1xi1>, vector<64x1xi32>
    %c7_i32_50 = arith.constant 7 : i32
    %146 = vector.broadcast %c7_i32_50 : i32 to vector<64x1xi32>
    %147 = arith.cmpi slt, %145, %146 : vector<64x1xi32>
    %148 = arith.andi %129, %147 : vector<64x1xi1>
    %cst_51 = arith.constant 0.000000e+00 : f32
    %149 = vector.broadcast %cst_51 : f32 to vector<64x8xf32>
    %150 = vector.shape_cast %148 : vector<64x1xi1> to vector<64x1xi1>
    %151 = vector.broadcast %150 : vector<64x1xi1> to vector<64x8xi1>
    %152 = arith.select %151, %126, %149 : vector<64x8xi1>, vector<64x8xf32>
    %153 = arith.addf %122, %152 : vector<64x8xf32>
    %154 = vector.extract_strided_slice %16 {offsets = [0, 112], sizes = [64, 8], strides = [1, 1]} : vector<64x128xf32> to vector<64x8xf32>
    %cst_52 = arith.constant 0.000000e+00 : f32
    %155 = vector.broadcast %cst_52 : f32 to vector<8x8xf32>
    %156 = vector.extract_strided_slice %154 {offsets = [0, 0], sizes = [56, 8], strides = [1, 1]} : vector<64x8xf32> to vector<56x8xf32>
    %157 = tpu.concatenate %155, %156 in 0 : vector<8x8xf32>, vector<56x8xf32> -> vector<64x8xf32>
    %158 = tpu.iota {dimensions = array<i32: 0>} : vector<64x1xi32>
    %c8_i32_53 = arith.constant 8 : i32
    %159 = vector.broadcast %c8_i32_53 : i32 to vector<64x1xi32>
    %160 = arith.cmpi sge, %158, %159 : vector<64x1xi32>
    %cst_54 = arith.constant 0.000000e+00 : f32
    %161 = vector.broadcast %cst_54 : f32 to vector<64x8xf32>
    %162 = vector.shape_cast %160 : vector<64x1xi1> to vector<64x1xi1>
    %163 = vector.broadcast %162 : vector<64x1xi1> to vector<64x8xi1>
    %164 = arith.select %163, %157, %161 : vector<64x8xi1>, vector<64x8xf32>
    %165 = arith.addf %153, %164 : vector<64x8xf32>
    %166 = math.tanh %165 : vector<64x8xf32>
    %167 = vector.shape_cast %166 : vector<64x8xf32> to vector<8x8x8xf32>
    %c0_55 = arith.constant 0 : index
    %c0_56 = arith.constant 0 : index
    %c0_57 = arith.constant 0 : index
    %c0_58 = arith.constant 0 : index
    %c8 = arith.constant 8 : index
    %168 = vector.load %arg5[%c0_55, %c0_56, %c0_57, %c0_58, %c8] : memref<1x8x2x8x16xf32, #tpu.memory_space<vmem>>, vector<1x8x1x8x8xf32>
    %169 = vector.shape_cast %168 : vector<1x8x1x8x8xf32> to vector<8x8x8xf32>
    %170 = vector.shape_cast %167 : vector<8x8x8xf32> to vector<1x8x1x8x8xf32>
    tpu.vector_store %arg5[%c0_55, %c0_56, %c0_57, %c0_58, %c8], %170 {strides = array<i32>} : memref<1x8x2x8x16xf32, #tpu.memory_space<vmem>>, vector<1x8x1x8x8xf32>,
    %171 = vector.extract_strided_slice %16 {offsets = [0, 8], sizes = [64, 8], strides = [1, 1]} : vector<64x128xf32> to vector<64x8xf32>
    %172 = vector.extract_strided_slice %171 {offsets = [8, 0], sizes = [56, 8], strides = [1, 1]} : vector<64x8xf32> to vector<56x8xf32>
    %cst_59 = arith.constant 0.000000e+00 : f32
    %173 = vector.broadcast %cst_59 : f32 to vector<8x8xf32>
    %174 = tpu.concatenate %172, %173 in 0 : vector<56x8xf32>, vector<8x8xf32> -> vector<64x8xf32>
    %175 = tpu.iota {dimensions = array<i32: 0>} : vector<64x1xi32>
    %c56_i32 = arith.constant 56 : i32
    %176 = vector.broadcast %c56_i32 : i32 to vector<64x1xi32>
    %177 = arith.cmpi slt, %175, %176 : vector<64x1xi32>
    %cst_60 = arith.constant 0.000000e+00 : f32
    %178 = vector.broadcast %cst_60 : f32 to vector<64x8xf32>
    %179 = vector.shape_cast %177 : vector<64x1xi1> to vector<64x1xi1>
    %180 = vector.broadcast %179 : vector<64x1xi1> to vector<64x8xi1>
    %181 = arith.select %180, %174, %178 : vector<64x8xi1>, vector<64x8xf32>
    %182 = vector.extract_strided_slice %16 {offsets = [0, 24], sizes = [64, 8], strides = [1, 1]} : vector<64x128xf32> to vector<64x8xf32>
    %183 = vector.extract_strided_slice %182 {offsets = [7, 0], sizes = [57, 8], strides = [1, 1]} : vector<64x8xf32> to vector<57x8xf32>
    %cst_61 = arith.constant 0.000000e+00 : f32
    %184 = vector.broadcast %cst_61 : f32 to vector<7x8xf32>
    %185 = tpu.concatenate %183, %184 in 0 : vector<57x8xf32>, vector<7x8xf32> -> vector<64x8xf32>
    %186 = tpu.iota {dimensions = array<i32: 0>} : vector<64x1xi32>
    %c56_i32_62 = arith.constant 56 : i32
    %187 = vector.broadcast %c56_i32_62 : i32 to vector<64x1xi32>
    %188 = arith.cmpi slt, %186, %187 : vector<64x1xi32>
    %c8_i32_63 = arith.constant 8 : i32
    %c0_i32_64 = arith.constant 0 : i32
    %189 = arith.cmpi eq, %c8_i32_63, %c0_i32_64 : i32
    %c1_i32_65 = arith.constant 1 : i32
    %190 = arith.select %189, %c1_i32_65, %c8_i32_63 : i32
    %191 = vector.broadcast %190 : i32 to vector<64x1xi32>
    %192 = arith.remsi %186, %191 : vector<64x1xi32>
    %c0_i32_66 = arith.constant 0 : i32
    %193 = vector.broadcast %c0_i32_66 : i32 to vector<64x1xi32>
    %194 = arith.cmpi ne, %192, %193 : vector<64x1xi32>
    %c0_i32_67 = arith.constant 0 : i32
    %195 = vector.broadcast %c0_i32_67 : i32 to vector<64x1xi32>
    %196 = arith.cmpi slt, %192, %195 : vector<64x1xi32>
    %c0_i32_68 = arith.constant 0 : i32
    %197 = arith.cmpi slt, %190, %c0_i32_68 : i32
    %198 = vector.broadcast %197 : i1 to vector<64x1xi1>
    %199 = vector.broadcast %198 : vector<64x1xi1> to vector<64x1xi1>
    %200 = arith.xori %196, %199 : vector<64x1xi1>
    %201 = arith.andi %200, %194 : vector<64x1xi1>
    %202 = vector.broadcast %190 : i32 to vector<64x1xi32>
    %203 = arith.addi %192, %202 : vector<64x1xi32>
    %204 = arith.select %201, %203, %192 : vector<64x1xi1>, vector<64x1xi32>
    %c1_i32_69 = arith.constant 1 : i32
    %205 = vector.broadcast %c1_i32_69 : i32 to vector<64x1xi32>
    %206 = arith.cmpi sge, %204, %205 : vector<64x1xi32>
    %207 = arith.andi %188, %206 : vector<64x1xi1>
    %cst_70 = arith.constant 0.000000e+00 : f32
    %208 = vector.broadcast %cst_70 : f32 to vector<64x8xf32>
    %209 = vector.shape_cast %207 : vector<64x1xi1> to vector<64x1xi1>
    %210 = vector.broadcast %209 : vector<64x1xi1> to vector<64x8xi1>
    %211 = arith.select %210, %185, %208 : vector<64x8xi1>, vector<64x8xf32>
    %212 = arith.addf %181, %211 : vector<64x8xf32>
    %213 = vector.extract_strided_slice %16 {offsets = [0, 72], sizes = [64, 8], strides = [1, 1]} : vector<64x128xf32> to vector<64x8xf32>
    %214 = arith.addf %212, %213 : vector<64x8xf32>
    %215 = vector.extract_strided_slice %16 {offsets = [0, 88], sizes = [64, 8], strides = [1, 1]} : vector<64x128xf32> to vector<64x8xf32>
    %cst_71 = arith.constant 0.000000e+00 : f32
    %216 = vector.broadcast %cst_71 : f32 to vector<1x8xf32>
    %217 = vector.extract_strided_slice %215 {offsets = [0, 0], sizes = [63, 8], strides = [1, 1]} : vector<64x8xf32> to vector<63x8xf32>
    %218 = tpu.concatenate %216, %217 in 0 : vector<1x8xf32>, vector<63x8xf32> -> vector<64x8xf32>
    %219 = tpu.iota {dimensions = array<i32: 0>} : vector<64x1xi32>
    %c8_i32_72 = arith.constant 8 : i32
    %c0_i32_73 = arith.constant 0 : i32
    %220 = arith.cmpi eq, %c8_i32_72, %c0_i32_73 : i32
    %c1_i32_74 = arith.constant 1 : i32
    %221 = arith.select %220, %c1_i32_74, %c8_i32_72 : i32
    %222 = vector.broadcast %221 : i32 to vector<64x1xi32>
    %223 = arith.remsi %219, %222 : vector<64x1xi32>
    %c0_i32_75 = arith.constant 0 : i32
    %224 = vector.broadcast %c0_i32_75 : i32 to vector<64x1xi32>
    %225 = arith.cmpi ne, %223, %224 : vector<64x1xi32>
    %c0_i32_76 = arith.constant 0 : i32
    %226 = vector.broadcast %c0_i32_76 : i32 to vector<64x1xi32>
    %227 = arith.cmpi slt, %223, %226 : vector<64x1xi32>
    %c0_i32_77 = arith.constant 0 : i32
    %228 = arith.cmpi slt, %221, %c0_i32_77 : i32
    %229 = vector.broadcast %228 : i1 to vector<64x1xi1>
    %230 = vector.broadcast %229 : vector<64x1xi1> to vector<64x1xi1>
    %231 = arith.xori %227, %230 : vector<64x1xi1>
    %232 = arith.andi %231, %225 : vector<64x1xi1>
    %233 = vector.broadcast %221 : i32 to vector<64x1xi32>
    %234 = arith.addi %223, %233 : vector<64x1xi32>
    %235 = arith.select %232, %234, %223 : vector<64x1xi1>, vector<64x1xi32>
    %c1_i32_78 = arith.constant 1 : i32
    %236 = vector.broadcast %c1_i32_78 : i32 to vector<64x1xi32>
    %237 = arith.cmpi sge, %235, %236 : vector<64x1xi32>
    %cst_79 = arith.constant 0.000000e+00 : f32
    %238 = vector.broadcast %cst_79 : f32 to vector<64x8xf32>
    %239 = vector.shape_cast %237 : vector<64x1xi1> to vector<64x1xi1>
    %240 = vector.broadcast %239 : vector<64x1xi1> to vector<64x8xi1>
    %241 = arith.select %240, %218, %238 : vector<64x8xi1>, vector<64x8xf32>
    %242 = arith.addf %214, %241 : vector<64x8xf32>
    %243 = math.tanh %242 : vector<64x8xf32>
    %244 = vector.shape_cast %243 : vector<64x8xf32> to vector<8x8x8xf32>
    %c0_80 = arith.constant 0 : index
    %c0_81 = arith.constant 0 : index
    %c1 = arith.constant 1 : index
    %c0_82 = arith.constant 0 : index
    %c0_83 = arith.constant 0 : index
    %245 = vector.load %arg5[%c0_80, %c0_81, %c1, %c0_82, %c0_83] : memref<1x8x2x8x16xf32, #tpu.memory_space<vmem>>, vector<1x8x1x8x8xf32>
    %246 = vector.shape_cast %245 : vector<1x8x1x8x8xf32> to vector<8x8x8xf32>
    %247 = vector.shape_cast %244 : vector<8x8x8xf32> to vector<1x8x1x8x8xf32>
    tpu.vector_store %arg5[%c0_80, %c0_81, %c1, %c0_82, %c0_83], %247 {strides = array<i32>} : memref<1x8x2x8x16xf32, #tpu.memory_space<vmem>>, vector<1x8x1x8x8xf32>,
    %248 = vector.extract_strided_slice %16 {offsets = [0, 0], sizes = [64, 8], strides = [1, 1]} : vector<64x128xf32> to vector<64x8xf32>
    %249 = vector.extract_strided_slice %248 {offsets = [9, 0], sizes = [55, 8], strides = [1, 1]} : vector<64x8xf32> to vector<55x8xf32>
    %cst_84 = arith.constant 0.000000e+00 : f32
    %250 = vector.broadcast %cst_84 : f32 to vector<9x8xf32>
    %251 = tpu.concatenate %249, %250 in 0 : vector<55x8xf32>, vector<9x8xf32> -> vector<64x8xf32>
    %252 = tpu.iota {dimensions = array<i32: 0>} : vector<64x1xi32>
    %c56_i32_85 = arith.constant 56 : i32
    %253 = vector.broadcast %c56_i32_85 : i32 to vector<64x1xi32>
    %254 = arith.cmpi slt, %252, %253 : vector<64x1xi32>
    %c8_i32_86 = arith.constant 8 : i32
    %c0_i32_87 = arith.constant 0 : i32
    %255 = arith.cmpi eq, %c8_i32_86, %c0_i32_87 : i32
    %c1_i32_88 = arith.constant 1 : i32
    %256 = arith.select %255, %c1_i32_88, %c8_i32_86 : i32
    %257 = vector.broadcast %256 : i32 to vector<64x1xi32>
    %258 = arith.remsi %252, %257 : vector<64x1xi32>
    %c0_i32_89 = arith.constant 0 : i32
    %259 = vector.broadcast %c0_i32_89 : i32 to vector<64x1xi32>
    %260 = arith.cmpi ne, %258, %259 : vector<64x1xi32>
    %c0_i32_90 = arith.constant 0 : i32
    %261 = vector.broadcast %c0_i32_90 : i32 to vector<64x1xi32>
    %262 = arith.cmpi slt, %258, %261 : vector<64x1xi32>
    %c0_i32_91 = arith.constant 0 : i32
    %263 = arith.cmpi slt, %256, %c0_i32_91 : i32
    %264 = vector.broadcast %263 : i1 to vector<64x1xi1>
    %265 = vector.broadcast %264 : vector<64x1xi1> to vector<64x1xi1>
    %266 = arith.xori %262, %265 : vector<64x1xi1>
    %267 = arith.andi %266, %260 : vector<64x1xi1>
    %268 = vector.broadcast %256 : i32 to vector<64x1xi32>
    %269 = arith.addi %258, %268 : vector<64x1xi32>
    %270 = arith.select %267, %269, %258 : vector<64x1xi1>, vector<64x1xi32>
    %c7_i32_92 = arith.constant 7 : i32
    %271 = vector.broadcast %c7_i32_92 : i32 to vector<64x1xi32>
    %272 = arith.cmpi slt, %270, %271 : vector<64x1xi32>
    %273 = arith.andi %254, %272 : vector<64x1xi1>
    %cst_93 = arith.constant 0.000000e+00 : f32
    %274 = vector.broadcast %cst_93 : f32 to vector<64x8xf32>
    %275 = vector.shape_cast %273 : vector<64x1xi1> to vector<64x1xi1>
    %276 = vector.broadcast %275 : vector<64x1xi1> to vector<64x8xi1>
    %277 = arith.select %276, %251, %274 : vector<64x8xi1>, vector<64x8xf32>
    %278 = vector.extract_strided_slice %16 {offsets = [0, 16], sizes = [64, 8], strides = [1, 1]} : vector<64x128xf32> to vector<64x8xf32>
    %279 = vector.extract_strided_slice %278 {offsets = [8, 0], sizes = [56, 8], strides = [1, 1]} : vector<64x8xf32> to vector<56x8xf32>
    %cst_94 = arith.constant 0.000000e+00 : f32
    %280 = vector.broadcast %cst_94 : f32 to vector<8x8xf32>
    %281 = tpu.concatenate %279, %280 in 0 : vector<56x8xf32>, vector<8x8xf32> -> vector<64x8xf32>
    %282 = tpu.iota {dimensions = array<i32: 0>} : vector<64x1xi32>
    %c56_i32_95 = arith.constant 56 : i32
    %283 = vector.broadcast %c56_i32_95 : i32 to vector<64x1xi32>
    %284 = arith.cmpi slt, %282, %283 : vector<64x1xi32>
    %cst_96 = arith.constant 0.000000e+00 : f32
    %285 = vector.broadcast %cst_96 : f32 to vector<64x8xf32>
    %286 = vector.shape_cast %284 : vector<64x1xi1> to vector<64x1xi1>
    %287 = vector.broadcast %286 : vector<64x1xi1> to vector<64x8xi1>
    %288 = arith.select %287, %281, %285 : vector<64x8xi1>, vector<64x8xf32>
    %289 = arith.addf %277, %288 : vector<64x8xf32>
    %290 = vector.extract_strided_slice %16 {offsets = [0, 64], sizes = [64, 8], strides = [1, 1]} : vector<64x128xf32> to vector<64x8xf32>
    %291 = vector.extract_strided_slice %290 {offsets = [1, 0], sizes = [63, 8], strides = [1, 1]} : vector<64x8xf32> to vector<63x8xf32>
    %cst_97 = arith.constant 0.000000e+00 : f32
    %292 = vector.broadcast %cst_97 : f32 to vector<1x8xf32>
    %293 = tpu.concatenate %291, %292 in 0 : vector<63x8xf32>, vector<1x8xf32> -> vector<64x8xf32>
    %294 = tpu.iota {dimensions = array<i32: 0>} : vector<64x1xi32>
    %c8_i32_98 = arith.constant 8 : i32
    %c0_i32_99 = arith.constant 0 : i32
    %295 = arith.cmpi eq, %c8_i32_98, %c0_i32_99 : i32
    %c1_i32_100 = arith.constant 1 : i32
    %296 = arith.select %295, %c1_i32_100, %c8_i32_98 : i32
    %297 = vector.broadcast %296 : i32 to vector<64x1xi32>
    %298 = arith.remsi %294, %297 : vector<64x1xi32>
    %c0_i32_101 = arith.constant 0 : i32
    %299 = vector.broadcast %c0_i32_101 : i32 to vector<64x1xi32>
    %300 = arith.cmpi ne, %298, %299 : vector<64x1xi32>
    %c0_i32_102 = arith.constant 0 : i32
    %301 = vector.broadcast %c0_i32_102 : i32 to vector<64x1xi32>
    %302 = arith.cmpi slt, %298, %301 : vector<64x1xi32>
    %c0_i32_103 = arith.constant 0 : i32
    %303 = arith.cmpi slt, %296, %c0_i32_103 : i32
    %304 = vector.broadcast %303 : i1 to vector<64x1xi1>
    %305 = vector.broadcast %304 : vector<64x1xi1> to vector<64x1xi1>
    %306 = arith.xori %302, %305 : vector<64x1xi1>
    %307 = arith.andi %306, %300 : vector<64x1xi1>
    %308 = vector.broadcast %296 : i32 to vector<64x1xi32>
    %309 = arith.addi %298, %308 : vector<64x1xi32>
    %310 = arith.select %307, %309, %298 : vector<64x1xi1>, vector<64x1xi32>
    %c7_i32_104 = arith.constant 7 : i32
    %311 = vector.broadcast %c7_i32_104 : i32 to vector<64x1xi32>
    %312 = arith.cmpi slt, %310, %311 : vector<64x1xi32>
    %cst_105 = arith.constant 0.000000e+00 : f32
    %313 = vector.broadcast %cst_105 : f32 to vector<64x8xf32>
    %314 = vector.shape_cast %312 : vector<64x1xi1> to vector<64x1xi1>
    %315 = vector.broadcast %314 : vector<64x1xi1> to vector<64x8xi1>
    %316 = arith.select %315, %293, %313 : vector<64x8xi1>, vector<64x8xf32>
    %317 = arith.addf %289, %316 : vector<64x8xf32>
    %318 = vector.extract_strided_slice %16 {offsets = [0, 80], sizes = [64, 8], strides = [1, 1]} : vector<64x128xf32> to vector<64x8xf32>
    %319 = arith.addf %317, %318 : vector<64x8xf32>
    %320 = math.tanh %319 : vector<64x8xf32>
    %321 = vector.shape_cast %320 : vector<64x8xf32> to vector<8x8x8xf32>
    %c0_106 = arith.constant 0 : index
    %c0_107 = arith.constant 0 : index
    %c1_108 = arith.constant 1 : index
    %c0_109 = arith.constant 0 : index
    %c8_110 = arith.constant 8 : index
    %322 = vector.load %arg5[%c0_106, %c0_107, %c1_108, %c0_109, %c8_110] : memref<1x8x2x8x16xf32, #tpu.memory_space<vmem>>, vector<1x8x1x8x8xf32>
    %323 = vector.shape_cast %322 : vector<1x8x1x8x8xf32> to vector<8x8x8xf32>
    %324 = vector.shape_cast %321 : vector<8x8x8xf32> to vector<1x8x1x8x8xf32>
    tpu.vector_store %arg5[%c0_106, %c0_107, %c1_108, %c0_109, %c8_110], %324 {strides = array<i32>} : memref<1x8x2x8x16xf32, #tpu.memory_space<vmem>>, vector<1x8x1x8x8xf32>,
    return
  }
  func.func @transform_0(%arg0: i32) -> (i32, i32, i32) {
    %c0_i32 = arith.constant 0 : i32
    %c0_i32_0 = arith.constant 0 : i32
    %c0_i32_1 = arith.constant 0 : i32
    return %arg0, %c0_i32, %c0_i32_0 : i32, i32, i32
  }
  func.func @transform_1(%arg0: i32) -> (i32, i32) {
    %c0_i32 = arith.constant 0 : i32
    %c0_i32_0 = arith.constant 0 : i32
    %c0_i32_1 = arith.constant 0 : i32
    return %c0_i32, %c0_i32_0 : i32, i32
  }
  func.func @transform_2(%arg0: i32) -> (i32, i32) {
    %c0_i32 = arith.constant 0 : i32
    %c0_i32_0 = arith.constant 0 : i32
    %c0_i32_1 = arith.constant 0 : i32
    return %c0_i32, %c0_i32_0 : i32, i32
  }
  func.func @transform_3(%arg0: i32) -> (i32, i32) {
    %c0_i32 = arith.constant 0 : i32
    %c0_i32_0 = arith.constant 0 : i32
    %c0_i32_1 = arith.constant 0 : i32
    return %c0_i32, %c0_i32_0 : i32, i32
  }
  func.func @transform_4(%arg0: i32) -> (i32, i32, i32, i32, i32) {
    %c0_i32 = arith.constant 0 : i32
    %c0_i32_0 = arith.constant 0 : i32
    %c0_i32_1 = arith.constant 0 : i32
    %c0_i32_2 = arith.constant 0 : i32
    %c0_i32_3 = arith.constant 0 : i32
    return %arg0, %c0_i32, %c0_i32_0, %c0_i32_1, %c0_i32_2 : i32, i32, i32, i32, i32
  }
}

</mosaic_0001>

<llo_original>
// kernel: generator_forward.7
$region0: #{generator_forward.7}
  #allocation0 [shape = 'u32[]', space=smem, size = 0x4, offset = 0x4, fixed_abs, tag = 'smem constant byte address 0x4 - core index']
  #allocation1 [shape = 'u32[144,128]{1,0:T(1,128)}', space=vmem, size = 0x12000, scoped, tag = 'internal scratch']
  #allocation2 [shape = 'f32[1,128]{1,0:T(1,128)}', space=vmem, size = 0x200, scoped, tag = 'scratch operand']
  #allocation3 [shape = 'f32[1,128]{1,0:T(1,128)}', space=vmem, size = 0x200, scoped, tag = 'scratch operand']
  %s0 = inlined_call_operand.vmem [shape: f32[32,128], index: 0, kind: input, shape index: {}]
  %s1 = inlined_call_operand.hbm [shape: f32[1,128], index: 1, kind: input, shape index: {}]
  %s2 = inlined_call_operand.hbm [shape: f32[1,128], index: 2, kind: input, shape index: {}]
  %s3 = inlined_call_operand.vmem [shape: f32[1,128], index: 3, kind: output, shape index: {0}]
  %s4 = inlined_call_operand.vmem [shape: f32[1,128], index: 4, kind: output, shape index: {1}]
  %5 = xla_tuple %s3, %s4
  %s6 = sld [smem:[#allocation0]]
  $region46: #{generator_forward.7} parent=0
    _
  %s8 = ssub.s32 1, %s6
  %s9 = scalar_select 0, %s8, %s6
  $region1: #{generator_forward.7} parent=0
    #allocation4 [shape = 'u8[512]{0}', space=vmem, size = 0x400, scoped, tag = 'input window, operand 1, single buffered']
    #allocation5 [shape = 's32[1]{0}', space=sflag, size = 0x4, scoped, tag = 'scoped memory for generator_forward.7']
    #allocation6 [shape = 'u8[512]{0}', space=vmem, size = 0x400, scoped, tag = 'input window, operand 2, single buffered']
    #allocation7 [shape = 's32[1]{0}', space=sflag, size = 0x4, scoped, tag = 'scoped memory for generator_forward.7']
    %10 = vsyncpa [#allocation5], 0
    %11 = vsyncpa [#allocation7], 0
    // Predicated region
    $region2: #{generator_forward.7} parent=1 // pred_check
      _
    $region3: #{generator_forward.7} parent=1 // pred_check_branch
      %13 = sbr.rel (0) target = $region5
    $region4: #{generator_forward.7} parent=1 // pred_region
      _
    $region5: #{generator_forward.7} parent=1 // pred_fallthru
      _
    // Predicated region
    $region6: #{generator_forward.7} parent=1 // pred_check
      _
    $region7: #{generator_forward.7} parent=1 // pred_check_branch
      %15 = sbr.rel (0) target = $region9
    $region8: #{generator_forward.7} parent=1 // pred_region
      %s17 = ssub.s32 16, 16
      %18 = vsyncadd [#allocation5], %s17
      %s20 = sshll.u32 [#allocation4], 4
      %s21 = int_to_ptr.vmem [resolvable:$true] %s20
      %23 = dma.hbm_to_vmem [thread:$0]  %s1, 16, %s21, [#allocation5]
    $region9: #{generator_forward.7} parent=1 // pred_fallthru
      _
    // Predicated region
    $region10: #{generator_forward.7} parent=1 // pred_check
      _
    $region11: #{generator_forward.7} parent=1 // pred_check_branch
      %25 = sbr.rel (0) target = $region13
    $region12: #{generator_forward.7} parent=1 // pred_region
      %s27 = ssub.s32 16, 16
      %28 = vsyncadd [#allocation7], %s27
      %s30 = sshll.u32 [#allocation6], 4
      %s31 = int_to_ptr.vmem [resolvable:$true] %s30
      %33 = dma.hbm_to_vmem [thread:$0]  %s2, 16, %s31, [#allocation7]
    $region13: #{generator_forward.7} parent=1 // pred_fallthru
      _
    // Predicated region
    $region14: #{generator_forward.7} parent=1 // pred_check
      _
    $region15: #{generator_forward.7} parent=1 // pred_check_branch
      %35 = sbr.rel (0) target = $region17
    $region16: #{generator_forward.7} parent=1 // pred_region
      %36 = dma.done [#allocation5], 16
    $region17: #{generator_forward.7} parent=1 // pred_fallthru
      _
    // Predicated region
    $region18: #{generator_forward.7} parent=1 // pred_check
      _
    $region19: #{generator_forward.7} parent=1 // pred_check_branch
      %38 = sbr.rel (0) target = $region21
    $region20: #{generator_forward.7} parent=1 // pred_region
      %39 = dma.done [#allocation7], 16
    $region21: #{generator_forward.7} parent=1 // pred_fallthru
      _
    %p40 = scmp.eq.s32.totalorder 0, 0
    // Predicated region
    $region22: #{generator_forward.7} parent=1 // pred_check
      %p41 = pneg %p40
    $region23: #{generator_forward.7} parent=1 // pred_check_branch
      %43 = sbr.rel (%p41) target = $region25
    $region24: #{generator_forward.7} parent=1 // pred_region
      %44 = vst [vmem:[#allocation2] sm:$0x1] 0.0
      %45 = vst [vmem:[#allocation3] sm:$0x1] 0.0
    $region25: #{generator_forward.7} parent=1 // pred_fallthru
      _
    %v46 = vld [vmem:[%s0] sm:$0xff]
    %v47 = vld [vmem:[%s0 + $0x8] sm:$0xff]
    %v48 = vld [vmem:[%s0 + $0x10] sm:$0xff]
    %v49 = vld [vmem:[%s0 + $0x18] sm:$0xff]
    %v50 = vld [vmem:[#allocation2] sm:$0x1]
    %v51 = vadd.f32 %v46, %v47
    %v52 = vadd.f32 %v51, %v48
    %v53 = vadd.f32 %v52, %v49
    %v54 = vrot.slane %v53, 4
    %v55 = vadd.f32 %v53, %v54
    %v56 = vrot.slane %v55, 2
    %v57 = vadd.f32 %v55, %v56
    %v58 = vrot.slane %v57, 1
    %v59 = vadd.f32 %v57, %v58
    %v60 = vadd.f32 %v50, %v59
    %61 = vst [vmem:[#allocation2] sm:$0x1] %v60
    %v62 = vld [vmem:[#allocation3] sm:$0x1]
    %v63 = vmul.f32 %v46, %v46
    %v64 = vmul.f32 %v47, %v47
    %v65 = vmul.f32 %v48, %v48
    %v66 = vmul.f32 %v49, %v49
    %v67 = vadd.f32 %v63, %v64
    %v68 = vadd.f32 %v67, %v65
    %v69 = vadd.f32 %v68, %v66
    %v70 = vrot.slane %v69, 4
    %v71 = vadd.f32 %v69, %v70
    %v72 = vrot.slane %v71, 2
    %v73 = vadd.f32 %v71, %v72
    %v74 = vrot.slane %v73, 1
    %v75 = vadd.f32 %v73, %v74
    %v76 = vadd.f32 %v62, %v75
    %77 = vst [vmem:[#allocation3] sm:$0x1] %v76
    // Predicated region
    $region26: #{generator_forward.7} parent=1 // pred_check
      %p78 = pneg %p40
    $region27: #{generator_forward.7} parent=1 // pred_check_branch
      %80 = sbr.rel (%p78) target = $region29
    $region28: #{generator_forward.7} parent=1 // pred_region
      %v81 = vld [vmem:[#allocation2] sm:$0x1]
      %v82 = vmul.f32 %v81, 0.03125
      %v83 = vld [vmem:[#allocation3] sm:$0x1]
      %v84 = vmul.f32 %v83, 0.03125
      %v85 = vmul.f32 %v82, %v82
      %v86 = vsub.f32 %v84, %v85
      %v87 = vld [vmem:[#allocation4] sm:$0x1]
      %v88 = vadd.f32 %v86, 1e-05
      %v89 = vrsqrt.pop %v88
      %v90 = vmul.f32 %v87, %v89
      %91 = vst [vmem:[%s3] sm:$0x1] %v90
      %v92 = vld [vmem:[#allocation6] sm:$0x1]
      %v93 = vmul.f32 %v82, %v90
      %v94 = vsub.f32 %v92, %v93
      %95 = vst [vmem:[%s4] sm:$0x1] %v94
    $region29: #{generator_forward.7} parent=1 // pred_fallthru
      _
    // Predicated region
    $region30: #{generator_forward.7} parent=1 // pred_check
      _
    $region31: #{generator_forward.7} parent=1 // pred_check_branch
      %97 = sbr.rel (0) target = $region33
    $region32: #{generator_forward.7} parent=1 // pred_region
      _
    $region33: #{generator_forward.7} parent=1 // pred_fallthru
      _
    // Predicated region
    $region34: #{generator_forward.7} parent=1 // pred_check
      _
    $region35: #{generator_forward.7} parent=1 // pred_check_branch
      %99 = sbr.rel (0) target = $region37
    $region36: #{generator_forward.7} parent=1 // pred_region
      _
    $region37: #{generator_forward.7} parent=1 // pred_fallthru
      _
    // Predicated region
    $region38: #{generator_forward.7} parent=1 // pred_check
      _
    $region39: #{generator_forward.7} parent=1 // pred_check_branch
      %101 = sbr.rel (0) target = $region41
    $region40: #{generator_forward.7} parent=1 // pred_region
      _
    $region41: #{generator_forward.7} parent=1 // pred_fallthru
      _
    // Predicated region
    $region42: #{generator_forward.7} parent=1 // pred_check
      _
    $region43: #{generator_forward.7} parent=1 // pred_check_branch
      %103 = sbr.rel (0) target = $region45
    $region44: #{generator_forward.7} parent=1 // pred_region
      _
    $region45: #{generator_forward.7} parent=1 // pred_fallthru
      _
    %104 = vsyncpa [#allocation5], 1
    %105 = vsyncpa [#allocation7], 1

// kernel: generator_forward.6
$region0: #{generator_forward.6}
  #allocation0 [shape = 'u32[]', space=smem, size = 0x4, offset = 0x4, fixed_abs, tag = 'smem constant byte address 0x4 - core index']
  #allocation1 [shape = 'u32[144,128]{1,0:T(1,128)}', space=vmem, size = 0x12000, scoped, tag = 'internal scratch']
  %s0 = inlined_call_operand.vmem [shape: f32[8,32], index: 0, kind: input, shape index: {}]
  %s1 = inlined_call_operand.hbm [shape: bf16[32,2048], index: 1, kind: input, shape index: {}]
  %s2 = inlined_call_operand.hbm [shape: f32[1,2048], index: 2, kind: input, shape index: {}]
  %s3 = inlined_call_operand.vmem [shape: f32[8,2048], index: 3, kind: output, shape index: {}]
  %s4 = sld [smem:[#allocation0]]
  $region53: #{generator_forward.6} parent=0
    _
  %s6 = ssub.s32 1, %s4
  %s7 = scalar_select 0, %s6, %s4
  $region1: #{generator_forward.6} parent=0
    #allocation2 [shape = 'u8[131072]{0}', space=vmem, size = 0x20000, scoped, tag = 'input window, operand 1']
    #allocation3 [shape = 's32[2]{0}', space=sflag, size = 0x8, scoped, tag = 'scoped memory for generator_forward.6']
    #allocation4 [shape = 'u8[8192]{0}', space=vmem, size = 0x2000, scoped, tag = 'input window, operand 2']
    #allocation5 [shape = 's32[2]{0}', space=sflag, size = 0x8, scoped, tag = 'scoped memory for generator_forward.6']
    %8 = vsyncpa [#allocation3], 0
    %s9 = scalar_lea.sflag [#allocation3], 1
    %10 = vsyncpa %s9, 0
    %11 = vsyncpa [#allocation5], 0
    %s12 = scalar_lea.sflag [#allocation5], 1
    %13 = vsyncpa %s12, 0
    loop: start=0, step=1, limit=4
    $region2: #{generator_forward.6} parent=1 // loop_pre_header
      _
    $region3: #{generator_forward.6} parent=1 // loop_header
      %s15 = sphi 0, %s19
      %p16 = scmp.ge.s32.totalorder %s15, 4
      %s22 = sphi 0, %s34
      %s23 = sphi 0, %s30
      %s24 = sphi 0, %s22
      %s25 = sphi 0, %s23
      %s26 = sphi 0, %s24
      %s27 = sphi 0, %s25
      %s37 = sphi 0, %s39
      %s40 = sphi 0, %s37
      %s41 = sphi 0, %s40
      %s57 = sphi 0, %s41
      %s63 = sphi 0, %s65
      %s66 = sphi 0, %s63
      %s67 = sphi 0, %s66
      %s83 = sphi 0, %s67
      %s89 = sphi 0, %s91
      %s92 = sphi 0, %s89
      %s93 = sphi 0, %s92
      %s109 = sphi 0, %s93
      %s117 = sphi 0, %s119
      %s120 = sphi 0, %s117
      %s121 = sphi 0, %s120
      %s137 = sphi 0, %s121
    $region4: #{generator_forward.6} parent=1 // loop_header_branch
      %18 = sbr.rel (%p16) target = $region8
    $region5: #{generator_forward.6} parent=1 // loop_body
      %s20 = ssub.s32 %s15, 1
      %s21 = ssub.s32 %s15, 2
      %s28 = sadd.s32 1, %s23
      %p29 = scmp.ge.s32.totalorder %s28, 2
      %s30 = scalar_select %p29, 0, %s28
      %s31 = sadd.s32 1, %s22
      %s32 = scalar_select %p29, %s31, %s22
      %p33 = scmp.ge.s32.totalorder %s32, 1
      %s34 = scalar_select %p33, 0, %s32
      %s35 = ssub.s32 %s22, %s34
      %p36 = scmp.eq.s32.totalorder %s35, 0
      %s38 = sadd.s32 %s37, 1
      %s39 = scalar_select %p36, %s37, %s38
      %p42 = pneg %p36
      %p43 = scmp.eq.s32.totalorder %s15, 1
      %p44 = por %p42, %p43
      %p45 = scmp.ne.s32.totalorder %s37, %s40
      %p46 = scmp.eq.s32.totalorder %s15, 0
      %p47 = por %p45, %p46
      %p48 = scmp.ne.s32.totalorder %s37, %s40
      %p49 = scmp.eq.s32.totalorder %s20, 1
      %p50 = por %p48, %p49
      %p51 = scmp.ne.s32.totalorder %s40, %s41
      %p52 = scmp.eq.s32.totalorder %s20, 0
      %p53 = por %p51, %p52
      %p54 = scmp.ne.s32.totalorder %s40, %s41
      %p55 = scmp.eq.s32.totalorder %s21, 1
      %p56 = por %p54, %p55
      %p58 = scmp.ne.s32.totalorder %s41, %s57
      %p59 = scmp.eq.s32.totalorder %s21, 0
      %p60 = por %p58, %p59
      %s61 = ssub.s32 %s23, %s30
      %p62 = scmp.eq.s32.totalorder %s61, 0
      %s64 = sadd.s32 %s63, 1
      %s65 = scalar_select %p62, %s63, %s64
      %p68 = pneg %p62
      %p69 = scmp.eq.s32.totalorder %s15, 1
      %p70 = por %p68, %p69
      %p71 = scmp.ne.s32.totalorder %s63, %s66
      %p72 = scmp.eq.s32.totalorder %s15, 0
      %p73 = por %p71, %p72
      %p74 = scmp.ne.s32.totalorder %s63, %s66
      %p75 = scmp.eq.s32.totalorder %s20, 1
      %p76 = por %p74, %p75
      %p77 = scmp.ne.s32.totalorder %s66, %s67
      %p78 = scmp.eq.s32.totalorder %s20, 0
      %p79 = por %p77, %p78
      %p80 = scmp.ne.s32.totalorder %s66, %s67
      %p81 = scmp.eq.s32.totalorder %s21, 1
      %p82 = por %p80, %p81
      %p84 = scmp.ne.s32.totalorder %s67, %s83
      %p85 = scmp.eq.s32.totalorder %s21, 0
      %p86 = por %p84, %p85
      %s87 = ssub.s32 %s23, %s30
      %p88 = scmp.eq.s32.totalorder %s87, 0
      %s90 = sadd.s32 %s89, 1
      %s91 = scalar_select %p88, %s89, %s90
      %p94 = pneg %p88
      %p95 = scmp.eq.s32.totalorder %s15, 1
      %p96 = por %p94, %p95
      %p97 = scmp.ne.s32.totalorder %s89, %s92
      %p98 = scmp.eq.s32.totalorder %s15, 0
      %p99 = por %p97, %p98
      %p100 = scmp.ne.s32.totalorder %s89, %s92
      %p101 = scmp.eq.s32.totalorder %s20, 1
      %p102 = por %p100, %p101
      %p103 = scmp.ne.s32.totalorder %s92, %s93
      %p104 = scmp.eq.s32.totalorder %s20, 0
      %p105 = por %p103, %p104
      %p106 = scmp.ne.s32.totalorder %s92, %s93
      %p107 = scmp.eq.s32.totalorder %s21, 1
      %p108 = por %p106, %p107
      %p110 = scmp.ne.s32.totalorder %s93, %s109
      %p111 = scmp.eq.s32.totalorder %s21, 0
      %p112 = por %p110, %p111
      %s113 = ssub.s32 %s22, %s34
      %s114 = ssub.s32 %s23, %s30
      %s115 = sor.u32 %s113, %s114
      %p116 = scmp.eq.s32.totalorder %s115, 0
      %s118 = sadd.s32 %s117, 1
      %s119 = scalar_select %p116, %s117, %s118
      %p122 = pneg %p116
      %p123 = scmp.eq.s32.totalorder %s15, 1
      %p124 = por %p122, %p123
      %p125 = scmp.ne.s32.totalorder %s117, %s120
      %p126 = scmp.eq.s32.totalorder %s15, 0
      %p127 = por %p125, %p126
      %p128 = scmp.ne.s32.totalorder %s117, %s120
      %p129 = scmp.eq.s32.totalorder %s20, 1
      %p130 = por %p128, %p129
      %p131 = scmp.ne.s32.totalorder %s120, %s121
      %p132 = scmp.eq.s32.totalorder %s20, 0
      %p133 = por %p131, %p132
      %p134 = scmp.ne.s32.totalorder %s120, %s121
      %p135 = scmp.eq.s32.totalorder %s21, 1
      %p136 = por %p134, %p135
      %p138 = scmp.ne.s32.totalorder %s121, %s137
      %p139 = scmp.eq.s32.totalorder %s21, 0
      %p140 = por %p138, %p139
      %p141 = scmp.le.s32.totalorder 1, %s15
      %p142 = scmp.lt.s32.totalorder %s15, 3
      %p143 = pnand %p141, %p142
      %p144 = pneg %p143
      // Predicated region
      $region9: #{generator_forward.6} parent=5 // pred_check
        _
      $region10: #{generator_forward.6} parent=5 // pred_check_branch
        %146 = sbr.rel (%p143) target = $region12
      $region11: #{generator_forward.6} parent=5 // pred_region
        %s147 = ssub.s32 %s15, 1
        // Predicated region
        $region13: #{generator_forward.6} parent=11 // pred_check
          %p148 = pneg %p53
        $region14: #{generator_forward.6} parent=11 // pred_check_branch
          %150 = sbr.rel (%p148) target = $region16
        $region15: #{generator_forward.6} parent=11 // pred_region
          %p151 = scmp.lt.s32.totalorder %s24, 0
          %s152 = scalar_select %p151, %s24, 0
          %s153 = smul.addr %s152, 8
          %s154 = scalar_lea.vmem %s0, %s153
        $region16: #{generator_forward.6} parent=11 // pred_fallthru
          _
      $region12: #{generator_forward.6} parent=5 // pred_fallthru
        _
      %p155 = scmp.lt.s32.totalorder %s15, 2
      // Predicated region
      $region17: #{generator_forward.6} parent=5 // pred_check
        %p156 = pneg %p155
      $region18: #{generator_forward.6} parent=5 // pred_check_branch
        %158 = sbr.rel (%p156) target = $region20
      $region19: #{generator_forward.6} parent=5 // pred_region
        // Predicated region
        $region21: #{generator_forward.6} parent=19 // pred_check
          %p159 = pneg %p73
        $region22: #{generator_forward.6} parent=19 // pred_check_branch
          %161 = sbr.rel (%p159) target = $region24
        $region23: #{generator_forward.6} parent=19 // pred_region
          %s162 = sand.u32 %s63, 1
          %s163 = scalar_lea.sflag [#allocation3], %s162
          %s164 = sand.u32 %s63, 1
          %s165 = smul.addr %s164, 128
          %s166 = scalar_lea.vmem [#allocation2], %s165
          %s167 = smul.u32 8, %s23
          %s169 = ssub.s32 2048, 2048
          %170 = vsyncadd %s163, %s169
          %s171 = smul.addr %s167, 64
          %s172 = scalar_lea.hbm %s1, %s171
          %s173 = sshll.u32 %s166, 4
          %s174 = int_to_ptr.vmem [resolvable:$true] %s173
          %179 = dma.hbm_to_vmem [thread:$0]  %s172, 2048, %s174, %s163, 1024, 512, 32
        $region24: #{generator_forward.6} parent=19 // pred_fallthru
          _
        // Predicated region
        $region25: #{generator_forward.6} parent=19 // pred_check
          %p180 = pneg %p99
        $region26: #{generator_forward.6} parent=19 // pred_check_branch
          %182 = sbr.rel (%p180) target = $region28
        $region27: #{generator_forward.6} parent=19 // pred_region
          %s183 = sand.u32 %s89, 1
          %s184 = scalar_lea.sflag [#allocation5], %s183
          %s185 = sand.u32 %s89, 1
          %s186 = smul.addr %s185, 8
          %s187 = scalar_lea.vmem [#allocation4], %s186
          %s188 = smul.u32 8, %s23
          %s190 = ssub.s32 128, 128
          %191 = vsyncadd %s184, %s190
          %s192 = smul.addr %s188, 16
          %s193 = scalar_lea.hbm %s2, %s192
          %s195 = sshll.u32 %s187, 4
          %s196 = int_to_ptr.vmem [resolvable:$true] %s195
          %198 = dma.hbm_to_vmem [thread:$0]  %s193, 128, %s196, %s184
        $region28: #{generator_forward.6} parent=19 // pred_fallthru
          _
      $region20: #{generator_forward.6} parent=5 // pred_fallthru
        _
      %p199 = scmp.le.s32.totalorder 1, %s15
      %p200 = scmp.lt.s32.totalorder %s15, 3
      %p201 = pnand %p199, %p200
      %p202 = pneg %p201
      // Predicated region
      $region29: #{generator_forward.6} parent=5 // pred_check
        _
      $region30: #{generator_forward.6} parent=5 // pred_check_branch
        %204 = sbr.rel (%p201) target = $region32
      $region31: #{generator_forward.6} parent=5 // pred_region
        %s205 = ssub.s32 %s15, 1
        %s206 = sand.u32 %s66, 1
        %s207 = scalar_lea.sflag [#allocation3], %s206
        %s208 = sand.u32 %s66, 1
        %s209 = smul.addr %s208, 128
        %s210 = scalar_lea.vmem [#allocation2], %s209
        // Predicated region
        $region33: #{generator_forward.6} parent=31 // pred_check
          %p211 = pneg %p79
        $region34: #{generator_forward.6} parent=31 // pred_check_branch
          %213 = sbr.rel (%p211) target = $region36
        $region35: #{generator_forward.6} parent=31 // pred_region
          %214 = dma.done %s207, 2048
        $region36: #{generator_forward.6} parent=31 // pred_fallthru
          _
        %s215 = sand.u32 %s92, 1
        %s216 = scalar_lea.sflag [#allocation5], %s215
        %s217 = sand.u32 %s92, 1
        %s218 = smul.addr %s217, 8
        %s219 = scalar_lea.vmem [#allocation4], %s218
        // Predicated region
        $region37: #{generator_forward.6} parent=31 // pred_check
          %p220 = pneg %p105
        $region38: #{generator_forward.6} parent=31 // pred_check_branch
          %222 = sbr.rel (%p220) target = $region40
        $region39: #{generator_forward.6} parent=31 // pred_region
          %223 = dma.done %s216, 128
        $region40: #{generator_forward.6} parent=31 // pred_fallthru
          _
        %p224 = scmp.lt.s32.totalorder %s24, 0
        %s225 = scalar_select %p224, %s24, 0
        %s226 = smul.addr %s225, 8
        %s227 = scalar_lea.vmem %s0, %s226
        %p228 = pneg %p53
        %p229 = pneg %p50
        %s230 = sand.u32 %s66, 1
        %s231 = scalar_lea.sflag [#allocation3], %s230
        %s232 = sand.u32 %s66, 1
        %s233 = smul.addr %s232, 128
        %s234 = scalar_lea.vmem [#allocation2], %s233
        %p235 = pneg %p79
        %p236 = pneg %p76
        %s237 = sand.u32 %s92, 1
        %s238 = scalar_lea.sflag [#allocation5], %s237
        %s239 = sand.u32 %s92, 1
        %s240 = smul.addr %s239, 8
        %s241 = scalar_lea.vmem [#allocation4], %s240
        %p242 = pneg %p105
        %p243 = pneg %p102
        %p244 = pneg %p133
        %p245 = pneg %p130
        %s246 = smul.u32 8, %s25
        %p247 = scmp.lt.s32.totalorder %s24, 0
        %s248 = scalar_select %p247, %s24, 0
        %p249 = scmp.lt.s32.totalorder %s246, 15
        %s250 = scalar_select %p249, %s246, 15
        %s251 = smul.addr %s248, 16
        %s252 = sadd.s32 %s250, %s251
        %s253 = smul.addr %s252, 8
        %s254 = scalar_lea.vmem %s3, %s253
        %p255 = scmp.lt.s32.totalorder %s24, 0
        %s256 = scalar_select %p255, %s24, 0
        %s257 = smul.addr %s256, 8
        %s258 = scalar_lea.vmem %s0, %s257
        %s259 = smul.u32 8, %s25
        %s260 = smul.u32 8, %s25
        %s261 = smul.u32 8, %s25
        %p262 = scmp.lt.s32.totalorder %s24, 0
        %s263 = scalar_select %p262, %s24, 0
        %p264 = scmp.lt.s32.totalorder %s261, 15
        %s265 = scalar_select %p264, %s261, 15
        %s266 = smul.addr %s263, 16
        %s267 = sadd.s32 %s265, %s266
        %s268 = smul.addr %s267, 8
        %s269 = scalar_lea.vmem %s3, %s268
        %s270 = smul.u32 8, %s25
        %v272 = vld [vmem:[%s258] sm:$0xff]
        %v273 = vpack.c.bf16 %v272, %v272
        %v274 = vld [vmem:[%s210] sm:$0xff]
        %v275 = vld [vmem:[%s210 + $0x8] sm:$0xff]
        %v276 = vld [vmem:[%s210 + $0x10] sm:$0xff]
        %v277 = vld [vmem:[%s210 + $0x18] sm:$0xff]
        %v278 = vld [vmem:[%s210 + $0x20] sm:$0xff]
        %v279 = vld [vmem:[%s210 + $0x28] sm:$0xff]
        %v280 = vld [vmem:[%s210 + $0x30] sm:$0xff]
        %v281 = vld [vmem:[%s210 + $0x38] sm:$0xff]
        %v282 = vld [vmem:[%s210 + $0x40] sm:$0xff]
        %v283 = vld [vmem:[%s210 + $0x48] sm:$0xff]
        %v284 = vld [vmem:[%s210 + $0x50] sm:$0xff]
        %v285 = vld [vmem:[%s210 + $0x58] sm:$0xff]
        %v286 = vld [vmem:[%s210 + $0x60] sm:$0xff]
        %v287 = vld [vmem:[%s210 + $0x68] sm:$0xff]
        %v288 = vld [vmem:[%s210 + $0x70] sm:$0xff]
        %v289 = vld [vmem:[%s210 + $0x78] sm:$0xff]
        %v290 = vld [vmem:[%s219] sm:$0xff]
        %v292 = vlaneseq
        %v293 = vshrl.u32 %v292, 7
        %v294 = vsub.s32 0, %v293
        %v295 = vrot.slane %v290, %v294
        %v296 = vlaneseq
        %v297 = vshrl.u32 %v296, 7
        %v298 = vsub.s32 1, %v297
        %v299 = vrot.slane %v290, %v298
        %v300 = vlaneseq
        %v301 = vshrl.u32 %v300, 7
        %v302 = vsub.s32 2, %v301
        %v303 = vrot.slane %v290, %v302
        %v304 = vlaneseq
        %v305 = vshrl.u32 %v304, 7
        %v306 = vsub.s32 3, %v305
        %v307 = vrot.slane %v290, %v306
        %v308 = vlaneseq
        %v309 = vshrl.u32 %v308, 7
        %v310 = vsub.s32 4, %v309
        %v311 = vrot.slane %v290, %v310
        %v312 = vlaneseq
        %v313 = vshrl.u32 %v312, 7
        %v314 = vsub.s32 5, %v313
        %v315 = vrot.slane %v290, %v314
        %v316 = vlaneseq
        %v317 = vshrl.u32 %v316, 7
        %v318 = vsub.s32 6, %v317
        %v319 = vrot.slane %v290, %v318
        %v320 = vlaneseq
        %v321 = vshrl.u32 %v320, 7
        %v322 = vsub.s32 7, %v321
        %v323 = vrot.slane %v290, %v322
        %v348 = vunpack.c.l.b16 %v274
        %v349 = vunpack.c.h.b16 %v274
        %v350 = vunpack.c.l.b16 %v275
        %v351 = vunpack.c.h.b16 %v275
        %v352 = vunpack.c.l.b16 %v276
        %v353 = vunpack.c.h.b16 %v276
        %v354 = vunpack.c.l.b16 %v277
        %v355 = vunpack.c.h.b16 %v277
        %v356 = vunpack.c.l.b16 %v278
        %v357 = vunpack.c.h.b16 %v278
        %v358 = vunpack.c.l.b16 %v279
        %v359 = vunpack.c.h.b16 %v279
        %v360 = vunpack.c.l.b16 %v280
        %v361 = vunpack.c.h.b16 %v280
        %v362 = vunpack.c.l.b16 %v281
        %v363 = vunpack.c.h.b16 %v281
        %v364 = vunpack.c.l.b16 %v282
        %v365 = vunpack.c.h.b16 %v282
        %v366 = vunpack.c.l.b16 %v283
        %v367 = vunpack.c.h.b16 %v283
        %v368 = vunpack.c.l.b16 %v284
        %v369 = vunpack.c.h.b16 %v284
        %v370 = vunpack.c.l.b16 %v285
        %v371 = vunpack.c.h.b16 %v285
        %v372 = vunpack.c.l.b16 %v286
        %v373 = vunpack.c.h.b16 %v286
        %v374 = vunpack.c.l.b16 %v287
        %v375 = vunpack.c.h.b16 %v287
        %v376 = vunpack.c.l.b16 %v288
        %v377 = vunpack.c.h.b16 %v288
        %v378 = vunpack.c.l.b16 %v289
        %v379 = vunpack.c.h.b16 %v289
        %v380 = vpack.c.b16 %v356, %v348
        %v381 = vpack.c.b16 %v357, %v349
        %v382 = vpack.c.b16 %v358, %v350
        %v383 = vpack.c.b16 %v359, %v351
        %v384 = vpack.c.b16 %v360, %v352
        %v385 = vpack.c.b16 %v361, %v353
        %v386 = vpack.c.b16 %v362, %v354
        %v387 = vpack.c.b16 %v363, %v355
        %v388 = vpack.c.b16 %v372, %v364
        %v389 = vpack.c.b16 %v373, %v365
        %v390 = vpack.c.b16 %v374, %v366
        %v391 = vpack.c.b16 %v375, %v367
        %v392 = vpack.c.b16 %v376, %v368
        %v393 = vpack.c.b16 %v377, %v369
        %v394 = vpack.c.b16 %v378, %v370
        %v395 = vpack.c.b16 %v379, %v371
        %vm412 = vcmask 261120
        %v414 = vsel %vm412, %v273, 0
        %416 = vmatprep.subr.bf16.mxu0 %v381
        %417 = vmatpush1.bf16.msra.mxu0 %v380
        %418 = vmatprep.subr.bf16.mxu0 %v389
        %419 = vmatpush1.bf16.msra.mxu0 %v388
        %420 = vmatprep.subr.bf16.mxu0 0
        %421 = vmatpush1.bf16.msra.mxu0 0
        %422 = vmatprep.subr.bf16.mxu0 0
        %423 = vmatpush1.bf16.msra.mxu0 0
        %424 = vmatprep.subr.bf16.mxu0 0
        %425 = vmatpush1.bf16.msra.mxu0 0
        %426 = vmatprep.subr.bf16.mxu0 0
        %427 = vmatpush1.bf16.msra.mxu0 0
        %428 = vmatprep.subr.bf16.mxu0 0
        %429 = vmatpush1.bf16.msra.mxu0 0
        %430 = vmatprep.subr.bf16.mxu0 0
        %431 = vmatpush1.bf16.msra.mxu0 0
        %432 = vmatprep.subr.bf16.mxu0 0
        %433 = vmatpush1.bf16.msra.mxu0 0
        %434 = vmatprep.subr.bf16.mxu0 0
        %435 = vmatpush1.bf16.msra.mxu0 0
        %436 = vmatprep.subr.bf16.mxu0 0
        %437 = vmatpush1.bf16.msra.mxu0 0
        %438 = vmatprep.subr.bf16.mxu0 0
        %439 = vmatpush1.bf16.msra.mxu0 0
        %440 = vmatprep.subr.bf16.mxu0 0
        %441 = vmatpush1.bf16.msra.mxu0 0
        %442 = vmatprep.subr.bf16.mxu0 0
        %443 = vmatpush1.bf16.msra.mxu0 0
        %444 = vmatprep.subr.bf16.mxu0 0
        %445 = vmatpush1.bf16.msra.mxu0 0
        %446 = vmatprep.subr.bf16.mxu0 0
        %447 = vmatpush1.bf16.msra.mxu0 0
        %448 = vmatprep.mubr.bf16.mxu0 0
        %449 = vmatmul.mubr.bf16.gmra.mrb[0].mxu0 %v414
        %v450 = vpop.f32.mrb[0].mxu0
        %v451 = vadd.f32 %v295, %v450
        %v452 = vpop.f32.mrb[0].mxu0
        %v453 = vadd.f32 %v299, %v452
        %v454 = vpop.f32.mrb[0].mxu0
        %v455 = vpop.f32.mrb[0].mxu0
        %456 = vdwg.mxu0
        %457 = vmatprep.subr.bf16.mxu0 %v383
        %458 = vmatpush1.bf16.msra.mxu0 %v382
        %459 = vmatprep.subr.bf16.mxu0 %v391
        %460 = vmatpush1.bf16.msra.mxu0 %v390
        %461 = vmatprep.subr.bf16.mxu0 0
        %462 = vmatpush1.bf16.msra.mxu0 0
        %463 = vmatprep.subr.bf16.mxu0 0
        %464 = vmatpush1.bf16.msra.mxu0 0
        %465 = vmatprep.subr.bf16.mxu0 0
        %466 = vmatpush1.bf16.msra.mxu0 0
        %467 = vmatprep.subr.bf16.mxu0 0
        %468 = vmatpush1.bf16.msra.mxu0 0
        %469 = vmatprep.subr.bf16.mxu0 0
        %470 = vmatpush1.bf16.msra.mxu0 0
        %471 = vmatprep.subr.bf16.mxu0 0
        %472 = vmatpush1.bf16.msra.mxu0 0
        %473 = vmatprep.subr.bf16.mxu0 0
        %474 = vmatpush1.bf16.msra.mxu0 0
        %475 = vmatprep.subr.bf16.mxu0 0
        %476 = vmatpush1.bf16.msra.mxu0 0
        %477 = vmatprep.subr.bf16.mxu0 0
        %478 = vmatpush1.bf16.msra.mxu0 0
        %479 = vmatprep.subr.bf16.mxu0 0
        %480 = vmatpush1.bf16.msra.mxu0 0
        %481 = vmatprep.subr.bf16.mxu0 0
        %482 = vmatpush1.bf16.msra.mxu0 0
        %483 = vmatprep.subr.bf16.mxu0 0
        %484 = vmatpush1.bf16.msra.mxu0 0
        %485 = vmatprep.subr.bf16.mxu0 0
        %486 = vmatpush1.bf16.msra.mxu0 0
        %487 = vmatprep.subr.bf16.mxu0 0
        %488 = vmatpush1.bf16.msra.mxu0 0
        %489 = vmatprep.mubr.bf16.mxu0 0
        %490 = vmatmul.mubr.bf16.gmra.mrb[0].mxu0 %v414
        %v491 = vpop.f32.mrb[0].mxu0
        %v492 = vadd.f32 %v303, %v491
        %v493 = vpop.f32.mrb[0].mxu0
        %v494 = vadd.f32 %v307, %v493
        %v495 = vpop.f32.mrb[0].mxu0
        %v496 = vpop.f32.mrb[0].mxu0
        %497 = vdwg.mxu0
        %498 = vmatprep.subr.bf16.mxu0 %v385
        %499 = vmatpush1.bf16.msra.mxu0 %v384
        %500 = vmatprep.subr.bf16.mxu0 %v393
        %501 = vmatpush1.bf16.msra.mxu0 %v392
        %502 = vmatprep.subr.bf16.mxu0 0
        %503 = vmatpush1.bf16.msra.mxu0 0
        %504 = vmatprep.subr.bf16.mxu0 0
        %505 = vmatpush1.bf16.msra.mxu0 0
        %506 = vmatprep.subr.bf16.mxu0 0
        %507 = vmatpush1.bf16.msra.mxu0 0
        %508 = vmatprep.subr.bf16.mxu0 0
        %509 = vmatpush1.bf16.msra.mxu0 0
        %510 = vmatprep.subr.bf16.mxu0 0
        %511 = vmatpush1.bf16.msra.mxu0 0
        %512 = vmatprep.subr.bf16.mxu0 0
        %513 = vmatpush1.bf16.msra.mxu0 0
        %514 = vmatprep.subr.bf16.mxu0 0
        %515 = vmatpush1.bf16.msra.mxu0 0
        %516 = vmatprep.subr.bf16.mxu0 0
        %517 = vmatpush1.bf16.msra.mxu0 0
        %518 = vmatprep.subr.bf16.mxu0 0
        %519 = vmatpush1.bf16.msra.mxu0 0
        %520 = vmatprep.subr.bf16.mxu0 0
        %521 = vmatpush1.bf16.msra.mxu0 0
        %522 = vmatprep.subr.bf16.mxu0 0
        %523 = vmatpush1.bf16.msra.mxu0 0
        %524 = vmatprep.subr.bf16.mxu0 0
        %525 = vmatpush1.bf16.msra.mxu0 0
        %526 = vmatprep.subr.bf16.mxu0 0
        %527 = vmatpush1.bf16.msra.mxu0 0
        %528 = vmatprep.subr.bf16.mxu0 0
        %529 = vmatpush1.bf16.msra.mxu0 0
        %530 = vmatprep.mubr.bf16.mxu0 0
        %531 = vmatmul.mubr.bf16.gmra.mrb[0].mxu0 %v414
        %v532 = vpop.f32.mrb[0].mxu0
        %v533 = vadd.f32 %v311, %v532
        %v534 = vpop.f32.mrb[0].mxu0
        %v535 = vadd.f32 %v315, %v534
        %v536 = vpop.f32.mrb[0].mxu0
        %v537 = vpop.f32.mrb[0].mxu0
        %538 = vdwg.mxu0
        %539 = vmatprep.subr.bf16.mxu0 %v387
        %540 = vmatpush1.bf16.msra.mxu0 %v386
        %541 = vmatprep.subr.bf16.mxu0 %v395
        %542 = vmatpush1.bf16.msra.mxu0 %v394
        %543 = vmatprep.subr.bf16.mxu0 0
        %544 = vmatpush1.bf16.msra.mxu0 0
        %545 = vmatprep.subr.bf16.mxu0 0
        %546 = vmatpush1.bf16.msra.mxu0 0
        %547 = vmatprep.subr.bf16.mxu0 0
        %548 = vmatpush1.bf16.msra.mxu0 0
        %549 = vmatprep.subr.bf16.mxu0 0
        %550 = vmatpush1.bf16.msra.mxu0 0
        %551 = vmatprep.subr.bf16.mxu0 0
        %552 = vmatpush1.bf16.msra.mxu0 0
        %553 = vmatprep.subr.bf16.mxu0 0
        %554 = vmatpush1.bf16.msra.mxu0 0
        %555 = vmatprep.subr.bf16.mxu0 0
        %556 = vmatpush1.bf16.msra.mxu0 0
        %557 = vmatprep.subr.bf16.mxu0 0
        %558 = vmatpush1.bf16.msra.mxu0 0
        %559 = vmatprep.subr.bf16.mxu0 0
        %560 = vmatpush1.bf16.msra.mxu0 0
        %561 = vmatprep.subr.bf16.mxu0 0
        %562 = vmatpush1.bf16.msra.mxu0 0
        %563 = vmatprep.subr.bf16.mxu0 0
        %564 = vmatpush1.bf16.msra.mxu0 0
        %565 = vmatprep.subr.bf16.mxu0 0
        %566 = vmatpush1.bf16.msra.mxu0 0
        %567 = vmatprep.subr.bf16.mxu0 0
        %568 = vmatpush1.bf16.msra.mxu0 0
        %569 = vmatprep.subr.bf16.mxu0 0
        %570 = vmatpush1.bf16.msra.mxu0 0
        %571 = vmatprep.mubr.bf16.mxu0 0
        %572 = vmatmul.mubr.bf16.gmra.mrb[0].mxu0 %v414
        %v573 = vpop.f32.mrb[0].mxu0
        %v574 = vadd.f32 %v319, %v573
        %v575 = vpop.f32.mrb[0].mxu0
        %v576 = vadd.f32 %v323, %v575
        %v577 = vpop.f32.mrb[0].mxu0
        %v578 = vpop.f32.mrb[0].mxu0
        %579 = vdwg.mxu0
        %580 = vst [vmem:[%s269] sm:$0xff] %v451
        %581 = vst [vmem:[%s269 + $0x8] sm:$0xff] %v453
        %582 = vst [vmem:[%s269 + $0x10] sm:$0xff] %v492
        %583 = vst [vmem:[%s269 + $0x18] sm:$0xff] %v494
        %584 = vst [vmem:[%s269 + $0x20] sm:$0xff] %v533
        %585 = vst [vmem:[%s269 + $0x28] sm:$0xff] %v535
        %586 = vst [vmem:[%s269 + $0x30] sm:$0xff] %v574
        %587 = vst [vmem:[%s269 + $0x38] sm:$0xff] %v576
        %s588 = smul.u32 8, %s25
        %p589 = scmp.lt.s32.totalorder %s24, 0
        %s590 = scalar_select %p589, %s24, 0
        %p591 = scmp.lt.s32.totalorder %s588, 15
        %s592 = scalar_select %p591, %s588, 15
        %s593 = smul.addr %s590, 16
        %s594 = sadd.s32 %s592, %s593
        %s595 = smul.addr %s594, 8
        %s596 = scalar_lea.vmem %s3, %s595
        // Predicated region
        $region41: #{generator_forward.6} parent=31 // pred_check
          %p597 = pneg %p130
        $region42: #{generator_forward.6} parent=31 // pred_check_branch
          %599 = sbr.rel (%p597) target = $region44
        $region43: #{generator_forward.6} parent=31 // pred_region
          %s600 = smul.u32 8, %s25
        $region44: #{generator_forward.6} parent=31 // pred_fallthru
          _
      $region32: #{generator_forward.6} parent=5 // pred_fallthru
        _
      %p601 = scmp.le.s32.totalorder 2, %s15
      // Predicated region
      $region45: #{generator_forward.6} parent=5 // pred_check
        %p602 = pneg %p601
      $region46: #{generator_forward.6} parent=5 // pred_check_branch
        %604 = sbr.rel (%p602) target = $region48
      $region47: #{generator_forward.6} parent=5 // pred_region
        %s605 = ssub.s32 %s15, 2
        // Predicated region
        $region49: #{generator_forward.6} parent=47 // pred_check
          %p606 = pneg %p136
        $region50: #{generator_forward.6} parent=47 // pred_check_branch
          %608 = sbr.rel (%p606) target = $region52
        $region51: #{generator_forward.6} parent=47 // pred_region
          %s609 = smul.u32 8, %s27
          %p610 = scmp.lt.s32.totalorder %s26, 0
          %s611 = scalar_select %p610, %s26, 0
          %p612 = scmp.lt.s32.totalorder %s609, 15
          %s613 = scalar_select %p612, %s609, 15
          %s614 = smul.addr %s611, 16
          %s615 = sadd.s32 %s613, %s614
          %s616 = smul.addr %s615, 8
          %s617 = scalar_lea.vmem %s3, %s616
        $region52: #{generator_forward.6} parent=47 // pred_fallthru
          _
      $region48: #{generator_forward.6} parent=5 // pred_fallthru
        _
    $region6: #{generator_forward.6} parent=1 // loop_footer
      %s19 = sadd.s32 1, %s15
    $region7: #{generator_forward.6} parent=1 // loop_footer_branch
      %14 = sbr.rel target = $region3
    $region8: #{generator_forward.6} parent=1 // loop_exit
      _
    %618 = vsyncpa [#allocation3], 1
    %s619 = scalar_lea.sflag [#allocation3], 1
    %620 = vsyncpa %s619, 1
    %621 = vsyncpa [#allocation5], 1
    %s622 = scalar_lea.sflag [#allocation5], 1
    %623 = vsyncpa %s622, 1

// kernel: generator_forward.8
$region0: #{generator_forward.8}
  #allocation0 [shape = 'u32[]', space=smem, size = 0x4, offset = 0x4, fixed_abs, tag = 'smem constant byte address 0x4 - core index']
  #allocation1 [shape = 'u32[144,128]{1,0:T(1,128)}', space=vmem, size = 0x12000, scoped, tag = 'internal scratch']
  %s0 = inlined_call_operand.vmem [shape: f32[32,128], index: 0, kind: input, shape index: {}]
  %s1 = inlined_call_operand.hbm [shape: bf16[128,8192], index: 1, kind: input, shape index: {}]
  %s2 = inlined_call_operand.vmem [shape: f32[1,128], index: 2, kind: input, shape index: {}]
  %s3 = inlined_call_operand.vmem [shape: f32[1,128], index: 3, kind: input, shape index: {}]
  %s4 = inlined_call_operand.vmem [shape: bf16[32,8192], index: 4, kind: output, shape index: {}]
  %s5 = sld [smem:[#allocation0]]
  $region72: #{generator_forward.8} parent=0
    _
  %s7 = ssub.s32 1, %s5
  %s8 = scalar_select 0, %s7, %s5
  $region1: #{generator_forward.8} parent=0
    #allocation2 [shape = 'u8[524288]{0}', space=vmem, size = 0x80000, scoped, tag = 'input window, operand 1']
    #allocation3 [shape = 's32[2]{0}', space=sflag, size = 0x8, scoped, tag = 'scoped memory for generator_forward.8']
    #allocation4 [shape = 'u8[131072]{0}', space=vmem, size = 0x20000, scoped, tag = 'output window, operand 0']
    %9 = vsyncpa [#allocation3], 0
    %s10 = scalar_lea.sflag [#allocation3], 1
    %11 = vsyncpa %s10, 0
    loop: start=0, step=1, limit=10
    $region2: #{generator_forward.8} parent=1 // loop_pre_header
      _
    $region3: #{generator_forward.8} parent=1 // loop_header
      %s13 = sphi 0, %s17
      %p14 = scmp.ge.s32.totalorder %s13, 10
      %s20 = sphi 0, %s32
      %s21 = sphi 0, %s28
      %s22 = sphi 0, %s20
      %s23 = sphi 0, %s21
      %s24 = sphi 0, %s22
      %s25 = sphi 0, %s23
      %s35 = sphi 0, %s37
      %s38 = sphi 0, %s35
      %s39 = sphi 0, %s38
      %s55 = sphi 0, %s39
      %s61 = sphi 0, %s63
      %s64 = sphi 0, %s61
      %s65 = sphi 0, %s64
      %s81 = sphi 0, %s65
      %s85 = sphi 0, %s85
      %s87 = sphi 0, %s85
      %s88 = sphi 0, %s87
      %s102 = sphi 0, %s88
      %s106 = sphi 0, %s106
      %s108 = sphi 0, %s106
      %s109 = sphi 0, %s108
      %s123 = sphi 0, %s109
      %s131 = sphi 0, %s133
      %s134 = sphi 0, %s131
      %s135 = sphi 0, %s134
      %s151 = sphi 0, %s135
    $region4: #{generator_forward.8} parent=1 // loop_header_branch
      %16 = sbr.rel (%p14) target = $region8
    $region5: #{generator_forward.8} parent=1 // loop_body
      %s18 = ssub.s32 %s13, 1
      %s19 = ssub.s32 %s13, 2
      %s26 = sadd.s32 1, %s21
      %p27 = scmp.ge.s32.totalorder %s26, 8
      %s28 = scalar_select %p27, 0, %s26
      %s29 = sadd.s32 1, %s20
      %s30 = scalar_select %p27, %s29, %s20
      %p31 = scmp.ge.s32.totalorder %s30, 1
      %s32 = scalar_select %p31, 0, %s30
      %s33 = ssub.s32 %s20, %s32
      %p34 = scmp.eq.s32.totalorder %s33, 0
      %s36 = sadd.s32 %s35, 1
      %s37 = scalar_select %p34, %s35, %s36
      %p40 = pneg %p34
      %p41 = scmp.eq.s32.totalorder %s13, 7
      %p42 = por %p40, %p41
      %p43 = scmp.ne.s32.totalorder %s35, %s38
      %p44 = scmp.eq.s32.totalorder %s13, 0
      %p45 = por %p43, %p44
      %p46 = scmp.ne.s32.totalorder %s35, %s38
      %p47 = scmp.eq.s32.totalorder %s18, 7
      %p48 = por %p46, %p47
      %p49 = scmp.ne.s32.totalorder %s38, %s39
      %p50 = scmp.eq.s32.totalorder %s18, 0
      %p51 = por %p49, %p50
      %p52 = scmp.ne.s32.totalorder %s38, %s39
      %p53 = scmp.eq.s32.totalorder %s19, 7
      %p54 = por %p52, %p53
      %p56 = scmp.ne.s32.totalorder %s39, %s55
      %p57 = scmp.eq.s32.totalorder %s19, 0
      %p58 = por %p56, %p57
      %s59 = ssub.s32 %s21, %s28
      %p60 = scmp.eq.s32.totalorder %s59, 0
      %s62 = sadd.s32 %s61, 1
      %s63 = scalar_select %p60, %s61, %s62
      %p66 = pneg %p60
      %p67 = scmp.eq.s32.totalorder %s13, 7
      %p68 = por %p66, %p67
      %p69 = scmp.ne.s32.totalorder %s61, %s64
      %p70 = scmp.eq.s32.totalorder %s13, 0
      %p71 = por %p69, %p70
      %p72 = scmp.ne.s32.totalorder %s61, %s64
      %p73 = scmp.eq.s32.totalorder %s18, 7
      %p74 = por %p72, %p73
      %p75 = scmp.ne.s32.totalorder %s64, %s65
      %p76 = scmp.eq.s32.totalorder %s18, 0
      %p77 = por %p75, %p76
      %p78 = scmp.ne.s32.totalorder %s64, %s65
      %p79 = scmp.eq.s32.totalorder %s19, 7
      %p80 = por %p78, %p79
      %p82 = scmp.ne.s32.totalorder %s65, %s81
      %p83 = scmp.eq.s32.totalorder %s19, 0
      %p84 = por %p82, %p83
      %s86 = sadd.s32 %s85, 1
      %p89 = scmp.eq.s32.totalorder %s13, 7
      %p90 = scmp.ne.s32.totalorder %s85, %s87
      %p91 = scmp.eq.s32.totalorder %s13, 0
      %p92 = por %p90, %p91
      %p93 = scmp.ne.s32.totalorder %s85, %s87
      %p94 = scmp.eq.s32.totalorder %s18, 7
      %p95 = por %p93, %p94
      %p96 = scmp.ne.s32.totalorder %s87, %s88
      %p97 = scmp.eq.s32.totalorder %s18, 0
      %p98 = por %p96, %p97
      %p99 = scmp.ne.s32.totalorder %s87, %s88
      %p100 = scmp.eq.s32.totalorder %s19, 7
      %p101 = por %p99, %p100
      %p103 = scmp.ne.s32.totalorder %s88, %s102
      %p104 = scmp.eq.s32.totalorder %s19, 0
      %p105 = por %p103, %p104
      %s107 = sadd.s32 %s106, 1
      %p110 = scmp.eq.s32.totalorder %s13, 7
      %p111 = scmp.ne.s32.totalorder %s106, %s108
      %p112 = scmp.eq.s32.totalorder %s13, 0
      %p113 = por %p111, %p112
      %p114 = scmp.ne.s32.totalorder %s106, %s108
      %p115 = scmp.eq.s32.totalorder %s18, 7
      %p116 = por %p114, %p115
      %p117 = scmp.ne.s32.totalorder %s108, %s109
      %p118 = scmp.eq.s32.totalorder %s18, 0
      %p119 = por %p117, %p118
      %p120 = scmp.ne.s32.totalorder %s108, %s109
      %p121 = scmp.eq.s32.totalorder %s19, 7
      %p122 = por %p120, %p121
      %p124 = scmp.ne.s32.totalorder %s109, %s123
      %p125 = scmp.eq.s32.totalorder %s19, 0
      %p126 = por %p124, %p125
      %s127 = ssub.s32 %s20, %s32
      %s128 = ssub.s32 %s21, %s28
      %s129 = sor.u32 %s127, %s128
      %p130 = scmp.eq.s32.totalorder %s129, 0
      %s132 = sadd.s32 %s131, 1
      %s133 = scalar_select %p130, %s131, %s132
      %p136 = pneg %p130
      %p137 = scmp.eq.s32.totalorder %s13, 7
      %p138 = por %p136, %p137
      %p139 = scmp.ne.s32.totalorder %s131, %s134
      %p140 = scmp.eq.s32.totalorder %s13, 0
      %p141 = por %p139, %p140
      %p142 = scmp.ne.s32.totalorder %s131, %s134
      %p143 = scmp.eq.s32.totalorder %s18, 7
      %p144 = por %p142, %p143
      %p145 = scmp.ne.s32.totalorder %s134, %s135
      %p146 = scmp.eq.s32.totalorder %s18, 0
      %p147 = por %p145, %p146
      %p148 = scmp.ne.s32.totalorder %s134, %s135
      %p149 = scmp.eq.s32.totalorder %s19, 7
      %p150 = por %p148, %p149
      %p152 = scmp.ne.s32.totalorder %s135, %s151
      %p153 = scmp.eq.s32.totalorder %s19, 0
      %p154 = por %p152, %p153
      %p155 = scmp.le.s32.totalorder 1, %s13
      %p156 = scmp.lt.s32.totalorder %s13, 9
      %p157 = pnand %p155, %p156
      %p158 = pneg %p157
      // Predicated region
      $region9: #{generator_forward.8} parent=5 // pred_check
        _
      $region10: #{generator_forward.8} parent=5 // pred_check_branch
        %160 = sbr.rel (%p157) target = $region12
      $region11: #{generator_forward.8} parent=5 // pred_region
        %s161 = ssub.s32 %s13, 1
        // Predicated region
        $region13: #{generator_forward.8} parent=11 // pred_check
          %p162 = pneg %p51
        $region14: #{generator_forward.8} parent=11 // pred_check_branch
          %164 = sbr.rel (%p162) target = $region16
        $region15: #{generator_forward.8} parent=11 // pred_region
          %s165 = smul.u32 4, %s22
          %p166 = scmp.lt.s32.totalorder %s165, 3
          %s167 = scalar_select %p166, %s165, 3
          %s168 = smul.addr %s167, 8
          %s169 = scalar_lea.vmem %s0, %s168
          %s170 = smul.u32 4, %s22
        $region16: #{generator_forward.8} parent=11 // pred_fallthru
          _
        // Predicated region
        $region17: #{generator_forward.8} parent=11 // pred_check
          %p171 = pneg %p98
        $region18: #{generator_forward.8} parent=11 // pred_check_branch
          %173 = sbr.rel (%p171) target = $region20
        $region19: #{generator_forward.8} parent=11 // pred_region
          _
        $region20: #{generator_forward.8} parent=11 // pred_fallthru
          _
        // Predicated region
        $region21: #{generator_forward.8} parent=11 // pred_check
          %p174 = pneg %p119
        $region22: #{generator_forward.8} parent=11 // pred_check_branch
          %176 = sbr.rel (%p174) target = $region24
        $region23: #{generator_forward.8} parent=11 // pred_region
          _
        $region24: #{generator_forward.8} parent=11 // pred_fallthru
          _
      $region12: #{generator_forward.8} parent=5 // pred_fallthru
        _
      %p177 = scmp.lt.s32.totalorder %s13, 8
      // Predicated region
      $region25: #{generator_forward.8} parent=5 // pred_check
        %p178 = pneg %p177
      $region26: #{generator_forward.8} parent=5 // pred_check_branch
        %180 = sbr.rel (%p178) target = $region28
      $region27: #{generator_forward.8} parent=5 // pred_region
        // Predicated region
        $region29: #{generator_forward.8} parent=27 // pred_check
          %p181 = pneg %p71
        $region30: #{generator_forward.8} parent=27 // pred_check_branch
          %183 = sbr.rel (%p181) target = $region32
        $region31: #{generator_forward.8} parent=27 // pred_region
          %s184 = sand.u32 %s61, 1
          %s185 = scalar_lea.sflag [#allocation3], %s184
          %s186 = sand.u32 %s61, 1
          %s187 = smul.addr %s186, 512
          %s188 = scalar_lea.vmem [#allocation2], %s187
          %s189 = smul.u32 8, %s21
          %s191 = ssub.s32 8192, 8192
          %192 = vsyncadd %s185, %s191
          %s193 = smul.addr %s189, 64
          %s194 = scalar_lea.hbm %s1, %s193
          %s195 = sshll.u32 %s188, 4
          %s196 = int_to_ptr.vmem [resolvable:$true] %s195
          %201 = dma.hbm_to_vmem [thread:$0]  %s194, 8192, %s196, %s185, 4096, 512, 32
        $region32: #{generator_forward.8} parent=27 // pred_fallthru
          _
      $region28: #{generator_forward.8} parent=5 // pred_fallthru
        _
      %p202 = scmp.le.s32.totalorder 1, %s13
      %p203 = scmp.lt.s32.totalorder %s13, 9
      %p204 = pnand %p202, %p203
      %p205 = pneg %p204
      // Predicated region
      $region33: #{generator_forward.8} parent=5 // pred_check
        _
      $region34: #{generator_forward.8} parent=5 // pred_check_branch
        %207 = sbr.rel (%p204) target = $region36
      $region35: #{generator_forward.8} parent=5 // pred_region
        %s208 = ssub.s32 %s13, 1
        %s209 = sand.u32 %s64, 1
        %s210 = scalar_lea.sflag [#allocation3], %s209
        %s211 = sand.u32 %s64, 1
        %s212 = smul.addr %s211, 512
        %s213 = scalar_lea.vmem [#allocation2], %s212
        // Predicated region
        $region37: #{generator_forward.8} parent=35 // pred_check
          %p214 = pneg %p77
        $region38: #{generator_forward.8} parent=35 // pred_check_branch
          %216 = sbr.rel (%p214) target = $region40
        $region39: #{generator_forward.8} parent=35 // pred_region
          %217 = dma.done %s210, 8192
        $region40: #{generator_forward.8} parent=35 // pred_fallthru
          _
        %s218 = smul.u32 4, %s22
        %p219 = scmp.lt.s32.totalorder %s218, 3
        %s220 = scalar_select %p219, %s218, 3
        %s221 = smul.addr %s220, 8
        %s222 = scalar_lea.vmem %s0, %s221
        %p223 = pneg %p51
        %p224 = pneg %p48
        %s225 = sand.u32 %s64, 1
        %s226 = scalar_lea.sflag [#allocation3], %s225
        %s227 = sand.u32 %s64, 1
        %s228 = smul.addr %s227, 512
        %s229 = scalar_lea.vmem [#allocation2], %s228
        %p230 = pneg %p77
        %p231 = pneg %p74
        %p232 = pneg %p98
        %p233 = pneg %p95
        %p234 = pneg %p119
        %p235 = pneg %p116
        %p236 = pneg %p147
        %p237 = pneg %p144
        %s238 = sand.u32 %s134, 1
        %s239 = sand.u32 %s134, 1
        %s240 = smul.addr %s239, 128
        %s241 = scalar_lea.vmem [#allocation4], %s240
        %s242 = smul.u32 4, %s22
        %p243 = scmp.lt.s32.totalorder %s242, 3
        %s244 = scalar_select %p243, %s242, 3
        %s245 = smul.addr %s244, 8
        %s246 = scalar_lea.vmem %s0, %s245
        %s247 = smul.u32 4, %s22
        %s248 = smul.u32 8, %s23
        %s249 = smul.u32 4, %s22
        %s250 = smul.u32 8, %s23
        %v252 = vld [vmem:[%s246] sm:$0xff]
        %v253 = vld [vmem:[%s246 + $0x8] sm:$0xff]
        %v254 = vld [vmem:[%s246 + $0x10] sm:$0xff]
        %v255 = vld [vmem:[%s246 + $0x18] sm:$0xff]
        %v256 = vld [vmem:[%s2] sm:$0x1]
        %v258 = vlaneseq
        %v259 = vshrl.u32 %v258, 7
        %v260 = vsub.s32 0, %v259
        %v261 = vrot.slane %v256, %v260
        %v263 = vmul.f32 %v252, %v261
        %v264 = vmul.f32 %v253, %v261
        %v265 = vmul.f32 %v254, %v261
        %v266 = vmul.f32 %v255, %v261
        %v267 = vld [vmem:[%s3] sm:$0x1]
        %v269 = vlaneseq
        %v270 = vshrl.u32 %v269, 7
        %v271 = vsub.s32 0, %v270
        %v272 = vrot.slane %v267, %v271
        %v274 = vadd.f32 %v263, %v272
        %v275 = vadd.f32 %v264, %v272
        %v276 = vadd.f32 %v265, %v272
        %v277 = vadd.f32 %v266, %v272
        %v278 = vpack.c.bf16 %v275, %v274
        %v279 = vpack.c.bf16 %v277, %v276
        %v280 = vld [vmem:[%s213] sm:$0xff]
        %v281 = vld [vmem:[%s213 + $0x8] sm:$0xff]
        %v282 = vld [vmem:[%s213 + $0x10] sm:$0xff]
        %v283 = vld [vmem:[%s213 + $0x18] sm:$0xff]
        %v284 = vld [vmem:[%s213 + $0x20] sm:$0xff]
        %v285 = vld [vmem:[%s213 + $0x28] sm:$0xff]
        %v286 = vld [vmem:[%s213 + $0x30] sm:$0xff]
        %v287 = vld [vmem:[%s213 + $0x38] sm:$0xff]
        %v288 = vld [vmem:[%s213 + $0x40] sm:$0xff]
        %v289 = vld [vmem:[%s213 + $0x48] sm:$0xff]
        %v290 = vld [vmem:[%s213 + $0x50] sm:$0xff]
        %v291 = vld [vmem:[%s213 + $0x58] sm:$0xff]
        %v292 = vld [vmem:[%s213 + $0x60] sm:$0xff]
        %v293 = vld [vmem:[%s213 + $0x68] sm:$0xff]
        %v294 = vld [vmem:[%s213 + $0x70] sm:$0xff]
        %v295 = vld [vmem:[%s213 + $0x78] sm:$0xff]
        %v296 = vld [vmem:[%s213 + $0x80] sm:$0xff]
        %v297 = vld [vmem:[%s213 + $0x88] sm:$0xff]
        %v298 = vld [vmem:[%s213 + $0x90] sm:$0xff]
        %v299 = vld [vmem:[%s213 + $0x98] sm:$0xff]
        %v300 = vld [vmem:[%s213 + $0xa0] sm:$0xff]
        %v301 = vld [vmem:[%s213 + $0xa8] sm:$0xff]
        %v302 = vld [vmem:[%s213 + $0xb0] sm:$0xff]
        %v303 = vld [vmem:[%s213 + $0xb8] sm:$0xff]
        %v304 = vld [vmem:[%s213 + $0xc0] sm:$0xff]
        %v305 = vld [vmem:[%s213 + $0xc8] sm:$0xff]
        %v306 = vld [vmem:[%s213 + $0xd0] sm:$0xff]
        %v307 = vld [vmem:[%s213 + $0xd8] sm:$0xff]
        %v308 = vld [vmem:[%s213 + $0xe0] sm:$0xff]
        %v309 = vld [vmem:[%s213 + $0xe8] sm:$0xff]
        %v310 = vld [vmem:[%s213 + $0xf0] sm:$0xff]
        %v311 = vld [vmem:[%s213 + $0xf8] sm:$0xff]
        %v312 = vld [vmem:[%s213 + $0x100] sm:$0xff]
        %v313 = vld [vmem:[%s213 + $0x108] sm:$0xff]
        %v314 = vld [vmem:[%s213 + $0x110] sm:$0xff]
        %v315 = vld [vmem:[%s213 + $0x118] sm:$0xff]
        %v316 = vld [vmem:[%s213 + $0x120] sm:$0xff]
        %v317 = vld [vmem:[%s213 + $0x128] sm:$0xff]
        %v318 = vld [vmem:[%s213 + $0x130] sm:$0xff]
        %v319 = vld [vmem:[%s213 + $0x138] sm:$0xff]
        %v320 = vld [vmem:[%s213 + $0x140] sm:$0xff]
        %v321 = vld [vmem:[%s213 + $0x148] sm:$0xff]
        %v322 = vld [vmem:[%s213 + $0x150] sm:$0xff]
        %v323 = vld [vmem:[%s213 + $0x158] sm:$0xff]
        %v324 = vld [vmem:[%s213 + $0x160] sm:$0xff]
        %v325 = vld [vmem:[%s213 + $0x168] sm:$0xff]
        %v326 = vld [vmem:[%s213 + $0x170] sm:$0xff]
        %v327 = vld [vmem:[%s213 + $0x178] sm:$0xff]
        %v328 = vld [vmem:[%s213 + $0x180] sm:$0xff]
        %v329 = vld [vmem:[%s213 + $0x188] sm:$0xff]
        %v330 = vld [vmem:[%s213 + $0x190] sm:$0xff]
        %v331 = vld [vmem:[%s213 + $0x198] sm:$0xff]
        %v332 = vld [vmem:[%s213 + $0x1a0] sm:$0xff]
        %v333 = vld [vmem:[%s213 + $0x1a8] sm:$0xff]
        %v334 = vld [vmem:[%s213 + $0x1b0] sm:$0xff]
        %v335 = vld [vmem:[%s213 + $0x1b8] sm:$0xff]
        %v336 = vld [vmem:[%s213 + $0x1c0] sm:$0xff]
        %v337 = vld [vmem:[%s213 + $0x1c8] sm:$0xff]
        %v338 = vld [vmem:[%s213 + $0x1d0] sm:$0xff]
        %v339 = vld [vmem:[%s213 + $0x1d8] sm:$0xff]
        %v340 = vld [vmem:[%s213 + $0x1e0] sm:$0xff]
        %v341 = vld [vmem:[%s213 + $0x1e8] sm:$0xff]
        %v342 = vld [vmem:[%s213 + $0x1f0] sm:$0xff]
        %v343 = vld [vmem:[%s213 + $0x1f8] sm:$0xff]
        %v408 = vunpack.c.l.b16 %v280
        %v409 = vunpack.c.h.b16 %v280
        %v410 = vunpack.c.l.b16 %v281
        %v411 = vunpack.c.h.b16 %v281
        %v412 = vunpack.c.l.b16 %v282
        %v413 = vunpack.c.h.b16 %v282
        %v414 = vunpack.c.l.b16 %v283
        %v415 = vunpack.c.h.b16 %v283
        %v416 = vunpack.c.l.b16 %v284
        %v417 = vunpack.c.h.b16 %v284
        %v418 = vunpack.c.l.b16 %v285
        %v419 = vunpack.c.h.b16 %v285
        %v420 = vunpack.c.l.b16 %v286
        %v421 = vunpack.c.h.b16 %v286
        %v422 = vunpack.c.l.b16 %v287
        %v423 = vunpack.c.h.b16 %v287
        %v424 = vunpack.c.l.b16 %v288
        %v425 = vunpack.c.h.b16 %v288
        %v426 = vunpack.c.l.b16 %v289
        %v427 = vunpack.c.h.b16 %v289
        %v428 = vunpack.c.l.b16 %v290
        %v429 = vunpack.c.h.b16 %v290
        %v430 = vunpack.c.l.b16 %v291
        %v431 = vunpack.c.h.b16 %v291
        %v432 = vunpack.c.l.b16 %v292
        %v433 = vunpack.c.h.b16 %v292
        %v434 = vunpack.c.l.b16 %v293
        %v435 = vunpack.c.h.b16 %v293
        %v436 = vunpack.c.l.b16 %v294
        %v437 = vunpack.c.h.b16 %v294
        %v438 = vunpack.c.l.b16 %v295
        %v439 = vunpack.c.h.b16 %v295
        %v440 = vunpack.c.l.b16 %v296
        %v441 = vunpack.c.h.b16 %v296
        %v442 = vunpack.c.l.b16 %v297
        %v443 = vunpack.c.h.b16 %v297
        %v444 = vunpack.c.l.b16 %v298
        %v445 = vunpack.c.h.b16 %v298
        %v446 = vunpack.c.l.b16 %v299
        %v447 = vunpack.c.h.b16 %v299
        %v448 = vunpack.c.l.b16 %v300
        %v449 = vunpack.c.h.b16 %v300
        %v450 = vunpack.c.l.b16 %v301
        %v451 = vunpack.c.h.b16 %v301
        %v452 = vunpack.c.l.b16 %v302
        %v453 = vunpack.c.h.b16 %v302
        %v454 = vunpack.c.l.b16 %v303
        %v455 = vunpack.c.h.b16 %v303
        %v456 = vunpack.c.l.b16 %v304
        %v457 = vunpack.c.h.b16 %v304
        %v458 = vunpack.c.l.b16 %v305
        %v459 = vunpack.c.h.b16 %v305
        %v460 = vunpack.c.l.b16 %v306
        %v461 = vunpack.c.h.b16 %v306
        %v462 = vunpack.c.l.b16 %v307
        %v463 = vunpack.c.h.b16 %v307
        %v464 = vunpack.c.l.b16 %v308
        %v465 = vunpack.c.h.b16 %v308
        %v466 = vunpack.c.l.b16 %v309
        %v467 = vunpack.c.h.b16 %v309
        %v468 = vunpack.c.l.b16 %v310
        %v469 = vunpack.c.h.b16 %v310
        %v470 = vunpack.c.l.b16 %v311
        %v471 = vunpack.c.h.b16 %v311
        %v472 = vunpack.c.l.b16 %v312
        %v473 = vunpack.c.h.b16 %v312
        %v474 = vunpack.c.l.b16 %v313
        %v475 = vunpack.c.h.b16 %v313
        %v476 = vunpack.c.l.b16 %v314
        %v477 = vunpack.c.h.b16 %v314
        %v478 = vunpack.c.l.b16 %v315
        %v479 = vunpack.c.h.b16 %v315
        %v480 = vunpack.c.l.b16 %v316
        %v481 = vunpack.c.h.b16 %v316
        %v482 = vunpack.c.l.b16 %v317
        %v483 = vunpack.c.h.b16 %v317
        %v484 = vunpack.c.l.b16 %v318
        %v485 = vunpack.c.h.b16 %v318
        %v486 = vunpack.c.l.b16 %v319
        %v487 = vunpack.c.h.b16 %v319
        %v488 = vunpack.c.l.b16 %v320
        %v489 = vunpack.c.h.b16 %v320
        %v490 = vunpack.c.l.b16 %v321
        %v491 = vunpack.c.h.b16 %v321
        %v492 = vunpack.c.l.b16 %v322
        %v493 = vunpack.c.h.b16 %v322
        %v494 = vunpack.c.l.b16 %v323
        %v495 = vunpack.c.h.b16 %v323
        %v496 = vunpack.c.l.b16 %v324
        %v497 = vunpack.c.h.b16 %v324
        %v498 = vunpack.c.l.b16 %v325
        %v499 = vunpack.c.h.b16 %v325
        %v500 = vunpack.c.l.b16 %v326
        %v501 = vunpack.c.h.b16 %v326
        %v502 = vunpack.c.l.b16 %v327
        %v503 = vunpack.c.h.b16 %v327
        %v504 = vunpack.c.l.b16 %v328
        %v505 = vunpack.c.h.b16 %v328
        %v506 = vunpack.c.l.b16 %v329
        %v507 = vunpack.c.h.b16 %v329
        %v508 = vunpack.c.l.b16 %v330
        %v509 = vunpack.c.h.b16 %v330
        %v510 = vunpack.c.l.b16 %v331
        %v511 = vunpack.c.h.b16 %v331
        %v512 = vunpack.c.l.b16 %v332
        %v513 = vunpack.c.h.b16 %v332
        %v514 = vunpack.c.l.b16 %v333
        %v515 = vunpack.c.h.b16 %v333
        %v516 = vunpack.c.l.b16 %v334
        %v517 = vunpack.c.h.b16 %v334
        %v518 = vunpack.c.l.b16 %v335
        %v519 = vunpack.c.h.b16 %v335
        %v520 = vunpack.c.l.b16 %v336
        %v521 = vunpack.c.h.b16 %v336
        %v522 = vunpack.c.l.b16 %v337
        %v523 = vunpack.c.h.b16 %v337
        %v524 = vunpack.c.l.b16 %v338
        %v525 = vunpack.c.h.b16 %v338
        %v526 = vunpack.c.l.b16 %v339
        %v527 = vunpack.c.h.b16 %v339
        %v528 = vunpack.c.l.b16 %v340
        %v529 = vunpack.c.h.b16 %v340
        %v530 = vunpack.c.l.b16 %v341
        %v531 = vunpack.c.h.b16 %v341
        %v532 = vunpack.c.l.b16 %v342
        %v533 = vunpack.c.h.b16 %v342
        %v534 = vunpack.c.l.b16 %v343
        %v535 = vunpack.c.h.b16 %v343
        %v536 = vpack.c.b16 %v416, %v408
        %v537 = vpack.c.b16 %v417, %v409
        %v538 = vpack.c.b16 %v418, %v410
        %v539 = vpack.c.b16 %v419, %v411
        %v540 = vpack.c.b16 %v420, %v412
        %v541 = vpack.c.b16 %v421, %v413
        %v542 = vpack.c.b16 %v422, %v414
        %v543 = vpack.c.b16 %v423, %v415
        %v544 = vpack.c.b16 %v432, %v424
        %v545 = vpack.c.b16 %v433, %v425
        %v546 = vpack.c.b16 %v434, %v426
        %v547 = vpack.c.b16 %v435, %v427
        %v548 = vpack.c.b16 %v436, %v428
        %v549 = vpack.c.b16 %v437, %v429
        %v550 = vpack.c.b16 %v438, %v430
        %v551 = vpack.c.b16 %v439, %v431
        %v552 = vpack.c.b16 %v448, %v440
        %v553 = vpack.c.b16 %v449, %v441
        %v554 = vpack.c.b16 %v450, %v442
        %v555 = vpack.c.b16 %v451, %v443
        %v556 = vpack.c.b16 %v452, %v444
        %v557 = vpack.c.b16 %v453, %v445
        %v558 = vpack.c.b16 %v454, %v446
        %v559 = vpack.c.b16 %v455, %v447
        %v560 = vpack.c.b16 %v464, %v456
        %v561 = vpack.c.b16 %v465, %v457
        %v562 = vpack.c.b16 %v466, %v458
        %v563 = vpack.c.b16 %v467, %v459
        %v564 = vpack.c.b16 %v468, %v460
        %v565 = vpack.c.b16 %v469, %v461
        %v566 = vpack.c.b16 %v470, %v462
        %v567 = vpack.c.b16 %v471, %v463
        %v568 = vpack.c.b16 %v480, %v472
        %v569 = vpack.c.b16 %v481, %v473
        %v570 = vpack.c.b16 %v482, %v474
        %v571 = vpack.c.b16 %v483, %v475
        %v572 = vpack.c.b16 %v484, %v476
        %v573 = vpack.c.b16 %v485, %v477
        %v574 = vpack.c.b16 %v486, %v478
        %v575 = vpack.c.b16 %v487, %v479
        %v576 = vpack.c.b16 %v496, %v488
        %v577 = vpack.c.b16 %v497, %v489
        %v578 = vpack.c.b16 %v498, %v490
        %v579 = vpack.c.b16 %v499, %v491
        %v580 = vpack.c.b16 %v500, %v492
        %v581 = vpack.c.b16 %v501, %v493
        %v582 = vpack.c.b16 %v502, %v494
        %v583 = vpack.c.b16 %v503, %v495
        %v584 = vpack.c.b16 %v512, %v504
        %v585 = vpack.c.b16 %v513, %v505
        %v586 = vpack.c.b16 %v514, %v506
        %v587 = vpack.c.b16 %v515, %v507
        %v588 = vpack.c.b16 %v516, %v508
        %v589 = vpack.c.b16 %v517, %v509
        %v590 = vpack.c.b16 %v518, %v510
        %v591 = vpack.c.b16 %v519, %v511
        %v592 = vpack.c.b16 %v528, %v520
        %v593 = vpack.c.b16 %v529, %v521
        %v594 = vpack.c.b16 %v530, %v522
        %v595 = vpack.c.b16 %v531, %v523
        %v596 = vpack.c.b16 %v532, %v524
        %v597 = vpack.c.b16 %v533, %v525
        %v598 = vpack.c.b16 %v534, %v526
        %v599 = vpack.c.b16 %v535, %v527
        %664 = vmatprep.subr.bf16.mxu0 %v537
        %665 = vmatpush1.bf16.msra.mxu0 %v536
        %666 = vmatprep.subr.bf16.mxu0 %v545
        %667 = vmatpush1.bf16.msra.mxu0 %v544
        %668 = vmatprep.subr.bf16.mxu0 %v553
        %669 = vmatpush1.bf16.msra.mxu0 %v552
        %670 = vmatprep.subr.bf16.mxu0 %v561
        %671 = vmatpush1.bf16.msra.mxu0 %v560
        %672 = vmatprep.subr.bf16.mxu0 %v569
        %673 = vmatpush1.bf16.msra.mxu0 %v568
        %674 = vmatprep.subr.bf16.mxu0 %v577
        %675 = vmatpush1.bf16.msra.mxu0 %v576
        %676 = vmatprep.subr.bf16.mxu0 %v585
        %677 = vmatpush1.bf16.msra.mxu0 %v584
        %678 = vmatprep.subr.bf16.mxu0 %v593
        %679 = vmatpush1.bf16.msra.mxu0 %v592
        %680 = vmatprep.subr.bf16.mxu0 0
        %681 = vmatpush1.bf16.msra.mxu0 0
        %682 = vmatprep.subr.bf16.mxu0 0
        %683 = vmatpush1.bf16.msra.mxu0 0
        %684 = vmatprep.subr.bf16.mxu0 0
        %685 = vmatpush1.bf16.msra.mxu0 0
        %686 = vmatprep.subr.bf16.mxu0 0
        %687 = vmatpush1.bf16.msra.mxu0 0
        %688 = vmatprep.subr.bf16.mxu0 0
        %689 = vmatpush1.bf16.msra.mxu0 0
        %690 = vmatprep.subr.bf16.mxu0 0
        %691 = vmatpush1.bf16.msra.mxu0 0
        %692 = vmatprep.subr.bf16.mxu0 0
        %693 = vmatpush1.bf16.msra.mxu0 0
        %694 = vmatprep.subr.bf16.mxu0 0
        %695 = vmatpush1.bf16.msra.mxu0 0
        %696 = vmatprep.mubr.bf16.mxu0 0
        %697 = vmatmul.mubr.bf16.gmra.mrb[0].mxu0 %v278
        %v698 = vpop.f32.mrb[0].mxu0
        %v699 = vadd.f32 0.0, %v698
        %v700 = vpop.f32.mrb[0].mxu0
        %v701 = vadd.f32 0.0, %v700
        %v702 = vpop.f32.mrb[0].mxu0
        %v703 = vadd.f32 0.0, %v702
        %v704 = vpop.f32.mrb[0].mxu0
        %v705 = vadd.f32 0.0, %v704
        %706 = vmatprep.mubr.bf16.mxu0 0
        %707 = vmatmul.mubr.bf16.gmra.mrb[0].mxu0 %v279
        %v708 = vpop.f32.mrb[0].mxu0
        %v709 = vadd.f32 0.0, %v708
        %v710 = vpop.f32.mrb[0].mxu0
        %v711 = vadd.f32 0.0, %v710
        %v712 = vpop.f32.mrb[0].mxu0
        %v713 = vadd.f32 0.0, %v712
        %v714 = vpop.f32.mrb[0].mxu0
        %v715 = vadd.f32 0.0, %v714
        %716 = vdwg.mxu0
        %717 = vmatprep.subr.bf16.mxu0 %v539
        %718 = vmatpush1.bf16.msra.mxu0 %v538
        %719 = vmatprep.subr.bf16.mxu0 %v547
        %720 = vmatpush1.bf16.msra.mxu0 %v546
        %721 = vmatprep.subr.bf16.mxu0 %v555
        %722 = vmatpush1.bf16.msra.mxu0 %v554
        %723 = vmatprep.subr.bf16.mxu0 %v563
        %724 = vmatpush1.bf16.msra.mxu0 %v562
        %725 = vmatprep.subr.bf16.mxu0 %v571
        %726 = vmatpush1.bf16.msra.mxu0 %v570
        %727 = vmatprep.subr.bf16.mxu0 %v579
        %728 = vmatpush1.bf16.msra.mxu0 %v578
        %729 = vmatprep.subr.bf16.mxu0 %v587
        %730 = vmatpush1.bf16.msra.mxu0 %v586
        %731 = vmatprep.subr.bf16.mxu0 %v595
        %732 = vmatpush1.bf16.msra.mxu0 %v594
        %733 = vmatprep.subr.bf16.mxu0 0
        %734 = vmatpush1.bf16.msra.mxu0 0
        %735 = vmatprep.subr.bf16.mxu0 0
        %736 = vmatpush1.bf16.msra.mxu0 0
        %737 = vmatprep.subr.bf16.mxu0 0
        %738 = vmatpush1.bf16.msra.mxu0 0
        %739 = vmatprep.subr.bf16.mxu0 0
        %740 = vmatpush1.bf16.msra.mxu0 0
        %741 = vmatprep.subr.bf16.mxu0 0
        %742 = vmatpush1.bf16.msra.mxu0 0
        %743 = vmatprep.subr.bf16.mxu0 0
        %744 = vmatpush1.bf16.msra.mxu0 0
        %745 = vmatprep.subr.bf16.mxu0 0
        %746 = vmatpush1.bf16.msra.mxu0 0
        %747 = vmatprep.subr.bf16.mxu0 0
        %748 = vmatpush1.bf16.msra.mxu0 0
        %749 = vmatprep.mubr.bf16.mxu0 0
        %750 = vmatmul.mubr.bf16.gmra.mrb[0].mxu0 %v278
        %v751 = vpop.f32.mrb[0].mxu0
        %v752 = vadd.f32 0.0, %v751
        %v753 = vpop.f32.mrb[0].mxu0
        %v754 = vadd.f32 0.0, %v753
        %v755 = vpop.f32.mrb[0].mxu0
        %v756 = vadd.f32 0.0, %v755
        %v757 = vpop.f32.mrb[0].mxu0
        %v758 = vadd.f32 0.0, %v757
        %759 = vmatprep.mubr.bf16.mxu0 0
        %760 = vmatmul.mubr.bf16.gmra.mrb[0].mxu0 %v279
        %v761 = vpop.f32.mrb[0].mxu0
        %v762 = vadd.f32 0.0, %v761
        %v763 = vpop.f32.mrb[0].mxu0
        %v764 = vadd.f32 0.0, %v763
        %v765 = vpop.f32.mrb[0].mxu0
        %v766 = vadd.f32 0.0, %v765
        %v767 = vpop.f32.mrb[0].mxu0
        %v768 = vadd.f32 0.0, %v767
        %769 = vdwg.mxu0
        %770 = vmatprep.subr.bf16.mxu0 %v541
        %771 = vmatpush1.bf16.msra.mxu0 %v540
        %772 = vmatprep.subr.bf16.mxu0 %v549
        %773 = vmatpush1.bf16.msra.mxu0 %v548
        %774 = vmatprep.subr.bf16.mxu0 %v557
        %775 = vmatpush1.bf16.msra.mxu0 %v556
        %776 = vmatprep.subr.bf16.mxu0 %v565
        %777 = vmatpush1.bf16.msra.mxu0 %v564
        %778 = vmatprep.subr.bf16.mxu0 %v573
        %779 = vmatpush1.bf16.msra.mxu0 %v572
        %780 = vmatprep.subr.bf16.mxu0 %v581
        %781 = vmatpush1.bf16.msra.mxu0 %v580
        %782 = vmatprep.subr.bf16.mxu0 %v589
        %783 = vmatpush1.bf16.msra.mxu0 %v588
        %784 = vmatprep.subr.bf16.mxu0 %v597
        %785 = vmatpush1.bf16.msra.mxu0 %v596
        %786 = vmatprep.subr.bf16.mxu0 0
        %787 = vmatpush1.bf16.msra.mxu0 0
        %788 = vmatprep.subr.bf16.mxu0 0
        %789 = vmatpush1.bf16.msra.mxu0 0
        %790 = vmatprep.subr.bf16.mxu0 0
        %791 = vmatpush1.bf16.msra.mxu0 0
        %792 = vmatprep.subr.bf16.mxu0 0
        %793 = vmatpush1.bf16.msra.mxu0 0
        %794 = vmatprep.subr.bf16.mxu0 0
        %795 = vmatpush1.bf16.msra.mxu0 0
        %796 = vmatprep.subr.bf16.mxu0 0
        %797 = vmatpush1.bf16.msra.mxu0 0
        %798 = vmatprep.subr.bf16.mxu0 0
        %799 = vmatpush1.bf16.msra.mxu0 0
        %800 = vmatprep.subr.bf16.mxu0 0
        %801 = vmatpush1.bf16.msra.mxu0 0
        %802 = vmatprep.mubr.bf16.mxu0 0
        %803 = vmatmul.mubr.bf16.gmra.mrb[0].mxu0 %v278
        %v804 = vpop.f32.mrb[0].mxu0
        %v805 = vadd.f32 0.0, %v804
        %v806 = vpop.f32.mrb[0].mxu0
        %v807 = vadd.f32 0.0, %v806
        %v808 = vpop.f32.mrb[0].mxu0
        %v809 = vadd.f32 0.0, %v808
        %v810 = vpop.f32.mrb[0].mxu0
        %v811 = vadd.f32 0.0, %v810
        %812 = vmatprep.mubr.bf16.mxu0 0
        %813 = vmatmul.mubr.bf16.gmra.mrb[0].mxu0 %v279
        %v814 = vpop.f32.mrb[0].mxu0
        %v815 = vadd.f32 0.0, %v814
        %v816 = vpop.f32.mrb[0].mxu0
        %v817 = vadd.f32 0.0, %v816
        %v818 = vpop.f32.mrb[0].mxu0
        %v819 = vadd.f32 0.0, %v818
        %v820 = vpop.f32.mrb[0].mxu0
        %v821 = vadd.f32 0.0, %v820
        %822 = vdwg.mxu0
        %823 = vmatprep.subr.bf16.mxu0 %v543
        %824 = vmatpush1.bf16.msra.mxu0 %v542
        %825 = vmatprep.subr.bf16.mxu0 %v551
        %826 = vmatpush1.bf16.msra.mxu0 %v550
        %827 = vmatprep.subr.bf16.mxu0 %v559
        %828 = vmatpush1.bf16.msra.mxu0 %v558
        %829 = vmatprep.subr.bf16.mxu0 %v567
        %830 = vmatpush1.bf16.msra.mxu0 %v566
        %831 = vmatprep.subr.bf16.mxu0 %v575
        %832 = vmatpush1.bf16.msra.mxu0 %v574
        %833 = vmatprep.subr.bf16.mxu0 %v583
        %834 = vmatpush1.bf16.msra.mxu0 %v582
        %835 = vmatprep.subr.bf16.mxu0 %v591
        %836 = vmatpush1.bf16.msra.mxu0 %v590
        %837 = vmatprep.subr.bf16.mxu0 %v599
        %838 = vmatpush1.bf16.msra.mxu0 %v598
        %839 = vmatprep.subr.bf16.mxu0 0
        %840 = vmatpush1.bf16.msra.mxu0 0
        %841 = vmatprep.subr.bf16.mxu0 0
        %842 = vmatpush1.bf16.msra.mxu0 0
        %843 = vmatprep.subr.bf16.mxu0 0
        %844 = vmatpush1.bf16.msra.mxu0 0
        %845 = vmatprep.subr.bf16.mxu0 0
        %846 = vmatpush1.bf16.msra.mxu0 0
        %847 = vmatprep.subr.bf16.mxu0 0
        %848 = vmatpush1.bf16.msra.mxu0 0
        %849 = vmatprep.subr.bf16.mxu0 0
        %850 = vmatpush1.bf16.msra.mxu0 0
        %851 = vmatprep.subr.bf16.mxu0 0
        %852 = vmatpush1.bf16.msra.mxu0 0
        %853 = vmatprep.subr.bf16.mxu0 0
        %854 = vmatpush1.bf16.msra.mxu0 0
        %855 = vmatprep.mubr.bf16.mxu0 0
        %856 = vmatmul.mubr.bf16.gmra.mrb[0].mxu0 %v278
        %v857 = vpop.f32.mrb[0].mxu0
        %v858 = vadd.f32 0.0, %v857
        %v859 = vpop.f32.mrb[0].mxu0
        %v860 = vadd.f32 0.0, %v859
        %v861 = vpop.f32.mrb[0].mxu0
        %v862 = vadd.f32 0.0, %v861
        %v863 = vpop.f32.mrb[0].mxu0
        %v864 = vadd.f32 0.0, %v863
        %865 = vmatprep.mubr.bf16.mxu0 0
        %866 = vmatmul.mubr.bf16.gmra.mrb[0].mxu0 %v279
        %v867 = vpop.f32.mrb[0].mxu0
        %v868 = vadd.f32 0.0, %v867
        %v869 = vpop.f32.mrb[0].mxu0
        %v870 = vadd.f32 0.0, %v869
        %v871 = vpop.f32.mrb[0].mxu0
        %v872 = vadd.f32 0.0, %v871
        %v873 = vpop.f32.mrb[0].mxu0
        %v874 = vadd.f32 0.0, %v873
        %875 = vdwg.mxu0
        %v876 = vpack.c.bf16 %v703, %v699
        %v877 = vpack.c.bf16 %v705, %v701
        %v878 = vpack.c.bf16 %v756, %v752
        %v879 = vpack.c.bf16 %v758, %v754
        %v880 = vpack.c.bf16 %v809, %v805
        %v881 = vpack.c.bf16 %v811, %v807
        %v882 = vpack.c.bf16 %v862, %v858
        %v883 = vpack.c.bf16 %v864, %v860
        %v884 = vpack.c.bf16 %v713, %v709
        %v885 = vpack.c.bf16 %v715, %v711
        %v886 = vpack.c.bf16 %v766, %v762
        %v887 = vpack.c.bf16 %v768, %v764
        %v888 = vpack.c.bf16 %v819, %v815
        %v889 = vpack.c.bf16 %v821, %v817
        %v890 = vpack.c.bf16 %v872, %v868
        %v891 = vpack.c.bf16 %v874, %v870
        %v908 = vunpack.c.l.b16 %v876
        %v909 = vunpack.c.l.b16 %v877
        %v910 = vunpack.c.l.b16 %v878
        %v911 = vunpack.c.l.b16 %v879
        %v912 = vunpack.c.l.b16 %v880
        %v913 = vunpack.c.l.b16 %v881
        %v914 = vunpack.c.l.b16 %v882
        %v915 = vunpack.c.l.b16 %v883
        %v916 = vunpack.c.h.b16 %v876
        %v917 = vunpack.c.h.b16 %v877
        %v918 = vunpack.c.h.b16 %v878
        %v919 = vunpack.c.h.b16 %v879
        %v920 = vunpack.c.h.b16 %v880
        %v921 = vunpack.c.h.b16 %v881
        %v922 = vunpack.c.h.b16 %v882
        %v923 = vunpack.c.h.b16 %v883
        %v924 = vunpack.c.l.b16 %v884
        %v925 = vunpack.c.l.b16 %v885
        %v926 = vunpack.c.l.b16 %v886
        %v927 = vunpack.c.l.b16 %v887
        %v928 = vunpack.c.l.b16 %v888
        %v929 = vunpack.c.l.b16 %v889
        %v930 = vunpack.c.l.b16 %v890
        %v931 = vunpack.c.l.b16 %v891
        %v932 = vunpack.c.h.b16 %v884
        %v933 = vunpack.c.h.b16 %v885
        %v934 = vunpack.c.h.b16 %v886
        %v935 = vunpack.c.h.b16 %v887
        %v936 = vunpack.c.h.b16 %v888
        %v937 = vunpack.c.h.b16 %v889
        %v938 = vunpack.c.h.b16 %v890
        %v939 = vunpack.c.h.b16 %v891
        %v940 = vpack.c.b16 %v909, %v908
        %v941 = vpack.c.b16 %v911, %v910
        %v942 = vpack.c.b16 %v913, %v912
        %v943 = vpack.c.b16 %v915, %v914
        %v944 = vpack.c.b16 %v917, %v916
        %v945 = vpack.c.b16 %v919, %v918
        %v946 = vpack.c.b16 %v921, %v920
        %v947 = vpack.c.b16 %v923, %v922
        %v948 = vpack.c.b16 %v925, %v924
        %v949 = vpack.c.b16 %v927, %v926
        %v950 = vpack.c.b16 %v929, %v928
        %v951 = vpack.c.b16 %v931, %v930
        %v952 = vpack.c.b16 %v933, %v932
        %v953 = vpack.c.b16 %v935, %v934
        %v954 = vpack.c.b16 %v937, %v936
        %v955 = vpack.c.b16 %v939, %v938
        %972 = vst [vmem:[%s241] sm:$0xff] %v940
        %973 = vst [vmem:[%s241 + $0x8] sm:$0xff] %v941
        %974 = vst [vmem:[%s241 + $0x10] sm:$0xff] %v942
        %975 = vst [vmem:[%s241 + $0x18] sm:$0xff] %v943
        %976 = vst [vmem:[%s241 + $0x20] sm:$0xff] %v944
        %977 = vst [vmem:[%s241 + $0x28] sm:$0xff] %v945
        %978 = vst [vmem:[%s241 + $0x30] sm:$0xff] %v946
        %979 = vst [vmem:[%s241 + $0x38] sm:$0xff] %v947
        %980 = vst [vmem:[%s241 + $0x40] sm:$0xff] %v948
        %981 = vst [vmem:[%s241 + $0x48] sm:$0xff] %v949
        %982 = vst [vmem:[%s241 + $0x50] sm:$0xff] %v950
        %983 = vst [vmem:[%s241 + $0x58] sm:$0xff] %v951
        %984 = vst [vmem:[%s241 + $0x60] sm:$0xff] %v952
        %985 = vst [vmem:[%s241 + $0x68] sm:$0xff] %v953
        %986 = vst [vmem:[%s241 + $0x70] sm:$0xff] %v954
        %987 = vst [vmem:[%s241 + $0x78] sm:$0xff] %v955
        %s988 = sand.u32 %s134, 1
        %s989 = sand.u32 %s134, 1
        %s990 = smul.addr %s989, 128
        %s991 = scalar_lea.vmem [#allocation4], %s990
        // Predicated region
        $region41: #{generator_forward.8} parent=35 // pred_check
          %p992 = pneg %p144
        $region42: #{generator_forward.8} parent=35 // pred_check_branch
          %994 = sbr.rel (%p992) target = $region44
        $region43: #{generator_forward.8} parent=35 // pred_region
          %s995 = smul.u32 4, %s22
          %s996 = smul.u32 8, %s23
          %s997 = smul.addr %s995, 64
          %s998 = sadd.s32 %s996, %s997
          %s999 = smul.addr %s998, 4
          %s1000 = scalar_lea.vmem %s4, %s999
          // Predicated region
          $region45: #{generator_forward.8} parent=43 // pred_check
            _
          $region46: #{generator_forward.8} parent=43 // pred_check_branch
            %1002 = sbr.rel (0) target = $region48
          $region47: #{generator_forward.8} parent=43 // pred_region
            // Predicated region
            $region49: #{generator_forward.8} parent=47 // pred_check
              _
            $region50: #{generator_forward.8} parent=47 // pred_check_branch
              %1004 = sbr.rel (0) target = $region52
            $region51: #{generator_forward.8} parent=47 // pred_region
              loop: start=0, step=1, limit=1
              $region53: #{generator_forward.8} parent=51 // loop_pre_header
                _
              $region54: #{generator_forward.8} parent=51 // loop_header
                %s1006 = sphi 0, %s1010
                %p1007 = scmp.ge.s32.totalorder %s1006, 1
                %s1011 = sphi %s991, %s991
                %s1012 = sphi %s1000, %s1000
              $region55: #{generator_forward.8} parent=51 // loop_header_branch
                %1009 = sbr.rel (%p1007) target = $region59
              $region56: #{generator_forward.8} parent=51 // loop_body
                %v1013 = vld [vmem:[%s1011] sm:$0xff]
                %1014 = vst [vmem:[%s1012] sm:$0xff] %v1013
                %v1015 = vld [vmem:[%s1011 + $0x8] sm:$0xff]
                %1016 = vst [vmem:[%s1012 + $0x8] sm:$0xff] %v1015
                %v1017 = vld [vmem:[%s1011 + $0x10] sm:$0xff]
                %1018 = vst [vmem:[%s1012 + $0x10] sm:$0xff] %v1017
                %v1019 = vld [vmem:[%s1011 + $0x18] sm:$0xff]
                %1020 = vst [vmem:[%s1012 + $0x18] sm:$0xff] %v1019
                %v1021 = vld [vmem:[%s1011 + $0x20] sm:$0xff]
                %1022 = vst [vmem:[%s1012 + $0x100] sm:$0xff] %v1021
                %v1023 = vld [vmem:[%s1011 + $0x28] sm:$0xff]
                %1024 = vst [vmem:[%s1012 + $0x108] sm:$0xff] %v1023
                %v1025 = vld [vmem:[%s1011 + $0x30] sm:$0xff]
                %1026 = vst [vmem:[%s1012 + $0x110] sm:$0xff] %v1025
                %v1027 = vld [vmem:[%s1011 + $0x38] sm:$0xff]
                %1028 = vst [vmem:[%s1012 + $0x118] sm:$0xff] %v1027
                %v1029 = vld [vmem:[%s1011 + $0x40] sm:$0xff]
                %1030 = vst [vmem:[%s1012 + $0x200] sm:$0xff] %v1029
                %v1031 = vld [vmem:[%s1011 + $0x48] sm:$0xff]
                %1032 = vst [vmem:[%s1012 + $0x208] sm:$0xff] %v1031
                %v1033 = vld [vmem:[%s1011 + $0x50] sm:$0xff]
                %1034 = vst [vmem:[%s1012 + $0x210] sm:$0xff] %v1033
                %v1035 = vld [vmem:[%s1011 + $0x58] sm:$0xff]
                %1036 = vst [vmem:[%s1012 + $0x218] sm:$0xff] %v1035
                %v1037 = vld [vmem:[%s1011 + $0x60] sm:$0xff]
                %1038 = vst [vmem:[%s1012 + $0x300] sm:$0xff] %v1037
                %v1039 = vld [vmem:[%s1011 + $0x68] sm:$0xff]
                %1040 = vst [vmem:[%s1012 + $0x308] sm:$0xff] %v1039
                %v1041 = vld [vmem:[%s1011 + $0x70] sm:$0xff]
                %1042 = vst [vmem:[%s1012 + $0x310] sm:$0xff] %v1041
                %v1043 = vld [vmem:[%s1011 + $0x78] sm:$0xff]
                %1044 = vst [vmem:[%s1012 + $0x318] sm:$0xff] %v1043
              $region57: #{generator_forward.8} parent=51 // loop_footer
                %s1010 = sadd.s32 1, %s1006
              $region58: #{generator_forward.8} parent=51 // loop_footer_branch
                %1005 = sbr.rel target = $region54
              $region59: #{generator_forward.8} parent=51 // loop_exit
                _
            $region52: #{generator_forward.8} parent=47 // pred_fallthru
              _
            // Predicated region
            $region60: #{generator_forward.8} parent=47 // pred_check
              _
            $region61: #{generator_forward.8} parent=47 // pred_check_branch
              %1046 = sbr.rel target = $region63
            $region62: #{generator_forward.8} parent=47 // pred_region
              _
            $region63: #{generator_forward.8} parent=47 // pred_fallthru
              _
          $region48: #{generator_forward.8} parent=43 // pred_fallthru
            _
          %1047 = vnop
        $region44: #{generator_forward.8} parent=35 // pred_fallthru
          _
      $region36: #{generator_forward.8} parent=5 // pred_fallthru
        _
      %p1048 = scmp.le.s32.totalorder 2, %s13
      // Predicated region
      $region64: #{generator_forward.8} parent=5 // pred_check
        %p1049 = pneg %p1048
      $region65: #{generator_forward.8} parent=5 // pred_check_branch
        %1051 = sbr.rel (%p1049) target = $region67
      $region66: #{generator_forward.8} parent=5 // pred_region
        %s1052 = ssub.s32 %s13, 2
        // Predicated region
        $region68: #{generator_forward.8} parent=66 // pred_check
          %p1053 = pneg %p150
        $region69: #{generator_forward.8} parent=66 // pred_check_branch
          %1055 = sbr.rel (%p1053) target = $region71
        $region70: #{generator_forward.8} parent=66 // pred_region
          %s1056 = sand.u32 %s135, 1
          %s1057 = sand.u32 %s135, 1
          %s1058 = smul.addr %s1057, 128
          %s1059 = scalar_lea.vmem [#allocation4], %s1058
        $region71: #{generator_forward.8} parent=66 // pred_fallthru
          _
      $region67: #{generator_forward.8} parent=5 // pred_fallthru
        _
    $region6: #{generator_forward.8} parent=1 // loop_footer
      %s17 = sadd.s32 1, %s13
    $region7: #{generator_forward.8} parent=1 // loop_footer_branch
      %12 = sbr.rel target = $region3
    $region8: #{generator_forward.8} parent=1 // loop_exit
      _
    %1060 = vsyncpa [#allocation3], 1
    %s1061 = scalar_lea.sflag [#allocation3], 1
    %1062 = vsyncpa %s1061, 1

// kernel: generator_forward.9
$region0: #{generator_forward.9}
  #allocation0 [shape = 'u32[]', space=smem, size = 0x4, offset = 0x4, fixed_abs, tag = 'smem constant byte address 0x4 - core index']
  #allocation1 [shape = 'u32[144,128]{1,0:T(1,128)}', space=vmem, size = 0x12000, scoped, tag = 'internal scratch']
  %s0 = inlined_call_operand.vmem [shape: bf16[2,16,8192], index: 0, kind: input, shape index: {}]
  %s1 = inlined_call_operand.vmem [shape: bf16[2,4,2,4,1024], index: 1, kind: output, shape index: {}]
  %s2 = sld [smem:[#allocation0]]
  $region37: #{generator_forward.9} parent=0
    _
  %s4 = ssub.s32 1, %s2
  %s5 = scalar_select 0, %s4, %s2
  loop: start=0, step=1, limit=4
  $region2: #{generator_forward.9} parent=0 // loop_pre_header
    _
  $region3: #{generator_forward.9} parent=0 // loop_header
    %s7 = sphi 0, %s11
    %p8 = scmp.ge.s32.totalorder %s7, 4
    %s17 = sphi 0, %s19
    %s20 = sphi 0, %s17
    %s21 = sphi 0, %s20
    %s37 = sphi 0, %s21
    %s43 = sphi 0, %s45
    %s46 = sphi 0, %s43
    %s47 = sphi 0, %s46
    %s63 = sphi 0, %s47
  $region4: #{generator_forward.9} parent=0 // loop_header_branch
    %10 = sbr.rel (%p8) target = $region8
  $region5: #{generator_forward.9} parent=0 // loop_body
    %s12 = ssub.s32 %s7, 1
    %s13 = ssub.s32 %s7, 2
    %s14 = sadd.s32 %s7, 1
    %s15 = ssub.s32 %s7, %s14
    %p16 = scmp.eq.s32.totalorder %s15, 0
    %s18 = sadd.s32 %s17, 1
    %s19 = scalar_select %p16, %s17, %s18
    %p22 = pneg %p16
    %p23 = scmp.eq.s32.totalorder %s7, 1
    %p24 = por %p22, %p23
    %p25 = scmp.ne.s32.totalorder %s17, %s20
    %p26 = scmp.eq.s32.totalorder %s7, 0
    %p27 = por %p25, %p26
    %p28 = scmp.ne.s32.totalorder %s17, %s20
    %p29 = scmp.eq.s32.totalorder %s12, 1
    %p30 = por %p28, %p29
    %p31 = scmp.ne.s32.totalorder %s20, %s21
    %p32 = scmp.eq.s32.totalorder %s12, 0
    %p33 = por %p31, %p32
    %p34 = scmp.ne.s32.totalorder %s20, %s21
    %p35 = scmp.eq.s32.totalorder %s13, 1
    %p36 = por %p34, %p35
    %p38 = scmp.ne.s32.totalorder %s21, %s37
    %p39 = scmp.eq.s32.totalorder %s13, 0
    %p40 = por %p38, %p39
    %s41 = ssub.s32 %s7, %s14
    %p42 = scmp.eq.s32.totalorder %s41, 0
    %s44 = sadd.s32 %s43, 1
    %s45 = scalar_select %p42, %s43, %s44
    %p48 = pneg %p42
    %p49 = scmp.eq.s32.totalorder %s7, 1
    %p50 = por %p48, %p49
    %p51 = scmp.ne.s32.totalorder %s43, %s46
    %p52 = scmp.eq.s32.totalorder %s7, 0
    %p53 = por %p51, %p52
    %p54 = scmp.ne.s32.totalorder %s43, %s46
    %p55 = scmp.eq.s32.totalorder %s12, 1
    %p56 = por %p54, %p55
    %p57 = scmp.ne.s32.totalorder %s46, %s47
    %p58 = scmp.eq.s32.totalorder %s12, 0
    %p59 = por %p57, %p58
    %p60 = scmp.ne.s32.totalorder %s46, %s47
    %p61 = scmp.eq.s32.totalorder %s13, 1
    %p62 = por %p60, %p61
    %p64 = scmp.ne.s32.totalorder %s47, %s63
    %p65 = scmp.eq.s32.totalorder %s13, 0
    %p66 = por %p64, %p65
    %p67 = scmp.le.s32.totalorder 1, %s7
    %p68 = scmp.lt.s32.totalorder %s7, 3
    %p69 = pnand %p67, %p68
    %p70 = pneg %p69
    // Predicated region
    $region9: #{generator_forward.9} parent=5 // pred_check
      _
    $region10: #{generator_forward.9} parent=5 // pred_check_branch
      %72 = sbr.rel (%p69) target = $region12
    $region11: #{generator_forward.9} parent=5 // pred_region
      %s73 = ssub.s32 %s7, 1
    $region12: #{generator_forward.9} parent=5 // pred_fallthru
      _
    %p74 = scmp.lt.s32.totalorder %s7, 2
    // Predicated region
    $region13: #{generator_forward.9} parent=5 // pred_check
      %p75 = pneg %p74
    $region14: #{generator_forward.9} parent=5 // pred_check_branch
      %77 = sbr.rel (%p75) target = $region16
    $region15: #{generator_forward.9} parent=5 // pred_region
      // Predicated region
      $region17: #{generator_forward.9} parent=15 // pred_check
        %p78 = pneg %p27
      $region18: #{generator_forward.9} parent=15 // pred_check_branch
        %80 = sbr.rel (%p78) target = $region20
      $region19: #{generator_forward.9} parent=15 // pred_region
        %p81 = scmp.lt.s32.totalorder %s7, 1
        %s82 = scalar_select %p81, %s7, 1
        %s83 = smul.addr %s82, 128
        %s84 = smul.addr %s83, 4
        %s85 = scalar_lea.vmem %s0, %s84
      $region20: #{generator_forward.9} parent=15 // pred_fallthru
        _
    $region16: #{generator_forward.9} parent=5 // pred_fallthru
      _
    %p86 = scmp.le.s32.totalorder 1, %s7
    %p87 = scmp.lt.s32.totalorder %s7, 3
    %p88 = pnand %p86, %p87
    %p89 = pneg %p88
    // Predicated region
    $region21: #{generator_forward.9} parent=5 // pred_check
      _
    $region22: #{generator_forward.9} parent=5 // pred_check_branch
      %91 = sbr.rel (%p88) target = $region24
    $region23: #{generator_forward.9} parent=5 // pred_region
      %s92 = ssub.s32 %s7, 1
      %p93 = scmp.lt.s32.totalorder %s12, 1
      %s94 = scalar_select %p93, %s12, 1
      %s95 = smul.addr %s94, 128
      %s96 = smul.addr %s95, 4
      %s97 = scalar_lea.vmem %s0, %s96
      %p98 = pneg %p33
      %p99 = pneg %p30
      %p100 = pneg %p59
      %p101 = pneg %p56
      %p102 = scmp.lt.s32.totalorder %s12, 1
      %s103 = scalar_select %p102, %s12, 1
      %s104 = smul.addr %s103, 64
      %s105 = smul.addr %s104, 2
      %s106 = scalar_lea.vmem %s1, %s105
      %p107 = scmp.lt.s32.totalorder %s12, 1
      %s108 = scalar_select %p107, %s12, 1
      %s109 = smul.addr %s108, 128
      %s110 = smul.addr %s109, 4
      %s111 = scalar_lea.vmem %s0, %s110
      %p112 = scmp.lt.s32.totalorder %s12, 1
      %s113 = scalar_select %p112, %s12, 1
      %s114 = smul.addr %s113, 64
      %s115 = smul.addr %s114, 2
      %s116 = scalar_lea.vmem %s1, %s115
      %v117 = vld [vmem:[%s111 + $0x50] sm:$0xff]
      %v118 = vld [vmem:[%s111 + $0x58] sm:$0xff]
      %v119 = vld [vmem:[%s111 + $0x150] sm:$0xff]
      %v120 = vld [vmem:[%s111 + $0x158] sm:$0xff]
      %v121 = vunpack.c.l.bf16 %v117
      %v122 = vunpack.c.h.bf16 %v117
      %v123 = vunpack.c.l.bf16 %v118
      %v124 = vunpack.c.h.bf16 %v118
      %v125 = vunpack.c.l.bf16 %v119
      %v126 = vunpack.c.h.bf16 %v119
      %v127 = vunpack.c.l.bf16 %v120
      %v128 = vunpack.c.h.bf16 %v120
      %v129 = vld [vmem:[%s111 + $0x70] sm:$0xff]
      %v130 = vld [vmem:[%s111 + $0x78] sm:$0xff]
      %v131 = vld [vmem:[%s111 + $0x170] sm:$0xff]
      %v132 = vld [vmem:[%s111 + $0x178] sm:$0xff]
      %v133 = vunpack.c.l.bf16 %v129
      %v134 = vunpack.c.h.bf16 %v129
      %v135 = vunpack.c.l.bf16 %v130
      %v136 = vunpack.c.h.bf16 %v130
      %v137 = vunpack.c.l.bf16 %v131
      %v138 = vunpack.c.h.bf16 %v131
      %v139 = vunpack.c.l.bf16 %v132
      %v140 = vunpack.c.h.bf16 %v132
      %vm149 = vcmask 1040384
      %v150 = vrot.slane %v133, 7
      %v151 = vrot.slane %v134, 7
      %v152 = vrot.slane %v135, 7
      %v153 = vrot.slane %v136, 7
      %v154 = vrot.slane %v137, 7
      %v155 = vsel %vm149, %v150, %v154
      %v156 = vrot.slane %v138, 7
      %v157 = vsel %vm149, %v151, %v156
      %v158 = vrot.slane %v139, 7
      %v159 = vsel %vm149, %v152, %v158
      %v160 = vrot.slane %v140, 7
      %v161 = vsel %vm149, %v153, %v160
      %v170 = vsel %vm149, 0.0, %v150
      %v171 = vsel %vm149, 0.0, %v151
      %v172 = vsel %vm149, 0.0, %v152
      %v173 = vsel %vm149, 0.0, %v153
      %v174 = vlaneseq
      %v175 = vshrl.u32 %v174, 7
      %v176 = vadd.s32 %v175, 8
      %vm177 = vcmp.lt.s32.totalorder %v175, 0
      %v178 = vsub.s32 0, %v175
      %v179 = vsel %vm177, %v178, %v175
      %v180 = vshrl.u32 %v179, 2
      %v181 = vand.u32 %v179, 3
      %v182 = vsub.s32 0, %v181
      %v183 = vsel %vm177, %v182, %v181
      %vm184 = vcmp.lt.s32.totalorder %v176, 0
      %v185 = vsub.s32 0, %v176
      %v186 = vsel %vm184, %v185, %v176
      %v187 = vshrl.u32 %v186, 2
      %v188 = vand.u32 %v186, 3
      %v189 = vsub.s32 0, %v188
      %v190 = vsel %vm184, %v189, %v188
      %vm191 = vcmp.ne.s32.totalorder %v183, 0
      %vm192 = vcmp.ne.s32.totalorder %v190, 0
      %vm193 = vcmp.lt.s32.totalorder %v183, 0
      %vm194 = vcmp.lt.s32.totalorder %v190, 0
      %vm195 = vmand %vm193, %vm191
      %vm196 = vmand %vm194, %vm192
      %v197 = vadd.s32 %v183, 4
      %v198 = vadd.s32 %v190, 4
      %v199 = vsel %vm195, %v197, %v183
      %v200 = vsel %vm196, %v198, %v190
      %vm201 = vcmp.ge.s32.totalorder %v199, 1
      %vm202 = vcmp.ge.s32.totalorder %v200, 1
      %v203 = vsel %vm201, 1, 0
      %v204 = vsel %vm202, 1, 0
      %vm205 = vcmp.eq.s32.totalorder %v203, 1
      %vm206 = vcmp.eq.s32.totalorder %v204, 1
      %v207 = vsel %vm205, %v170, 0.0
      %v208 = vsel %vm205, %v171, 0.0
      %v209 = vsel %vm205, %v172, 0.0
      %v210 = vsel %vm205, %v173, 0.0
      %v211 = vsel %vm206, %v155, 0.0
      %v212 = vsel %vm206, %v157, 0.0
      %v213 = vsel %vm206, %v159, 0.0
      %v214 = vsel %vm206, %v161, 0.0
      %v215 = vadd.f32 %v121, %v207
      %v216 = vadd.f32 %v122, %v208
      %v217 = vadd.f32 %v123, %v209
      %v218 = vadd.f32 %v124, %v210
      %v219 = vadd.f32 %v125, %v211
      %v220 = vadd.f32 %v126, %v212
      %v221 = vadd.f32 %v127, %v213
      %v222 = vadd.f32 %v128, %v214
      %v223 = vld [vmem:[%s111 + $0xd0] sm:$0xff]
      %v224 = vld [vmem:[%s111 + $0xd8] sm:$0xff]
      %v225 = vld [vmem:[%s111 + $0x1d0] sm:$0xff]
      %v226 = vld [vmem:[%s111 + $0x1d8] sm:$0xff]
      %v227 = vunpack.c.l.bf16 %v223
      %v228 = vunpack.c.h.bf16 %v223
      %v229 = vunpack.c.l.bf16 %v224
      %v230 = vunpack.c.h.bf16 %v224
      %v231 = vunpack.c.l.bf16 %v225
      %v232 = vunpack.c.h.bf16 %v225
      %v233 = vunpack.c.l.bf16 %v226
      %v234 = vunpack.c.h.bf16 %v226
      %vm243 = vcmask 1043456
      %v244 = vrot.slane %v227, 4
      %v245 = vrot.slane %v228, 4
      %v246 = vrot.slane %v229, 4
      %v247 = vrot.slane %v230, 4
      %v248 = vrot.slane %v231, 4
      %v249 = vsel %vm243, %v244, %v248
      %v250 = vrot.slane %v232, 4
      %v251 = vsel %vm243, %v245, %v250
      %v252 = vrot.slane %v233, 4
      %v253 = vsel %vm243, %v246, %v252
      %v254 = vrot.slane %v234, 4
      %v255 = vsel %vm243, %v247, %v254
      %v264 = vsel %vm243, 0.0, %v244
      %v265 = vsel %vm243, 0.0, %v245
      %v266 = vsel %vm243, 0.0, %v246
      %v267 = vsel %vm243, 0.0, %v247
      %vm268 = vcmp.ge.s32.totalorder %v175, 4
      %vm269 = vcmp.ge.s32.totalorder %v176, 4
      %v270 = vsel %vm268, 1, 0
      %v271 = vsel %vm269, 1, 0
      %vm272 = vcmp.eq.s32.totalorder %v270, 1
      %vm273 = vcmp.eq.s32.totalorder %v271, 1
      %v274 = vsel %vm272, %v264, 0.0
      %v275 = vsel %vm272, %v265, 0.0
      %v276 = vsel %vm272, %v266, 0.0
      %v277 = vsel %vm272, %v267, 0.0
      %v278 = vsel %vm273, %v249, 0.0
      %v279 = vsel %vm273, %v251, 0.0
      %v280 = vsel %vm273, %v253, 0.0
      %v281 = vsel %vm273, %v255, 0.0
      %v282 = vadd.f32 %v215, %v274
      %v283 = vadd.f32 %v216, %v275
      %v284 = vadd.f32 %v217, %v276
      %v285 = vadd.f32 %v218, %v277
      %v286 = vadd.f32 %v219, %v278
      %v287 = vadd.f32 %v220, %v279
      %v288 = vadd.f32 %v221, %v280
      %v289 = vadd.f32 %v222, %v281
      %v290 = vld [vmem:[%s111 + $0xf0] sm:$0xff]
      %v291 = vld [vmem:[%s111 + $0xf8] sm:$0xff]
      %v292 = vld [vmem:[%s111 + $0x1f0] sm:$0xff]
      %v293 = vld [vmem:[%s111 + $0x1f8] sm:$0xff]
      %v294 = vunpack.c.l.bf16 %v290
      %v295 = vunpack.c.h.bf16 %v290
      %v296 = vunpack.c.l.bf16 %v291
      %v297 = vunpack.c.h.bf16 %v291
      %v298 = vunpack.c.l.bf16 %v292
      %v299 = vunpack.c.h.bf16 %v292
      %v300 = vunpack.c.l.bf16 %v293
      %v301 = vunpack.c.h.bf16 %v293
      %vm310 = vcmask 1044480
      %v311 = vrot.slane %v294, 3
      %v312 = vrot.slane %v295, 3
      %v313 = vrot.slane %v296, 3
      %v314 = vrot.slane %v297, 3
      %v315 = vrot.slane %v298, 3
      %v316 = vsel %vm310, %v311, %v315
      %v317 = vrot.slane %v299, 3
      %v318 = vsel %vm310, %v312, %v317
      %v319 = vrot.slane %v300, 3
      %v320 = vsel %vm310, %v313, %v319
      %v321 = vrot.slane %v301, 3
      %v322 = vsel %vm310, %v314, %v321
      %v331 = vsel %vm310, 0.0, %v311
      %v332 = vsel %vm310, 0.0, %v312
      %v333 = vsel %vm310, 0.0, %v313
      %v334 = vsel %vm310, 0.0, %v314
      %vm335 = vmand %vm268, %vm201
      %vm336 = vmand %vm269, %vm202
      %v337 = vsel %vm335, 1, 0
      %v338 = vsel %vm336, 1, 0
      %vm339 = vcmp.eq.s32.totalorder %v337, 1
      %vm340 = vcmp.eq.s32.totalorder %v338, 1
      %v341 = vsel %vm339, %v331, 0.0
      %v342 = vsel %vm339, %v332, 0.0
      %v343 = vsel %vm339, %v333, 0.0
      %v344 = vsel %vm339, %v334, 0.0
      %v345 = vsel %vm340, %v316, 0.0
      %v346 = vsel %vm340, %v318, 0.0
      %v347 = vsel %vm340, %v320, 0.0
      %v348 = vsel %vm340, %v322, 0.0
      %v349 = vadd.f32 %v282, %v341
      %v350 = vadd.f32 %v283, %v342
      %v351 = vadd.f32 %v284, %v343
      %v352 = vadd.f32 %v285, %v344
      %v353 = vadd.f32 %v286, %v345
      %v354 = vadd.f32 %v287, %v346
      %v355 = vadd.f32 %v288, %v347
      %v356 = vadd.f32 %v289, %v348
      %v365 = vcombine.low %v349, %v350
      %v366 = vcombine.high %v349, %v350
      %v367 = vcombine.low %v351, %v352
      %v368 = vcombine.high %v351, %v352
      %v369 = vcombine.low %v353, %v354
      %v370 = vcombine.high %v353, %v354
      %v371 = vcombine.low %v355, %v356
      %v372 = vcombine.high %v355, %v356
      %v381 = vcombine.high %v365, %v365
      %v382 = vcombine.high %v367, %v367
      %v383 = vcombine.high %v366, %v366
      %v384 = vcombine.high %v368, %v368
      %v385 = vcombine.high %v369, %v369
      %v386 = vcombine.high %v371, %v371
      %v387 = vcombine.high %v370, %v370
      %v388 = vcombine.high %v372, %v372
      %v397 = vpack.c.bf16 %v365, %v365
      %v398 = vpack.c.bf16 %v381, %v381
      %v399 = vpack.c.bf16 %v367, %v367
      %v400 = vpack.c.bf16 %v382, %v382
      %v401 = vpack.c.bf16 %v366, %v366
      %v402 = vpack.c.bf16 %v383, %v383
      %v403 = vpack.c.bf16 %v368, %v368
      %v404 = vpack.c.bf16 %v384, %v384
      %v405 = vpack.c.bf16 %v369, %v369
      %v406 = vpack.c.bf16 %v385, %v385
      %v407 = vpack.c.bf16 %v371, %v371
      %v408 = vpack.c.bf16 %v386, %v386
      %v409 = vpack.c.bf16 %v370, %v370
      %v410 = vpack.c.bf16 %v387, %v387
      %v411 = vpack.c.bf16 %v372, %v372
      %v412 = vpack.c.bf16 %v388, %v388
      %v429 = vcombine.low %v397, %v398
      %v430 = vcombine.low %v399, %v400
      %v432 = vunpack.c.l.s4 1983009808
      %v433 = vunpack.c.0.s8 %v432
      %v434 = vlaneseq
      %v435 = vshrl.u32 %v434, 7
      %v436 = vsub.s32 %v433, %v435
      %v437 = vrot.slane %v429, %v436
      %v439 = vunpack.c.l.s4 1983009808
      %v440 = vunpack.c.0.s8 %v439
      %v441 = vlaneseq
      %v442 = vshrl.u32 %v441, 7
      %v443 = vsub.s32 %v440, %v442
      %v444 = vrot.slane %v430, %v443
      %v445 = vcombine.low %v437, %v444
      %v446 = vcombine.low %v401, %v402
      %v447 = vcombine.low %v403, %v404
      %v449 = vunpack.c.l.s4 1983009808
      %v450 = vunpack.c.0.s8 %v449
      %v451 = vlaneseq
      %v452 = vshrl.u32 %v451, 7
      %v453 = vsub.s32 %v450, %v452
      %v454 = vrot.slane %v446, %v453
      %v456 = vunpack.c.l.s4 1983009808
      %v457 = vunpack.c.0.s8 %v456
      %v458 = vlaneseq
      %v459 = vshrl.u32 %v458, 7
      %v460 = vsub.s32 %v457, %v459
      %v461 = vrot.slane %v447, %v460
      %v462 = vcombine.low %v454, %v461
      %v463 = vcombine.low %v405, %v406
      %v464 = vcombine.low %v407, %v408
      %v466 = vunpack.c.l.s4 1983009808
      %v467 = vunpack.c.0.s8 %v466
      %v468 = vlaneseq
      %v469 = vshrl.u32 %v468, 7
      %v470 = vsub.s32 %v467, %v469
      %v471 = vrot.slane %v463, %v470
      %v473 = vunpack.c.l.s4 1983009808
      %v474 = vunpack.c.0.s8 %v473
      %v475 = vlaneseq
      %v476 = vshrl.u32 %v475, 7
      %v477 = vsub.s32 %v474, %v476
      %v478 = vrot.slane %v464, %v477
      %v479 = vcombine.low %v471, %v478
      %v480 = vcombine.low %v409, %v410
      %v481 = vcombine.low %v411, %v412
      %v483 = vunpack.c.l.s4 1983009808
      %v484 = vunpack.c.0.s8 %v483
      %v485 = vlaneseq
      %v486 = vshrl.u32 %v485, 7
      %v487 = vsub.s32 %v484, %v486
      %v488 = vrot.slane %v480, %v487
      %v490 = vunpack.c.l.s4 1983009808
      %v491 = vunpack.c.0.s8 %v490
      %v492 = vlaneseq
      %v493 = vshrl.u32 %v492, 7
      %v494 = vsub.s32 %v491, %v493
      %v495 = vrot.slane %v481, %v494
      %v496 = vcombine.low %v488, %v495
      %501 = vst [vmem:[%s116] sm:$0xff] %v445
      %502 = vst [vmem:[%s116 + $0x20] sm:$0xff] %v462
      %503 = vst [vmem:[%s116 + $0x40] sm:$0xff] %v479
      %504 = vst [vmem:[%s116 + $0x60] sm:$0xff] %v496
      %v505 = vld [vmem:[%s111 + $0x40] sm:$0xff]
      %v506 = vld [vmem:[%s111 + $0x48] sm:$0xff]
      %v507 = vld [vmem:[%s111 + $0x140] sm:$0xff]
      %v508 = vld [vmem:[%s111 + $0x148] sm:$0xff]
      %v509 = vunpack.c.l.bf16 %v505
      %v510 = vunpack.c.h.bf16 %v505
      %v511 = vunpack.c.l.bf16 %v506
      %v512 = vunpack.c.h.bf16 %v506
      %v513 = vunpack.c.l.bf16 %v507
      %v514 = vunpack.c.h.bf16 %v507
      %v515 = vunpack.c.l.bf16 %v508
      %v516 = vunpack.c.h.bf16 %v508
      %vm525 = vcmask 1046528
      %v526 = vrot.slane %v509, 1
      %v527 = vrot.slane %v513, 1
      %v528 = vsel %vm525, %v526, %v527
      %v529 = vrot.slane %v510, 1
      %v530 = vrot.slane %v514, 1
      %v531 = vsel %vm525, %v529, %v530
      %v532 = vrot.slane %v511, 1
      %v533 = vrot.slane %v515, 1
      %v534 = vsel %vm525, %v532, %v533
      %v535 = vrot.slane %v512, 1
      %v536 = vrot.slane %v516, 1
      %v537 = vsel %vm525, %v535, %v536
      %v546 = vsel %vm525, %v527, 0.0
      %v547 = vsel %vm525, %v530, 0.0
      %v548 = vsel %vm525, %v533, 0.0
      %v549 = vsel %vm525, %v536, 0.0
      %vm550 = vcmp.lt.s32.totalorder %v199, 3
      %vm551 = vcmp.lt.s32.totalorder %v200, 3
      %v552 = vsel %vm550, 1, 0
      %v553 = vsel %vm551, 1, 0
      %vm554 = vcmp.eq.s32.totalorder %v552, 1
      %vm555 = vcmp.eq.s32.totalorder %v553, 1
      %v556 = vsel %vm554, %v528, 0.0
      %v557 = vsel %vm554, %v531, 0.0
      %v558 = vsel %vm554, %v534, 0.0
      %v559 = vsel %vm554, %v537, 0.0
      %v560 = vsel %vm555, %v546, 0.0
      %v561 = vsel %vm555, %v547, 0.0
      %v562 = vsel %vm555, %v548, 0.0
      %v563 = vsel %vm555, %v549, 0.0
      %v564 = vld [vmem:[%s111 + $0x60] sm:$0xff]
      %v565 = vld [vmem:[%s111 + $0x68] sm:$0xff]
      %v566 = vld [vmem:[%s111 + $0x160] sm:$0xff]
      %v567 = vld [vmem:[%s111 + $0x168] sm:$0xff]
      %v568 = vunpack.c.l.bf16 %v564
      %v569 = vunpack.c.h.bf16 %v564
      %v570 = vunpack.c.l.bf16 %v565
      %v571 = vunpack.c.h.bf16 %v565
      %v572 = vunpack.c.l.bf16 %v566
      %v573 = vunpack.c.h.bf16 %v566
      %v574 = vunpack.c.l.bf16 %v567
      %v575 = vunpack.c.h.bf16 %v567
      %v576 = vadd.f32 %v556, %v568
      %v577 = vadd.f32 %v557, %v569
      %v578 = vadd.f32 %v558, %v570
      %v579 = vadd.f32 %v559, %v571
      %v580 = vadd.f32 %v560, %v572
      %v581 = vadd.f32 %v561, %v573
      %v582 = vadd.f32 %v562, %v574
      %v583 = vadd.f32 %v563, %v575
      %v584 = vld [vmem:[%s111 + $0xc0] sm:$0xff]
      %v585 = vld [vmem:[%s111 + $0xc8] sm:$0xff]
      %v586 = vld [vmem:[%s111 + $0x1c0] sm:$0xff]
      %v587 = vld [vmem:[%s111 + $0x1c8] sm:$0xff]
      %v588 = vunpack.c.l.bf16 %v584
      %v589 = vunpack.c.h.bf16 %v584
      %v590 = vunpack.c.l.bf16 %v585
      %v591 = vunpack.c.h.bf16 %v585
      %v592 = vunpack.c.l.bf16 %v586
      %v593 = vunpack.c.h.bf16 %v586
      %v594 = vunpack.c.l.bf16 %v587
      %v595 = vunpack.c.h.bf16 %v587
      %vm604 = vcmask 1042432
      %v605 = vrot.slane %v588, 5
      %v606 = vrot.slane %v589, 5
      %v607 = vrot.slane %v590, 5
      %v608 = vrot.slane %v591, 5
      %v609 = vrot.slane %v592, 5
      %v610 = vsel %vm604, %v605, %v609
      %v611 = vrot.slane %v593, 5
      %v612 = vsel %vm604, %v606, %v611
      %v613 = vrot.slane %v594, 5
      %v614 = vsel %vm604, %v607, %v613
      %v615 = vrot.slane %v595, 5
      %v616 = vsel %vm604, %v608, %v615
      %v625 = vsel %vm604, 0.0, %v605
      %v626 = vsel %vm604, 0.0, %v606
      %v627 = vsel %vm604, 0.0, %v607
      %v628 = vsel %vm604, 0.0, %v608
      %vm629 = vmand %vm268, %vm550
      %vm630 = vmand %vm269, %vm551
      %v631 = vsel %vm629, 1, 0
      %v632 = vsel %vm630, 1, 0
      %vm633 = vcmp.eq.s32.totalorder %v631, 1
      %vm634 = vcmp.eq.s32.totalorder %v632, 1
      %v635 = vsel %vm633, %v625, 0.0
      %v636 = vsel %vm633, %v626, 0.0
      %v637 = vsel %vm633, %v627, 0.0
      %v638 = vsel %vm633, %v628, 0.0
      %v639 = vsel %vm634, %v610, 0.0
      %v640 = vsel %vm634, %v612, 0.0
      %v641 = vsel %vm634, %v614, 0.0
      %v642 = vsel %vm634, %v616, 0.0
      %v643 = vadd.f32 %v576, %v635
      %v644 = vadd.f32 %v577, %v636
      %v645 = vadd.f32 %v578, %v637
      %v646 = vadd.f32 %v579, %v638
      %v647 = vadd.f32 %v580, %v639
      %v648 = vadd.f32 %v581, %v640
      %v649 = vadd.f32 %v582, %v641
      %v650 = vadd.f32 %v583, %v642
      %v651 = vld [vmem:[%s111 + $0xe0] sm:$0xff]
      %v652 = vld [vmem:[%s111 + $0xe8] sm:$0xff]
      %v653 = vld [vmem:[%s111 + $0x1e0] sm:$0xff]
      %v654 = vld [vmem:[%s111 + $0x1e8] sm:$0xff]
      %v655 = vunpack.c.l.bf16 %v651
      %v656 = vunpack.c.h.bf16 %v651
      %v657 = vunpack.c.l.bf16 %v652
      %v658 = vunpack.c.h.bf16 %v652
      %v659 = vunpack.c.l.bf16 %v653
      %v660 = vunpack.c.h.bf16 %v653
      %v661 = vunpack.c.l.bf16 %v654
      %v662 = vunpack.c.h.bf16 %v654
      %v671 = vrot.slane %v655, 4
      %v672 = vrot.slane %v656, 4
      %v673 = vrot.slane %v657, 4
      %v674 = vrot.slane %v658, 4
      %v675 = vrot.slane %v659, 4
      %v676 = vsel %vm243, %v671, %v675
      %v677 = vrot.slane %v660, 4
      %v678 = vsel %vm243, %v672, %v677
      %v679 = vrot.slane %v661, 4
      %v680 = vsel %vm243, %v673, %v679
      %v681 = vrot.slane %v662, 4
      %v682 = vsel %vm243, %v674, %v681
      %v691 = vsel %vm243, 0.0, %v671
      %v692 = vsel %vm243, 0.0, %v672
      %v693 = vsel %vm243, 0.0, %v673
      %v694 = vsel %vm243, 0.0, %v674
      %v695 = vsel %vm272, %v691, 0.0
      %v696 = vsel %vm272, %v692, 0.0
      %v697 = vsel %vm272, %v693, 0.0
      %v698 = vsel %vm272, %v694, 0.0
      %v699 = vsel %vm273, %v676, 0.0
      %v700 = vsel %vm273, %v678, 0.0
      %v701 = vsel %vm273, %v680, 0.0
      %v702 = vsel %vm273, %v682, 0.0
      %v703 = vadd.f32 %v643, %v695
      %v704 = vadd.f32 %v644, %v696
      %v705 = vadd.f32 %v645, %v697
      %v706 = vadd.f32 %v646, %v698
      %v707 = vadd.f32 %v647, %v699
      %v708 = vadd.f32 %v648, %v700
      %v709 = vadd.f32 %v649, %v701
      %v710 = vadd.f32 %v650, %v702
      %v719 = vcombine.low %v703, %v704
      %v720 = vcombine.high %v703, %v704
      %v721 = vcombine.low %v705, %v706
      %v722 = vcombine.high %v705, %v706
      %v723 = vcombine.low %v707, %v708
      %v724 = vcombine.high %v707, %v708
      %v725 = vcombine.low %v709, %v710
      %v726 = vcombine.high %v709, %v710
      %v735 = vcombine.high %v719, %v719
      %v736 = vcombine.high %v721, %v721
      %v737 = vcombine.high %v720, %v720
      %v738 = vcombine.high %v722, %v722
      %v739 = vcombine.high %v723, %v723
      %v740 = vcombine.high %v725, %v725
      %v741 = vcombine.high %v724, %v724
      %v742 = vcombine.high %v726, %v726
      %v751 = vpack.c.bf16 %v719, %v719
      %v752 = vpack.c.bf16 %v735, %v735
      %v753 = vpack.c.bf16 %v721, %v721
      %v754 = vpack.c.bf16 %v736, %v736
      %v755 = vpack.c.bf16 %v720, %v720
      %v756 = vpack.c.bf16 %v737, %v737
      %v757 = vpack.c.bf16 %v722, %v722
      %v758 = vpack.c.bf16 %v738, %v738
      %v759 = vpack.c.bf16 %v723, %v723
      %v760 = vpack.c.bf16 %v739, %v739
      %v761 = vpack.c.bf16 %v725, %v725
      %v762 = vpack.c.bf16 %v740, %v740
      %v763 = vpack.c.bf16 %v724, %v724
      %v764 = vpack.c.bf16 %v741, %v741
      %v765 = vpack.c.bf16 %v726, %v726
      %v766 = vpack.c.bf16 %v742, %v742
      %v783 = vcombine.low %v751, %v752
      %v784 = vcombine.low %v753, %v754
      %v786 = vunpack.c.l.s4 1983009808
      %v787 = vunpack.c.0.s8 %v786
      %v788 = vlaneseq
      %v789 = vshrl.u32 %v788, 7
      %v790 = vsub.s32 %v787, %v789
      %v791 = vrot.slane %v783, %v790
      %v793 = vunpack.c.l.s4 1983009808
      %v794 = vunpack.c.0.s8 %v793
      %v795 = vlaneseq
      %v796 = vshrl.u32 %v795, 7
      %v797 = vsub.s32 %v794, %v796
      %v798 = vrot.slane %v784, %v797
      %v799 = vcombine.low %v791, %v798
      %v800 = vcombine.low %v755, %v756
      %v801 = vcombine.low %v757, %v758
      %v803 = vunpack.c.l.s4 1983009808
      %v804 = vunpack.c.0.s8 %v803
      %v805 = vlaneseq
      %v806 = vshrl.u32 %v805, 7
      %v807 = vsub.s32 %v804, %v806
      %v808 = vrot.slane %v800, %v807
      %v810 = vunpack.c.l.s4 1983009808
      %v811 = vunpack.c.0.s8 %v810
      %v812 = vlaneseq
      %v813 = vshrl.u32 %v812, 7
      %v814 = vsub.s32 %v811, %v813
      %v815 = vrot.slane %v801, %v814
      %v816 = vcombine.low %v808, %v815
      %v817 = vcombine.low %v759, %v760
      %v818 = vcombine.low %v761, %v762
      %v820 = vunpack.c.l.s4 1983009808
      %v821 = vunpack.c.0.s8 %v820
      %v822 = vlaneseq
      %v823 = vshrl.u32 %v822, 7
      %v824 = vsub.s32 %v821, %v823
      %v825 = vrot.slane %v817, %v824
      %v827 = vunpack.c.l.s4 1983009808
      %v828 = vunpack.c.0.s8 %v827
      %v829 = vlaneseq
      %v830 = vshrl.u32 %v829, 7
      %v831 = vsub.s32 %v828, %v830
      %v832 = vrot.slane %v818, %v831
      %v833 = vcombine.low %v825, %v832
      %v834 = vcombine.low %v763, %v764
      %v835 = vcombine.low %v765, %v766
      %v837 = vunpack.c.l.s4 1983009808
      %v838 = vunpack.c.0.s8 %v837
      %v839 = vlaneseq
      %v840 = vshrl.u32 %v839, 7
      %v841 = vsub.s32 %v838, %v840
      %v842 = vrot.slane %v834, %v841
      %v844 = vunpack.c.l.s4 1983009808
      %v845 = vunpack.c.0.s8 %v844
      %v846 = vlaneseq
      %v847 = vshrl.u32 %v846, 7
      %v848 = vsub.s32 %v845, %v847
      %v849 = vrot.slane %v835, %v848
      %v850 = vcombine.low %v842, %v849
      %855 = vst [vmem:[%s116 + $0x8] sm:$0xff] %v799
      %856 = vst [vmem:[%s116 + $0x28] sm:$0xff] %v816
      %857 = vst [vmem:[%s116 + $0x48] sm:$0xff] %v833
      %858 = vst [vmem:[%s116 + $0x68] sm:$0xff] %v850
      %v859 = vld [vmem:[%s111 + $0x10] sm:$0xff]
      %v860 = vld [vmem:[%s111 + $0x18] sm:$0xff]
      %v861 = vld [vmem:[%s111 + $0x110] sm:$0xff]
      %v862 = vld [vmem:[%s111 + $0x118] sm:$0xff]
      %v863 = vunpack.c.l.bf16 %v859
      %v864 = vunpack.c.h.bf16 %v859
      %v865 = vunpack.c.l.bf16 %v860
      %v866 = vunpack.c.h.bf16 %v860
      %v867 = vunpack.c.l.bf16 %v861
      %v868 = vunpack.c.h.bf16 %v861
      %v869 = vunpack.c.l.bf16 %v862
      %v870 = vunpack.c.h.bf16 %v862
      %v879 = vrot.slane %v863, 4
      %v880 = vrot.slane %v867, 4
      %v881 = vsel %vm243, %v879, %v880
      %v882 = vrot.slane %v864, 4
      %v883 = vrot.slane %v868, 4
      %v884 = vsel %vm243, %v882, %v883
      %v885 = vrot.slane %v865, 4
      %v886 = vrot.slane %v869, 4
      %v887 = vsel %vm243, %v885, %v886
      %v888 = vrot.slane %v866, 4
      %v889 = vrot.slane %v870, 4
      %v890 = vsel %vm243, %v888, %v889
      %v899 = vsel %vm243, %v880, 0.0
      %v900 = vsel %vm243, %v883, 0.0
      %v901 = vsel %vm243, %v886, 0.0
      %v902 = vsel %vm243, %v889, 0.0
      %vm903 = vcmp.lt.s32.totalorder %v175, 12
      %vm904 = vcmp.lt.s32.totalorder %v176, 12
      %v905 = vsel %vm903, 1, 0
      %v906 = vsel %vm904, 1, 0
      %vm907 = vcmp.eq.s32.totalorder %v905, 1
      %vm908 = vcmp.eq.s32.totalorder %v906, 1
      %v909 = vsel %vm907, %v881, 0.0
      %v910 = vsel %vm907, %v884, 0.0
      %v911 = vsel %vm907, %v887, 0.0
      %v912 = vsel %vm907, %v890, 0.0
      %v913 = vsel %vm908, %v899, 0.0
      %v914 = vsel %vm908, %v900, 0.0
      %v915 = vsel %vm908, %v901, 0.0
      %v916 = vsel %vm908, %v902, 0.0
      %v917 = vld [vmem:[%s111 + $0x30] sm:$0xff]
      %v918 = vld [vmem:[%s111 + $0x38] sm:$0xff]
      %v919 = vld [vmem:[%s111 + $0x130] sm:$0xff]
      %v920 = vld [vmem:[%s111 + $0x138] sm:$0xff]
      %v921 = vunpack.c.l.bf16 %v917
      %v922 = vunpack.c.h.bf16 %v917
      %v923 = vunpack.c.l.bf16 %v918
      %v924 = vunpack.c.h.bf16 %v918
      %v925 = vunpack.c.l.bf16 %v919
      %v926 = vunpack.c.h.bf16 %v919
      %v927 = vunpack.c.l.bf16 %v920
      %v928 = vunpack.c.h.bf16 %v920
      %v937 = vrot.slane %v921, 3
      %v938 = vrot.slane %v925, 3
      %v939 = vsel %vm310, %v937, %v938
      %v940 = vrot.slane %v922, 3
      %v941 = vrot.slane %v926, 3
      %v942 = vsel %vm310, %v940, %v941
      %v943 = vrot.slane %v923, 3
      %v944 = vrot.slane %v927, 3
      %v945 = vsel %vm310, %v943, %v944
      %v946 = vrot.slane %v924, 3
      %v947 = vrot.slane %v928, 3
      %v948 = vsel %vm310, %v946, %v947
      %v957 = vsel %vm310, %v938, 0.0
      %v958 = vsel %vm310, %v941, 0.0
      %v959 = vsel %vm310, %v944, 0.0
      %v960 = vsel %vm310, %v947, 0.0
      %vm961 = vmand %vm903, %vm201
      %vm962 = vmand %vm904, %vm202
      %v963 = vsel %vm961, 1, 0
      %v964 = vsel %vm962, 1, 0
      %vm965 = vcmp.eq.s32.totalorder %v963, 1
      %vm966 = vcmp.eq.s32.totalorder %v964, 1
      %v967 = vsel %vm965, %v939, 0.0
      %v968 = vsel %vm965, %v942, 0.0
      %v969 = vsel %vm965, %v945, 0.0
      %v970 = vsel %vm965, %v948, 0.0
      %v971 = vsel %vm966, %v957, 0.0
      %v972 = vsel %vm966, %v958, 0.0
      %v973 = vsel %vm966, %v959, 0.0
      %v974 = vsel %vm966, %v960, 0.0
      %v975 = vadd.f32 %v909, %v967
      %v976 = vadd.f32 %v910, %v968
      %v977 = vadd.f32 %v911, %v969
      %v978 = vadd.f32 %v912, %v970
      %v979 = vadd.f32 %v913, %v971
      %v980 = vadd.f32 %v914, %v972
      %v981 = vadd.f32 %v915, %v973
      %v982 = vadd.f32 %v916, %v974
      %v983 = vld [vmem:[%s111 + $0x90] sm:$0xff]
      %v984 = vld [vmem:[%s111 + $0x98] sm:$0xff]
      %v985 = vld [vmem:[%s111 + $0x190] sm:$0xff]
      %v986 = vld [vmem:[%s111 + $0x198] sm:$0xff]
      %v987 = vunpack.c.l.bf16 %v983
      %v988 = vunpack.c.h.bf16 %v983
      %v989 = vunpack.c.l.bf16 %v984
      %v990 = vunpack.c.h.bf16 %v984
      %v991 = vunpack.c.l.bf16 %v985
      %v992 = vunpack.c.h.bf16 %v985
      %v993 = vunpack.c.l.bf16 %v986
      %v994 = vunpack.c.h.bf16 %v986
      %v995 = vadd.f32 %v975, %v987
      %v996 = vadd.f32 %v976, %v988
      %v997 = vadd.f32 %v977, %v989
      %v998 = vadd.f32 %v978, %v990
      %v999 = vadd.f32 %v979, %v991
      %v1000 = vadd.f32 %v980, %v992
      %v1001 = vadd.f32 %v981, %v993
      %v1002 = vadd.f32 %v982, %v994
      %v1003 = vld [vmem:[%s111 + $0xb0] sm:$0xff]
      %v1004 = vld [vmem:[%s111 + $0xb8] sm:$0xff]
      %v1005 = vld [vmem:[%s111 + $0x1b0] sm:$0xff]
      %v1006 = vld [vmem:[%s111 + $0x1b8] sm:$0xff]
      %v1007 = vunpack.c.l.bf16 %v1003
      %v1008 = vunpack.c.h.bf16 %v1003
      %v1009 = vunpack.c.l.bf16 %v1004
      %v1010 = vunpack.c.h.bf16 %v1004
      %v1011 = vunpack.c.l.bf16 %v1005
      %v1012 = vunpack.c.h.bf16 %v1005
      %v1013 = vunpack.c.l.bf16 %v1006
      %v1014 = vunpack.c.h.bf16 %v1006
      %v1023 = vrot.slane %v1007, 7
      %v1024 = vrot.slane %v1008, 7
      %v1025 = vrot.slane %v1009, 7
      %v1026 = vrot.slane %v1010, 7
      %v1027 = vrot.slane %v1011, 7
      %v1028 = vsel %vm149, %v1023, %v1027
      %v1029 = vrot.slane %v1012, 7
      %v1030 = vsel %vm149, %v1024, %v1029
      %v1031 = vrot.slane %v1013, 7
      %v1032 = vsel %vm149, %v1025, %v1031
      %v1033 = vrot.slane %v1014, 7
      %v1034 = vsel %vm149, %v1026, %v1033
      %v1043 = vsel %vm149, 0.0, %v1023
      %v1044 = vsel %vm149, 0.0, %v1024
      %v1045 = vsel %vm149, 0.0, %v1025
      %v1046 = vsel %vm149, 0.0, %v1026
      %v1047 = vsel %vm205, %v1043, 0.0
      %v1048 = vsel %vm205, %v1044, 0.0
      %v1049 = vsel %vm205, %v1045, 0.0
      %v1050 = vsel %vm205, %v1046, 0.0
      %v1051 = vsel %vm206, %v1028, 0.0
      %v1052 = vsel %vm206, %v1030, 0.0
      %v1053 = vsel %vm206, %v1032, 0.0
      %v1054 = vsel %vm206, %v1034, 0.0
      %v1055 = vadd.f32 %v995, %v1047
      %v1056 = vadd.f32 %v996, %v1048
      %v1057 = vadd.f32 %v997, %v1049
      %v1058 = vadd.f32 %v998, %v1050
      %v1059 = vadd.f32 %v999, %v1051
      %v1060 = vadd.f32 %v1000, %v1052
      %v1061 = vadd.f32 %v1001, %v1053
      %v1062 = vadd.f32 %v1002, %v1054
      %v1071 = vcombine.low %v1055, %v1056
      %v1072 = vcombine.high %v1055, %v1056
      %v1073 = vcombine.low %v1057, %v1058
      %v1074 = vcombine.high %v1057, %v1058
      %v1075 = vcombine.low %v1059, %v1060
      %v1076 = vcombine.high %v1059, %v1060
      %v1077 = vcombine.low %v1061, %v1062
      %v1078 = vcombine.high %v1061, %v1062
      %v1087 = vcombine.high %v1071, %v1071
      %v1088 = vcombine.high %v1073, %v1073
      %v1089 = vcombine.high %v1072, %v1072
      %v1090 = vcombine.high %v1074, %v1074
      %v1091 = vcombine.high %v1075, %v1075
      %v1092 = vcombine.high %v1077, %v1077
      %v1093 = vcombine.high %v1076, %v1076
      %v1094 = vcombine.high %v1078, %v1078
      %v1103 = vpack.c.bf16 %v1071, %v1071
      %v1104 = vpack.c.bf16 %v1087, %v1087
      %v1105 = vpack.c.bf16 %v1073, %v1073
      %v1106 = vpack.c.bf16 %v1088, %v1088
      %v1107 = vpack.c.bf16 %v1072, %v1072
      %v1108 = vpack.c.bf16 %v1089, %v1089
      %v1109 = vpack.c.bf16 %v1074, %v1074
      %v1110 = vpack.c.bf16 %v1090, %v1090
      %v1111 = vpack.c.bf16 %v1075, %v1075
      %v1112 = vpack.c.bf16 %v1091, %v1091
      %v1113 = vpack.c.bf16 %v1077, %v1077
      %v1114 = vpack.c.bf16 %v1092, %v1092
      %v1115 = vpack.c.bf16 %v1076, %v1076
      %v1116 = vpack.c.bf16 %v1093, %v1093
      %v1117 = vpack.c.bf16 %v1078, %v1078
      %v1118 = vpack.c.bf16 %v1094, %v1094
      %v1135 = vcombine.low %v1103, %v1104
      %v1136 = vcombine.low %v1105, %v1106
      %v1138 = vunpack.c.l.s4 1983009808
      %v1139 = vunpack.c.0.s8 %v1138
      %v1140 = vlaneseq
      %v1141 = vshrl.u32 %v1140, 7
      %v1142 = vsub.s32 %v1139, %v1141
      %v1143 = vrot.slane %v1135, %v1142
      %v1145 = vunpack.c.l.s4 1983009808
      %v1146 = vunpack.c.0.s8 %v1145
      %v1147 = vlaneseq
      %v1148 = vshrl.u32 %v1147, 7
      %v1149 = vsub.s32 %v1146, %v1148
      %v1150 = vrot.slane %v1136, %v1149
      %v1151 = vcombine.low %v1143, %v1150
      %v1152 = vcombine.low %v1107, %v1108
      %v1153 = vcombine.low %v1109, %v1110
      %v1155 = vunpack.c.l.s4 1983009808
      %v1156 = vunpack.c.0.s8 %v1155
      %v1157 = vlaneseq
      %v1158 = vshrl.u32 %v1157, 7
      %v1159 = vsub.s32 %v1156, %v1158
      %v1160 = vrot.slane %v1152, %v1159
      %v1162 = vunpack.c.l.s4 1983009808
      %v1163 = vunpack.c.0.s8 %v1162
      %v1164 = vlaneseq
      %v1165 = vshrl.u32 %v1164, 7
      %v1166 = vsub.s32 %v1163, %v1165
      %v1167 = vrot.slane %v1153, %v1166
      %v1168 = vcombine.low %v1160, %v1167
      %v1169 = vcombine.low %v1111, %v1112
      %v1170 = vcombine.low %v1113, %v1114
      %v1172 = vunpack.c.l.s4 1983009808
      %v1173 = vunpack.c.0.s8 %v1172
      %v1174 = vlaneseq
      %v1175 = vshrl.u32 %v1174, 7
      %v1176 = vsub.s32 %v1173, %v1175
      %v1177 = vrot.slane %v1169, %v1176
      %v1179 = vunpack.c.l.s4 1983009808
      %v1180 = vunpack.c.0.s8 %v1179
      %v1181 = vlaneseq
      %v1182 = vshrl.u32 %v1181, 7
      %v1183 = vsub.s32 %v1180, %v1182
      %v1184 = vrot.slane %v1170, %v1183
      %v1185 = vcombine.low %v1177, %v1184
      %v1186 = vcombine.low %v1115, %v1116
      %v1187 = vcombine.low %v1117, %v1118
      %v1189 = vunpack.c.l.s4 1983009808
      %v1190 = vunpack.c.0.s8 %v1189
      %v1191 = vlaneseq
      %v1192 = vshrl.u32 %v1191, 7
      %v1193 = vsub.s32 %v1190, %v1192
      %v1194 = vrot.slane %v1186, %v1193
      %v1196 = vunpack.c.l.s4 1983009808
      %v1197 = vunpack.c.0.s8 %v1196
      %v1198 = vlaneseq
      %v1199 = vshrl.u32 %v1198, 7
      %v1200 = vsub.s32 %v1197, %v1199
      %v1201 = vrot.slane %v1187, %v1200
      %v1202 = vcombine.low %v1194, %v1201
      %s1207 = scalar_lea.vmem %s116, 16
      %1208 = vst [vmem:[%s1207] sm:$0xff] %v1151
      %1209 = vst [vmem:[%s1207 + $0x20] sm:$0xff] %v1168
      %1210 = vst [vmem:[%s1207 + $0x40] sm:$0xff] %v1185
      %1211 = vst [vmem:[%s1207 + $0x60] sm:$0xff] %v1202
      %v1212 = vld [vmem:[%s111] sm:$0xff]
      %v1213 = vld [vmem:[%s111 + $0x8] sm:$0xff]
      %v1214 = vld [vmem:[%s111 + $0x100] sm:$0xff]
      %v1215 = vld [vmem:[%s111 + $0x108] sm:$0xff]
      %v1216 = vunpack.c.l.bf16 %v1212
      %v1217 = vunpack.c.h.bf16 %v1212
      %v1218 = vunpack.c.l.bf16 %v1213
      %v1219 = vunpack.c.h.bf16 %v1213
      %v1220 = vunpack.c.l.bf16 %v1214
      %v1221 = vunpack.c.h.bf16 %v1214
      %v1222 = vunpack.c.l.bf16 %v1215
      %v1223 = vunpack.c.h.bf16 %v1215
      %v1232 = vrot.slane %v1216, 5
      %v1233 = vrot.slane %v1220, 5
      %v1234 = vsel %vm604, %v1232, %v1233
      %v1235 = vrot.slane %v1217, 5
      %v1236 = vrot.slane %v1221, 5
      %v1237 = vsel %vm604, %v1235, %v1236
      %v1238 = vrot.slane %v1218, 5
      %v1239 = vrot.slane %v1222, 5
      %v1240 = vsel %vm604, %v1238, %v1239
      %v1241 = vrot.slane %v1219, 5
      %v1242 = vrot.slane %v1223, 5
      %v1243 = vsel %vm604, %v1241, %v1242
      %v1252 = vsel %vm604, %v1233, 0.0
      %v1253 = vsel %vm604, %v1236, 0.0
      %v1254 = vsel %vm604, %v1239, 0.0
      %v1255 = vsel %vm604, %v1242, 0.0
      %vm1256 = vmand %vm903, %vm550
      %vm1257 = vmand %vm904, %vm551
      %v1258 = vsel %vm1256, 1, 0
      %v1259 = vsel %vm1257, 1, 0
      %vm1260 = vcmp.eq.s32.totalorder %v1258, 1
      %vm1261 = vcmp.eq.s32.totalorder %v1259, 1
      %v1262 = vsel %vm1260, %v1234, 0.0
      %v1263 = vsel %vm1260, %v1237, 0.0
      %v1264 = vsel %vm1260, %v1240, 0.0
      %v1265 = vsel %vm1260, %v1243, 0.0
      %v1266 = vsel %vm1261, %v1252, 0.0
      %v1267 = vsel %vm1261, %v1253, 0.0
      %v1268 = vsel %vm1261, %v1254, 0.0
      %v1269 = vsel %vm1261, %v1255, 0.0
      %v1270 = vld [vmem:[%s111 + $0x20] sm:$0xff]
      %v1271 = vld [vmem:[%s111 + $0x28] sm:$0xff]
      %v1272 = vld [vmem:[%s111 + $0x120] sm:$0xff]
      %v1273 = vld [vmem:[%s111 + $0x128] sm:$0xff]
      %v1274 = vunpack.c.l.bf16 %v1270
      %v1275 = vunpack.c.h.bf16 %v1270
      %v1276 = vunpack.c.l.bf16 %v1271
      %v1277 = vunpack.c.h.bf16 %v1271
      %v1278 = vunpack.c.l.bf16 %v1272
      %v1279 = vunpack.c.h.bf16 %v1272
      %v1280 = vunpack.c.l.bf16 %v1273
      %v1281 = vunpack.c.h.bf16 %v1273
      %v1290 = vrot.slane %v1274, 4
      %v1291 = vrot.slane %v1278, 4
      %v1292 = vsel %vm243, %v1290, %v1291
      %v1293 = vrot.slane %v1275, 4
      %v1294 = vrot.slane %v1279, 4
      %v1295 = vsel %vm243, %v1293, %v1294
      %v1296 = vrot.slane %v1276, 4
      %v1297 = vrot.slane %v1280, 4
      %v1298 = vsel %vm243, %v1296, %v1297
      %v1299 = vrot.slane %v1277, 4
      %v1300 = vrot.slane %v1281, 4
      %v1301 = vsel %vm243, %v1299, %v1300
      %v1310 = vsel %vm243, %v1291, 0.0
      %v1311 = vsel %vm243, %v1294, 0.0
      %v1312 = vsel %vm243, %v1297, 0.0
      %v1313 = vsel %vm243, %v1300, 0.0
      %v1314 = vsel %vm907, %v1292, 0.0
      %v1315 = vsel %vm907, %v1295, 0.0
      %v1316 = vsel %vm907, %v1298, 0.0
      %v1317 = vsel %vm907, %v1301, 0.0
      %v1318 = vsel %vm908, %v1310, 0.0
      %v1319 = vsel %vm908, %v1311, 0.0
      %v1320 = vsel %vm908, %v1312, 0.0
      %v1321 = vsel %vm908, %v1313, 0.0
      %v1322 = vadd.f32 %v1262, %v1314
      %v1323 = vadd.f32 %v1263, %v1315
      %v1324 = vadd.f32 %v1264, %v1316
      %v1325 = vadd.f32 %v1265, %v1317
      %v1326 = vadd.f32 %v1266, %v1318
      %v1327 = vadd.f32 %v1267, %v1319
      %v1328 = vadd.f32 %v1268, %v1320
      %v1329 = vadd.f32 %v1269, %v1321
      %v1330 = vld [vmem:[%s111 + $0x80] sm:$0xff]
      %v1331 = vld [vmem:[%s111 + $0x88] sm:$0xff]
      %v1332 = vld [vmem:[%s111 + $0x180] sm:$0xff]
      %v1333 = vld [vmem:[%s111 + $0x188] sm:$0xff]
      %v1334 = vunpack.c.l.bf16 %v1330
      %v1335 = vunpack.c.h.bf16 %v1330
      %v1336 = vunpack.c.l.bf16 %v1331
      %v1337 = vunpack.c.h.bf16 %v1331
      %v1338 = vunpack.c.l.bf16 %v1332
      %v1339 = vunpack.c.h.bf16 %v1332
      %v1340 = vunpack.c.l.bf16 %v1333
      %v1341 = vunpack.c.h.bf16 %v1333
      %v1350 = vrot.slane %v1334, 1
      %v1351 = vrot.slane %v1338, 1
      %v1352 = vsel %vm525, %v1350, %v1351
      %v1353 = vrot.slane %v1335, 1
      %v1354 = vrot.slane %v1339, 1
      %v1355 = vsel %vm525, %v1353, %v1354
      %v1356 = vrot.slane %v1336, 1
      %v1357 = vrot.slane %v1340, 1
      %v1358 = vsel %vm525, %v1356, %v1357
      %v1359 = vrot.slane %v1337, 1
      %v1360 = vrot.slane %v1341, 1
      %v1361 = vsel %vm525, %v1359, %v1360
      %v1370 = vsel %vm525, %v1351, 0.0
      %v1371 = vsel %vm525, %v1354, 0.0
      %v1372 = vsel %vm525, %v1357, 0.0
      %v1373 = vsel %vm525, %v1360, 0.0
      %v1374 = vsel %vm554, %v1352, 0.0
      %v1375 = vsel %vm554, %v1355, 0.0
      %v1376 = vsel %vm554, %v1358, 0.0
      %v1377 = vsel %vm554, %v1361, 0.0
      %v1378 = vsel %vm555, %v1370, 0.0
      %v1379 = vsel %vm555, %v1371, 0.0
      %v1380 = vsel %vm555, %v1372, 0.0
      %v1381 = vsel %vm555, %v1373, 0.0
      %v1382 = vadd.f32 %v1322, %v1374
      %v1383 = vadd.f32 %v1323, %v1375
      %v1384 = vadd.f32 %v1324, %v1376
      %v1385 = vadd.f32 %v1325, %v1377
      %v1386 = vadd.f32 %v1326, %v1378
      %v1387 = vadd.f32 %v1327, %v1379
      %v1388 = vadd.f32 %v1328, %v1380
      %v1389 = vadd.f32 %v1329, %v1381
      %v1390 = vld [vmem:[%s111 + $0xa0] sm:$0xff]
      %v1391 = vld [vmem:[%s111 + $0xa8] sm:$0xff]
      %v1392 = vld [vmem:[%s111 + $0x1a0] sm:$0xff]
      %v1393 = vld [vmem:[%s111 + $0x1a8] sm:$0xff]
      %v1394 = vunpack.c.l.bf16 %v1390
      %v1395 = vunpack.c.h.bf16 %v1390
      %v1396 = vunpack.c.l.bf16 %v1391
      %v1397 = vunpack.c.h.bf16 %v1391
      %v1398 = vunpack.c.l.bf16 %v1392
      %v1399 = vunpack.c.h.bf16 %v1392
      %v1400 = vunpack.c.l.bf16 %v1393
      %v1401 = vunpack.c.h.bf16 %v1393
      %v1402 = vadd.f32 %v1382, %v1394
      %v1403 = vadd.f32 %v1383, %v1395
      %v1404 = vadd.f32 %v1384, %v1396
      %v1405 = vadd.f32 %v1385, %v1397
      %v1406 = vadd.f32 %v1386, %v1398
      %v1407 = vadd.f32 %v1387, %v1399
      %v1408 = vadd.f32 %v1388, %v1400
      %v1409 = vadd.f32 %v1389, %v1401
      %v1418 = vcombine.low %v1402, %v1403
      %v1419 = vcombine.high %v1402, %v1403
      %v1420 = vcombine.low %v1404, %v1405
      %v1421 = vcombine.high %v1404, %v1405
      %v1422 = vcombine.low %v1406, %v1407
      %v1423 = vcombine.high %v1406, %v1407
      %v1424 = vcombine.low %v1408, %v1409
      %v1425 = vcombine.high %v1408, %v1409
      %v1434 = vcombine.high %v1418, %v1418
      %v1435 = vcombine.high %v1420, %v1420
      %v1436 = vcombine.high %v1419, %v1419
      %v1437 = vcombine.high %v1421, %v1421
      %v1438 = vcombine.high %v1422, %v1422
      %v1439 = vcombine.high %v1424, %v1424
      %v1440 = vcombine.high %v1423, %v1423
      %v1441 = vcombine.high %v1425, %v1425
      %v1450 = vpack.c.bf16 %v1418, %v1418
      %v1451 = vpack.c.bf16 %v1434, %v1434
      %v1452 = vpack.c.bf16 %v1420, %v1420
      %v1453 = vpack.c.bf16 %v1435, %v1435
      %v1454 = vpack.c.bf16 %v1419, %v1419
      %v1455 = vpack.c.bf16 %v1436, %v1436
      %v1456 = vpack.c.bf16 %v1421, %v1421
      %v1457 = vpack.c.bf16 %v1437, %v1437
      %v1458 = vpack.c.bf16 %v1422, %v1422
      %v1459 = vpack.c.bf16 %v1438, %v1438
      %v1460 = vpack.c.bf16 %v1424, %v1424
      %v1461 = vpack.c.bf16 %v1439, %v1439
      %v1462 = vpack.c.bf16 %v1423, %v1423
      %v1463 = vpack.c.bf16 %v1440, %v1440
      %v1464 = vpack.c.bf16 %v1425, %v1425
      %v1465 = vpack.c.bf16 %v1441, %v1441
      %v1482 = vcombine.low %v1450, %v1451
      %v1483 = vcombine.low %v1452, %v1453
      %v1485 = vunpack.c.l.s4 1983009808
      %v1486 = vunpack.c.0.s8 %v1485
      %v1487 = vlaneseq
      %v1488 = vshrl.u32 %v1487, 7
      %v1489 = vsub.s32 %v1486, %v1488
      %v1490 = vrot.slane %v1482, %v1489
      %v1492 = vunpack.c.l.s4 1983009808
      %v1493 = vunpack.c.0.s8 %v1492
      %v1494 = vlaneseq
      %v1495 = vshrl.u32 %v1494, 7
      %v1496 = vsub.s32 %v1493, %v1495
      %v1497 = vrot.slane %v1483, %v1496
      %v1498 = vcombine.low %v1490, %v1497
      %v1499 = vcombine.low %v1454, %v1455
      %v1500 = vcombine.low %v1456, %v1457
      %v1502 = vunpack.c.l.s4 1983009808
      %v1503 = vunpack.c.0.s8 %v1502
      %v1504 = vlaneseq
      %v1505 = vshrl.u32 %v1504, 7
      %v1506 = vsub.s32 %v1503, %v1505
      %v1507 = vrot.slane %v1499, %v1506
      %v1509 = vunpack.c.l.s4 1983009808
      %v1510 = vunpack.c.0.s8 %v1509
      %v1511 = vlaneseq
      %v1512 = vshrl.u32 %v1511, 7
      %v1513 = vsub.s32 %v1510, %v1512
      %v1514 = vrot.slane %v1500, %v1513
      %v1515 = vcombine.low %v1507, %v1514
      %v1516 = vcombine.low %v1458, %v1459
      %v1517 = vcombine.low %v1460, %v1461
      %v1519 = vunpack.c.l.s4 1983009808
      %v1520 = vunpack.c.0.s8 %v1519
      %v1521 = vlaneseq
      %v1522 = vshrl.u32 %v1521, 7
      %v1523 = vsub.s32 %v1520, %v1522
      %v1524 = vrot.slane %v1516, %v1523
      %v1526 = vunpack.c.l.s4 1983009808
      %v1527 = vunpack.c.0.s8 %v1526
      %v1528 = vlaneseq
      %v1529 = vshrl.u32 %v1528, 7
      %v1530 = vsub.s32 %v1527, %v1529
      %v1531 = vrot.slane %v1517, %v1530
      %v1532 = vcombine.low %v1524, %v1531
      %v1533 = vcombine.low %v1462, %v1463
      %v1534 = vcombine.low %v1464, %v1465
      %v1536 = vunpack.c.l.s4 1983009808
      %v1537 = vunpack.c.0.s8 %v1536
      %v1538 = vlaneseq
      %v1539 = vshrl.u32 %v1538, 7
      %v1540 = vsub.s32 %v1537, %v1539
      %v1541 = vrot.slane %v1533, %v1540
      %v1543 = vunpack.c.l.s4 1983009808
      %v1544 = vunpack.c.0.s8 %v1543
      %v1545 = vlaneseq
      %v1546 = vshrl.u32 %v1545, 7
      %v1547 = vsub.s32 %v1544, %v1546
      %v1548 = vrot.slane %v1534, %v1547
      %v1549 = vcombine.low %v1541, %v1548
      %1554 = vst [vmem:[%s1207 + $0x8] sm:$0xff] %v1498
      %1555 = vst [vmem:[%s1207 + $0x28] sm:$0xff] %v1515
      %1556 = vst [vmem:[%s1207 + $0x48] sm:$0xff] %v1532
      %1557 = vst [vmem:[%s1207 + $0x68] sm:$0xff] %v1549
      %p1558 = scmp.lt.s32.totalorder %s12, 1
      %s1559 = scalar_select %p1558, %s12, 1
      %s1560 = smul.addr %s1559, 64
      %s1561 = smul.addr %s1560, 2
      %s1562 = scalar_lea.vmem %s1, %s1561
      // Predicated region
      $region25: #{generator_forward.9} parent=23 // pred_check
        %p1563 = pneg %p56
      $region26: #{generator_forward.9} parent=23 // pred_check_branch
        %1565 = sbr.rel (%p1563) target = $region28
      $region27: #{generator_forward.9} parent=23 // pred_region
        _
      $region28: #{generator_forward.9} parent=23 // pred_fallthru
        _
    $region24: #{generator_forward.9} parent=5 // pred_fallthru
      _
    %p1566 = scmp.le.s32.totalorder 2, %s7
    // Predicated region
    $region29: #{generator_forward.9} parent=5 // pred_check
      %p1567 = pneg %p1566
    $region30: #{generator_forward.9} parent=5 // pred_check_branch
      %1569 = sbr.rel (%p1567) target = $region32
    $region31: #{generator_forward.9} parent=5 // pred_region
      %s1570 = ssub.s32 %s7, 2
      // Predicated region
      $region33: #{generator_forward.9} parent=31 // pred_check
        %p1571 = pneg %p62
      $region34: #{generator_forward.9} parent=31 // pred_check_branch
        %1573 = sbr.rel (%p1571) target = $region36
      $region35: #{generator_forward.9} parent=31 // pred_region
        %p1574 = scmp.lt.s32.totalorder %s13, 1
        %s1575 = scalar_select %p1574, %s13, 1
        %s1576 = smul.addr %s1575, 64
        %s1577 = smul.addr %s1576, 2
        %s1578 = scalar_lea.vmem %s1, %s1577
      $region36: #{generator_forward.9} parent=31 // pred_fallthru
        _
    $region32: #{generator_forward.9} parent=5 // pred_fallthru
      _
  $region6: #{generator_forward.9} parent=0 // loop_footer
    %s11 = sadd.s32 1, %s7
  $region7: #{generator_forward.9} parent=0 // loop_footer_branch
    %6 = sbr.rel target = $region3
  $region8: #{generator_forward.9} parent=0 // loop_exit
    _

// kernel: generator_forward.10
$region0: #{generator_forward.10}
  #allocation0 [shape = 'u32[]', space=smem, size = 0x4, offset = 0x4, fixed_abs, tag = 'smem constant byte address 0x4 - core index']
  #allocation1 [shape = 'u32[144,128]{1,0:T(1,128)}', space=vmem, size = 0x12000, scoped, tag = 'internal scratch']
  #allocation2 [shape = 'f32[1,256]{1,0:T(1,128)}', space=vmem, size = 0x400, scoped, tag = 'scratch operand']
  #allocation3 [shape = 'f32[1,256]{1,0:T(1,128)}', space=vmem, size = 0x400, scoped, tag = 'scratch operand']
  %s0 = inlined_call_operand.vmem [shape: bf16[128,512], index: 0, kind: input, shape index: {}]
  %s1 = inlined_call_operand.vmem [shape: f32[1,512], index: 1, kind: input, shape index: {}]
  %s2 = inlined_call_operand.vmem [shape: f32[1,512], index: 2, kind: input, shape index: {}]
  %s3 = inlined_call_operand.vmem [shape: f32[1,512], index: 3, kind: output, shape index: {0}]
  %s4 = inlined_call_operand.vmem [shape: f32[1,512], index: 4, kind: output, shape index: {1}]
  %5 = xla_tuple %s3, %s4
  %s6 = sld [smem:[#allocation0]]
  $region99: #{generator_forward.10} parent=0
    _
  %s8 = ssub.s32 1, %s6
  %s9 = scalar_select 0, %s8, %s6
  $region1: #{generator_forward.10} parent=0
    #allocation4 [shape = 'u8[131072]{0}', space=vmem, size = 0x20000, scoped, tag = 'input window, operand 0']
    loop: start=0, step=1, limit=4
    $region2: #{generator_forward.10} parent=1 // loop_pre_header
      _
    $region3: #{generator_forward.10} parent=1 // loop_header
      %s11 = sphi 0, %s15
      %p12 = scmp.ge.s32.totalorder %s11, 4
      %s18 = sphi 0, %s30
      %s19 = sphi 0, %s26
      %s20 = sphi 0, %s18
      %s21 = sphi 0, %s19
      %s22 = sphi 0, %s20
      %s23 = sphi 0, %s21
      %s35 = sphi 0, %s37
      %s38 = sphi 0, %s35
      %s39 = sphi 0, %s38
      %s55 = sphi 0, %s39
      %s61 = sphi 0, %s63
      %s64 = sphi 0, %s61
      %s65 = sphi 0, %s64
      %s81 = sphi 0, %s65
      %s87 = sphi 0, %s89
      %s90 = sphi 0, %s87
      %s91 = sphi 0, %s90
      %s107 = sphi 0, %s91
      %s113 = sphi 0, %s115
      %s116 = sphi 0, %s113
      %s117 = sphi 0, %s116
      %s133 = sphi 0, %s117
      %s139 = sphi 0, %s141
      %s142 = sphi 0, %s139
      %s143 = sphi 0, %s142
      %s159 = sphi 0, %s143
    $region4: #{generator_forward.10} parent=1 // loop_header_branch
      %14 = sbr.rel (%p12) target = $region8
    $region5: #{generator_forward.10} parent=1 // loop_body
      %s16 = ssub.s32 %s11, 1
      %s17 = ssub.s32 %s11, 2
      %s24 = sadd.s32 1, %s19
      %p25 = scmp.ge.s32.totalorder %s24, 1
      %s26 = scalar_select %p25, 0, %s24
      %s27 = sadd.s32 1, %s18
      %s28 = scalar_select %p25, %s27, %s18
      %p29 = scmp.ge.s32.totalorder %s28, 2
      %s30 = scalar_select %p29, 0, %s28
      %s31 = ssub.s32 %s19, %s26
      %s32 = ssub.s32 %s18, %s30
      %s33 = sor.u32 %s31, %s32
      %p34 = scmp.eq.s32.totalorder %s33, 0
      %s36 = sadd.s32 %s35, 1
      %s37 = scalar_select %p34, %s35, %s36
      %p40 = pneg %p34
      %p41 = scmp.eq.s32.totalorder %s11, 1
      %p42 = por %p40, %p41
      %p43 = scmp.ne.s32.totalorder %s35, %s38
      %p44 = scmp.eq.s32.totalorder %s11, 0
      %p45 = por %p43, %p44
      %p46 = scmp.ne.s32.totalorder %s35, %s38
      %p47 = scmp.eq.s32.totalorder %s16, 1
      %p48 = por %p46, %p47
      %p49 = scmp.ne.s32.totalorder %s38, %s39
      %p50 = scmp.eq.s32.totalorder %s16, 0
      %p51 = por %p49, %p50
      %p52 = scmp.ne.s32.totalorder %s38, %s39
      %p53 = scmp.eq.s32.totalorder %s17, 1
      %p54 = por %p52, %p53
      %p56 = scmp.ne.s32.totalorder %s39, %s55
      %p57 = scmp.eq.s32.totalorder %s17, 0
      %p58 = por %p56, %p57
      %s59 = ssub.s32 %s18, %s30
      %p60 = scmp.eq.s32.totalorder %s59, 0
      %s62 = sadd.s32 %s61, 1
      %s63 = scalar_select %p60, %s61, %s62
      %p66 = pneg %p60
      %p67 = scmp.eq.s32.totalorder %s11, 1
      %p68 = por %p66, %p67
      %p69 = scmp.ne.s32.totalorder %s61, %s64
      %p70 = scmp.eq.s32.totalorder %s11, 0
      %p71 = por %p69, %p70
      %p72 = scmp.ne.s32.totalorder %s61, %s64
      %p73 = scmp.eq.s32.totalorder %s16, 1
      %p74 = por %p72, %p73
      %p75 = scmp.ne.s32.totalorder %s64, %s65
      %p76 = scmp.eq.s32.totalorder %s16, 0
      %p77 = por %p75, %p76
      %p78 = scmp.ne.s32.totalorder %s64, %s65
      %p79 = scmp.eq.s32.totalorder %s17, 1
      %p80 = por %p78, %p79
      %p82 = scmp.ne.s32.totalorder %s65, %s81
      %p83 = scmp.eq.s32.totalorder %s17, 0
      %p84 = por %p82, %p83
      %s85 = ssub.s32 %s18, %s30
      %p86 = scmp.eq.s32.totalorder %s85, 0
      %s88 = sadd.s32 %s87, 1
      %s89 = scalar_select %p86, %s87, %s88
      %p92 = pneg %p86
      %p93 = scmp.eq.s32.totalorder %s11, 1
      %p94 = por %p92, %p93
      %p95 = scmp.ne.s32.totalorder %s87, %s90
      %p96 = scmp.eq.s32.totalorder %s11, 0
      %p97 = por %p95, %p96
      %p98 = scmp.ne.s32.totalorder %s87, %s90
      %p99 = scmp.eq.s32.totalorder %s16, 1
      %p100 = por %p98, %p99
      %p101 = scmp.ne.s32.totalorder %s90, %s91
      %p102 = scmp.eq.s32.totalorder %s16, 0
      %p103 = por %p101, %p102
      %p104 = scmp.ne.s32.totalorder %s90, %s91
      %p105 = scmp.eq.s32.totalorder %s17, 1
      %p106 = por %p104, %p105
      %p108 = scmp.ne.s32.totalorder %s91, %s107
      %p109 = scmp.eq.s32.totalorder %s17, 0
      %p110 = por %p108, %p109
      %s111 = ssub.s32 %s18, %s30
      %p112 = scmp.eq.s32.totalorder %s111, 0
      %s114 = sadd.s32 %s113, 1
      %s115 = scalar_select %p112, %s113, %s114
      %p118 = pneg %p112
      %p119 = scmp.eq.s32.totalorder %s11, 1
      %p120 = por %p118, %p119
      %p121 = scmp.ne.s32.totalorder %s113, %s116
      %p122 = scmp.eq.s32.totalorder %s11, 0
      %p123 = por %p121, %p122
      %p124 = scmp.ne.s32.totalorder %s113, %s116
      %p125 = scmp.eq.s32.totalorder %s16, 1
      %p126 = por %p124, %p125
      %p127 = scmp.ne.s32.totalorder %s116, %s117
      %p128 = scmp.eq.s32.totalorder %s16, 0
      %p129 = por %p127, %p128
      %p130 = scmp.ne.s32.totalorder %s116, %s117
      %p131 = scmp.eq.s32.totalorder %s17, 1
      %p132 = por %p130, %p131
      %p134 = scmp.ne.s32.totalorder %s117, %s133
      %p135 = scmp.eq.s32.totalorder %s17, 0
      %p136 = por %p134, %p135
      %s137 = ssub.s32 %s18, %s30
      %p138 = scmp.eq.s32.totalorder %s137, 0
      %s140 = sadd.s32 %s139, 1
      %s141 = scalar_select %p138, %s139, %s140
      %p144 = pneg %p138
      %p145 = scmp.eq.s32.totalorder %s11, 1
      %p146 = por %p144, %p145
      %p147 = scmp.ne.s32.totalorder %s139, %s142
      %p148 = scmp.eq.s32.totalorder %s11, 0
      %p149 = por %p147, %p148
      %p150 = scmp.ne.s32.totalorder %s139, %s142
      %p151 = scmp.eq.s32.totalorder %s16, 1
      %p152 = por %p150, %p151
      %p153 = scmp.ne.s32.totalorder %s142, %s143
      %p154 = scmp.eq.s32.totalorder %s16, 0
      %p155 = por %p153, %p154
      %p156 = scmp.ne.s32.totalorder %s142, %s143
      %p157 = scmp.eq.s32.totalorder %s17, 1
      %p158 = por %p156, %p157
      %p160 = scmp.ne.s32.totalorder %s143, %s159
      %p161 = scmp.eq.s32.totalorder %s17, 0
      %p162 = por %p160, %p161
      %p163 = scmp.le.s32.totalorder 1, %s11
      %p164 = scmp.lt.s32.totalorder %s11, 3
      %p165 = pnand %p163, %p164
      %p166 = pneg %p165
      // Predicated region
      $region9: #{generator_forward.10} parent=5 // pred_check
        _
      $region10: #{generator_forward.10} parent=5 // pred_check_branch
        %168 = sbr.rel (%p165) target = $region12
      $region11: #{generator_forward.10} parent=5 // pred_region
        %s169 = ssub.s32 %s11, 1
      $region12: #{generator_forward.10} parent=5 // pred_fallthru
        _
      %p170 = scmp.lt.s32.totalorder %s11, 2
      // Predicated region
      $region13: #{generator_forward.10} parent=5 // pred_check
        %p171 = pneg %p170
      $region14: #{generator_forward.10} parent=5 // pred_check_branch
        %173 = sbr.rel (%p171) target = $region16
      $region15: #{generator_forward.10} parent=5 // pred_region
        // Predicated region
        $region17: #{generator_forward.10} parent=15 // pred_check
          %p174 = pneg %p45
        $region18: #{generator_forward.10} parent=15 // pred_check_branch
          %176 = sbr.rel (%p174) target = $region20
        $region19: #{generator_forward.10} parent=15 // pred_region
          %s177 = sand.u32 %s35, 1
          %s178 = sand.u32 %s35, 1
          %s179 = smul.addr %s178, 128
          %s180 = scalar_lea.vmem [#allocation4], %s179
          %s181 = smul.u32 16, %s19
          %s182 = smul.u32 2, %s18
          %s183 = smul.addr %s181, 4
          %s184 = sadd.s32 %s182, %s183
          %s185 = smul.addr %s184, 4
          %s186 = scalar_lea.vmem %s0, %s185
          // Predicated region
          $region21: #{generator_forward.10} parent=19 // pred_check
            _
          $region22: #{generator_forward.10} parent=19 // pred_check_branch
            %188 = sbr.rel (0) target = $region24
          $region23: #{generator_forward.10} parent=19 // pred_region
            // Predicated region
            $region25: #{generator_forward.10} parent=23 // pred_check
              _
            $region26: #{generator_forward.10} parent=23 // pred_check_branch
              %190 = sbr.rel (0) target = $region28
            $region27: #{generator_forward.10} parent=23 // pred_region
              // Predicated region
              $region40: #{generator_forward.10} parent=27 // pred_check
                _
              $region41: #{generator_forward.10} parent=27 // pred_check_branch
                %235 = sbr.rel (0) target = $region43
              $region42: #{generator_forward.10} parent=27 // pred_region
                loop: start=0, step=1, limit=1
                $region44: #{generator_forward.10} parent=42 // loop_pre_header
                  _
                $region45: #{generator_forward.10} parent=42 // loop_header
                  %s237 = sphi 0, %s241
                  %p238 = scmp.ge.s32.totalorder %s237, 1
                  %s242 = sphi %s186, %s186
                  %s243 = sphi %s180, %s180
                $region46: #{generator_forward.10} parent=42 // loop_header_branch
                  %240 = sbr.rel (%p238) target = $region50
                $region47: #{generator_forward.10} parent=42 // loop_body
                  %v244 = vld [vmem:[%s242] sm:$0xff]
                  %245 = vst [vmem:[%s243] sm:$0xff] %v244
                  %v246 = vld [vmem:[%s242 + $0x10] sm:$0xff]
                  %247 = vst [vmem:[%s243 + $0x8] sm:$0xff] %v246
                  %v248 = vld [vmem:[%s242 + $0x20] sm:$0xff]
                  %249 = vst [vmem:[%s243 + $0x10] sm:$0xff] %v248
                  %v250 = vld [vmem:[%s242 + $0x30] sm:$0xff]
                  %251 = vst [vmem:[%s243 + $0x18] sm:$0xff] %v250
                  %v252 = vld [vmem:[%s242 + $0x40] sm:$0xff]
                  %253 = vst [vmem:[%s243 + $0x20] sm:$0xff] %v252
                  %v254 = vld [vmem:[%s242 + $0x50] sm:$0xff]
                  %255 = vst [vmem:[%s243 + $0x28] sm:$0xff] %v254
                  %v256 = vld [vmem:[%s242 + $0x60] sm:$0xff]
                  %257 = vst [vmem:[%s243 + $0x30] sm:$0xff] %v256
                  %v258 = vld [vmem:[%s242 + $0x70] sm:$0xff]
                  %259 = vst [vmem:[%s243 + $0x38] sm:$0xff] %v258
                  %v260 = vld [vmem:[%s242 + $0x80] sm:$0xff]
                  %261 = vst [vmem:[%s243 + $0x40] sm:$0xff] %v260
                  %v262 = vld [vmem:[%s242 + $0x90] sm:$0xff]
                  %263 = vst [vmem:[%s243 + $0x48] sm:$0xff] %v262
                  %v264 = vld [vmem:[%s242 + $0xa0] sm:$0xff]
                  %265 = vst [vmem:[%s243 + $0x50] sm:$0xff] %v264
                  %v266 = vld [vmem:[%s242 + $0xb0] sm:$0xff]
                  %267 = vst [vmem:[%s243 + $0x58] sm:$0xff] %v266
                  %v268 = vld [vmem:[%s242 + $0xc0] sm:$0xff]
                  %269 = vst [vmem:[%s243 + $0x60] sm:$0xff] %v268
                  %v270 = vld [vmem:[%s242 + $0xd0] sm:$0xff]
                  %271 = vst [vmem:[%s243 + $0x68] sm:$0xff] %v270
                  %v272 = vld [vmem:[%s242 + $0xe0] sm:$0xff]
                  %273 = vst [vmem:[%s243 + $0x70] sm:$0xff] %v272
                  %v274 = vld [vmem:[%s242 + $0xf0] sm:$0xff]
                  %275 = vst [vmem:[%s243 + $0x78] sm:$0xff] %v274
                $region48: #{generator_forward.10} parent=42 // loop_footer
                  %s241 = sadd.s32 1, %s237
                $region49: #{generator_forward.10} parent=42 // loop_footer_branch
                  %236 = sbr.rel target = $region45
                $region50: #{generator_forward.10} parent=42 // loop_exit
                  _
              $region43: #{generator_forward.10} parent=27 // pred_fallthru
                _
              // Predicated region
              $region51: #{generator_forward.10} parent=27 // pred_check
                _
              $region52: #{generator_forward.10} parent=27 // pred_check_branch
                %277 = sbr.rel target = $region54
              $region53: #{generator_forward.10} parent=27 // pred_region
                _
              $region54: #{generator_forward.10} parent=27 // pred_fallthru
                _
            $region28: #{generator_forward.10} parent=23 // pred_fallthru
              _
            // Predicated region
            $region29: #{generator_forward.10} parent=23 // pred_check
              _
            $region30: #{generator_forward.10} parent=23 // pred_check_branch
              %192 = sbr.rel target = $region32
            $region31: #{generator_forward.10} parent=23 // pred_region
              loop: start=0, step=1, limit=1
              $region33: #{generator_forward.10} parent=31 // loop_pre_header
                _
              $region34: #{generator_forward.10} parent=31 // loop_header
                %s195 = sphi 0, %s199
                %p196 = scmp.ge.s32.totalorder %s195, 1
                %s200 = sphi %s186, %s186
                %s201 = sphi %s180, %s180
              $region35: #{generator_forward.10} parent=31 // loop_header_branch
                %198 = sbr.rel (%p196) target = $region39
              $region36: #{generator_forward.10} parent=31 // loop_body
                %v202 = vld [vmem:[%s200] sm:$0xff]
                %203 = vst [vmem:[%s201] sm:$0xff] %v202
                %v204 = vld [vmem:[%s200 + $0x10] sm:$0xff]
                %205 = vst [vmem:[%s201 + $0x8] sm:$0xff] %v204
                %v206 = vld [vmem:[%s200 + $0x20] sm:$0xff]
                %207 = vst [vmem:[%s201 + $0x10] sm:$0xff] %v206
                %v208 = vld [vmem:[%s200 + $0x30] sm:$0xff]
                %209 = vst [vmem:[%s201 + $0x18] sm:$0xff] %v208
                %v210 = vld [vmem:[%s200 + $0x40] sm:$0xff]
                %211 = vst [vmem:[%s201 + $0x20] sm:$0xff] %v210
                %v212 = vld [vmem:[%s200 + $0x50] sm:$0xff]
                %213 = vst [vmem:[%s201 + $0x28] sm:$0xff] %v212
                %v214 = vld [vmem:[%s200 + $0x60] sm:$0xff]
                %215 = vst [vmem:[%s201 + $0x30] sm:$0xff] %v214
                %v216 = vld [vmem:[%s200 + $0x70] sm:$0xff]
                %217 = vst [vmem:[%s201 + $0x38] sm:$0xff] %v216
                %v218 = vld [vmem:[%s200 + $0x80] sm:$0xff]
                %219 = vst [vmem:[%s201 + $0x40] sm:$0xff] %v218
                %v220 = vld [vmem:[%s200 + $0x90] sm:$0xff]
                %221 = vst [vmem:[%s201 + $0x48] sm:$0xff] %v220
                %v222 = vld [vmem:[%s200 + $0xa0] sm:$0xff]
                %223 = vst [vmem:[%s201 + $0x50] sm:$0xff] %v222
                %v224 = vld [vmem:[%s200 + $0xb0] sm:$0xff]
                %225 = vst [vmem:[%s201 + $0x58] sm:$0xff] %v224
                %v226 = vld [vmem:[%s200 + $0xc0] sm:$0xff]
                %227 = vst [vmem:[%s201 + $0x60] sm:$0xff] %v226
                %v228 = vld [vmem:[%s200 + $0xd0] sm:$0xff]
                %229 = vst [vmem:[%s201 + $0x68] sm:$0xff] %v228
                %v230 = vld [vmem:[%s200 + $0xe0] sm:$0xff]
                %231 = vst [vmem:[%s201 + $0x70] sm:$0xff] %v230
                %v232 = vld [vmem:[%s200 + $0xf0] sm:$0xff]
                %233 = vst [vmem:[%s201 + $0x78] sm:$0xff] %v232
              $region37: #{generator_forward.10} parent=31 // loop_footer
                %s199 = sadd.s32 1, %s195
              $region38: #{generator_forward.10} parent=31 // loop_footer_branch
                %194 = sbr.rel target = $region34
              $region39: #{generator_forward.10} parent=31 // loop_exit
                _
            $region32: #{generator_forward.10} parent=23 // pred_fallthru
              _
          $region24: #{generator_forward.10} parent=19 // pred_fallthru
            _
          %278 = vnop
        $region20: #{generator_forward.10} parent=15 // pred_fallthru
          _
        // Predicated region
        $region55: #{generator_forward.10} parent=15 // pred_check
          %p279 = pneg %p71
        $region56: #{generator_forward.10} parent=15 // pred_check_branch
          %281 = sbr.rel (%p279) target = $region58
        $region57: #{generator_forward.10} parent=15 // pred_region
          %s282 = smul.u32 2, %s18
          %p283 = scmp.lt.s32.totalorder %s282, 3
          %s284 = scalar_select %p283, %s282, 3
          %s285 = scalar_lea.vmem %s1, %s284
          %s286 = smul.u32 2, %s18
        $region58: #{generator_forward.10} parent=15 // pred_fallthru
          _
        // Predicated region
        $region59: #{generator_forward.10} parent=15 // pred_check
          %p287 = pneg %p97
        $region60: #{generator_forward.10} parent=15 // pred_check_branch
          %289 = sbr.rel (%p287) target = $region62
        $region61: #{generator_forward.10} parent=15 // pred_region
          %s290 = smul.u32 2, %s18
          %p291 = scmp.lt.s32.totalorder %s290, 3
          %s292 = scalar_select %p291, %s290, 3
          %s293 = scalar_lea.vmem %s2, %s292
          %s294 = smul.u32 2, %s18
        $region62: #{generator_forward.10} parent=15 // pred_fallthru
          _
      $region16: #{generator_forward.10} parent=5 // pred_fallthru
        _
      %p295 = scmp.le.s32.totalorder 1, %s11
      %p296 = scmp.lt.s32.totalorder %s11, 3
      %p297 = pnand %p295, %p296
      %p298 = pneg %p297
      // Predicated region
      $region63: #{generator_forward.10} parent=5 // pred_check
        _
      $region64: #{generator_forward.10} parent=5 // pred_check_branch
        %300 = sbr.rel (%p297) target = $region66
      $region65: #{generator_forward.10} parent=5 // pred_region
        %s301 = ssub.s32 %s11, 1
        %s302 = sand.u32 %s38, 1
        %s303 = sand.u32 %s38, 1
        %s304 = smul.addr %s303, 128
        %s305 = scalar_lea.vmem [#allocation4], %s304
        // Predicated region
        $region67: #{generator_forward.10} parent=65 // pred_check
          %p306 = pneg %p51
        $region68: #{generator_forward.10} parent=65 // pred_check_branch
          %308 = sbr.rel (%p306) target = $region70
        $region69: #{generator_forward.10} parent=65 // pred_region
          _
        $region70: #{generator_forward.10} parent=65 // pred_fallthru
          _
        %s309 = sand.u32 %s38, 1
        %s310 = sand.u32 %s38, 1
        %s311 = smul.addr %s310, 128
        %s312 = scalar_lea.vmem [#allocation4], %s311
        %p313 = pneg %p51
        %p314 = pneg %p48
        %s315 = smul.u32 2, %s20
        %p316 = scmp.lt.s32.totalorder %s315, 3
        %s317 = scalar_select %p316, %s315, 3
        %s318 = scalar_lea.vmem %s1, %s317
        %p319 = pneg %p77
        %p320 = pneg %p74
        %s321 = smul.u32 2, %s20
        %p322 = scmp.lt.s32.totalorder %s321, 3
        %s323 = scalar_select %p322, %s321, 3
        %s324 = scalar_lea.vmem %s2, %s323
        %p325 = pneg %p103
        %p326 = pneg %p100
        %p327 = pneg %p129
        %p328 = pneg %p126
        %s329 = smul.u32 2, %s20
        %p330 = scmp.lt.s32.totalorder %s329, 3
        %s331 = scalar_select %p330, %s329, 3
        %s332 = scalar_lea.vmem %s3, %s331
        %p333 = pneg %p155
        %p334 = pneg %p152
        %s335 = smul.u32 2, %s20
        %p336 = scmp.lt.s32.totalorder %s335, 3
        %s337 = scalar_select %p336, %s335, 3
        %s338 = scalar_lea.vmem %s4, %s337
        %s339 = smul.u32 16, %s21
        %s340 = smul.u32 2, %s20
        %s341 = smul.u32 2, %s20
        %p342 = scmp.lt.s32.totalorder %s341, 3
        %s343 = scalar_select %p342, %s341, 3
        %s344 = scalar_lea.vmem %s1, %s343
        %s345 = smul.u32 2, %s20
        %s346 = smul.u32 2, %s20
        %p347 = scmp.lt.s32.totalorder %s346, 3
        %s348 = scalar_select %p347, %s346, 3
        %s349 = scalar_lea.vmem %s2, %s348
        %s350 = smul.u32 2, %s20
        %s351 = smul.u32 2, %s20
        %p352 = scmp.lt.s32.totalorder %s351, 3
        %s353 = scalar_select %p352, %s351, 3
        %s354 = scalar_lea.vmem %s3, %s353
        %s355 = smul.u32 2, %s20
        %s356 = smul.u32 2, %s20
        %p357 = scmp.lt.s32.totalorder %s356, 3
        %s358 = scalar_select %p357, %s356, 3
        %s359 = scalar_lea.vmem %s4, %s358
        %s360 = smul.u32 2, %s20
        %p361 = scmp.eq.s32.totalorder %s21, 0
        // Predicated region
        $region71: #{generator_forward.10} parent=65 // pred_check
          %p362 = pneg %p361
        $region72: #{generator_forward.10} parent=65 // pred_check_branch
          %364 = sbr.rel (%p362) target = $region74
        $region73: #{generator_forward.10} parent=65 // pred_region
          %v365 = vlaneseq
          %vm366 = vcmp.ge.s32.totalorder %v365, 0
          %vm367 = vcmp.lt.s32.totalorder %v365, 256
          %vm368 = vmand %vm366, %vm367
          %369 = vst.msk [vmem:[#allocation2] sm:$0x3] %vm368, 0.0
          %370 = vst.msk [vmem:[#allocation3] sm:$0x3] %vm368, 0.0
        $region74: #{generator_forward.10} parent=65 // pred_fallthru
          _
        %v371 = vld [vmem:[%s305] sm:$0xff]
        %v372 = vld [vmem:[%s305 + $0x8] sm:$0xff]
        %v373 = vld [vmem:[%s305 + $0x10] sm:$0xff]
        %v374 = vld [vmem:[%s305 + $0x18] sm:$0xff]
        %v375 = vld [vmem:[%s305 + $0x20] sm:$0xff]
        %v376 = vld [vmem:[%s305 + $0x28] sm:$0xff]
        %v377 = vld [vmem:[%s305 + $0x30] sm:$0xff]
        %v378 = vld [vmem:[%s305 + $0x38] sm:$0xff]
        %v379 = vld [vmem:[%s305 + $0x40] sm:$0xff]
        %v380 = vld [vmem:[%s305 + $0x48] sm:$0xff]
        %v381 = vld [vmem:[%s305 + $0x50] sm:$0xff]
        %v382 = vld [vmem:[%s305 + $0x58] sm:$0xff]
        %v383 = vld [vmem:[%s305 + $0x60] sm:$0xff]
        %v384 = vld [vmem:[%s305 + $0x68] sm:$0xff]
        %v385 = vld [vmem:[%s305 + $0x70] sm:$0xff]
        %v386 = vld [vmem:[%s305 + $0x78] sm:$0xff]
        %v387 = vunpack.c.l.bf16 %v371
        %v388 = vunpack.c.h.bf16 %v371
        %v389 = vunpack.c.l.bf16 %v372
        %v390 = vunpack.c.h.bf16 %v372
        %v391 = vunpack.c.l.bf16 %v373
        %v392 = vunpack.c.h.bf16 %v373
        %v393 = vunpack.c.l.bf16 %v374
        %v394 = vunpack.c.h.bf16 %v374
        %v395 = vunpack.c.l.bf16 %v375
        %v396 = vunpack.c.h.bf16 %v375
        %v397 = vunpack.c.l.bf16 %v376
        %v398 = vunpack.c.h.bf16 %v376
        %v399 = vunpack.c.l.bf16 %v377
        %v400 = vunpack.c.h.bf16 %v377
        %v401 = vunpack.c.l.bf16 %v378
        %v402 = vunpack.c.h.bf16 %v378
        %v403 = vunpack.c.l.bf16 %v379
        %v404 = vunpack.c.h.bf16 %v379
        %v405 = vunpack.c.l.bf16 %v380
        %v406 = vunpack.c.h.bf16 %v380
        %v407 = vunpack.c.l.bf16 %v381
        %v408 = vunpack.c.h.bf16 %v381
        %v409 = vunpack.c.l.bf16 %v382
        %v410 = vunpack.c.h.bf16 %v382
        %v411 = vunpack.c.l.bf16 %v383
        %v412 = vunpack.c.h.bf16 %v383
        %v413 = vunpack.c.l.bf16 %v384
        %v414 = vunpack.c.h.bf16 %v384
        %v415 = vunpack.c.l.bf16 %v385
        %v416 = vunpack.c.h.bf16 %v385
        %v417 = vunpack.c.l.bf16 %v386
        %v418 = vunpack.c.h.bf16 %v386
        %v419 = vld [vmem:[#allocation2] sm:$0x3]
        %v420 = vadd.f32 %v387, %v389
        %v421 = vadd.f32 %v420, %v391
        %v422 = vadd.f32 %v421, %v393
        %v423 = vadd.f32 %v422, %v395
        %v424 = vadd.f32 %v423, %v397
        %v425 = vadd.f32 %v424, %v399
        %v426 = vadd.f32 %v425, %v401
        %v427 = vadd.f32 %v426, %v403
        %v428 = vadd.f32 %v427, %v405
        %v429 = vadd.f32 %v428, %v407
        %v430 = vadd.f32 %v429, %v409
        %v431 = vadd.f32 %v430, %v411
        %v432 = vadd.f32 %v431, %v413
        %v433 = vadd.f32 %v432, %v415
        %v434 = vadd.f32 %v433, %v417
        %v435 = vrot.slane %v434, 4
        %v436 = vadd.f32 %v434, %v435
        %v437 = vrot.slane %v436, 2
        %v438 = vadd.f32 %v436, %v437
        %v439 = vrot.slane %v438, 1
        %v440 = vadd.f32 %v438, %v439
        %v441 = vadd.f32 %v388, %v390
        %v442 = vadd.f32 %v441, %v392
        %v443 = vadd.f32 %v442, %v394
        %v444 = vadd.f32 %v443, %v396
        %v445 = vadd.f32 %v444, %v398
        %v446 = vadd.f32 %v445, %v400
        %v447 = vadd.f32 %v446, %v402
        %v448 = vadd.f32 %v447, %v404
        %v449 = vadd.f32 %v448, %v406
        %v450 = vadd.f32 %v449, %v408
        %v451 = vadd.f32 %v450, %v410
        %v452 = vadd.f32 %v451, %v412
        %v453 = vadd.f32 %v452, %v414
        %v454 = vadd.f32 %v453, %v416
        %v455 = vadd.f32 %v454, %v418
        %v456 = vrot.slane %v455, 4
        %v457 = vadd.f32 %v455, %v456
        %v458 = vrot.slane %v457, 2
        %v459 = vadd.f32 %v457, %v458
        %v460 = vrot.slane %v459, 1
        %v461 = vadd.f32 %v459, %v460
        %v464 = vcombine.low %v440, %v461
        %v466 = vunpack.c.l.s4 1966171168
        %v467 = vunpack.c.0.s8 %v466
        %v468 = vlaneseq
        %v469 = vshrl.u32 %v468, 7
        %v470 = vsub.s32 %v467, %v469
        %v471 = vrot.slane %v464, %v470
        %v473 = vunpack.c.l.s4 1966171168
        %v474 = vunpack.c.0.s8 %v473
        %v475 = vlaneseq
        %v476 = vshrl.u32 %v475, 7
        %v477 = vsub.s32 %v474, %v476
        %v478 = vrot.slane %v471, %v477
        %v480 = vadd.f32 %v419, %v478
        %v481 = vlaneseq
        %vm482 = vcmp.ge.s32.totalorder %v481, 0
        %vm483 = vcmp.lt.s32.totalorder %v481, 256
        %vm484 = vmand %vm482, %vm483
        %485 = vst.msk [vmem:[#allocation2] sm:$0x3] %vm484, %v480
        %v486 = vld [vmem:[#allocation3] sm:$0x3]
        %v487 = vmul.f32 %v387, %v387
        %v488 = vmul.f32 %v388, %v388
        %v489 = vmul.f32 %v389, %v389
        %v490 = vmul.f32 %v390, %v390
        %v491 = vmul.f32 %v391, %v391
        %v492 = vmul.f32 %v392, %v392
        %v493 = vmul.f32 %v393, %v393
        %v494 = vmul.f32 %v394, %v394
        %v495 = vmul.f32 %v395, %v395
        %v496 = vmul.f32 %v396, %v396
        %v497 = vmul.f32 %v397, %v397
        %v498 = vmul.f32 %v398, %v398
        %v499 = vmul.f32 %v399, %v399
        %v500 = vmul.f32 %v400, %v400
        %v501 = vmul.f32 %v401, %v401
        %v502 = vmul.f32 %v402, %v402
        %v503 = vmul.f32 %v403, %v403
        %v504 = vmul.f32 %v404, %v404
        %v505 = vmul.f32 %v405, %v405
        %v506 = vmul.f32 %v406, %v406
        %v507 = vmul.f32 %v407, %v407
        %v508 = vmul.f32 %v408, %v408
        %v509 = vmul.f32 %v409, %v409
        %v510 = vmul.f32 %v410, %v410
        %v511 = vmul.f32 %v411, %v411
        %v512 = vmul.f32 %v412, %v412
        %v513 = vmul.f32 %v413, %v413
        %v514 = vmul.f32 %v414, %v414
        %v515 = vmul.f32 %v415, %v415
        %v516 = vmul.f32 %v416, %v416
        %v517 = vmul.f32 %v417, %v417
        %v518 = vmul.f32 %v418, %v418
        %v519 = vadd.f32 %v487, %v489
        %v520 = vadd.f32 %v519, %v491
        %v521 = vadd.f32 %v520, %v493
        %v522 = vadd.f32 %v521, %v495
        %v523 = vadd.f32 %v522, %v497
        %v524 = vadd.f32 %v523, %v499
        %v525 = vadd.f32 %v524, %v501
        %v526 = vadd.f32 %v525, %v503
        %v527 = vadd.f32 %v526, %v505
        %v528 = vadd.f32 %v527, %v507
        %v529 = vadd.f32 %v528, %v509
        %v530 = vadd.f32 %v529, %v511
        %v531 = vadd.f32 %v530, %v513
        %v532 = vadd.f32 %v531, %v515
        %v533 = vadd.f32 %v532, %v517
        %v534 = vrot.slane %v533, 4
        %v535 = vadd.f32 %v533, %v534
        %v536 = vrot.slane %v535, 2
        %v537 = vadd.f32 %v535, %v536
        %v538 = vrot.slane %v537, 1
        %v539 = vadd.f32 %v537, %v538
        %v540 = vadd.f32 %v488, %v490
        %v541 = vadd.f32 %v540, %v492
        %v542 = vadd.f32 %v541, %v494
        %v543 = vadd.f32 %v542, %v496
        %v544 = vadd.f32 %v543, %v498
        %v545 = vadd.f32 %v544, %v500
        %v546 = vadd.f32 %v545, %v502
        %v547 = vadd.f32 %v546, %v504
        %v548 = vadd.f32 %v547, %v506
        %v549 = vadd.f32 %v548, %v508
        %v550 = vadd.f32 %v549, %v510
        %v551 = vadd.f32 %v550, %v512
        %v552 = vadd.f32 %v551, %v514
        %v553 = vadd.f32 %v552, %v516
        %v554 = vadd.f32 %v553, %v518
        %v555 = vrot.slane %v554, 4
        %v556 = vadd.f32 %v554, %v555
        %v557 = vrot.slane %v556, 2
        %v558 = vadd.f32 %v556, %v557
        %v559 = vrot.slane %v558, 1
        %v560 = vadd.f32 %v558, %v559
        %v563 = vcombine.low %v539, %v560
        %v565 = vunpack.c.l.s4 1966171168
        %v566 = vunpack.c.0.s8 %v565
        %v567 = vlaneseq
        %v568 = vshrl.u32 %v567, 7
        %v569 = vsub.s32 %v566, %v568
        %v570 = vrot.slane %v563, %v569
        %v572 = vunpack.c.l.s4 1966171168
        %v573 = vunpack.c.0.s8 %v572
        %v574 = vlaneseq
        %v575 = vshrl.u32 %v574, 7
        %v576 = vsub.s32 %v573, %v575
        %v577 = vrot.slane %v570, %v576
        %v579 = vadd.f32 %v486, %v577
        %580 = vst.msk [vmem:[#allocation3] sm:$0x3] %vm484, %v579
        // Predicated region
        $region75: #{generator_forward.10} parent=65 // pred_check
          %p581 = pneg %p361
        $region76: #{generator_forward.10} parent=65 // pred_check_branch
          %583 = sbr.rel (%p581) target = $region78
        $region77: #{generator_forward.10} parent=65 // pred_region
          %v584 = vld [vmem:[#allocation2] sm:$0x3]
          %v585 = vmul.f32 %v584, 0.0078125
          %v586 = vld [vmem:[#allocation3] sm:$0x3]
          %v587 = vmul.f32 %v586, 0.0078125
          %v588 = vmul.f32 %v585, %v585
          %v589 = vsub.f32 %v587, %v588
          %v590 = vld [vmem:[%s344] sm:$0x3]
          %v591 = vadd.f32 %v589, 1e-05
          %v592 = vrsqrt.pop %v591
          %v593 = vmul.f32 %v590, %v592
          %594 = vst.msk [vmem:[%s354] sm:$0x3] %vm484, %v593
          %v595 = vld [vmem:[%s349] sm:$0x3]
          %v596 = vmul.f32 %v585, %v593
          %v597 = vsub.f32 %v595, %v596
          %598 = vst.msk [vmem:[%s359] sm:$0x3] %vm484, %v597
        $region78: #{generator_forward.10} parent=65 // pred_fallthru
          _
        %s599 = smul.u32 2, %s20
        %p600 = scmp.lt.s32.totalorder %s599, 3
        %s601 = scalar_select %p600, %s599, 3
        %s602 = scalar_lea.vmem %s3, %s601
        %s603 = smul.u32 2, %s20
        %p604 = scmp.lt.s32.totalorder %s603, 3
        %s605 = scalar_select %p604, %s603, 3
        %s606 = scalar_lea.vmem %s4, %s605
        // Predicated region
        $region79: #{generator_forward.10} parent=65 // pred_check
          %p607 = pneg %p126
        $region80: #{generator_forward.10} parent=65 // pred_check_branch
          %609 = sbr.rel (%p607) target = $region82
        $region81: #{generator_forward.10} parent=65 // pred_region
          %s610 = smul.u32 2, %s20
        $region82: #{generator_forward.10} parent=65 // pred_fallthru
          _
        // Predicated region
        $region83: #{generator_forward.10} parent=65 // pred_check
          %p611 = pneg %p152
        $region84: #{generator_forward.10} parent=65 // pred_check_branch
          %613 = sbr.rel (%p611) target = $region86
        $region85: #{generator_forward.10} parent=65 // pred_region
          %s614 = smul.u32 2, %s20
        $region86: #{generator_forward.10} parent=65 // pred_fallthru
          _
      $region66: #{generator_forward.10} parent=5 // pred_fallthru
        _
      %p615 = scmp.le.s32.totalorder 2, %s11
      // Predicated region
      $region87: #{generator_forward.10} parent=5 // pred_check
        %p616 = pneg %p615
      $region88: #{generator_forward.10} parent=5 // pred_check_branch
        %618 = sbr.rel (%p616) target = $region90
      $region89: #{generator_forward.10} parent=5 // pred_region
        %s619 = ssub.s32 %s11, 2
        // Predicated region
        $region91: #{generator_forward.10} parent=89 // pred_check
          %p620 = pneg %p132
        $region92: #{generator_forward.10} parent=89 // pred_check_branch
          %622 = sbr.rel (%p620) target = $region94
        $region93: #{generator_forward.10} parent=89 // pred_region
          %s623 = smul.u32 2, %s22
          %p624 = scmp.lt.s32.totalorder %s623, 3
          %s625 = scalar_select %p624, %s623, 3
          %s626 = scalar_lea.vmem %s3, %s625
        $region94: #{generator_forward.10} parent=89 // pred_fallthru
          _
        // Predicated region
        $region95: #{generator_forward.10} parent=89 // pred_check
          %p627 = pneg %p158
        $region96: #{generator_forward.10} parent=89 // pred_check_branch
          %629 = sbr.rel (%p627) target = $region98
        $region97: #{generator_forward.10} parent=89 // pred_region
          %s630 = smul.u32 2, %s22
          %p631 = scmp.lt.s32.totalorder %s630, 3
          %s632 = scalar_select %p631, %s630, 3
          %s633 = scalar_lea.vmem %s4, %s632
        $region98: #{generator_forward.10} parent=89 // pred_fallthru
          _
      $region90: #{generator_forward.10} parent=5 // pred_fallthru
        _
    $region6: #{generator_forward.10} parent=1 // loop_footer
      %s15 = sadd.s32 1, %s11
    $region7: #{generator_forward.10} parent=1 // loop_footer_branch
      %10 = sbr.rel target = $region3
    $region8: #{generator_forward.10} parent=1 // loop_exit
      _

// kernel: generator_forward.11
$region0: #{generator_forward.11}
  #allocation0 [shape = 'u32[]', space=smem, size = 0x4, offset = 0x4, fixed_abs, tag = 'smem constant byte address 0x4 - core index']
  #allocation1 [shape = 'u32[144,128]{1,0:T(1,128)}', space=vmem, size = 0x12000, scoped, tag = 'internal scratch']
  %s0 = inlined_call_operand.vmem [shape: bf16[2,64,512], index: 0, kind: input, shape index: {}]
  %s1 = inlined_call_operand.vmem [shape: f32[1,512], index: 1, kind: input, shape index: {}]
  %s2 = inlined_call_operand.vmem [shape: f32[1,512], index: 2, kind: input, shape index: {}]
  %s3 = inlined_call_operand.vmem [shape: bf16[512,128], index: 3, kind: input, shape index: {}]
  %s4 = inlined_call_operand.vmem [shape: f32[2,8,2,8,16], index: 4, kind: output, shape index: {}]
  %s5 = sld [smem:[#allocation0]]
  $region49: #{generator_forward.11} parent=0
    _
  %s7 = ssub.s32 1, %s5
  %s8 = scalar_select 0, %s7, %s5
  loop: start=0, step=1, limit=4
  $region2: #{generator_forward.11} parent=0 // loop_pre_header
    _
  $region3: #{generator_forward.11} parent=0 // loop_header
    %s10 = sphi 0, %s14
    %p11 = scmp.ge.s32.totalorder %s10, 4
    %s20 = sphi 0, %s22
    %s23 = sphi 0, %s20
    %s24 = sphi 0, %s23
    %s40 = sphi 0, %s24
    %s44 = sphi 0, %s44
    %s46 = sphi 0, %s44
    %s47 = sphi 0, %s46
    %s61 = sphi 0, %s47
    %s65 = sphi 0, %s65
    %s67 = sphi 0, %s65
    %s68 = sphi 0, %s67
    %s82 = sphi 0, %s68
    %s86 = sphi 0, %s86
    %s88 = sphi 0, %s86
    %s89 = sphi 0, %s88
    %s103 = sphi 0, %s89
    %s109 = sphi 0, %s111
    %s112 = sphi 0, %s109
    %s113 = sphi 0, %s112
    %s129 = sphi 0, %s113
  $region4: #{generator_forward.11} parent=0 // loop_header_branch
    %13 = sbr.rel (%p11) target = $region8
  $region5: #{generator_forward.11} parent=0 // loop_body
    %s15 = ssub.s32 %s10, 1
    %s16 = ssub.s32 %s10, 2
    %s17 = sadd.s32 %s10, 1
    %s18 = ssub.s32 %s10, %s17
    %p19 = scmp.eq.s32.totalorder %s18, 0
    %s21 = sadd.s32 %s20, 1
    %s22 = scalar_select %p19, %s20, %s21
    %p25 = pneg %p19
    %p26 = scmp.eq.s32.totalorder %s10, 1
    %p27 = por %p25, %p26
    %p28 = scmp.ne.s32.totalorder %s20, %s23
    %p29 = scmp.eq.s32.totalorder %s10, 0
    %p30 = por %p28, %p29
    %p31 = scmp.ne.s32.totalorder %s20, %s23
    %p32 = scmp.eq.s32.totalorder %s15, 1
    %p33 = por %p31, %p32
    %p34 = scmp.ne.s32.totalorder %s23, %s24
    %p35 = scmp.eq.s32.totalorder %s15, 0
    %p36 = por %p34, %p35
    %p37 = scmp.ne.s32.totalorder %s23, %s24
    %p38 = scmp.eq.s32.totalorder %s16, 1
    %p39 = por %p37, %p38
    %p41 = scmp.ne.s32.totalorder %s24, %s40
    %p42 = scmp.eq.s32.totalorder %s16, 0
    %p43 = por %p41, %p42
    %s45 = sadd.s32 %s44, 1
    %p48 = scmp.eq.s32.totalorder %s10, 1
    %p49 = scmp.ne.s32.totalorder %s44, %s46
    %p50 = scmp.eq.s32.totalorder %s10, 0
    %p51 = por %p49, %p50
    %p52 = scmp.ne.s32.totalorder %s44, %s46
    %p53 = scmp.eq.s32.totalorder %s15, 1
    %p54 = por %p52, %p53
    %p55 = scmp.ne.s32.totalorder %s46, %s47
    %p56 = scmp.eq.s32.totalorder %s15, 0
    %p57 = por %p55, %p56
    %p58 = scmp.ne.s32.totalorder %s46, %s47
    %p59 = scmp.eq.s32.totalorder %s16, 1
    %p60 = por %p58, %p59
    %p62 = scmp.ne.s32.totalorder %s47, %s61
    %p63 = scmp.eq.s32.totalorder %s16, 0
    %p64 = por %p62, %p63
    %s66 = sadd.s32 %s65, 1
    %p69 = scmp.eq.s32.totalorder %s10, 1
    %p70 = scmp.ne.s32.totalorder %s65, %s67
    %p71 = scmp.eq.s32.totalorder %s10, 0
    %p72 = por %p70, %p71
    %p73 = scmp.ne.s32.totalorder %s65, %s67
    %p74 = scmp.eq.s32.totalorder %s15, 1
    %p75 = por %p73, %p74
    %p76 = scmp.ne.s32.totalorder %s67, %s68
    %p77 = scmp.eq.s32.totalorder %s15, 0
    %p78 = por %p76, %p77
    %p79 = scmp.ne.s32.totalorder %s67, %s68
    %p80 = scmp.eq.s32.totalorder %s16, 1
    %p81 = por %p79, %p80
    %p83 = scmp.ne.s32.totalorder %s68, %s82
    %p84 = scmp.eq.s32.totalorder %s16, 0
    %p85 = por %p83, %p84
    %s87 = sadd.s32 %s86, 1
    %p90 = scmp.eq.s32.totalorder %s10, 1
    %p91 = scmp.ne.s32.totalorder %s86, %s88
    %p92 = scmp.eq.s32.totalorder %s10, 0
    %p93 = por %p91, %p92
    %p94 = scmp.ne.s32.totalorder %s86, %s88
    %p95 = scmp.eq.s32.totalorder %s15, 1
    %p96 = por %p94, %p95
    %p97 = scmp.ne.s32.totalorder %s88, %s89
    %p98 = scmp.eq.s32.totalorder %s15, 0
    %p99 = por %p97, %p98
    %p100 = scmp.ne.s32.totalorder %s88, %s89
    %p101 = scmp.eq.s32.totalorder %s16, 1
    %p102 = por %p100, %p101
    %p104 = scmp.ne.s32.totalorder %s89, %s103
    %p105 = scmp.eq.s32.totalorder %s16, 0
    %p106 = por %p104, %p105
    %s107 = ssub.s32 %s10, %s17
    %p108 = scmp.eq.s32.totalorder %s107, 0
    %s110 = sadd.s32 %s109, 1
    %s111 = scalar_select %p108, %s109, %s110
    %p114 = pneg %p108
    %p115 = scmp.eq.s32.totalorder %s10, 1
    %p116 = por %p114, %p115
    %p117 = scmp.ne.s32.totalorder %s109, %s112
    %p118 = scmp.eq.s32.totalorder %s10, 0
    %p119 = por %p117, %p118
    %p120 = scmp.ne.s32.totalorder %s109, %s112
    %p121 = scmp.eq.s32.totalorder %s15, 1
    %p122 = por %p120, %p121
    %p123 = scmp.ne.s32.totalorder %s112, %s113
    %p124 = scmp.eq.s32.totalorder %s15, 0
    %p125 = por %p123, %p124
    %p126 = scmp.ne.s32.totalorder %s112, %s113
    %p127 = scmp.eq.s32.totalorder %s16, 1
    %p128 = por %p126, %p127
    %p130 = scmp.ne.s32.totalorder %s113, %s129
    %p131 = scmp.eq.s32.totalorder %s16, 0
    %p132 = por %p130, %p131
    %p133 = scmp.le.s32.totalorder 1, %s10
    %p134 = scmp.lt.s32.totalorder %s10, 3
    %p135 = pnand %p133, %p134
    %p136 = pneg %p135
    // Predicated region
    $region9: #{generator_forward.11} parent=5 // pred_check
      _
    $region10: #{generator_forward.11} parent=5 // pred_check_branch
      %138 = sbr.rel (%p135) target = $region12
    $region11: #{generator_forward.11} parent=5 // pred_region
      %s139 = ssub.s32 %s10, 1
      // Predicated region
      $region13: #{generator_forward.11} parent=11 // pred_check
        %p140 = pneg %p57
      $region14: #{generator_forward.11} parent=11 // pred_check_branch
        %142 = sbr.rel (%p140) target = $region16
      $region15: #{generator_forward.11} parent=11 // pred_region
        _
      $region16: #{generator_forward.11} parent=11 // pred_fallthru
        _
      // Predicated region
      $region17: #{generator_forward.11} parent=11 // pred_check
        %p143 = pneg %p78
      $region18: #{generator_forward.11} parent=11 // pred_check_branch
        %145 = sbr.rel (%p143) target = $region20
      $region19: #{generator_forward.11} parent=11 // pred_region
        _
      $region20: #{generator_forward.11} parent=11 // pred_fallthru
        _
      // Predicated region
      $region21: #{generator_forward.11} parent=11 // pred_check
        %p146 = pneg %p99
      $region22: #{generator_forward.11} parent=11 // pred_check_branch
        %148 = sbr.rel (%p146) target = $region24
      $region23: #{generator_forward.11} parent=11 // pred_region
        _
      $region24: #{generator_forward.11} parent=11 // pred_fallthru
        _
    $region12: #{generator_forward.11} parent=5 // pred_fallthru
      _
    %p149 = scmp.lt.s32.totalorder %s10, 2
    // Predicated region
    $region25: #{generator_forward.11} parent=5 // pred_check
      %p150 = pneg %p149
    $region26: #{generator_forward.11} parent=5 // pred_check_branch
      %152 = sbr.rel (%p150) target = $region28
    $region27: #{generator_forward.11} parent=5 // pred_region
      // Predicated region
      $region29: #{generator_forward.11} parent=27 // pred_check
        %p153 = pneg %p30
      $region30: #{generator_forward.11} parent=27 // pred_check_branch
        %155 = sbr.rel (%p153) target = $region32
      $region31: #{generator_forward.11} parent=27 // pred_region
        %p156 = scmp.lt.s32.totalorder %s10, 1
        %s157 = scalar_select %p156, %s10, 1
        %s158 = smul.addr %s157, 32
        %s159 = smul.addr %s158, 4
        %s160 = scalar_lea.vmem %s0, %s159
      $region32: #{generator_forward.11} parent=27 // pred_fallthru
        _
    $region28: #{generator_forward.11} parent=5 // pred_fallthru
      _
    %p161 = scmp.le.s32.totalorder 1, %s10
    %p162 = scmp.lt.s32.totalorder %s10, 3
    %p163 = pnand %p161, %p162
    %p164 = pneg %p163
    // Predicated region
    $region33: #{generator_forward.11} parent=5 // pred_check
      _
    $region34: #{generator_forward.11} parent=5 // pred_check_branch
      %166 = sbr.rel (%p163) target = $region36
    $region35: #{generator_forward.11} parent=5 // pred_region
      %s167 = ssub.s32 %s10, 1
      %p168 = scmp.lt.s32.totalorder %s15, 1
      %s169 = scalar_select %p168, %s15, 1
      %s170 = smul.addr %s169, 32
      %s171 = smul.addr %s170, 4
      %s172 = scalar_lea.vmem %s0, %s171
      %p173 = pneg %p36
      %p174 = pneg %p33
      %p175 = pneg %p57
      %p176 = pneg %p54
      %p177 = pneg %p78
      %p178 = pneg %p75
      %p179 = pneg %p99
      %p180 = pneg %p96
      %p181 = pneg %p125
      %p182 = pneg %p122
      %p183 = scmp.lt.s32.totalorder %s15, 1
      %s184 = scalar_select %p183, %s15, 1
      %s185 = smul.addr %s184, 16
      %s186 = smul.addr %s185, 8
      %s187 = scalar_lea.vmem %s4, %s186
      %p188 = scmp.lt.s32.totalorder %s15, 1
      %s189 = scalar_select %p188, %s15, 1
      %s190 = smul.addr %s189, 32
      %s191 = smul.addr %s190, 4
      %s192 = scalar_lea.vmem %s0, %s191
      %p193 = scmp.lt.s32.totalorder %s15, 1
      %s194 = scalar_select %p193, %s15, 1
      %s195 = smul.addr %s194, 16
      %s196 = smul.addr %s195, 8
      %s197 = scalar_lea.vmem %s4, %s196
      %v199 = vld [vmem:[%s192] sm:$0xff]
      %v200 = vld [vmem:[%s192 + $0x8] sm:$0xff]
      %v201 = vld [vmem:[%s192 + $0x10] sm:$0xff]
      %v202 = vld [vmem:[%s192 + $0x18] sm:$0xff]
      %v203 = vld [vmem:[%s192 + $0x20] sm:$0xff]
      %v204 = vld [vmem:[%s192 + $0x28] sm:$0xff]
      %v205 = vld [vmem:[%s192 + $0x30] sm:$0xff]
      %v206 = vld [vmem:[%s192 + $0x38] sm:$0xff]
      %v207 = vld [vmem:[%s192 + $0x40] sm:$0xff]
      %v208 = vld [vmem:[%s192 + $0x48] sm:$0xff]
      %v209 = vld [vmem:[%s192 + $0x50] sm:$0xff]
      %v210 = vld [vmem:[%s192 + $0x58] sm:$0xff]
      %v211 = vld [vmem:[%s192 + $0x60] sm:$0xff]
      %v212 = vld [vmem:[%s192 + $0x68] sm:$0xff]
      %v213 = vld [vmem:[%s192 + $0x70] sm:$0xff]
      %v214 = vld [vmem:[%s192 + $0x78] sm:$0xff]
      %v215 = vunpack.c.l.bf16 %v199
      %v216 = vunpack.c.h.bf16 %v199
      %v217 = vunpack.c.l.bf16 %v200
      %v218 = vunpack.c.h.bf16 %v200
      %v219 = vunpack.c.l.bf16 %v201
      %v220 = vunpack.c.h.bf16 %v201
      %v221 = vunpack.c.l.bf16 %v202
      %v222 = vunpack.c.h.bf16 %v202
      %v223 = vunpack.c.l.bf16 %v203
      %v224 = vunpack.c.h.bf16 %v203
      %v225 = vunpack.c.l.bf16 %v204
      %v226 = vunpack.c.h.bf16 %v204
      %v227 = vunpack.c.l.bf16 %v205
      %v228 = vunpack.c.h.bf16 %v205
      %v229 = vunpack.c.l.bf16 %v206
      %v230 = vunpack.c.h.bf16 %v206
      %v231 = vunpack.c.l.bf16 %v207
      %v232 = vunpack.c.h.bf16 %v207
      %v233 = vunpack.c.l.bf16 %v208
      %v234 = vunpack.c.h.bf16 %v208
      %v235 = vunpack.c.l.bf16 %v209
      %v236 = vunpack.c.h.bf16 %v209
      %v237 = vunpack.c.l.bf16 %v210
      %v238 = vunpack.c.h.bf16 %v210
      %v239 = vunpack.c.l.bf16 %v211
      %v240 = vunpack.c.h.bf16 %v211
      %v241 = vunpack.c.l.bf16 %v212
      %v242 = vunpack.c.h.bf16 %v212
      %v243 = vunpack.c.l.bf16 %v213
      %v244 = vunpack.c.h.bf16 %v213
      %v245 = vunpack.c.l.bf16 %v214
      %v246 = vunpack.c.h.bf16 %v214
      %v247 = vld [vmem:[%s1] sm:$0xf]
      %v249 = vlaneseq
      %v250 = vshrl.u32 %v249, 7
      %v251 = vsub.s32 0, %v250
      %v252 = vrot.slane %v247, %v251
      %v253 = vlaneseq
      %v254 = vshrl.u32 %v253, 7
      %v255 = vsub.s32 1, %v254
      %v256 = vrot.slane %v247, %v255
      %v257 = vlaneseq
      %v258 = vshrl.u32 %v257, 7
      %v259 = vsub.s32 2, %v258
      %v260 = vrot.slane %v247, %v259
      %v261 = vlaneseq
      %v262 = vshrl.u32 %v261, 7
      %v263 = vsub.s32 3, %v262
      %v264 = vrot.slane %v247, %v263
      %v269 = vmul.f32 %v215, %v252
      %v270 = vmul.f32 %v216, %v256
      %v271 = vmul.f32 %v217, %v260
      %v272 = vmul.f32 %v218, %v264
      %v273 = vmul.f32 %v219, %v252
      %v274 = vmul.f32 %v220, %v256
      %v275 = vmul.f32 %v221, %v260
      %v276 = vmul.f32 %v222, %v264
      %v277 = vmul.f32 %v223, %v252
      %v278 = vmul.f32 %v224, %v256
      %v279 = vmul.f32 %v225, %v260
      %v280 = vmul.f32 %v226, %v264
      %v281 = vmul.f32 %v227, %v252
      %v282 = vmul.f32 %v228, %v256
      %v283 = vmul.f32 %v229, %v260
      %v284 = vmul.f32 %v230, %v264
      %v285 = vmul.f32 %v231, %v252
      %v286 = vmul.f32 %v232, %v256
      %v287 = vmul.f32 %v233, %v260
      %v288 = vmul.f32 %v234, %v264
      %v289 = vmul.f32 %v235, %v252
      %v290 = vmul.f32 %v236, %v256
      %v291 = vmul.f32 %v237, %v260
      %v292 = vmul.f32 %v238, %v264
      %v293 = vmul.f32 %v239, %v252
      %v294 = vmul.f32 %v240, %v256
      %v295 = vmul.f32 %v241, %v260
      %v296 = vmul.f32 %v242, %v264
      %v297 = vmul.f32 %v243, %v252
      %v298 = vmul.f32 %v244, %v256
      %v299 = vmul.f32 %v245, %v260
      %v300 = vmul.f32 %v246, %v264
      %v301 = vld [vmem:[%s2] sm:$0xf]
      %v303 = vlaneseq
      %v304 = vshrl.u32 %v303, 7
      %v305 = vsub.s32 0, %v304
      %v306 = vrot.slane %v301, %v305
      %v307 = vlaneseq
      %v308 = vshrl.u32 %v307, 7
      %v309 = vsub.s32 1, %v308
      %v310 = vrot.slane %v301, %v309
      %v311 = vlaneseq
      %v312 = vshrl.u32 %v311, 7
      %v313 = vsub.s32 2, %v312
      %v314 = vrot.slane %v301, %v313
      %v315 = vlaneseq
      %v316 = vshrl.u32 %v315, 7
      %v317 = vsub.s32 3, %v316
      %v318 = vrot.slane %v301, %v317
      %v323 = vadd.f32 %v269, %v306
      %v324 = vadd.f32 %v270, %v310
      %v325 = vadd.f32 %v271, %v314
      %v326 = vadd.f32 %v272, %v318
      %v327 = vadd.f32 %v273, %v306
      %v328 = vadd.f32 %v274, %v310
      %v329 = vadd.f32 %v275, %v314
      %v330 = vadd.f32 %v276, %v318
      %v331 = vadd.f32 %v277, %v306
      %v332 = vadd.f32 %v278, %v310
      %v333 = vadd.f32 %v279, %v314
      %v334 = vadd.f32 %v280, %v318
      %v335 = vadd.f32 %v281, %v306
      %v336 = vadd.f32 %v282, %v310
      %v337 = vadd.f32 %v283, %v314
      %v338 = vadd.f32 %v284, %v318
      %v339 = vadd.f32 %v285, %v306
      %v340 = vadd.f32 %v286, %v310
      %v341 = vadd.f32 %v287, %v314
      %v342 = vadd.f32 %v288, %v318
      %v343 = vadd.f32 %v289, %v306
      %v344 = vadd.f32 %v290, %v310
      %v345 = vadd.f32 %v291, %v314
      %v346 = vadd.f32 %v292, %v318
      %v347 = vadd.f32 %v293, %v306
      %v348 = vadd.f32 %v294, %v310
      %v349 = vadd.f32 %v295, %v314
      %v350 = vadd.f32 %v296, %v318
      %v351 = vadd.f32 %v297, %v306
      %v352 = vadd.f32 %v298, %v310
      %v353 = vadd.f32 %v299, %v314
      %v354 = vadd.f32 %v300, %v318
      %vm355 = vcmp.ge.f32.partialorder %v323, 0.0
      %vm356 = vcmp.ge.f32.partialorder %v324, 0.0
      %vm357 = vcmp.ge.f32.partialorder %v325, 0.0
      %vm358 = vcmp.ge.f32.partialorder %v326, 0.0
      %vm359 = vcmp.ge.f32.partialorder %v327, 0.0
      %vm360 = vcmp.ge.f32.partialorder %v328, 0.0
      %vm361 = vcmp.ge.f32.partialorder %v329, 0.0
      %vm362 = vcmp.ge.f32.partialorder %v330, 0.0
      %vm363 = vcmp.ge.f32.partialorder %v331, 0.0
      %vm364 = vcmp.ge.f32.partialorder %v332, 0.0
      %vm365 = vcmp.ge.f32.partialorder %v333, 0.0
      %vm366 = vcmp.ge.f32.partialorder %v334, 0.0
      %vm367 = vcmp.ge.f32.partialorder %v335, 0.0
      %vm368 = vcmp.ge.f32.partialorder %v336, 0.0
      %vm369 = vcmp.ge.f32.partialorder %v337, 0.0
      %vm370 = vcmp.ge.f32.partialorder %v338, 0.0
      %vm371 = vcmp.ge.f32.partialorder %v339, 0.0
      %vm372 = vcmp.ge.f32.partialorder %v340, 0.0
      %vm373 = vcmp.ge.f32.partialorder %v341, 0.0
      %vm374 = vcmp.ge.f32.partialorder %v342, 0.0
      %vm375 = vcmp.ge.f32.partialorder %v343, 0.0
      %vm376 = vcmp.ge.f32.partialorder %v344, 0.0
      %vm377 = vcmp.ge.f32.partialorder %v345, 0.0
      %vm378 = vcmp.ge.f32.partialorder %v346, 0.0
      %vm379 = vcmp.ge.f32.partialorder %v347, 0.0
      %vm380 = vcmp.ge.f32.partialorder %v348, 0.0
      %vm381 = vcmp.ge.f32.partialorder %v349, 0.0
      %vm382 = vcmp.ge.f32.partialorder %v350, 0.0
      %vm383 = vcmp.ge.f32.partialorder %v351, 0.0
      %vm384 = vcmp.ge.f32.partialorder %v352, 0.0
      %vm385 = vcmp.ge.f32.partialorder %v353, 0.0
      %vm386 = vcmp.ge.f32.partialorder %v354, 0.0
      %v387 = vmul.f32 %v323, 0.2
      %v388 = vmul.f32 %v324, 0.2
      %v389 = vmul.f32 %v325, 0.2
      %v390 = vmul.f32 %v326, 0.2
      %v391 = vmul.f32 %v327, 0.2
      %v392 = vmul.f32 %v328, 0.2
      %v393 = vmul.f32 %v329, 0.2
      %v394 = vmul.f32 %v330, 0.2
      %v395 = vmul.f32 %v331, 0.2
      %v396 = vmul.f32 %v332, 0.2
      %v397 = vmul.f32 %v333, 0.2
      %v398 = vmul.f32 %v334, 0.2
      %v399 = vmul.f32 %v335, 0.2
      %v400 = vmul.f32 %v336, 0.2
      %v401 = vmul.f32 %v337, 0.2
      %v402 = vmul.f32 %v338, 0.2
      %v403 = vmul.f32 %v339, 0.2
      %v404 = vmul.f32 %v340, 0.2
      %v405 = vmul.f32 %v341, 0.2
      %v406 = vmul.f32 %v342, 0.2
      %v407 = vmul.f32 %v343, 0.2
      %v408 = vmul.f32 %v344, 0.2
      %v409 = vmul.f32 %v345, 0.2
      %v410 = vmul.f32 %v346, 0.2
      %v411 = vmul.f32 %v347, 0.2
      %v412 = vmul.f32 %v348, 0.2
      %v413 = vmul.f32 %v349, 0.2
      %v414 = vmul.f32 %v350, 0.2
      %v415 = vmul.f32 %v351, 0.2
      %v416 = vmul.f32 %v352, 0.2
      %v417 = vmul.f32 %v353, 0.2
      %v418 = vmul.f32 %v354, 0.2
      %v419 = vsel %vm355, %v323, %v387
      %v420 = vsel %vm356, %v324, %v388
      %v421 = vsel %vm357, %v325, %v389
      %v422 = vsel %vm358, %v326, %v390
      %v423 = vsel %vm359, %v327, %v391
      %v424 = vsel %vm360, %v328, %v392
      %v425 = vsel %vm361, %v329, %v393
      %v426 = vsel %vm362, %v330, %v394
      %v427 = vsel %vm363, %v331, %v395
      %v428 = vsel %vm364, %v332, %v396
      %v429 = vsel %vm365, %v333, %v397
      %v430 = vsel %vm366, %v334, %v398
      %v431 = vsel %vm367, %v335, %v399
      %v432 = vsel %vm368, %v336, %v400
      %v433 = vsel %vm369, %v337, %v401
      %v434 = vsel %vm370, %v338, %v402
      %v435 = vsel %vm371, %v339, %v403
      %v436 = vsel %vm372, %v340, %v404
      %v437 = vsel %vm373, %v341, %v405
      %v438 = vsel %vm374, %v342, %v406
      %v439 = vsel %vm375, %v343, %v407
      %v440 = vsel %vm376, %v344, %v408
      %v441 = vsel %vm377, %v345, %v409
      %v442 = vsel %vm378, %v346, %v410
      %v443 = vsel %vm379, %v347, %v411
      %v444 = vsel %vm380, %v348, %v412
      %v445 = vsel %vm381, %v349, %v413
      %v446 = vsel %vm382, %v350, %v414
      %v447 = vsel %vm383, %v351, %v415
      %v448 = vsel %vm384, %v352, %v416
      %v449 = vsel %vm385, %v353, %v417
      %v450 = vsel %vm386, %v354, %v418
      %v451 = vpack.c.bf16 %v423, %v419
      %v452 = vpack.c.bf16 %v424, %v420
      %v453 = vpack.c.bf16 %v425, %v421
      %v454 = vpack.c.bf16 %v426, %v422
      %v455 = vpack.c.bf16 %v431, %v427
      %v456 = vpack.c.bf16 %v432, %v428
      %v457 = vpack.c.bf16 %v433, %v429
      %v458 = vpack.c.bf16 %v434, %v430
      %v459 = vpack.c.bf16 %v439, %v435
      %v460 = vpack.c.bf16 %v440, %v436
      %v461 = vpack.c.bf16 %v441, %v437
      %v462 = vpack.c.bf16 %v442, %v438
      %v463 = vpack.c.bf16 %v447, %v443
      %v464 = vpack.c.bf16 %v448, %v444
      %v465 = vpack.c.bf16 %v449, %v445
      %v466 = vpack.c.bf16 %v450, %v446
      %v467 = vld [vmem:[%s3] sm:$0xf]
      %v468 = vld [vmem:[%s3 + $0x4] sm:$0xf]
      %v469 = vld [vmem:[%s3 + $0x8] sm:$0xf]
      %v470 = vld [vmem:[%s3 + $0xc] sm:$0xf]
      %v471 = vld [vmem:[%s3 + $0x10] sm:$0xf]
      %v472 = vld [vmem:[%s3 + $0x14] sm:$0xf]
      %v473 = vld [vmem:[%s3 + $0x18] sm:$0xf]
      %v474 = vld [vmem:[%s3 + $0x1c] sm:$0xf]
      %v475 = vld [vmem:[%s3 + $0x20] sm:$0xf]
      %v476 = vld [vmem:[%s3 + $0x24] sm:$0xf]
      %v477 = vld [vmem:[%s3 + $0x28] sm:$0xf]
      %v478 = vld [vmem:[%s3 + $0x2c] sm:$0xf]
      %v479 = vld [vmem:[%s3 + $0x30] sm:$0xf]
      %v480 = vld [vmem:[%s3 + $0x34] sm:$0xf]
      %v481 = vld [vmem:[%s3 + $0x38] sm:$0xf]
      %v482 = vld [vmem:[%s3 + $0x3c] sm:$0xf]
      %v483 = vld [vmem:[%s3 + $0x40] sm:$0xf]
      %v484 = vld [vmem:[%s3 + $0x44] sm:$0xf]
      %v485 = vld [vmem:[%s3 + $0x48] sm:$0xf]
      %v486 = vld [vmem:[%s3 + $0x4c] sm:$0xf]
      %v487 = vld [vmem:[%s3 + $0x50] sm:$0xf]
      %v488 = vld [vmem:[%s3 + $0x54] sm:$0xf]
      %v489 = vld [vmem:[%s3 + $0x58] sm:$0xf]
      %v490 = vld [vmem:[%s3 + $0x5c] sm:$0xf]
      %v491 = vld [vmem:[%s3 + $0x60] sm:$0xf]
      %v492 = vld [vmem:[%s3 + $0x64] sm:$0xf]
      %v493 = vld [vmem:[%s3 + $0x68] sm:$0xf]
      %v494 = vld [vmem:[%s3 + $0x6c] sm:$0xf]
      %v495 = vld [vmem:[%s3 + $0x70] sm:$0xf]
      %v496 = vld [vmem:[%s3 + $0x74] sm:$0xf]
      %v497 = vld [vmem:[%s3 + $0x78] sm:$0xf]
      %v498 = vld [vmem:[%s3 + $0x7c] sm:$0xf]
      %v499 = vld [vmem:[%s3 + $0x80] sm:$0xf]
      %v500 = vld [vmem:[%s3 + $0x84] sm:$0xf]
      %v501 = vld [vmem:[%s3 + $0x88] sm:$0xf]
      %v502 = vld [vmem:[%s3 + $0x8c] sm:$0xf]
      %v503 = vld [vmem:[%s3 + $0x90] sm:$0xf]
      %v504 = vld [vmem:[%s3 + $0x94] sm:$0xf]
      %v505 = vld [vmem:[%s3 + $0x98] sm:$0xf]
      %v506 = vld [vmem:[%s3 + $0x9c] sm:$0xf]
      %v507 = vld [vmem:[%s3 + $0xa0] sm:$0xf]
      %v508 = vld [vmem:[%s3 + $0xa4] sm:$0xf]
      %v509 = vld [vmem:[%s3 + $0xa8] sm:$0xf]
      %v510 = vld [vmem:[%s3 + $0xac] sm:$0xf]
      %v511 = vld [vmem:[%s3 + $0xb0] sm:$0xf]
      %v512 = vld [vmem:[%s3 + $0xb4] sm:$0xf]
      %v513 = vld [vmem:[%s3 + $0xb8] sm:$0xf]
      %v514 = vld [vmem:[%s3 + $0xbc] sm:$0xf]
      %v515 = vld [vmem:[%s3 + $0xc0] sm:$0xf]
      %v516 = vld [vmem:[%s3 + $0xc4] sm:$0xf]
      %v517 = vld [vmem:[%s3 + $0xc8] sm:$0xf]
      %v518 = vld [vmem:[%s3 + $0xcc] sm:$0xf]
      %v519 = vld [vmem:[%s3 + $0xd0] sm:$0xf]
      %v520 = vld [vmem:[%s3 + $0xd4] sm:$0xf]
      %v521 = vld [vmem:[%s3 + $0xd8] sm:$0xf]
      %v522 = vld [vmem:[%s3 + $0xdc] sm:$0xf]
      %v523 = vld [vmem:[%s3 + $0xe0] sm:$0xf]
      %v524 = vld [vmem:[%s3 + $0xe4] sm:$0xf]
      %v525 = vld [vmem:[%s3 + $0xe8] sm:$0xf]
      %v526 = vld [vmem:[%s3 + $0xec] sm:$0xf]
      %v527 = vld [vmem:[%s3 + $0xf0] sm:$0xf]
      %v528 = vld [vmem:[%s3 + $0xf4] sm:$0xf]
      %v529 = vld [vmem:[%s3 + $0xf8] sm:$0xf]
      %v530 = vld [vmem:[%s3 + $0xfc] sm:$0xf]
      %v595 = vunpack.c.l.b16 %v467
      %v596 = vunpack.c.l.b16 %v468
      %v597 = vunpack.c.l.b16 %v469
      %v598 = vunpack.c.l.b16 %v470
      %v599 = vunpack.c.l.b16 %v471
      %v600 = vunpack.c.l.b16 %v472
      %v601 = vunpack.c.l.b16 %v473
      %v602 = vunpack.c.l.b16 %v474
      %v603 = vunpack.c.l.b16 %v475
      %v604 = vunpack.c.l.b16 %v476
      %v605 = vunpack.c.l.b16 %v477
      %v606 = vunpack.c.l.b16 %v478
      %v607 = vunpack.c.l.b16 %v479
      %v608 = vunpack.c.l.b16 %v480
      %v609 = vunpack.c.l.b16 %v481
      %v610 = vunpack.c.l.b16 %v482
      %v611 = vunpack.c.l.b16 %v483
      %v612 = vunpack.c.l.b16 %v484
      %v613 = vunpack.c.l.b16 %v485
      %v614 = vunpack.c.l.b16 %v486
      %v615 = vunpack.c.l.b16 %v487
      %v616 = vunpack.c.l.b16 %v488
      %v617 = vunpack.c.l.b16 %v489
      %v618 = vunpack.c.l.b16 %v490
      %v619 = vunpack.c.l.b16 %v491
      %v620 = vunpack.c.l.b16 %v492
      %v621 = vunpack.c.l.b16 %v493
      %v622 = vunpack.c.l.b16 %v494
      %v623 = vunpack.c.l.b16 %v495
      %v624 = vunpack.c.l.b16 %v496
      %v625 = vunpack.c.l.b16 %v497
      %v626 = vunpack.c.l.b16 %v498
      %v627 = vunpack.c.l.b16 %v499
      %v628 = vunpack.c.l.b16 %v500
      %v629 = vunpack.c.l.b16 %v501
      %v630 = vunpack.c.l.b16 %v502
      %v631 = vunpack.c.l.b16 %v503
      %v632 = vunpack.c.l.b16 %v504
      %v633 = vunpack.c.l.b16 %v505
      %v634 = vunpack.c.l.b16 %v506
      %v635 = vunpack.c.l.b16 %v507
      %v636 = vunpack.c.l.b16 %v508
      %v637 = vunpack.c.l.b16 %v509
      %v638 = vunpack.c.l.b16 %v510
      %v639 = vunpack.c.l.b16 %v511
      %v640 = vunpack.c.l.b16 %v512
      %v641 = vunpack.c.l.b16 %v513
      %v642 = vunpack.c.l.b16 %v514
      %v643 = vunpack.c.l.b16 %v515
      %v644 = vunpack.c.l.b16 %v516
      %v645 = vunpack.c.l.b16 %v517
      %v646 = vunpack.c.l.b16 %v518
      %v647 = vunpack.c.l.b16 %v519
      %v648 = vunpack.c.l.b16 %v520
      %v649 = vunpack.c.l.b16 %v521
      %v650 = vunpack.c.l.b16 %v522
      %v651 = vunpack.c.l.b16 %v523
      %v652 = vunpack.c.l.b16 %v524
      %v653 = vunpack.c.l.b16 %v525
      %v654 = vunpack.c.l.b16 %v526
      %v655 = vunpack.c.l.b16 %v527
      %v656 = vunpack.c.l.b16 %v528
      %v657 = vunpack.c.l.b16 %v529
      %v658 = vunpack.c.l.b16 %v530
      %v659 = vpack.c.b16 %v596, %v595
      %v660 = vpack.c.b16 %v598, %v597
      %v661 = vpack.c.b16 %v600, %v599
      %v662 = vpack.c.b16 %v602, %v601
      %v663 = vpack.c.b16 %v604, %v603
      %v664 = vpack.c.b16 %v606, %v605
      %v665 = vpack.c.b16 %v608, %v607
      %v666 = vpack.c.b16 %v610, %v609
      %v667 = vpack.c.b16 %v612, %v611
      %v668 = vpack.c.b16 %v614, %v613
      %v669 = vpack.c.b16 %v616, %v615
      %v670 = vpack.c.b16 %v618, %v617
      %v671 = vpack.c.b16 %v620, %v619
      %v672 = vpack.c.b16 %v622, %v621
      %v673 = vpack.c.b16 %v624, %v623
      %v674 = vpack.c.b16 %v626, %v625
      %v675 = vpack.c.b16 %v628, %v627
      %v676 = vpack.c.b16 %v630, %v629
      %v677 = vpack.c.b16 %v632, %v631
      %v678 = vpack.c.b16 %v634, %v633
      %v679 = vpack.c.b16 %v636, %v635
      %v680 = vpack.c.b16 %v638, %v637
      %v681 = vpack.c.b16 %v640, %v639
      %v682 = vpack.c.b16 %v642, %v641
      %v683 = vpack.c.b16 %v644, %v643
      %v684 = vpack.c.b16 %v646, %v645
      %v685 = vpack.c.b16 %v648, %v647
      %v686 = vpack.c.b16 %v650, %v649
      %v687 = vpack.c.b16 %v652, %v651
      %v688 = vpack.c.b16 %v654, %v653
      %v689 = vpack.c.b16 %v656, %v655
      %v690 = vpack.c.b16 %v658, %v657
      %723 = vmatprep.subr.bf16.mxu0 0
      %724 = vmatpush1.bf16.msra.mxu0 %v659
      %725 = vmatprep.subr.bf16.mxu0 0
      %726 = vmatpush1.bf16.msra.mxu0 %v660
      %727 = vmatprep.subr.bf16.mxu0 0
      %728 = vmatpush1.bf16.msra.mxu0 %v661
      %729 = vmatprep.subr.bf16.mxu0 0
      %730 = vmatpush1.bf16.msra.mxu0 %v662
      %731 = vmatprep.subr.bf16.mxu0 0
      %732 = vmatpush1.bf16.msra.mxu0 %v663
      %733 = vmatprep.subr.bf16.mxu0 0
      %734 = vmatpush1.bf16.msra.mxu0 %v664
      %735 = vmatprep.subr.bf16.mxu0 0
      %736 = vmatpush1.bf16.msra.mxu0 %v665
      %737 = vmatprep.subr.bf16.mxu0 0
      %738 = vmatpush1.bf16.msra.mxu0 %v666
      %739 = vmatprep.subr.bf16.mxu0 0
      %740 = vmatpush1.bf16.msra.mxu0 %v667
      %741 = vmatprep.subr.bf16.mxu0 0
      %742 = vmatpush1.bf16.msra.mxu0 %v668
      %743 = vmatprep.subr.bf16.mxu0 0
      %744 = vmatpush1.bf16.msra.mxu0 %v669
      %745 = vmatprep.subr.bf16.mxu0 0
      %746 = vmatpush1.bf16.msra.mxu0 %v670
      %747 = vmatprep.subr.bf16.mxu0 0
      %748 = vmatpush1.bf16.msra.mxu0 %v671
      %749 = vmatprep.subr.bf16.mxu0 0
      %750 = vmatpush1.bf16.msra.mxu0 %v672
      %751 = vmatprep.subr.bf16.mxu0 0
      %752 = vmatpush1.bf16.msra.mxu0 %v673
      %753 = vmatprep.subr.bf16.mxu0 0
      %754 = vmatpush1.bf16.msra.mxu0 %v674
      %755 = vmatprep.mubr.bf16.mxu0 %v452
      %756 = vmatmul.mubr.bf16.gmra.mrb[0].mxu0 %v451
      %v757 = vpop.f32.mrb[0].mxu0
      %v758 = vadd.f32 0.0, %v757
      %v759 = vpop.f32.mrb[0].mxu0
      %v760 = vpop.f32.mrb[0].mxu0
      %v761 = vadd.f32 0.0, %v760
      %v762 = vpop.f32.mrb[0].mxu0
      %763 = vmatprep.mubr.bf16.mxu0 %v456
      %764 = vmatmul.mubr.bf16.gmra.mrb[0].mxu0 %v455
      %v765 = vpop.f32.mrb[0].mxu0
      %v766 = vadd.f32 0.0, %v765
      %v767 = vpop.f32.mrb[0].mxu0
      %v768 = vpop.f32.mrb[0].mxu0
      %v769 = vadd.f32 0.0, %v768
      %v770 = vpop.f32.mrb[0].mxu0
      %771 = vmatprep.mubr.bf16.mxu0 %v460
      %772 = vmatmul.mubr.bf16.gmra.mrb[0].mxu0 %v459
      %v773 = vpop.f32.mrb[0].mxu0
      %v774 = vadd.f32 0.0, %v773
      %v775 = vpop.f32.mrb[0].mxu0
      %v776 = vpop.f32.mrb[0].mxu0
      %v777 = vadd.f32 0.0, %v776
      %v778 = vpop.f32.mrb[0].mxu0
      %779 = vmatprep.mubr.bf16.mxu0 %v464
      %780 = vmatmul.mubr.bf16.gmra.mrb[0].mxu0 %v463
      %v781 = vpop.f32.mrb[0].mxu0
      %v782 = vadd.f32 0.0, %v781
      %v783 = vpop.f32.mrb[0].mxu0
      %v784 = vpop.f32.mrb[0].mxu0
      %v785 = vadd.f32 0.0, %v784
      %v786 = vpop.f32.mrb[0].mxu0
      %787 = vdwg.mxu0
      %788 = vmatprep.subr.bf16.mxu0 0
      %789 = vmatpush1.bf16.msra.mxu0 %v675
      %790 = vmatprep.subr.bf16.mxu0 0
      %791 = vmatpush1.bf16.msra.mxu0 %v676
      %792 = vmatprep.subr.bf16.mxu0 0
      %793 = vmatpush1.bf16.msra.mxu0 %v677
      %794 = vmatprep.subr.bf16.mxu0 0
      %795 = vmatpush1.bf16.msra.mxu0 %v678
      %796 = vmatprep.subr.bf16.mxu0 0
      %797 = vmatpush1.bf16.msra.mxu0 %v679
      %798 = vmatprep.subr.bf16.mxu0 0
      %799 = vmatpush1.bf16.msra.mxu0 %v680
      %800 = vmatprep.subr.bf16.mxu0 0
      %801 = vmatpush1.bf16.msra.mxu0 %v681
      %802 = vmatprep.subr.bf16.mxu0 0
      %803 = vmatpush1.bf16.msra.mxu0 %v682
      %804 = vmatprep.subr.bf16.mxu0 0
      %805 = vmatpush1.bf16.msra.mxu0 %v683
      %806 = vmatprep.subr.bf16.mxu0 0
      %807 = vmatpush1.bf16.msra.mxu0 %v684
      %808 = vmatprep.subr.bf16.mxu0 0
      %809 = vmatpush1.bf16.msra.mxu0 %v685
      %810 = vmatprep.subr.bf16.mxu0 0
      %811 = vmatpush1.bf16.msra.mxu0 %v686
      %812 = vmatprep.subr.bf16.mxu0 0
      %813 = vmatpush1.bf16.msra.mxu0 %v687
      %814 = vmatprep.subr.bf16.mxu0 0
      %815 = vmatpush1.bf16.msra.mxu0 %v688
      %816 = vmatprep.subr.bf16.mxu0 0
      %817 = vmatpush1.bf16.msra.mxu0 %v689
      %818 = vmatprep.subr.bf16.mxu0 0
      %819 = vmatpush1.bf16.msra.mxu0 %v690
      %820 = vmatprep.mubr.bf16.mxu0 %v454
      %821 = vmatmul.mubr.bf16.gmra.mrb[0].mxu0 %v453
      %v822 = vpop.f32.mrb[0].mxu0
      %v823 = vadd.f32 %v758, %v822
      %v824 = vpop.f32.mrb[0].mxu0
      %v825 = vpop.f32.mrb[0].mxu0
      %v826 = vadd.f32 %v761, %v825
      %v827 = vpop.f32.mrb[0].mxu0
      %828 = vmatprep.mubr.bf16.mxu0 %v458
      %829 = vmatmul.mubr.bf16.gmra.mrb[0].mxu0 %v457
      %v830 = vpop.f32.mrb[0].mxu0
      %v831 = vadd.f32 %v766, %v830
      %v832 = vpop.f32.mrb[0].mxu0
      %v833 = vpop.f32.mrb[0].mxu0
      %v834 = vadd.f32 %v769, %v833
      %v835 = vpop.f32.mrb[0].mxu0
      %836 = vmatprep.mubr.bf16.mxu0 %v462
      %837 = vmatmul.mubr.bf16.gmra.mrb[0].mxu0 %v461
      %v838 = vpop.f32.mrb[0].mxu0
      %v839 = vadd.f32 %v774, %v838
      %v840 = vpop.f32.mrb[0].mxu0
      %v841 = vpop.f32.mrb[0].mxu0
      %v842 = vadd.f32 %v777, %v841
      %v843 = vpop.f32.mrb[0].mxu0
      %844 = vmatprep.mubr.bf16.mxu0 %v466
      %845 = vmatmul.mubr.bf16.gmra.mrb[0].mxu0 %v465
      %v846 = vpop.f32.mrb[0].mxu0
      %v847 = vadd.f32 %v782, %v846
      %v848 = vpop.f32.mrb[0].mxu0
      %v849 = vpop.f32.mrb[0].mxu0
      %v850 = vadd.f32 %v785, %v849
      %v851 = vpop.f32.mrb[0].mxu0
      %852 = vdwg.mxu0
      %vm861 = vcmask 1040384
      %v862 = vrot.slane %v823, 7
      %v863 = vrot.slane %v826, 7
      %v864 = vsel %vm861, %v862, %v863
      %v865 = vrot.slane %v831, 7
      %v866 = vsel %vm861, %v863, %v865
      %v867 = vrot.slane %v834, 7
      %v868 = vsel %vm861, %v865, %v867
      %v869 = vrot.slane %v839, 7
      %v870 = vsel %vm861, %v867, %v869
      %v871 = vrot.slane %v842, 7
      %v872 = vsel %vm861, %v869, %v871
      %v873 = vrot.slane %v847, 7
      %v874 = vsel %vm861, %v871, %v873
      %v875 = vrot.slane %v850, 7
      %v876 = vsel %vm861, %v873, %v875
      %877 = vrot.lane.b32.xlu0 %v862, 72
      %v878 = vpop.permute.xlu0 %877
      %879 = vrot.lane.b32.xlu0 %v864, 72
      %v880 = vpop.permute.xlu0 %879
      %881 = vrot.lane.b32.xlu0 %v866, 72
      %v882 = vpop.permute.xlu0 %881
      %883 = vrot.lane.b32.xlu0 %v868, 72
      %v884 = vpop.permute.xlu0 %883
      %885 = vrot.lane.b32.xlu0 %v870, 72
      %v886 = vpop.permute.xlu0 %885
      %887 = vrot.lane.b32.xlu0 %v872, 72
      %v888 = vpop.permute.xlu0 %887
      %889 = vrot.lane.b32.xlu0 %v874, 72
      %v890 = vpop.permute.xlu0 %889
      %891 = vrot.lane.b32.xlu0 %v876, 72
      %v892 = vpop.permute.xlu0 %891
      %v901 = vsel %vm861, 0.0, %v878
      %v902 = vlaneseq
      %v903 = vshrl.u32 %v902, 7
      %v904 = vadd.s32 %v903, 8
      %v905 = vadd.s32 %v903, 16
      %v906 = vadd.s32 %v903, 24
      %v907 = vadd.s32 %v903, 32
      %v908 = vadd.s32 %v903, 40
      %v909 = vadd.s32 %v903, 48
      %v910 = vadd.s32 %v903, 56
      %vm911 = vcmp.lt.s32.totalorder %v903, 0
      %v912 = vsub.s32 0, %v903
      %v913 = vsel %vm911, %v912, %v903
      %v914 = vshrl.u32 %v913, 3
      %v915 = vand.u32 %v913, 7
      %v916 = vsub.s32 0, %v915
      %v917 = vsel %vm911, %v916, %v915
      %vm918 = vcmp.lt.s32.totalorder %v904, 0
      %v919 = vsub.s32 0, %v904
      %v920 = vsel %vm918, %v919, %v904
      %v921 = vshrl.u32 %v920, 3
      %v922 = vand.u32 %v920, 7
      %v923 = vsub.s32 0, %v922
      %v924 = vsel %vm918, %v923, %v922
      %vm925 = vcmp.lt.s32.totalorder %v905, 0
      %v926 = vsub.s32 0, %v905
      %v927 = vsel %vm925, %v926, %v905
      %v928 = vshrl.u32 %v927, 3
      %v929 = vand.u32 %v927, 7
      %v930 = vsub.s32 0, %v929
      %v931 = vsel %vm925, %v930, %v929
      %vm932 = vcmp.lt.s32.totalorder %v906, 0
      %v933 = vsub.s32 0, %v906
      %v934 = vsel %vm932, %v933, %v906
      %v935 = vshrl.u32 %v934, 3
      %v936 = vand.u32 %v934, 7
      %v937 = vsub.s32 0, %v936
      %v938 = vsel %vm932, %v937, %v936
      %vm939 = vcmp.lt.s32.totalorder %v907, 0
      %v940 = vsub.s32 0, %v907
      %v941 = vsel %vm939, %v940, %v907
      %v942 = vshrl.u32 %v941, 3
      %v943 = vand.u32 %v941, 7
      %v944 = vsub.s32 0, %v943
      %v945 = vsel %vm939, %v944, %v943
      %vm946 = vcmp.lt.s32.totalorder %v908, 0
      %v947 = vsub.s32 0, %v908
      %v948 = vsel %vm946, %v947, %v908
      %v949 = vshrl.u32 %v948, 3
      %v950 = vand.u32 %v948, 7
      %v951 = vsub.s32 0, %v950
      %v952 = vsel %vm946, %v951, %v950
      %vm953 = vcmp.lt.s32.totalorder %v909, 0
      %v954 = vsub.s32 0, %v909
      %v955 = vsel %vm953, %v954, %v909
      %v956 = vshrl.u32 %v955, 3
      %v957 = vand.u32 %v955, 7
      %v958 = vsub.s32 0, %v957
      %v959 = vsel %vm953, %v958, %v957
      %vm960 = vcmp.lt.s32.totalorder %v910, 0
      %v961 = vsub.s32 0, %v910
      %v962 = vsel %vm960, %v961, %v910
      %v963 = vshrl.u32 %v962, 3
      %v964 = vand.u32 %v962, 7
      %v965 = vsub.s32 0, %v964
      %v966 = vsel %vm960, %v965, %v964
      %vm967 = vcmp.ne.s32.totalorder %v917, 0
      %vm968 = vcmp.ne.s32.totalorder %v924, 0
      %vm969 = vcmp.ne.s32.totalorder %v931, 0
      %vm970 = vcmp.ne.s32.totalorder %v938, 0
      %vm971 = vcmp.ne.s32.totalorder %v945, 0
      %vm972 = vcmp.ne.s32.totalorder %v952, 0
      %vm973 = vcmp.ne.s32.totalorder %v959, 0
      %vm974 = vcmp.ne.s32.totalorder %v966, 0
      %vm975 = vcmp.lt.s32.totalorder %v917, 0
      %vm976 = vcmp.lt.s32.totalorder %v924, 0
      %vm977 = vcmp.lt.s32.totalorder %v931, 0
      %vm978 = vcmp.lt.s32.totalorder %v938, 0
      %vm979 = vcmp.lt.s32.totalorder %v945, 0
      %vm980 = vcmp.lt.s32.totalorder %v952, 0
      %vm981 = vcmp.lt.s32.totalorder %v959, 0
      %vm982 = vcmp.lt.s32.totalorder %v966, 0
      %vm983 = vmand %vm975, %vm967
      %vm984 = vmand %vm976, %vm968
      %vm985 = vmand %vm977, %vm969
      %vm986 = vmand %vm978, %vm970
      %vm987 = vmand %vm979, %vm971
      %vm988 = vmand %vm980, %vm972
      %vm989 = vmand %vm981, %vm973
      %vm990 = vmand %vm982, %vm974
      %v991 = vadd.s32 %v917, 8
      %v992 = vadd.s32 %v924, 8
      %v993 = vadd.s32 %v931, 8
      %v994 = vadd.s32 %v938, 8
      %v995 = vadd.s32 %v945, 8
      %v996 = vadd.s32 %v952, 8
      %v997 = vadd.s32 %v959, 8
      %v998 = vadd.s32 %v966, 8
      %v999 = vsel %vm983, %v991, %v917
      %v1000 = vsel %vm984, %v992, %v924
      %v1001 = vsel %vm985, %v993, %v931
      %v1002 = vsel %vm986, %v994, %v938
      %v1003 = vsel %vm987, %v995, %v945
      %v1004 = vsel %vm988, %v996, %v952
      %v1005 = vsel %vm989, %v997, %v959
      %v1006 = vsel %vm990, %v998, %v966
      %vm1007 = vcmp.ge.s32.totalorder %v999, 1
      %vm1008 = vcmp.ge.s32.totalorder %v1000, 1
      %vm1009 = vcmp.ge.s32.totalorder %v1001, 1
      %vm1010 = vcmp.ge.s32.totalorder %v1002, 1
      %vm1011 = vcmp.ge.s32.totalorder %v1003, 1
      %vm1012 = vcmp.ge.s32.totalorder %v1004, 1
      %vm1013 = vcmp.ge.s32.totalorder %v1005, 1
      %vm1014 = vcmp.ge.s32.totalorder %v1006, 1
      %v1015 = vsel %vm1007, 1, 0
      %v1016 = vsel %vm1008, 1, 0
      %v1017 = vsel %vm1009, 1, 0
      %v1018 = vsel %vm1010, 1, 0
      %v1019 = vsel %vm1011, 1, 0
      %v1020 = vsel %vm1012, 1, 0
      %v1021 = vsel %vm1013, 1, 0
      %v1022 = vsel %vm1014, 1, 0
      %vm1023 = vcmp.eq.s32.totalorder %v1015, 1
      %vm1024 = vcmp.eq.s32.totalorder %v1016, 1
      %vm1025 = vcmp.eq.s32.totalorder %v1017, 1
      %vm1026 = vcmp.eq.s32.totalorder %v1018, 1
      %vm1027 = vcmp.eq.s32.totalorder %v1019, 1
      %vm1028 = vcmp.eq.s32.totalorder %v1020, 1
      %vm1029 = vcmp.eq.s32.totalorder %v1021, 1
      %vm1030 = vcmp.eq.s32.totalorder %v1022, 1
      %v1031 = vsel %vm1023, %v901, 0.0
      %v1032 = vsel %vm1024, %v880, 0.0
      %v1033 = vsel %vm1025, %v882, 0.0
      %v1034 = vsel %vm1026, %v884, 0.0
      %v1035 = vsel %vm1027, %v886, 0.0
      %v1036 = vsel %vm1028, %v888, 0.0
      %v1037 = vsel %vm1029, %v890, 0.0
      %v1038 = vsel %vm1030, %v892, 0.0
      %1047 = vrot.lane.b32.xlu0 %v1031, 40
      %v1048 = vpop.permute.xlu0 %1047
      %1049 = vrot.lane.b32.xlu0 %v1032, 40
      %v1050 = vpop.permute.xlu0 %1049
      %1051 = vrot.lane.b32.xlu0 %v1033, 40
      %v1052 = vpop.permute.xlu0 %1051
      %1053 = vrot.lane.b32.xlu0 %v1034, 40
      %v1054 = vpop.permute.xlu0 %1053
      %1055 = vrot.lane.b32.xlu0 %v1035, 40
      %v1056 = vpop.permute.xlu0 %1055
      %1057 = vrot.lane.b32.xlu0 %v1036, 40
      %v1058 = vpop.permute.xlu0 %1057
      %1059 = vrot.lane.b32.xlu0 %v1037, 40
      %v1060 = vpop.permute.xlu0 %1059
      %1061 = vrot.lane.b32.xlu0 %v1038, 40
      %v1062 = vpop.permute.xlu0 %1061
      %v1071 = vadd.f32 %v823, %v1048
      %v1072 = vadd.f32 %v826, %v1050
      %v1073 = vadd.f32 %v831, %v1052
      %v1074 = vadd.f32 %v834, %v1054
      %v1075 = vadd.f32 %v839, %v1056
      %v1076 = vadd.f32 %v842, %v1058
      %v1077 = vadd.f32 %v847, %v1060
      %v1078 = vadd.f32 %v850, %v1062
      %1079 = vrot.lane.b32.xlu0 %v823, 24
      %v1080 = vpop.permute.xlu0 %1079
      %1081 = vrot.lane.b32.xlu0 %v826, 24
      %v1082 = vpop.permute.xlu0 %1081
      %1083 = vrot.lane.b32.xlu0 %v831, 24
      %v1084 = vpop.permute.xlu0 %1083
      %1085 = vrot.lane.b32.xlu0 %v834, 24
      %v1086 = vpop.permute.xlu0 %1085
      %1087 = vrot.lane.b32.xlu0 %v839, 24
      %v1088 = vpop.permute.xlu0 %1087
      %1089 = vrot.lane.b32.xlu0 %v842, 24
      %v1090 = vpop.permute.xlu0 %1089
      %1091 = vrot.lane.b32.xlu0 %v847, 24
      %v1092 = vpop.permute.xlu0 %1091
      %vm1100 = vcmp.ge.s32.totalorder %v903, 8
      %vm1101 = vcmp.ge.s32.totalorder %v904, 8
      %vm1102 = vcmp.ge.s32.totalorder %v905, 8
      %vm1103 = vcmp.ge.s32.totalorder %v906, 8
      %vm1104 = vcmp.ge.s32.totalorder %v907, 8
      %vm1105 = vcmp.ge.s32.totalorder %v908, 8
      %vm1106 = vcmp.ge.s32.totalorder %v909, 8
      %vm1107 = vcmp.ge.s32.totalorder %v910, 8
      %v1108 = vsel %vm1101, 1, 0
      %v1109 = vsel %vm1102, 1, 0
      %v1110 = vsel %vm1103, 1, 0
      %v1111 = vsel %vm1104, 1, 0
      %v1112 = vsel %vm1105, 1, 0
      %v1113 = vsel %vm1106, 1, 0
      %v1114 = vsel %vm1107, 1, 0
      %vm1115 = vcmp.eq.s32.totalorder %v1108, 1
      %vm1116 = vcmp.eq.s32.totalorder %v1109, 1
      %vm1117 = vcmp.eq.s32.totalorder %v1110, 1
      %vm1118 = vcmp.eq.s32.totalorder %v1111, 1
      %vm1119 = vcmp.eq.s32.totalorder %v1112, 1
      %vm1120 = vcmp.eq.s32.totalorder %v1113, 1
      %vm1121 = vcmp.eq.s32.totalorder %v1114, 1
      %v1122 = vsel %vm1115, %v1080, 0.0
      %v1123 = vsel %vm1116, %v1082, 0.0
      %v1124 = vsel %vm1117, %v1084, 0.0
      %v1125 = vsel %vm1118, %v1086, 0.0
      %v1126 = vsel %vm1119, %v1088, 0.0
      %v1127 = vsel %vm1120, %v1090, 0.0
      %v1128 = vsel %vm1121, %v1092, 0.0
      %1137 = vrot.lane.b32.xlu0 0.0, 40
      %v1138 = vpop.permute.xlu0 %1137
      %1139 = vrot.lane.b32.xlu0 %v1122, 40
      %v1140 = vpop.permute.xlu0 %1139
      %1141 = vrot.lane.b32.xlu0 %v1123, 40
      %v1142 = vpop.permute.xlu0 %1141
      %1143 = vrot.lane.b32.xlu0 %v1124, 40
      %v1144 = vpop.permute.xlu0 %1143
      %1145 = vrot.lane.b32.xlu0 %v1125, 40
      %v1146 = vpop.permute.xlu0 %1145
      %1147 = vrot.lane.b32.xlu0 %v1126, 40
      %v1148 = vpop.permute.xlu0 %1147
      %1149 = vrot.lane.b32.xlu0 %v1127, 40
      %v1150 = vpop.permute.xlu0 %1149
      %1151 = vrot.lane.b32.xlu0 %v1128, 40
      %v1152 = vpop.permute.xlu0 %1151
      %v1161 = vadd.f32 %v1071, %v1138
      %v1162 = vadd.f32 %v1072, %v1140
      %v1163 = vadd.f32 %v1073, %v1142
      %v1164 = vadd.f32 %v1074, %v1144
      %v1165 = vadd.f32 %v1075, %v1146
      %v1166 = vadd.f32 %v1076, %v1148
      %v1167 = vadd.f32 %v1077, %v1150
      %v1168 = vadd.f32 %v1078, %v1152
      %1169 = vrot.lane.b32.xlu0 %v862, 8
      %v1170 = vpop.permute.xlu0 %1169
      %1171 = vrot.lane.b32.xlu0 %v864, 8
      %v1172 = vpop.permute.xlu0 %1171
      %1173 = vrot.lane.b32.xlu0 %v866, 8
      %v1174 = vpop.permute.xlu0 %1173
      %1175 = vrot.lane.b32.xlu0 %v868, 8
      %v1176 = vpop.permute.xlu0 %1175
      %1177 = vrot.lane.b32.xlu0 %v870, 8
      %v1178 = vpop.permute.xlu0 %1177
      %1179 = vrot.lane.b32.xlu0 %v872, 8
      %v1180 = vpop.permute.xlu0 %1179
      %1181 = vrot.lane.b32.xlu0 %v874, 8
      %v1182 = vpop.permute.xlu0 %1181
      %v1190 = vsel %vm861, 0.0, %v1170
      %vm1191 = vmand %vm1101, %vm1008
      %vm1192 = vmand %vm1102, %vm1009
      %vm1193 = vmand %vm1103, %vm1010
      %vm1194 = vmand %vm1104, %vm1011
      %vm1195 = vmand %vm1105, %vm1012
      %vm1196 = vmand %vm1106, %vm1013
      %vm1197 = vmand %vm1107, %vm1014
      %v1198 = vsel %vm1191, 1, 0
      %v1199 = vsel %vm1192, 1, 0
      %v1200 = vsel %vm1193, 1, 0
      %v1201 = vsel %vm1194, 1, 0
      %v1202 = vsel %vm1195, 1, 0
      %v1203 = vsel %vm1196, 1, 0
      %v1204 = vsel %vm1197, 1, 0
      %vm1205 = vcmp.eq.s32.totalorder %v1198, 1
      %vm1206 = vcmp.eq.s32.totalorder %v1199, 1
      %vm1207 = vcmp.eq.s32.totalorder %v1200, 1
      %vm1208 = vcmp.eq.s32.totalorder %v1201, 1
      %vm1209 = vcmp.eq.s32.totalorder %v1202, 1
      %vm1210 = vcmp.eq.s32.totalorder %v1203, 1
      %vm1211 = vcmp.eq.s32.totalorder %v1204, 1
      %v1212 = vsel %vm1205, %v1190, 0.0
      %v1213 = vsel %vm1206, %v1172, 0.0
      %v1214 = vsel %vm1207, %v1174, 0.0
      %v1215 = vsel %vm1208, %v1176, 0.0
      %v1216 = vsel %vm1209, %v1178, 0.0
      %v1217 = vsel %vm1210, %v1180, 0.0
      %v1218 = vsel %vm1211, %v1182, 0.0
      %1226 = vrot.lane.b32.xlu0 %v1212, 40
      %v1227 = vpop.permute.xlu0 %1226
      %1228 = vrot.lane.b32.xlu0 %v1213, 40
      %v1229 = vpop.permute.xlu0 %1228
      %1230 = vrot.lane.b32.xlu0 %v1214, 40
      %v1231 = vpop.permute.xlu0 %1230
      %1232 = vrot.lane.b32.xlu0 %v1215, 40
      %v1233 = vpop.permute.xlu0 %1232
      %1234 = vrot.lane.b32.xlu0 %v1216, 40
      %v1235 = vpop.permute.xlu0 %1234
      %1236 = vrot.lane.b32.xlu0 %v1217, 40
      %v1237 = vpop.permute.xlu0 %1236
      %1238 = vrot.lane.b32.xlu0 %v1218, 40
      %v1239 = vpop.permute.xlu0 %1238
      %v1247 = vadd.f32 %v1161, %v1138
      %v1248 = vadd.f32 %v1162, %v1227
      %v1249 = vadd.f32 %v1163, %v1229
      %v1250 = vadd.f32 %v1164, %v1231
      %v1251 = vadd.f32 %v1165, %v1233
      %v1252 = vadd.f32 %v1166, %v1235
      %v1253 = vadd.f32 %v1167, %v1237
      %v1254 = vadd.f32 %v1168, %v1239
      %v1255 = vtanh.pop %v1247
      %v1256 = vtanh.pop %v1248
      %v1257 = vtanh.pop %v1249
      %v1258 = vtanh.pop %v1250
      %v1259 = vtanh.pop %v1251
      %v1260 = vtanh.pop %v1252
      %v1261 = vtanh.pop %v1253
      %v1262 = vtanh.pop %v1254
      %1271 = vrot.lane.b32.xlu0 %v1255, 88
      %v1272 = vpop.permute.xlu0 %1271
      %1273 = vrot.lane.b32.xlu0 %v1256, 88
      %v1274 = vpop.permute.xlu0 %1273
      %1275 = vrot.lane.b32.xlu0 %v1257, 88
      %v1276 = vpop.permute.xlu0 %1275
      %1277 = vrot.lane.b32.xlu0 %v1258, 88
      %v1278 = vpop.permute.xlu0 %1277
      %1279 = vrot.lane.b32.xlu0 %v1259, 88
      %v1280 = vpop.permute.xlu0 %1279
      %1281 = vrot.lane.b32.xlu0 %v1260, 88
      %v1282 = vpop.permute.xlu0 %1281
      %1283 = vrot.lane.b32.xlu0 %v1261, 88
      %v1284 = vpop.permute.xlu0 %1283
      %1285 = vrot.lane.b32.xlu0 %v1262, 88
      %v1286 = vpop.permute.xlu0 %1285
      %vm1295 = vcmask 64512
      %1296 = vst.msk [vmem:[%s197] sm:$0xff] %vm1295, %v1272
      %1297 = vst.msk [vmem:[%s197 + $0x10] sm:$0xff] %vm1295, %v1274
      %1298 = vst.msk [vmem:[%s197 + $0x20] sm:$0xff] %vm1295, %v1276
      %1299 = vst.msk [vmem:[%s197 + $0x30] sm:$0xff] %vm1295, %v1278
      %1300 = vst.msk [vmem:[%s197 + $0x40] sm:$0xff] %vm1295, %v1280
      %1301 = vst.msk [vmem:[%s197 + $0x50] sm:$0xff] %vm1295, %v1282
      %1302 = vst.msk [vmem:[%s197 + $0x60] sm:$0xff] %vm1295, %v1284
      %1303 = vst.msk [vmem:[%s197 + $0x70] sm:$0xff] %vm1295, %v1286
      %vm1304 = vcmask 1046528
      %v1305 = vrot.slane %v823, 1
      %v1306 = vrot.slane %v826, 1
      %v1307 = vsel %vm1304, %v1305, %v1306
      %v1308 = vrot.slane %v831, 1
      %v1309 = vsel %vm1304, %v1306, %v1308
      %v1310 = vrot.slane %v834, 1
      %v1311 = vsel %vm1304, %v1308, %v1310
      %v1312 = vrot.slane %v839, 1
      %v1313 = vsel %vm1304, %v1310, %v1312
      %v1314 = vrot.slane %v842, 1
      %v1315 = vsel %vm1304, %v1312, %v1314
      %v1316 = vrot.slane %v847, 1
      %v1317 = vsel %vm1304, %v1314, %v1316
      %v1318 = vrot.slane %v850, 1
      %v1319 = vsel %vm1304, %v1316, %v1318
      %v1328 = vsel %vm1304, %v1318, 0.0
      %vm1329 = vcmp.lt.s32.totalorder %v999, 7
      %vm1330 = vcmp.lt.s32.totalorder %v1000, 7
      %vm1331 = vcmp.lt.s32.totalorder %v1001, 7
      %vm1332 = vcmp.lt.s32.totalorder %v1002, 7
      %vm1333 = vcmp.lt.s32.totalorder %v1003, 7
      %vm1334 = vcmp.lt.s32.totalorder %v1004, 7
      %vm1335 = vcmp.lt.s32.totalorder %v1005, 7
      %vm1336 = vcmp.lt.s32.totalorder %v1006, 7
      %v1337 = vsel %vm1329, 1, 0
      %v1338 = vsel %vm1330, 1, 0
      %v1339 = vsel %vm1331, 1, 0
      %v1340 = vsel %vm1332, 1, 0
      %v1341 = vsel %vm1333, 1, 0
      %v1342 = vsel %vm1334, 1, 0
      %v1343 = vsel %vm1335, 1, 0
      %v1344 = vsel %vm1336, 1, 0
      %vm1345 = vcmp.eq.s32.totalorder %v1337, 1
      %vm1346 = vcmp.eq.s32.totalorder %v1338, 1
      %vm1347 = vcmp.eq.s32.totalorder %v1339, 1
      %vm1348 = vcmp.eq.s32.totalorder %v1340, 1
      %vm1349 = vcmp.eq.s32.totalorder %v1341, 1
      %vm1350 = vcmp.eq.s32.totalorder %v1342, 1
      %vm1351 = vcmp.eq.s32.totalorder %v1343, 1
      %vm1352 = vcmp.eq.s32.totalorder %v1344, 1
      %v1353 = vsel %vm1345, %v1307, 0.0
      %v1354 = vsel %vm1346, %v1309, 0.0
      %v1355 = vsel %vm1347, %v1311, 0.0
      %v1356 = vsel %vm1348, %v1313, 0.0
      %v1357 = vsel %vm1349, %v1315, 0.0
      %v1358 = vsel %vm1350, %v1317, 0.0
      %v1359 = vsel %vm1351, %v1319, 0.0
      %v1360 = vsel %vm1352, %v1328, 0.0
      %1361 = vrot.lane.b32.xlu0 %v823, 112
      %v1362 = vpop.permute.xlu0 %1361
      %1363 = vrot.lane.b32.xlu0 %v826, 112
      %v1364 = vpop.permute.xlu0 %1363
      %1365 = vrot.lane.b32.xlu0 %v831, 112
      %v1366 = vpop.permute.xlu0 %1365
      %1367 = vrot.lane.b32.xlu0 %v834, 112
      %v1368 = vpop.permute.xlu0 %1367
      %1369 = vrot.lane.b32.xlu0 %v839, 112
      %v1370 = vpop.permute.xlu0 %1369
      %1371 = vrot.lane.b32.xlu0 %v842, 112
      %v1372 = vpop.permute.xlu0 %1371
      %1373 = vrot.lane.b32.xlu0 %v847, 112
      %v1374 = vpop.permute.xlu0 %1373
      %1375 = vrot.lane.b32.xlu0 %v850, 112
      %v1376 = vpop.permute.xlu0 %1375
      %v1385 = vadd.f32 %v1353, %v1362
      %v1386 = vadd.f32 %v1354, %v1364
      %v1387 = vadd.f32 %v1355, %v1366
      %v1388 = vadd.f32 %v1356, %v1368
      %v1389 = vadd.f32 %v1357, %v1370
      %v1390 = vadd.f32 %v1358, %v1372
      %v1391 = vadd.f32 %v1359, %v1374
      %v1392 = vadd.f32 %v1360, %v1376
      %1393 = vrot.lane.b32.xlu0 %v1305, 32
      %v1394 = vpop.permute.xlu0 %1393
      %1395 = vrot.lane.b32.xlu0 %v1307, 32
      %v1396 = vpop.permute.xlu0 %1395
      %1397 = vrot.lane.b32.xlu0 %v1309, 32
      %v1398 = vpop.permute.xlu0 %1397
      %1399 = vrot.lane.b32.xlu0 %v1311, 32
      %v1400 = vpop.permute.xlu0 %1399
      %1401 = vrot.lane.b32.xlu0 %v1313, 32
      %v1402 = vpop.permute.xlu0 %1401
      %1403 = vrot.lane.b32.xlu0 %v1315, 32
      %v1404 = vpop.permute.xlu0 %1403
      %1405 = vrot.lane.b32.xlu0 %v1317, 32
      %v1406 = vpop.permute.xlu0 %1405
      %1407 = vrot.lane.b32.xlu0 %v1319, 32
      %v1408 = vpop.permute.xlu0 %1407
      %v1417 = vsel %vm1304, 0.0, %v1394
      %vm1418 = vmand %vm1100, %vm1329
      %vm1419 = vmand %vm1101, %vm1330
      %vm1420 = vmand %vm1102, %vm1331
      %vm1421 = vmand %vm1103, %vm1332
      %vm1422 = vmand %vm1104, %vm1333
      %vm1423 = vmand %vm1105, %vm1334
      %vm1424 = vmand %vm1106, %vm1335
      %vm1425 = vmand %vm1107, %vm1336
      %v1426 = vsel %vm1418, 1, 0
      %v1427 = vsel %vm1419, 1, 0
      %v1428 = vsel %vm1420, 1, 0
      %v1429 = vsel %vm1421, 1, 0
      %v1430 = vsel %vm1422, 1, 0
      %v1431 = vsel %vm1423, 1, 0
      %v1432 = vsel %vm1424, 1, 0
      %v1433 = vsel %vm1425, 1, 0
      %vm1434 = vcmp.eq.s32.totalorder %v1426, 1
      %vm1435 = vcmp.eq.s32.totalorder %v1427, 1
      %vm1436 = vcmp.eq.s32.totalorder %v1428, 1
      %vm1437 = vcmp.eq.s32.totalorder %v1429, 1
      %vm1438 = vcmp.eq.s32.totalorder %v1430, 1
      %vm1439 = vcmp.eq.s32.totalorder %v1431, 1
      %vm1440 = vcmp.eq.s32.totalorder %v1432, 1
      %vm1441 = vcmp.eq.s32.totalorder %v1433, 1
      %v1442 = vsel %vm1434, %v1417, 0.0
      %v1443 = vsel %vm1435, %v1396, 0.0
      %v1444 = vsel %vm1436, %v1398, 0.0
      %v1445 = vsel %vm1437, %v1400, 0.0
      %v1446 = vsel %vm1438, %v1402, 0.0
      %v1447 = vsel %vm1439, %v1404, 0.0
      %v1448 = vsel %vm1440, %v1406, 0.0
      %v1449 = vsel %vm1441, %v1408, 0.0
      %1458 = vrot.lane.b32.xlu0 %v1442, 32
      %v1459 = vpop.permute.xlu0 %1458
      %1460 = vrot.lane.b32.xlu0 %v1443, 32
      %v1461 = vpop.permute.xlu0 %1460
      %1462 = vrot.lane.b32.xlu0 %v1444, 32
      %v1463 = vpop.permute.xlu0 %1462
      %1464 = vrot.lane.b32.xlu0 %v1445, 32
      %v1465 = vpop.permute.xlu0 %1464
      %1466 = vrot.lane.b32.xlu0 %v1446, 32
      %v1467 = vpop.permute.xlu0 %1466
      %1468 = vrot.lane.b32.xlu0 %v1447, 32
      %v1469 = vpop.permute.xlu0 %1468
      %1470 = vrot.lane.b32.xlu0 %v1448, 32
      %v1471 = vpop.permute.xlu0 %1470
      %1472 = vrot.lane.b32.xlu0 %v1449, 32
      %v1473 = vpop.permute.xlu0 %1472
      %v1482 = vadd.f32 %v1385, %v1459
      %v1483 = vadd.f32 %v1386, %v1461
      %v1484 = vadd.f32 %v1387, %v1463
      %v1485 = vadd.f32 %v1388, %v1465
      %v1486 = vadd.f32 %v1389, %v1467
      %v1487 = vadd.f32 %v1390, %v1469
      %v1488 = vadd.f32 %v1391, %v1471
      %v1489 = vadd.f32 %v1392, %v1473
      %1490 = vrot.lane.b32.xlu0 %v823, 16
      %v1491 = vpop.permute.xlu0 %1490
      %1492 = vrot.lane.b32.xlu0 %v826, 16
      %v1493 = vpop.permute.xlu0 %1492
      %1494 = vrot.lane.b32.xlu0 %v831, 16
      %v1495 = vpop.permute.xlu0 %1494
      %1496 = vrot.lane.b32.xlu0 %v834, 16
      %v1497 = vpop.permute.xlu0 %1496
      %1498 = vrot.lane.b32.xlu0 %v839, 16
      %v1499 = vpop.permute.xlu0 %1498
      %1500 = vrot.lane.b32.xlu0 %v842, 16
      %v1501 = vpop.permute.xlu0 %1500
      %1502 = vrot.lane.b32.xlu0 %v847, 16
      %v1503 = vpop.permute.xlu0 %1502
      %v1511 = vsel %vm1115, %v1491, 0.0
      %v1512 = vsel %vm1116, %v1493, 0.0
      %v1513 = vsel %vm1117, %v1495, 0.0
      %v1514 = vsel %vm1118, %v1497, 0.0
      %v1515 = vsel %vm1119, %v1499, 0.0
      %v1516 = vsel %vm1120, %v1501, 0.0
      %v1517 = vsel %vm1121, %v1503, 0.0
      %1525 = vrot.lane.b32.xlu0 0.0, 32
      %v1526 = vpop.permute.xlu0 %1525
      %1527 = vrot.lane.b32.xlu0 %v1511, 32
      %v1528 = vpop.permute.xlu0 %1527
      %1529 = vrot.lane.b32.xlu0 %v1512, 32
      %v1530 = vpop.permute.xlu0 %1529
      %1531 = vrot.lane.b32.xlu0 %v1513, 32
      %v1532 = vpop.permute.xlu0 %1531
      %1533 = vrot.lane.b32.xlu0 %v1514, 32
      %v1534 = vpop.permute.xlu0 %1533
      %1535 = vrot.lane.b32.xlu0 %v1515, 32
      %v1536 = vpop.permute.xlu0 %1535
      %1537 = vrot.lane.b32.xlu0 %v1516, 32
      %v1538 = vpop.permute.xlu0 %1537
      %1539 = vrot.lane.b32.xlu0 %v1517, 32
      %v1540 = vpop.permute.xlu0 %1539
      %v1549 = vadd.f32 %v1482, %v1526
      %v1550 = vadd.f32 %v1483, %v1528
      %v1551 = vadd.f32 %v1484, %v1530
      %v1552 = vadd.f32 %v1485, %v1532
      %v1553 = vadd.f32 %v1486, %v1534
      %v1554 = vadd.f32 %v1487, %v1536
      %v1555 = vadd.f32 %v1488, %v1538
      %v1556 = vadd.f32 %v1489, %v1540
      %v1557 = vtanh.pop %v1549
      %v1558 = vtanh.pop %v1550
      %v1559 = vtanh.pop %v1551
      %v1560 = vtanh.pop %v1552
      %v1561 = vtanh.pop %v1553
      %v1562 = vtanh.pop %v1554
      %v1563 = vtanh.pop %v1555
      %v1564 = vtanh.pop %v1556
      %1573 = vrot.lane.b32.xlu0 %v1557, 104
      %v1574 = vpop.permute.xlu0 %1573
      %1575 = vrot.lane.b32.xlu0 %v1558, 104
      %v1576 = vpop.permute.xlu0 %1575
      %1577 = vrot.lane.b32.xlu0 %v1559, 104
      %v1578 = vpop.permute.xlu0 %1577
      %1579 = vrot.lane.b32.xlu0 %v1560, 104
      %v1580 = vpop.permute.xlu0 %1579
      %1581 = vrot.lane.b32.xlu0 %v1561, 104
      %v1582 = vpop.permute.xlu0 %1581
      %1583 = vrot.lane.b32.xlu0 %v1562, 104
      %v1584 = vpop.permute.xlu0 %1583
      %1585 = vrot.lane.b32.xlu0 %v1563, 104
      %v1586 = vpop.permute.xlu0 %1585
      %1587 = vrot.lane.b32.xlu0 %v1564, 104
      %v1588 = vpop.permute.xlu0 %1587
      %vm1597 = vcmask 130112
      %1598 = vst.msk [vmem:[%s197] sm:$0xff] %vm1597, %v1574
      %1599 = vst.msk [vmem:[%s197 + $0x10] sm:$0xff] %vm1597, %v1576
      %1600 = vst.msk [vmem:[%s197 + $0x20] sm:$0xff] %vm1597, %v1578
      %1601 = vst.msk [vmem:[%s197 + $0x30] sm:$0xff] %vm1597, %v1580
      %1602 = vst.msk [vmem:[%s197 + $0x40] sm:$0xff] %vm1597, %v1582
      %1603 = vst.msk [vmem:[%s197 + $0x50] sm:$0xff] %vm1597, %v1584
      %1604 = vst.msk [vmem:[%s197 + $0x60] sm:$0xff] %vm1597, %v1586
      %1605 = vst.msk [vmem:[%s197 + $0x70] sm:$0xff] %vm1597, %v1588
      %vm1606 = vcmp.lt.s32.totalorder %v903, 56
      %vm1607 = vcmp.lt.s32.totalorder %v904, 56
      %vm1608 = vcmp.lt.s32.totalorder %v905, 56
      %vm1609 = vcmp.lt.s32.totalorder %v906, 56
      %vm1610 = vcmp.lt.s32.totalorder %v907, 56
      %vm1611 = vcmp.lt.s32.totalorder %v908, 56
      %vm1612 = vcmp.lt.s32.totalorder %v909, 56
      %vm1613 = vcmp.lt.s32.totalorder %v910, 56
      %v1614 = vsel %vm1606, 1, 0
      %v1615 = vsel %vm1607, 1, 0
      %v1616 = vsel %vm1608, 1, 0
      %v1617 = vsel %vm1609, 1, 0
      %v1618 = vsel %vm1610, 1, 0
      %v1619 = vsel %vm1611, 1, 0
      %v1620 = vsel %vm1612, 1, 0
      %vm1621 = vcmp.eq.s32.totalorder %v1614, 1
      %vm1622 = vcmp.eq.s32.totalorder %v1615, 1
      %vm1623 = vcmp.eq.s32.totalorder %v1616, 1
      %vm1624 = vcmp.eq.s32.totalorder %v1617, 1
      %vm1625 = vcmp.eq.s32.totalorder %v1618, 1
      %vm1626 = vcmp.eq.s32.totalorder %v1619, 1
      %vm1627 = vcmp.eq.s32.totalorder %v1620, 1
      %v1628 = vsel %vm1621, %v826, 0.0
      %v1629 = vsel %vm1622, %v831, 0.0
      %v1630 = vsel %vm1623, %v834, 0.0
      %v1631 = vsel %vm1624, %v839, 0.0
      %v1632 = vsel %vm1625, %v842, 0.0
      %v1633 = vsel %vm1626, %v847, 0.0
      %v1634 = vsel %vm1627, %v850, 0.0
      %v1643 = vsel %vm861, %v875, 0.0
      %vm1644 = vmand %vm1606, %vm1007
      %vm1645 = vmand %vm1607, %vm1008
      %vm1646 = vmand %vm1608, %vm1009
      %vm1647 = vmand %vm1609, %vm1010
      %vm1648 = vmand %vm1610, %vm1011
      %vm1649 = vmand %vm1611, %vm1012
      %vm1650 = vmand %vm1612, %vm1013
      %vm1651 = vmand %vm1613, %vm1014
      %v1652 = vsel %vm1644, 1, 0
      %v1653 = vsel %vm1645, 1, 0
      %v1654 = vsel %vm1646, 1, 0
      %v1655 = vsel %vm1647, 1, 0
      %v1656 = vsel %vm1648, 1, 0
      %v1657 = vsel %vm1649, 1, 0
      %v1658 = vsel %vm1650, 1, 0
      %v1659 = vsel %vm1651, 1, 0
      %vm1660 = vcmp.eq.s32.totalorder %v1652, 1
      %vm1661 = vcmp.eq.s32.totalorder %v1653, 1
      %vm1662 = vcmp.eq.s32.totalorder %v1654, 1
      %vm1663 = vcmp.eq.s32.totalorder %v1655, 1
      %vm1664 = vcmp.eq.s32.totalorder %v1656, 1
      %vm1665 = vcmp.eq.s32.totalorder %v1657, 1
      %vm1666 = vcmp.eq.s32.totalorder %v1658, 1
      %vm1667 = vcmp.eq.s32.totalorder %v1659, 1
      %v1668 = vsel %vm1660, %v864, 0.0
      %v1669 = vsel %vm1661, %v866, 0.0
      %v1670 = vsel %vm1662, %v868, 0.0
      %v1671 = vsel %vm1663, %v870, 0.0
      %v1672 = vsel %vm1664, %v872, 0.0
      %v1673 = vsel %vm1665, %v874, 0.0
      %v1674 = vsel %vm1666, %v876, 0.0
      %v1675 = vsel %vm1667, %v1643, 0.0
      %1684 = vrot.lane.b32.xlu0 %v1668, 112
      %v1685 = vpop.permute.xlu0 %1684
      %1686 = vrot.lane.b32.xlu0 %v1669, 112
      %v1687 = vpop.permute.xlu0 %1686
      %1688 = vrot.lane.b32.xlu0 %v1670, 112
      %v1689 = vpop.permute.xlu0 %1688
      %1690 = vrot.lane.b32.xlu0 %v1671, 112
      %v1691 = vpop.permute.xlu0 %1690
      %1692 = vrot.lane.b32.xlu0 %v1672, 112
      %v1693 = vpop.permute.xlu0 %1692
      %1694 = vrot.lane.b32.xlu0 %v1673, 112
      %v1695 = vpop.permute.xlu0 %1694
      %1696 = vrot.lane.b32.xlu0 %v1674, 112
      %v1697 = vpop.permute.xlu0 %1696
      %1698 = vrot.lane.b32.xlu0 %v1675, 112
      %v1699 = vpop.permute.xlu0 %1698
      %v1708 = vadd.f32 %v1628, %v1685
      %v1709 = vadd.f32 %v1629, %v1687
      %v1710 = vadd.f32 %v1630, %v1689
      %v1711 = vadd.f32 %v1631, %v1691
      %v1712 = vadd.f32 %v1632, %v1693
      %v1713 = vadd.f32 %v1633, %v1695
      %v1714 = vadd.f32 %v1634, %v1697
      %v1715 = vadd.f32 %v1699, 0.0
      %1716 = vrot.lane.b32.xlu0 %v823, 64
      %v1717 = vpop.permute.xlu0 %1716
      %1718 = vrot.lane.b32.xlu0 %v826, 64
      %v1719 = vpop.permute.xlu0 %1718
      %1720 = vrot.lane.b32.xlu0 %v831, 64
      %v1721 = vpop.permute.xlu0 %1720
      %1722 = vrot.lane.b32.xlu0 %v834, 64
      %v1723 = vpop.permute.xlu0 %1722
      %1724 = vrot.lane.b32.xlu0 %v839, 64
      %v1725 = vpop.permute.xlu0 %1724
      %1726 = vrot.lane.b32.xlu0 %v842, 64
      %v1727 = vpop.permute.xlu0 %1726
      %1728 = vrot.lane.b32.xlu0 %v847, 64
      %v1729 = vpop.permute.xlu0 %1728
      %1730 = vrot.lane.b32.xlu0 %v850, 64
      %v1731 = vpop.permute.xlu0 %1730
      %v1740 = vadd.f32 %v1708, %v1717
      %v1741 = vadd.f32 %v1709, %v1719
      %v1742 = vadd.f32 %v1710, %v1721
      %v1743 = vadd.f32 %v1711, %v1723
      %v1744 = vadd.f32 %v1712, %v1725
      %v1745 = vadd.f32 %v1713, %v1727
      %v1746 = vadd.f32 %v1714, %v1729
      %v1747 = vadd.f32 %v1715, %v1731
      %1748 = vrot.lane.b32.xlu0 %v862, 40
      %v1749 = vpop.permute.xlu0 %1748
      %1750 = vrot.lane.b32.xlu0 %v864, 40
      %v1751 = vpop.permute.xlu0 %1750
      %1752 = vrot.lane.b32.xlu0 %v866, 40
      %v1753 = vpop.permute.xlu0 %1752
      %1754 = vrot.lane.b32.xlu0 %v868, 40
      %v1755 = vpop.permute.xlu0 %1754
      %1756 = vrot.lane.b32.xlu0 %v870, 40
      %v1757 = vpop.permute.xlu0 %1756
      %1758 = vrot.lane.b32.xlu0 %v872, 40
      %v1759 = vpop.permute.xlu0 %1758
      %1760 = vrot.lane.b32.xlu0 %v874, 40
      %v1761 = vpop.permute.xlu0 %1760
      %1762 = vrot.lane.b32.xlu0 %v876, 40
      %v1763 = vpop.permute.xlu0 %1762
      %v1772 = vsel %vm861, 0.0, %v1749
      %v1773 = vsel %vm1023, %v1772, 0.0
      %v1774 = vsel %vm1024, %v1751, 0.0
      %v1775 = vsel %vm1025, %v1753, 0.0
      %v1776 = vsel %vm1026, %v1755, 0.0
      %v1777 = vsel %vm1027, %v1757, 0.0
      %v1778 = vsel %vm1028, %v1759, 0.0
      %v1779 = vsel %vm1029, %v1761, 0.0
      %v1780 = vsel %vm1030, %v1763, 0.0
      %1789 = vrot.lane.b32.xlu0 %v1773, 8
      %v1790 = vpop.permute.xlu0 %1789
      %1791 = vrot.lane.b32.xlu0 %v1774, 8
      %v1792 = vpop.permute.xlu0 %1791
      %1793 = vrot.lane.b32.xlu0 %v1775, 8
      %v1794 = vpop.permute.xlu0 %1793
      %1795 = vrot.lane.b32.xlu0 %v1776, 8
      %v1796 = vpop.permute.xlu0 %1795
      %1797 = vrot.lane.b32.xlu0 %v1777, 8
      %v1798 = vpop.permute.xlu0 %1797
      %1799 = vrot.lane.b32.xlu0 %v1778, 8
      %v1800 = vpop.permute.xlu0 %1799
      %1801 = vrot.lane.b32.xlu0 %v1779, 8
      %v1802 = vpop.permute.xlu0 %1801
      %1803 = vrot.lane.b32.xlu0 %v1780, 8
      %v1804 = vpop.permute.xlu0 %1803
      %v1813 = vadd.f32 %v1740, %v1790
      %v1814 = vadd.f32 %v1741, %v1792
      %v1815 = vadd.f32 %v1742, %v1794
      %v1816 = vadd.f32 %v1743, %v1796
      %v1817 = vadd.f32 %v1744, %v1798
      %v1818 = vadd.f32 %v1745, %v1800
      %v1819 = vadd.f32 %v1746, %v1802
      %v1820 = vadd.f32 %v1747, %v1804
      %v1821 = vtanh.pop %v1813
      %v1822 = vtanh.pop %v1814
      %v1823 = vtanh.pop %v1815
      %v1824 = vtanh.pop %v1816
      %v1825 = vtanh.pop %v1817
      %v1826 = vtanh.pop %v1818
      %v1827 = vtanh.pop %v1819
      %v1828 = vtanh.pop %v1820
      %1837 = vrot.lane.b32.xlu0 %v1821, 120
      %v1838 = vpop.permute.xlu0 %1837
      %1839 = vrot.lane.b32.xlu0 %v1822, 120
      %v1840 = vpop.permute.xlu0 %1839
      %1841 = vrot.lane.b32.xlu0 %v1823, 120
      %v1842 = vpop.permute.xlu0 %1841
      %1843 = vrot.lane.b32.xlu0 %v1824, 120
      %v1844 = vpop.permute.xlu0 %1843
      %1845 = vrot.lane.b32.xlu0 %v1825, 120
      %v1846 = vpop.permute.xlu0 %1845
      %1847 = vrot.lane.b32.xlu0 %v1826, 120
      %v1848 = vpop.permute.xlu0 %1847
      %1849 = vrot.lane.b32.xlu0 %v1827, 120
      %v1850 = vpop.permute.xlu0 %1849
      %1851 = vrot.lane.b32.xlu0 %v1828, 120
      %v1852 = vpop.permute.xlu0 %1851
      %s1861 = scalar_lea.vmem %s197, 8
      %1862 = vst.msk [vmem:[%s1861] sm:$0xff] %vm1295, %v1838
      %1863 = vst.msk [vmem:[%s1861 + $0x10] sm:$0xff] %vm1295, %v1840
      %1864 = vst.msk [vmem:[%s1861 + $0x20] sm:$0xff] %vm1295, %v1842
      %1865 = vst.msk [vmem:[%s1861 + $0x30] sm:$0xff] %vm1295, %v1844
      %1866 = vst.msk [vmem:[%s1861 + $0x40] sm:$0xff] %vm1295, %v1846
      %1867 = vst.msk [vmem:[%s1861 + $0x50] sm:$0xff] %vm1295, %v1848
      %1868 = vst.msk [vmem:[%s1861 + $0x60] sm:$0xff] %vm1295, %v1850
      %1869 = vst.msk [vmem:[%s1861 + $0x70] sm:$0xff] %vm1295, %v1852
      %vm1870 = vmand %vm1606, %vm1329
      %vm1871 = vmand %vm1607, %vm1330
      %vm1872 = vmand %vm1608, %vm1331
      %vm1873 = vmand %vm1609, %vm1332
      %vm1874 = vmand %vm1610, %vm1333
      %vm1875 = vmand %vm1611, %vm1334
      %vm1876 = vmand %vm1612, %vm1335
      %v1877 = vsel %vm1870, 1, 0
      %v1878 = vsel %vm1871, 1, 0
      %v1879 = vsel %vm1872, 1, 0
      %v1880 = vsel %vm1873, 1, 0
      %v1881 = vsel %vm1874, 1, 0
      %v1882 = vsel %vm1875, 1, 0
      %v1883 = vsel %vm1876, 1, 0
      %vm1884 = vcmp.eq.s32.totalorder %v1877, 1
      %vm1885 = vcmp.eq.s32.totalorder %v1878, 1
      %vm1886 = vcmp.eq.s32.totalorder %v1879, 1
      %vm1887 = vcmp.eq.s32.totalorder %v1880, 1
      %vm1888 = vcmp.eq.s32.totalorder %v1881, 1
      %vm1889 = vcmp.eq.s32.totalorder %v1882, 1
      %vm1890 = vcmp.eq.s32.totalorder %v1883, 1
      %v1891 = vsel %vm1884, %v1309, 0.0
      %v1892 = vsel %vm1885, %v1311, 0.0
      %v1893 = vsel %vm1886, %v1313, 0.0
      %v1894 = vsel %vm1887, %v1315, 0.0
      %v1895 = vsel %vm1888, %v1317, 0.0
      %v1896 = vsel %vm1889, %v1319, 0.0
      %v1897 = vsel %vm1890, %v1328, 0.0
      %1905 = vrot.lane.b32.xlu0 %v1628, 112
      %v1906 = vpop.permute.xlu0 %1905
      %1907 = vrot.lane.b32.xlu0 %v1629, 112
      %v1908 = vpop.permute.xlu0 %1907
      %1909 = vrot.lane.b32.xlu0 %v1630, 112
      %v1910 = vpop.permute.xlu0 %1909
      %1911 = vrot.lane.b32.xlu0 %v1631, 112
      %v1912 = vpop.permute.xlu0 %1911
      %1913 = vrot.lane.b32.xlu0 %v1632, 112
      %v1914 = vpop.permute.xlu0 %1913
      %1915 = vrot.lane.b32.xlu0 %v1633, 112
      %v1916 = vpop.permute.xlu0 %1915
      %1917 = vrot.lane.b32.xlu0 %v1634, 112
      %v1918 = vpop.permute.xlu0 %1917
      %1919 = vrot.lane.b32.xlu0 0.0, 112
      %v1920 = vpop.permute.xlu0 %1919
      %v1929 = vadd.f32 %v1891, %v1906
      %v1930 = vadd.f32 %v1892, %v1908
      %v1931 = vadd.f32 %v1893, %v1910
      %v1932 = vadd.f32 %v1894, %v1912
      %v1933 = vadd.f32 %v1895, %v1914
      %v1934 = vadd.f32 %v1896, %v1916
      %v1935 = vadd.f32 %v1897, %v1918
      %v1936 = vadd.f32 %v1920, 0.0
      %1945 = vrot.lane.b32.xlu0 %v1353, 64
      %v1946 = vpop.permute.xlu0 %1945
      %1947 = vrot.lane.b32.xlu0 %v1354, 64
      %v1948 = vpop.permute.xlu0 %1947
      %1949 = vrot.lane.b32.xlu0 %v1355, 64
      %v1950 = vpop.permute.xlu0 %1949
      %1951 = vrot.lane.b32.xlu0 %v1356, 64
      %v1952 = vpop.permute.xlu0 %1951
      %1953 = vrot.lane.b32.xlu0 %v1357, 64
      %v1954 = vpop.permute.xlu0 %1953
      %1955 = vrot.lane.b32.xlu0 %v1358, 64
      %v1956 = vpop.permute.xlu0 %1955
      %1957 = vrot.lane.b32.xlu0 %v1359, 64
      %v1958 = vpop.permute.xlu0 %1957
      %1959 = vrot.lane.b32.xlu0 %v1360, 64
      %v1960 = vpop.permute.xlu0 %1959
      %v1969 = vadd.f32 %v1929, %v1946
      %v1970 = vadd.f32 %v1930, %v1948
      %v1971 = vadd.f32 %v1931, %v1950
      %v1972 = vadd.f32 %v1932, %v1952
      %v1973 = vadd.f32 %v1933, %v1954
      %v1974 = vadd.f32 %v1934, %v1956
      %v1975 = vadd.f32 %v1935, %v1958
      %v1976 = vadd.f32 %v1936, %v1960
      %1977 = vrot.lane.b32.xlu0 %v823, 48
      %v1978 = vpop.permute.xlu0 %1977
      %1979 = vrot.lane.b32.xlu0 %v826, 48
      %v1980 = vpop.permute.xlu0 %1979
      %1981 = vrot.lane.b32.xlu0 %v831, 48
      %v1982 = vpop.permute.xlu0 %1981
      %1983 = vrot.lane.b32.xlu0 %v834, 48
      %v1984 = vpop.permute.xlu0 %1983
      %1985 = vrot.lane.b32.xlu0 %v839, 48
      %v1986 = vpop.permute.xlu0 %1985
      %1987 = vrot.lane.b32.xlu0 %v842, 48
      %v1988 = vpop.permute.xlu0 %1987
      %1989 = vrot.lane.b32.xlu0 %v847, 48
      %v1990 = vpop.permute.xlu0 %1989
      %1991 = vrot.lane.b32.xlu0 %v850, 48
      %v1992 = vpop.permute.xlu0 %1991
      %v2001 = vadd.f32 %v1969, %v1978
      %v2002 = vadd.f32 %v1970, %v1980
      %v2003 = vadd.f32 %v1971, %v1982
      %v2004 = vadd.f32 %v1972, %v1984
      %v2005 = vadd.f32 %v1973, %v1986
      %v2006 = vadd.f32 %v1974, %v1988
      %v2007 = vadd.f32 %v1975, %v1990
      %v2008 = vadd.f32 %v1976, %v1992
      %v2009 = vtanh.pop %v2001
      %v2010 = vtanh.pop %v2002
      %v2011 = vtanh.pop %v2003
      %v2012 = vtanh.pop %v2004
      %v2013 = vtanh.pop %v2005
      %v2014 = vtanh.pop %v2006
      %v2015 = vtanh.pop %v2007
      %v2016 = vtanh.pop %v2008
      %2025 = vrot.lane.b32.xlu0 %v2009, 8
      %v2026 = vpop.permute.xlu0 %2025
      %2027 = vrot.lane.b32.xlu0 %v2010, 8
      %v2028 = vpop.permute.xlu0 %2027
      %2029 = vrot.lane.b32.xlu0 %v2011, 8
      %v2030 = vpop.permute.xlu0 %2029
      %2031 = vrot.lane.b32.xlu0 %v2012, 8
      %v2032 = vpop.permute.xlu0 %2031
      %2033 = vrot.lane.b32.xlu0 %v2013, 8
      %v2034 = vpop.permute.xlu0 %2033
      %2035 = vrot.lane.b32.xlu0 %v2014, 8
      %v2036 = vpop.permute.xlu0 %2035
      %2037 = vrot.lane.b32.xlu0 %v2015, 8
      %v2038 = vpop.permute.xlu0 %2037
      %2039 = vrot.lane.b32.xlu0 %v2016, 8
      %v2040 = vpop.permute.xlu0 %2039
      %2049 = vst.msk [vmem:[%s1861] sm:$0xff] %vm1597, %v2026
      %2050 = vst.msk [vmem:[%s1861 + $0x10] sm:$0xff] %vm1597, %v2028
      %2051 = vst.msk [vmem:[%s1861 + $0x20] sm:$0xff] %vm1597, %v2030
      %2052 = vst.msk [vmem:[%s1861 + $0x30] sm:$0xff] %vm1597, %v2032
      %2053 = vst.msk [vmem:[%s1861 + $0x40] sm:$0xff] %vm1597, %v2034
      %2054 = vst.msk [vmem:[%s1861 + $0x50] sm:$0xff] %vm1597, %v2036
      %2055 = vst.msk [vmem:[%s1861 + $0x60] sm:$0xff] %vm1597, %v2038
      %2056 = vst.msk [vmem:[%s1861 + $0x70] sm:$0xff] %vm1597, %v2040
      %p2057 = scmp.lt.s32.totalorder %s15, 1
      %s2058 = scalar_select %p2057, %s15, 1
      %s2059 = smul.addr %s2058, 16
      %s2060 = smul.addr %s2059, 8
      %s2061 = scalar_lea.vmem %s4, %s2060
      // Predicated region
      $region37: #{generator_forward.11} parent=35 // pred_check
        %p2062 = pneg %p122
      $region38: #{generator_forward.11} parent=35 // pred_check_branch
        %2064 = sbr.rel (%p2062) target = $region40
      $region39: #{generator_forward.11} parent=35 // pred_region
        _
      $region40: #{generator_forward.11} parent=35 // pred_fallthru
        _
    $region36: #{generator_forward.11} parent=5 // pred_fallthru
      _
    %p2065 = scmp.le.s32.totalorder 2, %s10
    // Predicated region
    $region41: #{generator_forward.11} parent=5 // pred_check
      %p2066 = pneg %p2065
    $region42: #{generator_forward.11} parent=5 // pred_check_branch
      %2068 = sbr.rel (%p2066) target = $region44
    $region43: #{generator_forward.11} parent=5 // pred_region
      %s2069 = ssub.s32 %s10, 2
      // Predicated region
      $region45: #{generator_forward.11} parent=43 // pred_check
        %p2070 = pneg %p128
      $region46: #{generator_forward.11} parent=43 // pred_check_branch
        %2072 = sbr.rel (%p2070) target = $region48
      $region47: #{generator_forward.11} parent=43 // pred_region
        %p2073 = scmp.lt.s32.totalorder %s16, 1
        %s2074 = scalar_select %p2073, %s16, 1
        %s2075 = smul.addr %s2074, 16
        %s2076 = smul.addr %s2075, 8
        %s2077 = scalar_lea.vmem %s4, %s2076
      $region48: #{generator_forward.11} parent=43 // pred_fallthru
        _
    $region44: #{generator_forward.11} parent=5 // pred_fallthru
      _
  $region6: #{generator_forward.11} parent=0 // loop_footer
    %s14 = sadd.s32 1, %s10
  $region7: #{generator_forward.11} parent=0 // loop_footer_branch
    %9 = sbr.rel target = $region3
  $region8: #{generator_forward.11} parent=0 // loop_exit
    _

</llo_original>
